<compile_context>
chip_gen: v5e
topology: v5e:2x2
jax: 0.10.0
libtpu: 0.0.40
codegen_flags: <defaults>
</compile_context>

<pallas_src>
import functools

import jax
import jax.numpy as jnp
from jax.experimental import pallas as pl
from jax.experimental.pallas import tpu as pltpu

LANE = 128
CHANS = (32, 64, 128, 128)          # conv output channels, as in the PyTorch model


# ----------------------------------------------------------------------------
# In-kernel building blocks (operate on 2D refs / values; all slices are
# contiguous static row windows, column pooling uses stride-2 ref reads).
# ----------------------------------------------------------------------------
def _conv_relu_bn(buf_ref, w_ref, p_ref, H, W):
    """3x3 conv (pad=1) + bias + ReLU + eval-mode BN on the flat padded grid.

    `buf_ref` holds the zero-padded image flattened row-major with a 1-row lead
    halo: buffer row (1 + y*(W+2) + x) == padded pixel (y, x).  Returns the
    activation on the (H, W+2) output grid as (H*(W+2), Cout) f32; columns 0
    and W+1 of every output row are garbage and are dropped by the pooling.
    """
    Wp = W + 2
    M = H * Wp
    acc = None
    for t in range(9):
        dy, dx = divmod(t, 3)
        t0 = dy * Wp + dx
        lhs = buf_ref[t0:t0 + M, :]                          # contiguous (M, Cin) bf16
        part = jnp.dot(lhs, w_ref[t], preferred_element_type=jnp.float32)
        acc = part if acc is None else acc + part
    p = p_ref[...]                                           # (3, Cout): bias, scale, shift
    return jnp.maximum(acc + p[0:1, :], 0.0) * p[1:2, :] + p[2:3, :]


def _maxpool2(y, rp_ref, H, W):
    """2x2 max-pool of the (H, W+2)-grid activation -> (H//2 * W//2, C) f32."""
    Wp = W + 2
    Ho, Wo = H // 2, W // 2
    for i in range(Ho):                                      # pool row pairs, drop halo cols
        top = y[(2 * i) * Wp + 1:(2 * i) * Wp + 1 + W, :]
        bot = y[(2 * i + 1) * Wp + 1:(2 * i + 1) * Wp + 1 + W, :]
        rp_ref[i * W:(i + 1) * W, :] = jnp.maximum(top, bot)
    n = Ho * Wo
    even = rp_ref[pl.ds(0, n, 2), :]                         # image columns 0,2,4,...
    odd = rp_ref[pl.ds(1, n, 2), :]                          # image columns 1,3,5,...
    return jnp.maximum(even, odd)                            # (Ho*Wo, C), row-major (i, j)


def _stage_padded_flat(pad_ref, pooled, Ho, Wo):
    """Write pooled (Ho*Wo, C) f32 into the next layer's flat padded bf16 buffer."""
    Wp = Wo + 2
    pad_ref[...] = jnp.zeros(pad_ref.shape, pad_ref.dtype)   # zero border + halo rows
    v = pooled.astype(pad_ref.dtype)
    for r in range(Ho):
        dst = 1 + (r + 1) * Wp + 1                           # interior row r, col 1
        pad_ref[dst:dst + Wo, :] = v[r * Wo:(r + 1) * Wo, :]


# ----------------------------------------------------------------------------
# The fused whole-model kernel (one image per grid step).
# ----------------------------------------------------------------------------
def _model_kernel(x_ref,
                  wc1, pc1, wc2, pc2, wc3, pc3, wc4, pc4,
                  wf1, pf1, wf2, bf2,
                  o_ref,
                  pad2, pad3, pad4, rp1, rp2, rp3, rp4,
                  *, H, W):
    c4 = CHANS[-1]

    # Conv block 1: reads the pre-padded, pre-flattened bf16 input block directly.
    y = _conv_relu_bn(x_ref, wc1, pc1, H, W)
    p = _maxpool2(y, rp1, H, W)
    _stage_padded_flat(pad2, p, H // 2, W // 2)

    # Conv block 2
    y = _conv_relu_bn(pad2, wc2, pc2, H // 2, W // 2)
    p = _maxpool2(y, rp2, H // 2, W // 2)
    _stage_padded_flat(pad3, p, H // 4, W // 4)

    # Conv block 3
    y = _conv_relu_bn(pad3, wc3, pc3, H // 4, W // 4)
    p = _maxpool2(y, rp3, H // 4, W // 4)
    _stage_padded_flat(pad4, p, H // 8, W // 8)

    # Conv block 4
    y = _conv_relu_bn(pad4, wc4, pc4, H // 8, W // 8)
    p = _maxpool2(y, rp4, H // 8, W // 8)                    # (S4, 128), S4=(H//16)*(W//16)

    # FC head: Flatten -> [Dropout=id] -> Linear -> ReLU -> BatchNorm1d
    #          -> [Dropout=id] -> Linear.
    # TODO(synk): Dropout(0.5) omitted - inference/eval semantics (identity).
    s4 = (H // 16) * (W // 16)
    xflat = p if s4 == 1 else p.reshape(1, s4 * c4)          # (h, w, c) flatten order
    xflat = xflat.astype(jnp.bfloat16)
    # TODO(synk): for large inputs (e.g. 224x224 -> flat_dim 25088) K-tile this
    # matmul with an f32 VMEM accumulator so the w1 block fits v7x's 64 MiB VMEM.
    h = jnp.dot(xflat, wf1[...], preferred_element_type=jnp.float32)
    pf = pf1[...]                                            # (3, 512): bias, scale, shift
    h = jnp.maximum(h + pf[0:1, :], 0.0) * pf[1:2, :] + pf[2:3, :]
    logits = jnp.dot(h.astype(jnp.bfloat16), wf2[...],
                     preferred_element_type=jnp.float32) + bf2[...]
    o_ref[0] = logits.astype(o_ref.dtype)                    # lane-dense (1, 128) store


# ----------------------------------------------------------------------------
# Parameters (eval-mode BN folded into per-channel scale/shift).
# ----------------------------------------------------------------------------
def bn_fold(gamma, beta, mean, var, eps=1e-5):
    scale = gamma / jnp.sqrt(var + eps)
    shift = beta - mean * scale
    return scale, shift


def _prep_conv(key, cin, cout):
    kw, kb = jax.random.split(key)
    w = jax.random.normal(kw, (cout, cin, 3, 3), jnp.float32) * 0.05     # PyTorch OIHW
    b = jax.random.normal(kb, (cout,), jnp.float32) * 0.05
    # BatchNorm2d at PyTorch init, eval mode: gamma=1, beta=0, mean=0, var=1.
    scale, shift = bn_fold(jnp.ones((cout,)), jnp.zeros((cout,)),
                           jnp.zeros((cout,)), jnp.ones((cout,)))
    # (cout, cin, 3, 3) -> per-tap (9, cin, cout), bf16 for the MXU.
    w_taps = jnp.transpose(w, (2, 3, 1, 0)).reshape(9, cin, cout).astype(jnp.bfloat16)
    p = jnp.stack([b, scale, shift]).astype(jnp.float32)                 # (3, cout)
    return w_taps, p


def init_params(key, input_shape, num_classes):
    cin, H, W = input_shape
    assert H % 16 == 0 and W % 16 == 0
    keys = jax.random.split(key, 5)
    chans = (cin,) + CHANS
    conv = [_prep_conv(keys[i], chans[i], chans[i + 1]) for i in range(4)]

    hc, wc = H // 16, W // 16
    flat_dim = CHANS[-1] * hc * wc
    k1, k2, k3, k4 = jax.random.split(keys[4], 4)
    w1 = jax.random.normal(k1, (flat_dim, 512), jnp.float32) * 0.05
    b1 = jax.random.normal(k2, (512,), jnp.float32) * 0.05
    s1, t1 = bn_fold(jnp.ones((512,)), jnp.zeros((512,)),
                     jnp.zeros((512,)), jnp.ones((512,)))
    # Permute fc1 rows from the PyTorch flatten order (c, h, w) to the kernel's
    # (h, w, c) order (identity when hc == wc == 1).
    w1 = w1.reshape(CHANS[-1], hc, wc, 512).transpose(1, 2, 0, 3).reshape(flat_dim, 512)
    w2 = jax.random.normal(k3, (512, num_classes), jnp.float32) * 0.05
    b2 = jax.random.normal(k4, (num_classes,), jnp.float32) * 0.05
    ncp = ((num_classes + LANE - 1) // LANE) * LANE           # lane-dense classifier
    w2p = jnp.zeros((512, ncp), jnp.float32).at[:, :num_classes].set(w2)
    b2p = jnp.zeros((1, ncp), jnp.float32).at[0, :num_classes].set(b2)
    fc = (w1.astype(jnp.bfloat16),
          jnp.stack([b1, s1, t1]).astype(jnp.float32),        # (3, 512)
          w2p.astype(jnp.bfloat16), b2p)
    return {"conv": conv, "fc": fc, "num_classes": num_classes,
            "input_shape": input_shape}


# ----------------------------------------------------------------------------
# Forward pass (matches CustomModel.forward, eval mode).
# ----------------------------------------------------------------------------
def custom_model_forward(params, x_nchw):
    cin, H, W = params["input_shape"]
    n = x_nchw.shape[0]
    nc = params["num_classes"]
    c1, c2, c3, c4 = CHANS
    Hp, Wp = H + 2, W + 2

    # KB-sized one-time prep of the network input only: NCHW -> NHWC, zero-pad
    # the spatial ring, flatten the padded grid row-major, add one halo row on
    # each end, cast bf16.  All inter-layer activations stay in VMEM.
    x = jnp.transpose(x_nchw, (0, 2, 3, 1)).astype(jnp.bfloat16)
    x = jnp.pad(x, ((0, 0), (1, 1), (1, 1), (0, 0)))
    x = x.reshape(n, Hp * Wp, cin)
    x = jnp.pad(x, ((0, 0), (1, 1), (0, 0)))                  # (n, Hp*Wp + 2, cin)

    (wc1, pc1), (wc2, pc2), (wc3, pc3), (wc4, pc4) = params["conv"]
    wf1, pf1, wf2, bf2 = params["fc"]
    ncp = bf2.shape[1]

    def const_spec(a):
        nd = a.ndim
        return pl.BlockSpec(a.shape, lambda b: (0,) * nd)     # resident block

    scratch = [
        # flat padded bf16 activations (with 1-row halo at each end)
        pltpu.VMEM(((H // 2 + 2) * (W // 2 + 2) + 2, c1), jnp.bfloat16),
        pltpu.VMEM(((H // 4 + 2) * (W // 4 + 2) + 2, c2), jnp.bfloat16),
        pltpu.VMEM(((H // 8 + 2) * (W // 8 + 2) + 2, c3), jnp.bfloat16),
        # row-pooled f32 staging buffers for the column pooling
        pltpu.VMEM(((H // 2) * W, c1), jnp.float32),
        pltpu.VMEM(((H // 4) * (W // 2), c2), jnp.float32),
        pltpu.VMEM(((H // 8) * (W // 4), c3), jnp.float32),
        pltpu.VMEM(((H // 16) * (W // 8), c4), jnp.float32),
    ]

    kernel = functools.partial(_model_kernel, H=H, W=W)
    out = pl.pallas_call(
        kernel,
        out_shape=jax.ShapeDtypeStruct((n, 1, ncp), jnp.float32),
        grid=(n,),
        in_specs=[
            pl.BlockSpec((None, Hp * Wp + 2, cin), lambda b: (b, 0, 0)),
            const_spec(wc1), const_spec(pc1),
            const_spec(wc2), const_spec(pc2),
            const_spec(wc3), const_spec(pc3),
            const_spec(wc4), const_spec(pc4),
            const_spec(wf1), const_spec(pf1),
            const_spec(wf2), const_spec(bf2),
        ],
        out_specs=pl.BlockSpec((1, 1, ncp), lambda b: (b, 0, 0)),
        scratch_shapes=scratch,
        compiler_params=pltpu.CompilerParams(
            dimension_semantics=("parallel",)),
    )(x, wc1, pc1, wc2, pc2, wc3, pc3, wc4, pc4, wf1, pf1, wf2, bf2)

    return out[:, 0, :nc]


if __name__ == "__main__":
    input_shape = (4, 16, 16)     # (channels, H, W) - H, W divisible by 16
    num_classes = 10
    batch = 2

    key = jax.random.PRNGKey(0)
    kp, kx = jax.random.split(key)
    params = init_params(kp, input_shape, num_classes)
    x = jax.random.normal(kx, (batch,) + input_shape, jnp.float32)   # NCHW

    fwd = jax.jit(functools.partial(custom_model_forward, params))
    out = fwd(x)
    jax.block_until_ready(out)
    assert out.shape == (batch, num_classes), out.shape
    assert bool(jnp.all(jnp.isfinite(out)))
    print("KERNEL_OK")
</pallas_src>

<mosaic_0001>
module attributes {stable_mosaic.version = 11 : i64} {
  func.func @_model_kernel(%arg0: i32, %arg1: memref<1x326x4xbf16, #tpu.memory_space<vmem>>, %arg2: memref<9x4x32xbf16, #tpu.memory_space<vmem>>, %arg3: memref<3x32xf32, #tpu.memory_space<vmem>>, %arg4: memref<9x32x64xbf16, #tpu.memory_space<vmem>>, %arg5: memref<3x64xf32, #tpu.memory_space<vmem>>, %arg6: memref<9x64x128xbf16, #tpu.memory_space<vmem>>, %arg7: memref<3x128xf32, #tpu.memory_space<vmem>>, %arg8: memref<9x128x128xbf16, #tpu.memory_space<vmem>>, %arg9: memref<3x128xf32, #tpu.memory_space<vmem>>, %arg10: memref<128x512xbf16, #tpu.memory_space<vmem>>, %arg11: memref<3x512xf32, #tpu.memory_space<vmem>>, %arg12: memref<512x128xbf16, #tpu.memory_space<vmem>>, %arg13: memref<1x128xf32, #tpu.memory_space<vmem>>, %arg14: memref<1x1x128xf32, #tpu.memory_space<vmem>>, %arg15: memref<102x32xbf16, #tpu.memory_space<vmem>>, %arg16: memref<38x64xbf16, #tpu.memory_space<vmem>>, %arg17: memref<18x128xbf16, #tpu.memory_space<vmem>>, %arg18: memref<128x32xf32, #tpu.memory_space<vmem>>, %arg19: memref<32x64xf32, #tpu.memory_space<vmem>>, %arg20: memref<8x128xf32, #tpu.memory_space<vmem>>, %arg21: memref<2x128xf32, #tpu.memory_space<vmem>>) attributes {dimension_semantics = [#tpu.dimension_semantics<parallel>], iteration_bounds = array<i64: 2>, scalar_prefetch = 0 : i64, scratch_operands = 7 : i64, tpu.core_type = #tpu.core_type<tc>, window_params = [{transform_indices = @transform_0, window_bounds = array<i64: 1, 326, 4>}, {pipeline_mode = #tpu.pipeline_mode<synchronous>, transform_indices = @transform_1, window_bounds = array<i64: 9, 4, 32>}, {pipeline_mode = #tpu.pipeline_mode<synchronous>, transform_indices = @transform_2, window_bounds = array<i64: 3, 32>}, {pipeline_mode = #tpu.pipeline_mode<synchronous>, transform_indices = @transform_3, window_bounds = array<i64: 9, 32, 64>}, {pipeline_mode = #tpu.pipeline_mode<synchronous>, transform_indices = @transform_4, window_bounds = array<i64: 3, 64>}, {pipeline_mode = #tpu.pipeline_mode<synchronous>, transform_indices = @transform_5, window_bounds = array<i64: 9, 64, 128>}, {pipeline_mode = #tpu.pipeline_mode<synchronous>, transform_indices = @transform_6, window_bounds = array<i64: 3, 128>}, {pipeline_mode = #tpu.pipeline_mode<synchronous>, transform_indices = @transform_7, window_bounds = array<i64: 9, 128, 128>}, {pipeline_mode = #tpu.pipeline_mode<synchronous>, transform_indices = @transform_8, window_bounds = array<i64: 3, 128>}, {pipeline_mode = #tpu.pipeline_mode<synchronous>, transform_indices = @transform_9, window_bounds = array<i64: 128, 512>}, {pipeline_mode = #tpu.pipeline_mode<synchronous>, transform_indices = @transform_10, window_bounds = array<i64: 3, 512>}, {pipeline_mode = #tpu.pipeline_mode<synchronous>, transform_indices = @transform_11, window_bounds = array<i64: 512, 128>}, {pipeline_mode = #tpu.pipeline_mode<synchronous>, transform_indices = @transform_12, window_bounds = array<i64: 1, 128>}, {transform_indices = @transform_13, window_bounds = array<i64: 1, 1, 128>}]} {
    %c0 = arith.constant 0 : index
    %c0_0 = arith.constant 0 : index
    %c0_1 = arith.constant 0 : index
    %0 = vector.load %arg1[%c0, %c0_0, %c0_1] : memref<1x326x4xbf16, #tpu.memory_space<vmem>>, vector<1x288x4xbf16>
    %1 = vector.shape_cast %0 : vector<1x288x4xbf16> to vector<288x4xbf16>
    %c0_2 = arith.constant 0 : index
    %c0_3 = arith.constant 0 : index
    %c0_4 = arith.constant 0 : index
    %2 = vector.load %arg2[%c0_2, %c0_3, %c0_4] : memref<9x4x32xbf16, #tpu.memory_space<vmem>>, vector<1x4x32xbf16>
    %3 = vector.shape_cast %2 : vector<1x4x32xbf16> to vector<4x32xbf16>
    %cst = arith.constant dense<0.000000e+00> : vector<288x32xf32>
    %4 = tpu.matmul %1, %3, %cst {dimension_numbers = #tpu.dot_dimension_numbers<[1], [0], [0], [1], [0, 0, 1, 1], [], []>} : vector<288x4xbf16>, vector<4x32xbf16>, vector<288x32xf32> -> vector<288x32xf32>
    %c0_5 = arith.constant 0 : index
    %c1 = arith.constant 1 : index
    %c0_6 = arith.constant 0 : index
    %5 = vector.load %arg1[%c0_5, %c1, %c0_6] : memref<1x326x4xbf16, #tpu.memory_space<vmem>>, vector<1x288x4xbf16>
    %6 = vector.shape_cast %5 : vector<1x288x4xbf16> to vector<288x4xbf16>
    %c1_7 = arith.constant 1 : index
    %c0_8 = arith.constant 0 : index
    %c0_9 = arith.constant 0 : index
    %7 = vector.load %arg2[%c1_7, %c0_8, %c0_9] : memref<9x4x32xbf16, #tpu.memory_space<vmem>>, vector<1x4x32xbf16>
    %8 = vector.shape_cast %7 : vector<1x4x32xbf16> to vector<4x32xbf16>
    %cst_10 = arith.constant dense<0.000000e+00> : vector<288x32xf32>
    %9 = tpu.matmul %6, %8, %cst_10 {dimension_numbers = #tpu.dot_dimension_numbers<[1], [0], [0], [1], [0, 0, 1, 1], [], []>} : vector<288x4xbf16>, vector<4x32xbf16>, vector<288x32xf32> -> vector<288x32xf32>
    %10 = arith.addf %4, %9 : vector<288x32xf32>
    %c0_11 = arith.constant 0 : index
    %c2 = arith.constant 2 : index
    %c0_12 = arith.constant 0 : index
    %11 = vector.load %arg1[%c0_11, %c2, %c0_12] : memref<1x326x4xbf16, #tpu.memory_space<vmem>>, vector<1x288x4xbf16>
    %12 = vector.shape_cast %11 : vector<1x288x4xbf16> to vector<288x4xbf16>
    %c2_13 = arith.constant 2 : index
    %c0_14 = arith.constant 0 : index
    %c0_15 = arith.constant 0 : index
    %13 = vector.load %arg2[%c2_13, %c0_14, %c0_15] : memref<9x4x32xbf16, #tpu.memory_space<vmem>>, vector<1x4x32xbf16>
    %14 = vector.shape_cast %13 : vector<1x4x32xbf16> to vector<4x32xbf16>
    %cst_16 = arith.constant dense<0.000000e+00> : vector<288x32xf32>
    %15 = tpu.matmul %12, %14, %cst_16 {dimension_numbers = #tpu.dot_dimension_numbers<[1], [0], [0], [1], [0, 0, 1, 1], [], []>} : vector<288x4xbf16>, vector<4x32xbf16>, vector<288x32xf32> -> vector<288x32xf32>
    %16 = arith.addf %10, %15 : vector<288x32xf32>
    %c0_17 = arith.constant 0 : index
    %c18 = arith.constant 18 : index
    %c0_18 = arith.constant 0 : index
    %17 = vector.load %arg1[%c0_17, %c18, %c0_18] : memref<1x326x4xbf16, #tpu.memory_space<vmem>>, vector<1x288x4xbf16>
    %18 = vector.shape_cast %17 : vector<1x288x4xbf16> to vector<288x4xbf16>
    %c3 = arith.constant 3 : index
    %c0_19 = arith.constant 0 : index
    %c0_20 = arith.constant 0 : index
    %19 = vector.load %arg2[%c3, %c0_19, %c0_20] : memref<9x4x32xbf16, #tpu.memory_space<vmem>>, vector<1x4x32xbf16>
    %20 = vector.shape_cast %19 : vector<1x4x32xbf16> to vector<4x32xbf16>
    %cst_21 = arith.constant dense<0.000000e+00> : vector<288x32xf32>
    %21 = tpu.matmul %18, %20, %cst_21 {dimension_numbers = #tpu.dot_dimension_numbers<[1], [0], [0], [1], [0, 0, 1, 1], [], []>} : vector<288x4xbf16>, vector<4x32xbf16>, vector<288x32xf32> -> vector<288x32xf32>
    %22 = arith.addf %16, %21 : vector<288x32xf32>
    %c0_22 = arith.constant 0 : index
    %c19 = arith.constant 19 : index
    %c0_23 = arith.constant 0 : index
    %23 = vector.load %arg1[%c0_22, %c19, %c0_23] : memref<1x326x4xbf16, #tpu.memory_space<vmem>>, vector<1x288x4xbf16>
    %24 = vector.shape_cast %23 : vector<1x288x4xbf16> to vector<288x4xbf16>
    %c4 = arith.constant 4 : index
    %c0_24 = arith.constant 0 : index
    %c0_25 = arith.constant 0 : index
    %25 = vector.load %arg2[%c4, %c0_24, %c0_25] : memref<9x4x32xbf16, #tpu.memory_space<vmem>>, vector<1x4x32xbf16>
    %26 = vector.shape_cast %25 : vector<1x4x32xbf16> to vector<4x32xbf16>
    %cst_26 = arith.constant dense<0.000000e+00> : vector<288x32xf32>
    %27 = tpu.matmul %24, %26, %cst_26 {dimension_numbers = #tpu.dot_dimension_numbers<[1], [0], [0], [1], [0, 0, 1, 1], [], []>} : vector<288x4xbf16>, vector<4x32xbf16>, vector<288x32xf32> -> vector<288x32xf32>
    %28 = arith.addf %22, %27 : vector<288x32xf32>
    %c0_27 = arith.constant 0 : index
    %c20 = arith.constant 20 : index
    %c0_28 = arith.constant 0 : index
    %29 = vector.load %arg1[%c0_27, %c20, %c0_28] : memref<1x326x4xbf16, #tpu.memory_space<vmem>>, vector<1x288x4xbf16>
    %30 = vector.shape_cast %29 : vector<1x288x4xbf16> to vector<288x4xbf16>
    %c5 = arith.constant 5 : index
    %c0_29 = arith.constant 0 : index
    %c0_30 = arith.constant 0 : index
    %31 = vector.load %arg2[%c5, %c0_29, %c0_30] : memref<9x4x32xbf16, #tpu.memory_space<vmem>>, vector<1x4x32xbf16>
    %32 = vector.shape_cast %31 : vector<1x4x32xbf16> to vector<4x32xbf16>
    %cst_31 = arith.constant dense<0.000000e+00> : vector<288x32xf32>
    %33 = tpu.matmul %30, %32, %cst_31 {dimension_numbers = #tpu.dot_dimension_numbers<[1], [0], [0], [1], [0, 0, 1, 1], [], []>} : vector<288x4xbf16>, vector<4x32xbf16>, vector<288x32xf32> -> vector<288x32xf32>
    %34 = arith.addf %28, %33 : vector<288x32xf32>
    %c0_32 = arith.constant 0 : index
    %c36 = arith.constant 36 : index
    %c0_33 = arith.constant 0 : index
    %35 = vector.load %arg1[%c0_32, %c36, %c0_33] : memref<1x326x4xbf16, #tpu.memory_space<vmem>>, vector<1x288x4xbf16>
    %36 = vector.shape_cast %35 : vector<1x288x4xbf16> to vector<288x4xbf16>
    %c6 = arith.constant 6 : index
    %c0_34 = arith.constant 0 : index
    %c0_35 = arith.constant 0 : index
    %37 = vector.load %arg2[%c6, %c0_34, %c0_35] : memref<9x4x32xbf16, #tpu.memory_space<vmem>>, vector<1x4x32xbf16>
    %38 = vector.shape_cast %37 : vector<1x4x32xbf16> to vector<4x32xbf16>
    %cst_36 = arith.constant dense<0.000000e+00> : vector<288x32xf32>
    %39 = tpu.matmul %36, %38, %cst_36 {dimension_numbers = #tpu.dot_dimension_numbers<[1], [0], [0], [1], [0, 0, 1, 1], [], []>} : vector<288x4xbf16>, vector<4x32xbf16>, vector<288x32xf32> -> vector<288x32xf32>
    %40 = arith.addf %34, %39 : vector<288x32xf32>
    %c0_37 = arith.constant 0 : index
    %c37 = arith.constant 37 : index
    %c0_38 = arith.constant 0 : index
    %41 = vector.load %arg1[%c0_37, %c37, %c0_38] : memref<1x326x4xbf16, #tpu.memory_space<vmem>>, vector<1x288x4xbf16>
    %42 = vector.shape_cast %41 : vector<1x288x4xbf16> to vector<288x4xbf16>
    %c7 = arith.constant 7 : index
    %c0_39 = arith.constant 0 : index
    %c0_40 = arith.constant 0 : index
    %43 = vector.load %arg2[%c7, %c0_39, %c0_40] : memref<9x4x32xbf16, #tpu.memory_space<vmem>>, vector<1x4x32xbf16>
    %44 = vector.shape_cast %43 : vector<1x4x32xbf16> to vector<4x32xbf16>
    %cst_41 = arith.constant dense<0.000000e+00> : vector<288x32xf32>
    %45 = tpu.matmul %42, %44, %cst_41 {dimension_numbers = #tpu.dot_dimension_numbers<[1], [0], [0], [1], [0, 0, 1, 1], [], []>} : vector<288x4xbf16>, vector<4x32xbf16>, vector<288x32xf32> -> vector<288x32xf32>
    %46 = arith.addf %40, %45 : vector<288x32xf32>
    %c0_42 = arith.constant 0 : index
    %c38 = arith.constant 38 : index
    %c0_43 = arith.constant 0 : index
    %47 = vector.load %arg1[%c0_42, %c38, %c0_43] : memref<1x326x4xbf16, #tpu.memory_space<vmem>>, vector<1x288x4xbf16>
    %48 = vector.shape_cast %47 : vector<1x288x4xbf16> to vector<288x4xbf16>
    %c8 = arith.constant 8 : index
    %c0_44 = arith.constant 0 : index
    %c0_45 = arith.constant 0 : index
    %49 = vector.load %arg2[%c8, %c0_44, %c0_45] : memref<9x4x32xbf16, #tpu.memory_space<vmem>>, vector<1x4x32xbf16>
    %50 = vector.shape_cast %49 : vector<1x4x32xbf16> to vector<4x32xbf16>
    %cst_46 = arith.constant dense<0.000000e+00> : vector<288x32xf32>
    %51 = tpu.matmul %48, %50, %cst_46 {dimension_numbers = #tpu.dot_dimension_numbers<[1], [0], [0], [1], [0, 0, 1, 1], [], []>} : vector<288x4xbf16>, vector<4x32xbf16>, vector<288x32xf32> -> vector<288x32xf32>
    %52 = arith.addf %46, %51 : vector<288x32xf32>
    %c0_47 = arith.constant 0 : index
    %c0_48 = arith.constant 0 : index
    %53 = vector.load %arg3[%c0_47, %c0_48] : memref<3x32xf32, #tpu.memory_space<vmem>>, vector<3x32xf32>
    %54 = vector.extract_strided_slice %53 {offsets = [0, 0], sizes = [1, 32], strides = [1, 1]} : vector<3x32xf32> to vector<1x32xf32>
    %55 = vector.broadcast %54 : vector<1x32xf32> to vector<288x32xf32>
    %56 = arith.addf %52, %55 : vector<288x32xf32>
    %cst_49 = arith.constant 0.000000e+00 : f32
    %57 = vector.broadcast %cst_49 : f32 to vector<288x32xf32>
    %58 = arith.maximumf %56, %57 : vector<288x32xf32>
    %59 = vector.extract_strided_slice %53 {offsets = [1, 0], sizes = [1, 32], strides = [1, 1]} : vector<3x32xf32> to vector<1x32xf32>
    %60 = vector.broadcast %59 : vector<1x32xf32> to vector<288x32xf32>
    %61 = arith.mulf %58, %60 : vector<288x32xf32>
    %62 = vector.extract_strided_slice %53 {offsets = [2, 0], sizes = [1, 32], strides = [1, 1]} : vector<3x32xf32> to vector<1x32xf32>
    %63 = vector.broadcast %62 : vector<1x32xf32> to vector<288x32xf32>
    %64 = arith.addf %61, %63 : vector<288x32xf32>
    %65 = vector.extract_strided_slice %64 {offsets = [1, 0], sizes = [16, 32], strides = [1, 1]} : vector<288x32xf32> to vector<16x32xf32>
    %66 = vector.extract_strided_slice %64 {offsets = [19, 0], sizes = [16, 32], strides = [1, 1]} : vector<288x32xf32> to vector<16x32xf32>
    %67 = arith.maximumf %65, %66 : vector<16x32xf32>
    %c0_50 = arith.constant 0 : index
    %c0_51 = arith.constant 0 : index
    %68 = vector.load %arg18[%c0_50, %c0_51] : memref<128x32xf32, #tpu.memory_space<vmem>>, vector<16x32xf32>
    tpu.vector_store %arg18[%c0_50, %c0_51], %67 {strides = array<i32>} : memref<128x32xf32, #tpu.memory_space<vmem>>, vector<16x32xf32>,
    %69 = vector.extract_strided_slice %64 {offsets = [37, 0], sizes = [16, 32], strides = [1, 1]} : vector<288x32xf32> to vector<16x32xf32>
    %70 = vector.extract_strided_slice %64 {offsets = [55, 0], sizes = [16, 32], strides = [1, 1]} : vector<288x32xf32> to vector<16x32xf32>
    %71 = arith.maximumf %69, %70 : vector<16x32xf32>
    %c16 = arith.constant 16 : index
    %c0_52 = arith.constant 0 : index
    %72 = vector.load %arg18[%c16, %c0_52] : memref<128x32xf32, #tpu.memory_space<vmem>>, vector<16x32xf32>
    tpu.vector_store %arg18[%c16, %c0_52], %71 {strides = array<i32>} : memref<128x32xf32, #tpu.memory_space<vmem>>, vector<16x32xf32>,
    %73 = vector.extract_strided_slice %64 {offsets = [73, 0], sizes = [16, 32], strides = [1, 1]} : vector<288x32xf32> to vector<16x32xf32>
    %74 = vector.extract_strided_slice %64 {offsets = [91, 0], sizes = [16, 32], strides = [1, 1]} : vector<288x32xf32> to vector<16x32xf32>
    %75 = arith.maximumf %73, %74 : vector<16x32xf32>
    %c32 = arith.constant 32 : index
    %c0_53 = arith.constant 0 : index
    %76 = vector.load %arg18[%c32, %c0_53] : memref<128x32xf32, #tpu.memory_space<vmem>>, vector<16x32xf32>
    tpu.vector_store %arg18[%c32, %c0_53], %75 {strides = array<i32>} : memref<128x32xf32, #tpu.memory_space<vmem>>, vector<16x32xf32>,
    %77 = vector.extract_strided_slice %64 {offsets = [109, 0], sizes = [16, 32], strides = [1, 1]} : vector<288x32xf32> to vector<16x32xf32>
    %78 = vector.extract_strided_slice %64 {offsets = [127, 0], sizes = [16, 32], strides = [1, 1]} : vector<288x32xf32> to vector<16x32xf32>
    %79 = arith.maximumf %77, %78 : vector<16x32xf32>
    %c48 = arith.constant 48 : index
    %c0_54 = arith.constant 0 : index
    %80 = vector.load %arg18[%c48, %c0_54] : memref<128x32xf32, #tpu.memory_space<vmem>>, vector<16x32xf32>
    tpu.vector_store %arg18[%c48, %c0_54], %79 {strides = array<i32>} : memref<128x32xf32, #tpu.memory_space<vmem>>, vector<16x32xf32>,
    %81 = vector.extract_strided_slice %64 {offsets = [145, 0], sizes = [16, 32], strides = [1, 1]} : vector<288x32xf32> to vector<16x32xf32>
    %82 = vector.extract_strided_slice %64 {offsets = [163, 0], sizes = [16, 32], strides = [1, 1]} : vector<288x32xf32> to vector<16x32xf32>
    %83 = arith.maximumf %81, %82 : vector<16x32xf32>
    %c64 = arith.constant 64 : index
    %c0_55 = arith.constant 0 : index
    %84 = vector.load %arg18[%c64, %c0_55] : memref<128x32xf32, #tpu.memory_space<vmem>>, vector<16x32xf32>
    tpu.vector_store %arg18[%c64, %c0_55], %83 {strides = array<i32>} : memref<128x32xf32, #tpu.memory_space<vmem>>, vector<16x32xf32>,
    %85 = vector.extract_strided_slice %64 {offsets = [181, 0], sizes = [16, 32], strides = [1, 1]} : vector<288x32xf32> to vector<16x32xf32>
    %86 = vector.extract_strided_slice %64 {offsets = [199, 0], sizes = [16, 32], strides = [1, 1]} : vector<288x32xf32> to vector<16x32xf32>
    %87 = arith.maximumf %85, %86 : vector<16x32xf32>
    %c80 = arith.constant 80 : index
    %c0_56 = arith.constant 0 : index
    %88 = vector.load %arg18[%c80, %c0_56] : memref<128x32xf32, #tpu.memory_space<vmem>>, vector<16x32xf32>
    tpu.vector_store %arg18[%c80, %c0_56], %87 {strides = array<i32>} : memref<128x32xf32, #tpu.memory_space<vmem>>, vector<16x32xf32>,
    %89 = vector.extract_strided_slice %64 {offsets = [217, 0], sizes = [16, 32], strides = [1, 1]} : vector<288x32xf32> to vector<16x32xf32>
    %90 = vector.extract_strided_slice %64 {offsets = [235, 0], sizes = [16, 32], strides = [1, 1]} : vector<288x32xf32> to vector<16x32xf32>
    %91 = arith.maximumf %89, %90 : vector<16x32xf32>
    %c96 = arith.constant 96 : index
    %c0_57 = arith.constant 0 : index
    %92 = vector.load %arg18[%c96, %c0_57] : memref<128x32xf32, #tpu.memory_space<vmem>>, vector<16x32xf32>
    tpu.vector_store %arg18[%c96, %c0_57], %91 {strides = array<i32>} : memref<128x32xf32, #tpu.memory_space<vmem>>, vector<16x32xf32>,
    %93 = vector.extract_strided_slice %64 {offsets = [253, 0], sizes = [16, 32], strides = [1, 1]} : vector<288x32xf32> to vector<16x32xf32>
    %94 = vector.extract_strided_slice %64 {offsets = [271, 0], sizes = [16, 32], strides = [1, 1]} : vector<288x32xf32> to vector<16x32xf32>
    %95 = arith.maximumf %93, %94 : vector<16x32xf32>
    %c112 = arith.constant 112 : index
    %c0_58 = arith.constant 0 : index
    %96 = vector.load %arg18[%c112, %c0_58] : memref<128x32xf32, #tpu.memory_space<vmem>>, vector<16x32xf32>
    tpu.vector_store %arg18[%c112, %c0_58], %95 {strides = array<i32>} : memref<128x32xf32, #tpu.memory_space<vmem>>, vector<16x32xf32>,
    %c0_59 = arith.constant 0 : index
    %c0_60 = arith.constant 0 : index
    %97 = tpu.strided_load %arg18[%c0_59, %c0_60] {strides = array<i32: 2, 1>} : memref<128x32xf32, #tpu.memory_space<vmem>>, vector<64x32xf32>
    %c1_61 = arith.constant 1 : index
    %c0_62 = arith.constant 0 : index
    %98 = tpu.strided_load %arg18[%c1_61, %c0_62] {strides = array<i32: 2, 1>} : memref<128x32xf32, #tpu.memory_space<vmem>>, vector<64x32xf32>
    %99 = arith.maximumf %97, %98 : vector<64x32xf32>
    %cst_63 = arith.constant 0.000000e+00 : bf16
    %100 = vector.broadcast %cst_63 : bf16 to vector<102x32xbf16>
    %c0_64 = arith.constant 0 : index
    %c0_65 = arith.constant 0 : index
    %101 = vector.load %arg15[%c0_64, %c0_65] : memref<102x32xbf16, #tpu.memory_space<vmem>>, vector<102x32xbf16>
    tpu.vector_store %arg15[%c0_64, %c0_65], %100 {strides = array<i32>} : memref<102x32xbf16, #tpu.memory_space<vmem>>, vector<102x32xbf16>,
    %102 = arith.truncf %99 : vector<64x32xf32> to vector<64x32xbf16>
    %103 = vector.extract_strided_slice %102 {offsets = [0, 0], sizes = [8, 32], strides = [1, 1]} : vector<64x32xbf16> to vector<8x32xbf16>
    %c12 = arith.constant 12 : index
    %c0_66 = arith.constant 0 : index
    %104 = vector.load %arg15[%c12, %c0_66] : memref<102x32xbf16, #tpu.memory_space<vmem>>, vector<8x32xbf16>
    tpu.vector_store %arg15[%c12, %c0_66], %103 {strides = array<i32>} : memref<102x32xbf16, #tpu.memory_space<vmem>>, vector<8x32xbf16>,
    %105 = vector.extract_strided_slice %102 {offsets = [8, 0], sizes = [8, 32], strides = [1, 1]} : vector<64x32xbf16> to vector<8x32xbf16>
    %c22 = arith.constant 22 : index
    %c0_67 = arith.constant 0 : index
    %106 = vector.load %arg15[%c22, %c0_67] : memref<102x32xbf16, #tpu.memory_space<vmem>>, vector<8x32xbf16>
    tpu.vector_store %arg15[%c22, %c0_67], %105 {strides = array<i32>} : memref<102x32xbf16, #tpu.memory_space<vmem>>, vector<8x32xbf16>,
    %107 = vector.extract_strided_slice %102 {offsets = [16, 0], sizes = [8, 32], strides = [1, 1]} : vector<64x32xbf16> to vector<8x32xbf16>
    %c32_68 = arith.constant 32 : index
    %c0_69 = arith.constant 0 : index
    %108 = vector.load %arg15[%c32_68, %c0_69] : memref<102x32xbf16, #tpu.memory_space<vmem>>, vector<8x32xbf16>
    tpu.vector_store %arg15[%c32_68, %c0_69], %107 {strides = array<i32>} : memref<102x32xbf16, #tpu.memory_space<vmem>>, vector<8x32xbf16>,
    %109 = vector.extract_strided_slice %102 {offsets = [24, 0], sizes = [8, 32], strides = [1, 1]} : vector<64x32xbf16> to vector<8x32xbf16>
    %c42 = arith.constant 42 : index
    %c0_70 = arith.constant 0 : index
    %110 = vector.load %arg15[%c42, %c0_70] : memref<102x32xbf16, #tpu.memory_space<vmem>>, vector<8x32xbf16>
    tpu.vector_store %arg15[%c42, %c0_70], %109 {strides = array<i32>} : memref<102x32xbf16, #tpu.memory_space<vmem>>, vector<8x32xbf16>,
    %111 = vector.extract_strided_slice %102 {offsets = [32, 0], sizes = [8, 32], strides = [1, 1]} : vector<64x32xbf16> to vector<8x32xbf16>
    %c52 = arith.constant 52 : index
    %c0_71 = arith.constant 0 : index
    %112 = vector.load %arg15[%c52, %c0_71] : memref<102x32xbf16, #tpu.memory_space<vmem>>, vector<8x32xbf16>
    tpu.vector_store %arg15[%c52, %c0_71], %111 {strides = array<i32>} : memref<102x32xbf16, #tpu.memory_space<vmem>>, vector<8x32xbf16>,
    %113 = vector.extract_strided_slice %102 {offsets = [40, 0], sizes = [8, 32], strides = [1, 1]} : vector<64x32xbf16> to vector<8x32xbf16>
    %c62 = arith.constant 62 : index
    %c0_72 = arith.constant 0 : index
    %114 = vector.load %arg15[%c62, %c0_72] : memref<102x32xbf16, #tpu.memory_space<vmem>>, vector<8x32xbf16>
    tpu.vector_store %arg15[%c62, %c0_72], %113 {strides = array<i32>} : memref<102x32xbf16, #tpu.memory_space<vmem>>, vector<8x32xbf16>,
    %115 = vector.extract_strided_slice %102 {offsets = [48, 0], sizes = [8, 32], strides = [1, 1]} : vector<64x32xbf16> to vector<8x32xbf16>
    %c72 = arith.constant 72 : index
    %c0_73 = arith.constant 0 : index
    %116 = vector.load %arg15[%c72, %c0_73] : memref<102x32xbf16, #tpu.memory_space<vmem>>, vector<8x32xbf16>
    tpu.vector_store %arg15[%c72, %c0_73], %115 {strides = array<i32>} : memref<102x32xbf16, #tpu.memory_space<vmem>>, vector<8x32xbf16>,
    %117 = vector.extract_strided_slice %102 {offsets = [56, 0], sizes = [8, 32], strides = [1, 1]} : vector<64x32xbf16> to vector<8x32xbf16>
    %c82 = arith.constant 82 : index
    %c0_74 = arith.constant 0 : index
    %118 = vector.load %arg15[%c82, %c0_74] : memref<102x32xbf16, #tpu.memory_space<vmem>>, vector<8x32xbf16>
    tpu.vector_store %arg15[%c82, %c0_74], %117 {strides = array<i32>} : memref<102x32xbf16, #tpu.memory_space<vmem>>, vector<8x32xbf16>,
    %c0_75 = arith.constant 0 : index
    %c0_76 = arith.constant 0 : index
    %119 = vector.load %arg15[%c0_75, %c0_76] : memref<102x32xbf16, #tpu.memory_space<vmem>>, vector<80x32xbf16>
    %c0_77 = arith.constant 0 : index
    %c0_78 = arith.constant 0 : index
    %c0_79 = arith.constant 0 : index
    %120 = vector.load %arg4[%c0_77, %c0_78, %c0_79] : memref<9x32x64xbf16, #tpu.memory_space<vmem>>, vector<1x32x64xbf16>
    %121 = vector.shape_cast %120 : vector<1x32x64xbf16> to vector<32x64xbf16>
    %cst_80 = arith.constant dense<0.000000e+00> : vector<80x64xf32>
    %122 = tpu.matmul %119, %121, %cst_80 {dimension_numbers = #tpu.dot_dimension_numbers<[1], [0], [0], [1], [0, 0, 1, 1], [], []>} : vector<80x32xbf16>, vector<32x64xbf16>, vector<80x64xf32> -> vector<80x64xf32>
    %c1_81 = arith.constant 1 : index
    %c0_82 = arith.constant 0 : index
    %123 = vector.load %arg15[%c1_81, %c0_82] : memref<102x32xbf16, #tpu.memory_space<vmem>>, vector<80x32xbf16>
    %c1_83 = arith.constant 1 : index
    %c0_84 = arith.constant 0 : index
    %c0_85 = arith.constant 0 : index
    %124 = vector.load %arg4[%c1_83, %c0_84, %c0_85] : memref<9x32x64xbf16, #tpu.memory_space<vmem>>, vector<1x32x64xbf16>
    %125 = vector.shape_cast %124 : vector<1x32x64xbf16> to vector<32x64xbf16>
    %cst_86 = arith.constant dense<0.000000e+00> : vector<80x64xf32>
    %126 = tpu.matmul %123, %125, %cst_86 {dimension_numbers = #tpu.dot_dimension_numbers<[1], [0], [0], [1], [0, 0, 1, 1], [], []>} : vector<80x32xbf16>, vector<32x64xbf16>, vector<80x64xf32> -> vector<80x64xf32>
    %127 = arith.addf %122, %126 : vector<80x64xf32>
    %c2_87 = arith.constant 2 : index
    %c0_88 = arith.constant 0 : index
    %128 = vector.load %arg15[%c2_87, %c0_88] : memref<102x32xbf16, #tpu.memory_space<vmem>>, vector<80x32xbf16>
    %c2_89 = arith.constant 2 : index
    %c0_90 = arith.constant 0 : index
    %c0_91 = arith.constant 0 : index
    %129 = vector.load %arg4[%c2_89, %c0_90, %c0_91] : memref<9x32x64xbf16, #tpu.memory_space<vmem>>, vector<1x32x64xbf16>
    %130 = vector.shape_cast %129 : vector<1x32x64xbf16> to vector<32x64xbf16>
    %cst_92 = arith.constant dense<0.000000e+00> : vector<80x64xf32>
    %131 = tpu.matmul %128, %130, %cst_92 {dimension_numbers = #tpu.dot_dimension_numbers<[1], [0], [0], [1], [0, 0, 1, 1], [], []>} : vector<80x32xbf16>, vector<32x64xbf16>, vector<80x64xf32> -> vector<80x64xf32>
    %132 = arith.addf %127, %131 : vector<80x64xf32>
    %c10 = arith.constant 10 : index
    %c0_93 = arith.constant 0 : index
    %133 = vector.load %arg15[%c10, %c0_93] : memref<102x32xbf16, #tpu.memory_space<vmem>>, vector<80x32xbf16>
    %c3_94 = arith.constant 3 : index
    %c0_95 = arith.constant 0 : index
    %c0_96 = arith.constant 0 : index
    %134 = vector.load %arg4[%c3_94, %c0_95, %c0_96] : memref<9x32x64xbf16, #tpu.memory_space<vmem>>, vector<1x32x64xbf16>
    %135 = vector.shape_cast %134 : vector<1x32x64xbf16> to vector<32x64xbf16>
    %cst_97 = arith.constant dense<0.000000e+00> : vector<80x64xf32>
    %136 = tpu.matmul %133, %135, %cst_97 {dimension_numbers = #tpu.dot_dimension_numbers<[1], [0], [0], [1], [0, 0, 1, 1], [], []>} : vector<80x32xbf16>, vector<32x64xbf16>, vector<80x64xf32> -> vector<80x64xf32>
    %137 = arith.addf %132, %136 : vector<80x64xf32>
    %c11 = arith.constant 11 : index
    %c0_98 = arith.constant 0 : index
    %138 = vector.load %arg15[%c11, %c0_98] : memref<102x32xbf16, #tpu.memory_space<vmem>>, vector<80x32xbf16>
    %c4_99 = arith.constant 4 : index
    %c0_100 = arith.constant 0 : index
    %c0_101 = arith.constant 0 : index
    %139 = vector.load %arg4[%c4_99, %c0_100, %c0_101] : memref<9x32x64xbf16, #tpu.memory_space<vmem>>, vector<1x32x64xbf16>
    %140 = vector.shape_cast %139 : vector<1x32x64xbf16> to vector<32x64xbf16>
    %cst_102 = arith.constant dense<0.000000e+00> : vector<80x64xf32>
    %141 = tpu.matmul %138, %140, %cst_102 {dimension_numbers = #tpu.dot_dimension_numbers<[1], [0], [0], [1], [0, 0, 1, 1], [], []>} : vector<80x32xbf16>, vector<32x64xbf16>, vector<80x64xf32> -> vector<80x64xf32>
    %142 = arith.addf %137, %141 : vector<80x64xf32>
    %c12_103 = arith.constant 12 : index
    %c0_104 = arith.constant 0 : index
    %143 = vector.load %arg15[%c12_103, %c0_104] : memref<102x32xbf16, #tpu.memory_space<vmem>>, vector<80x32xbf16>
    %c5_105 = arith.constant 5 : index
    %c0_106 = arith.constant 0 : index
    %c0_107 = arith.constant 0 : index
    %144 = vector.load %arg4[%c5_105, %c0_106, %c0_107] : memref<9x32x64xbf16, #tpu.memory_space<vmem>>, vector<1x32x64xbf16>
    %145 = vector.shape_cast %144 : vector<1x32x64xbf16> to vector<32x64xbf16>
    %cst_108 = arith.constant dense<0.000000e+00> : vector<80x64xf32>
    %146 = tpu.matmul %143, %145, %cst_108 {dimension_numbers = #tpu.dot_dimension_numbers<[1], [0], [0], [1], [0, 0, 1, 1], [], []>} : vector<80x32xbf16>, vector<32x64xbf16>, vector<80x64xf32> -> vector<80x64xf32>
    %147 = arith.addf %142, %146 : vector<80x64xf32>
    %c20_109 = arith.constant 20 : index
    %c0_110 = arith.constant 0 : index
    %148 = vector.load %arg15[%c20_109, %c0_110] : memref<102x32xbf16, #tpu.memory_space<vmem>>, vector<80x32xbf16>
    %c6_111 = arith.constant 6 : index
    %c0_112 = arith.constant 0 : index
    %c0_113 = arith.constant 0 : index
    %149 = vector.load %arg4[%c6_111, %c0_112, %c0_113] : memref<9x32x64xbf16, #tpu.memory_space<vmem>>, vector<1x32x64xbf16>
    %150 = vector.shape_cast %149 : vector<1x32x64xbf16> to vector<32x64xbf16>
    %cst_114 = arith.constant dense<0.000000e+00> : vector<80x64xf32>
    %151 = tpu.matmul %148, %150, %cst_114 {dimension_numbers = #tpu.dot_dimension_numbers<[1], [0], [0], [1], [0, 0, 1, 1], [], []>} : vector<80x32xbf16>, vector<32x64xbf16>, vector<80x64xf32> -> vector<80x64xf32>
    %152 = arith.addf %147, %151 : vector<80x64xf32>
    %c21 = arith.constant 21 : index
    %c0_115 = arith.constant 0 : index
    %153 = vector.load %arg15[%c21, %c0_115] : memref<102x32xbf16, #tpu.memory_space<vmem>>, vector<80x32xbf16>
    %c7_116 = arith.constant 7 : index
    %c0_117 = arith.constant 0 : index
    %c0_118 = arith.constant 0 : index
    %154 = vector.load %arg4[%c7_116, %c0_117, %c0_118] : memref<9x32x64xbf16, #tpu.memory_space<vmem>>, vector<1x32x64xbf16>
    %155 = vector.shape_cast %154 : vector<1x32x64xbf16> to vector<32x64xbf16>
    %cst_119 = arith.constant dense<0.000000e+00> : vector<80x64xf32>
    %156 = tpu.matmul %153, %155, %cst_119 {dimension_numbers = #tpu.dot_dimension_numbers<[1], [0], [0], [1], [0, 0, 1, 1], [], []>} : vector<80x32xbf16>, vector<32x64xbf16>, vector<80x64xf32> -> vector<80x64xf32>
    %157 = arith.addf %152, %156 : vector<80x64xf32>
    %c22_120 = arith.constant 22 : index
    %c0_121 = arith.constant 0 : index
    %158 = vector.load %arg15[%c22_120, %c0_121] : memref<102x32xbf16, #tpu.memory_space<vmem>>, vector<80x32xbf16>
    %c8_122 = arith.constant 8 : index
    %c0_123 = arith.constant 0 : index
    %c0_124 = arith.constant 0 : index
    %159 = vector.load %arg4[%c8_122, %c0_123, %c0_124] : memref<9x32x64xbf16, #tpu.memory_space<vmem>>, vector<1x32x64xbf16>
    %160 = vector.shape_cast %159 : vector<1x32x64xbf16> to vector<32x64xbf16>
    %cst_125 = arith.constant dense<0.000000e+00> : vector<80x64xf32>
    %161 = tpu.matmul %158, %160, %cst_125 {dimension_numbers = #tpu.dot_dimension_numbers<[1], [0], [0], [1], [0, 0, 1, 1], [], []>} : vector<80x32xbf16>, vector<32x64xbf16>, vector<80x64xf32> -> vector<80x64xf32>
    %162 = arith.addf %157, %161 : vector<80x64xf32>
    %c0_126 = arith.constant 0 : index
    %c0_127 = arith.constant 0 : index
    %163 = vector.load %arg5[%c0_126, %c0_127] : memref<3x64xf32, #tpu.memory_space<vmem>>, vector<3x64xf32>
    %164 = vector.extract_strided_slice %163 {offsets = [0, 0], sizes = [1, 64], strides = [1, 1]} : vector<3x64xf32> to vector<1x64xf32>
    %165 = vector.broadcast %164 : vector<1x64xf32> to vector<80x64xf32>
    %166 = arith.addf %162, %165 : vector<80x64xf32>
    %cst_128 = arith.constant 0.000000e+00 : f32
    %167 = vector.broadcast %cst_128 : f32 to vector<80x64xf32>
    %168 = arith.maximumf %166, %167 : vector<80x64xf32>
    %169 = vector.extract_strided_slice %163 {offsets = [1, 0], sizes = [1, 64], strides = [1, 1]} : vector<3x64xf32> to vector<1x64xf32>
    %170 = vector.broadcast %169 : vector<1x64xf32> to vector<80x64xf32>
    %171 = arith.mulf %168, %170 : vector<80x64xf32>
    %172 = vector.extract_strided_slice %163 {offsets = [2, 0], sizes = [1, 64], strides = [1, 1]} : vector<3x64xf32> to vector<1x64xf32>
    %173 = vector.broadcast %172 : vector<1x64xf32> to vector<80x64xf32>
    %174 = arith.addf %171, %173 : vector<80x64xf32>
    %175 = vector.extract_strided_slice %174 {offsets = [1, 0], sizes = [8, 64], strides = [1, 1]} : vector<80x64xf32> to vector<8x64xf32>
    %176 = vector.extract_strided_slice %174 {offsets = [11, 0], sizes = [8, 64], strides = [1, 1]} : vector<80x64xf32> to vector<8x64xf32>
    %177 = arith.maximumf %175, %176 : vector<8x64xf32>
    %c0_129 = arith.constant 0 : index
    %c0_130 = arith.constant 0 : index
    %178 = vector.load %arg19[%c0_129, %c0_130] : memref<32x64xf32, #tpu.memory_space<vmem>>, vector<8x64xf32>
    tpu.vector_store %arg19[%c0_129, %c0_130], %177 {strides = array<i32>} : memref<32x64xf32, #tpu.memory_space<vmem>>, vector<8x64xf32>,
    %179 = vector.extract_strided_slice %174 {offsets = [21, 0], sizes = [8, 64], strides = [1, 1]} : vector<80x64xf32> to vector<8x64xf32>
    %180 = vector.extract_strided_slice %174 {offsets = [31, 0], sizes = [8, 64], strides = [1, 1]} : vector<80x64xf32> to vector<8x64xf32>
    %181 = arith.maximumf %179, %180 : vector<8x64xf32>
    %c8_131 = arith.constant 8 : index
    %c0_132 = arith.constant 0 : index
    %182 = vector.load %arg19[%c8_131, %c0_132] : memref<32x64xf32, #tpu.memory_space<vmem>>, vector<8x64xf32>
    tpu.vector_store %arg19[%c8_131, %c0_132], %181 {strides = array<i32>} : memref<32x64xf32, #tpu.memory_space<vmem>>, vector<8x64xf32>,
    %183 = vector.extract_strided_slice %174 {offsets = [41, 0], sizes = [8, 64], strides = [1, 1]} : vector<80x64xf32> to vector<8x64xf32>
    %184 = vector.extract_strided_slice %174 {offsets = [51, 0], sizes = [8, 64], strides = [1, 1]} : vector<80x64xf32> to vector<8x64xf32>
    %185 = arith.maximumf %183, %184 : vector<8x64xf32>
    %c16_133 = arith.constant 16 : index
    %c0_134 = arith.constant 0 : index
    %186 = vector.load %arg19[%c16_133, %c0_134] : memref<32x64xf32, #tpu.memory_space<vmem>>, vector<8x64xf32>
    tpu.vector_store %arg19[%c16_133, %c0_134], %185 {strides = array<i32>} : memref<32x64xf32, #tpu.memory_space<vmem>>, vector<8x64xf32>,
    %187 = vector.extract_strided_slice %174 {offsets = [61, 0], sizes = [8, 64], strides = [1, 1]} : vector<80x64xf32> to vector<8x64xf32>
    %188 = vector.extract_strided_slice %174 {offsets = [71, 0], sizes = [8, 64], strides = [1, 1]} : vector<80x64xf32> to vector<8x64xf32>
    %189 = arith.maximumf %187, %188 : vector<8x64xf32>
    %c24 = arith.constant 24 : index
    %c0_135 = arith.constant 0 : index
    %190 = vector.load %arg19[%c24, %c0_135] : memref<32x64xf32, #tpu.memory_space<vmem>>, vector<8x64xf32>
    tpu.vector_store %arg19[%c24, %c0_135], %189 {strides = array<i32>} : memref<32x64xf32, #tpu.memory_space<vmem>>, vector<8x64xf32>,
    %c0_136 = arith.constant 0 : index
    %c0_137 = arith.constant 0 : index
    %191 = tpu.strided_load %arg19[%c0_136, %c0_137] {strides = array<i32: 2, 1>} : memref<32x64xf32, #tpu.memory_space<vmem>>, vector<16x64xf32>
    %c1_138 = arith.constant 1 : index
    %c0_139 = arith.constant 0 : index
    %192 = tpu.strided_load %arg19[%c1_138, %c0_139] {strides = array<i32: 2, 1>} : memref<32x64xf32, #tpu.memory_space<vmem>>, vector<16x64xf32>
    %193 = arith.maximumf %191, %192 : vector<16x64xf32>
    %cst_140 = arith.constant 0.000000e+00 : bf16
    %194 = vector.broadcast %cst_140 : bf16 to vector<38x64xbf16>
    %c0_141 = arith.constant 0 : index
    %c0_142 = arith.constant 0 : index
    %195 = vector.load %arg16[%c0_141, %c0_142] : memref<38x64xbf16, #tpu.memory_space<vmem>>, vector<38x64xbf16>
    tpu.vector_store %arg16[%c0_141, %c0_142], %194 {strides = array<i32>} : memref<38x64xbf16, #tpu.memory_space<vmem>>, vector<38x64xbf16>,
    %196 = arith.truncf %193 : vector<16x64xf32> to vector<16x64xbf16>
    %197 = vector.extract_strided_slice %196 {offsets = [0, 0], sizes = [4, 64], strides = [1, 1]} : vector<16x64xbf16> to vector<4x64xbf16>
    %c8_143 = arith.constant 8 : index
    %c0_144 = arith.constant 0 : index
    %198 = vector.load %arg16[%c8_143, %c0_144] : memref<38x64xbf16, #tpu.memory_space<vmem>>, vector<4x64xbf16>
    tpu.vector_store %arg16[%c8_143, %c0_144], %197 {strides = array<i32>} : memref<38x64xbf16, #tpu.memory_space<vmem>>, vector<4x64xbf16>,
    %199 = vector.extract_strided_slice %196 {offsets = [4, 0], sizes = [4, 64], strides = [1, 1]} : vector<16x64xbf16> to vector<4x64xbf16>
    %c14 = arith.constant 14 : index
    %c0_145 = arith.constant 0 : index
    %200 = vector.load %arg16[%c14, %c0_145] : memref<38x64xbf16, #tpu.memory_space<vmem>>, vector<4x64xbf16>
    tpu.vector_store %arg16[%c14, %c0_145], %199 {strides = array<i32>} : memref<38x64xbf16, #tpu.memory_space<vmem>>, vector<4x64xbf16>,
    %201 = vector.extract_strided_slice %196 {offsets = [8, 0], sizes = [4, 64], strides = [1, 1]} : vector<16x64xbf16> to vector<4x64xbf16>
    %c20_146 = arith.constant 20 : index
    %c0_147 = arith.constant 0 : index
    %202 = vector.load %arg16[%c20_146, %c0_147] : memref<38x64xbf16, #tpu.memory_space<vmem>>, vector<4x64xbf16>
    tpu.vector_store %arg16[%c20_146, %c0_147], %201 {strides = array<i32>} : memref<38x64xbf16, #tpu.memory_space<vmem>>, vector<4x64xbf16>,
    %203 = vector.extract_strided_slice %196 {offsets = [12, 0], sizes = [4, 64], strides = [1, 1]} : vector<16x64xbf16> to vector<4x64xbf16>
    %c26 = arith.constant 26 : index
    %c0_148 = arith.constant 0 : index
    %204 = vector.load %arg16[%c26, %c0_148] : memref<38x64xbf16, #tpu.memory_space<vmem>>, vector<4x64xbf16>
    tpu.vector_store %arg16[%c26, %c0_148], %203 {strides = array<i32>} : memref<38x64xbf16, #tpu.memory_space<vmem>>, vector<4x64xbf16>,
    %c0_149 = arith.constant 0 : index
    %c0_150 = arith.constant 0 : index
    %205 = vector.load %arg16[%c0_149, %c0_150] : memref<38x64xbf16, #tpu.memory_space<vmem>>, vector<24x64xbf16>
    %c0_151 = arith.constant 0 : index
    %c0_152 = arith.constant 0 : index
    %c0_153 = arith.constant 0 : index
    %206 = vector.load %arg6[%c0_151, %c0_152, %c0_153] : memref<9x64x128xbf16, #tpu.memory_space<vmem>>, vector<1x64x128xbf16>
    %207 = vector.shape_cast %206 : vector<1x64x128xbf16> to vector<64x128xbf16>
    %cst_154 = arith.constant dense<0.000000e+00> : vector<24x128xf32>
    %208 = tpu.matmul %205, %207, %cst_154 {dimension_numbers = #tpu.dot_dimension_numbers<[1], [0], [0], [1], [0, 0, 1, 1], [], []>} : vector<24x64xbf16>, vector<64x128xbf16>, vector<24x128xf32> -> vector<24x128xf32>
    %c1_155 = arith.constant 1 : index
    %c0_156 = arith.constant 0 : index
    %209 = vector.load %arg16[%c1_155, %c0_156] : memref<38x64xbf16, #tpu.memory_space<vmem>>, vector<24x64xbf16>
    %c1_157 = arith.constant 1 : index
    %c0_158 = arith.constant 0 : index
    %c0_159 = arith.constant 0 : index
    %210 = vector.load %arg6[%c1_157, %c0_158, %c0_159] : memref<9x64x128xbf16, #tpu.memory_space<vmem>>, vector<1x64x128xbf16>
    %211 = vector.shape_cast %210 : vector<1x64x128xbf16> to vector<64x128xbf16>
    %cst_160 = arith.constant dense<0.000000e+00> : vector<24x128xf32>
    %212 = tpu.matmul %209, %211, %cst_160 {dimension_numbers = #tpu.dot_dimension_numbers<[1], [0], [0], [1], [0, 0, 1, 1], [], []>} : vector<24x64xbf16>, vector<64x128xbf16>, vector<24x128xf32> -> vector<24x128xf32>
    %213 = arith.addf %208, %212 : vector<24x128xf32>
    %c2_161 = arith.constant 2 : index
    %c0_162 = arith.constant 0 : index
    %214 = vector.load %arg16[%c2_161, %c0_162] : memref<38x64xbf16, #tpu.memory_space<vmem>>, vector<24x64xbf16>
    %c2_163 = arith.constant 2 : index
    %c0_164 = arith.constant 0 : index
    %c0_165 = arith.constant 0 : index
    %215 = vector.load %arg6[%c2_163, %c0_164, %c0_165] : memref<9x64x128xbf16, #tpu.memory_space<vmem>>, vector<1x64x128xbf16>
    %216 = vector.shape_cast %215 : vector<1x64x128xbf16> to vector<64x128xbf16>
    %cst_166 = arith.constant dense<0.000000e+00> : vector<24x128xf32>
    %217 = tpu.matmul %214, %216, %cst_166 {dimension_numbers = #tpu.dot_dimension_numbers<[1], [0], [0], [1], [0, 0, 1, 1], [], []>} : vector<24x64xbf16>, vector<64x128xbf16>, vector<24x128xf32> -> vector<24x128xf32>
    %218 = arith.addf %213, %217 : vector<24x128xf32>
    %c6_167 = arith.constant 6 : index
    %c0_168 = arith.constant 0 : index
    %219 = vector.load %arg16[%c6_167, %c0_168] : memref<38x64xbf16, #tpu.memory_space<vmem>>, vector<24x64xbf16>
    %c3_169 = arith.constant 3 : index
    %c0_170 = arith.constant 0 : index
    %c0_171 = arith.constant 0 : index
    %220 = vector.load %arg6[%c3_169, %c0_170, %c0_171] : memref<9x64x128xbf16, #tpu.memory_space<vmem>>, vector<1x64x128xbf16>
    %221 = vector.shape_cast %220 : vector<1x64x128xbf16> to vector<64x128xbf16>
    %cst_172 = arith.constant dense<0.000000e+00> : vector<24x128xf32>
    %222 = tpu.matmul %219, %221, %cst_172 {dimension_numbers = #tpu.dot_dimension_numbers<[1], [0], [0], [1], [0, 0, 1, 1], [], []>} : vector<24x64xbf16>, vector<64x128xbf16>, vector<24x128xf32> -> vector<24x128xf32>
    %223 = arith.addf %218, %222 : vector<24x128xf32>
    %c7_173 = arith.constant 7 : index
    %c0_174 = arith.constant 0 : index
    %224 = vector.load %arg16[%c7_173, %c0_174] : memref<38x64xbf16, #tpu.memory_space<vmem>>, vector<24x64xbf16>
    %c4_175 = arith.constant 4 : index
    %c0_176 = arith.constant 0 : index
    %c0_177 = arith.constant 0 : index
    %225 = vector.load %arg6[%c4_175, %c0_176, %c0_177] : memref<9x64x128xbf16, #tpu.memory_space<vmem>>, vector<1x64x128xbf16>
    %226 = vector.shape_cast %225 : vector<1x64x128xbf16> to vector<64x128xbf16>
    %cst_178 = arith.constant dense<0.000000e+00> : vector<24x128xf32>
    %227 = tpu.matmul %224, %226, %cst_178 {dimension_numbers = #tpu.dot_dimension_numbers<[1], [0], [0], [1], [0, 0, 1, 1], [], []>} : vector<24x64xbf16>, vector<64x128xbf16>, vector<24x128xf32> -> vector<24x128xf32>
    %228 = arith.addf %223, %227 : vector<24x128xf32>
    %c8_179 = arith.constant 8 : index
    %c0_180 = arith.constant 0 : index
    %229 = vector.load %arg16[%c8_179, %c0_180] : memref<38x64xbf16, #tpu.memory_space<vmem>>, vector<24x64xbf16>
    %c5_181 = arith.constant 5 : index
    %c0_182 = arith.constant 0 : index
    %c0_183 = arith.constant 0 : index
    %230 = vector.load %arg6[%c5_181, %c0_182, %c0_183] : memref<9x64x128xbf16, #tpu.memory_space<vmem>>, vector<1x64x128xbf16>
    %231 = vector.shape_cast %230 : vector<1x64x128xbf16> to vector<64x128xbf16>
    %cst_184 = arith.constant dense<0.000000e+00> : vector<24x128xf32>
    %232 = tpu.matmul %229, %231, %cst_184 {dimension_numbers = #tpu.dot_dimension_numbers<[1], [0], [0], [1], [0, 0, 1, 1], [], []>} : vector<24x64xbf16>, vector<64x128xbf16>, vector<24x128xf32> -> vector<24x128xf32>
    %233 = arith.addf %228, %232 : vector<24x128xf32>
    %c12_185 = arith.constant 12 : index
    %c0_186 = arith.constant 0 : index
    %234 = vector.load %arg16[%c12_185, %c0_186] : memref<38x64xbf16, #tpu.memory_space<vmem>>, vector<24x64xbf16>
    %c6_187 = arith.constant 6 : index
    %c0_188 = arith.constant 0 : index
    %c0_189 = arith.constant 0 : index
    %235 = vector.load %arg6[%c6_187, %c0_188, %c0_189] : memref<9x64x128xbf16, #tpu.memory_space<vmem>>, vector<1x64x128xbf16>
    %236 = vector.shape_cast %235 : vector<1x64x128xbf16> to vector<64x128xbf16>
    %cst_190 = arith.constant dense<0.000000e+00> : vector<24x128xf32>
    %237 = tpu.matmul %234, %236, %cst_190 {dimension_numbers = #tpu.dot_dimension_numbers<[1], [0], [0], [1], [0, 0, 1, 1], [], []>} : vector<24x64xbf16>, vector<64x128xbf16>, vector<24x128xf32> -> vector<24x128xf32>
    %238 = arith.addf %233, %237 : vector<24x128xf32>
    %c13 = arith.constant 13 : index
    %c0_191 = arith.constant 0 : index
    %239 = vector.load %arg16[%c13, %c0_191] : memref<38x64xbf16, #tpu.memory_space<vmem>>, vector<24x64xbf16>
    %c7_192 = arith.constant 7 : index
    %c0_193 = arith.constant 0 : index
    %c0_194 = arith.constant 0 : index
    %240 = vector.load %arg6[%c7_192, %c0_193, %c0_194] : memref<9x64x128xbf16, #tpu.memory_space<vmem>>, vector<1x64x128xbf16>
    %241 = vector.shape_cast %240 : vector<1x64x128xbf16> to vector<64x128xbf16>
    %cst_195 = arith.constant dense<0.000000e+00> : vector<24x128xf32>
    %242 = tpu.matmul %239, %241, %cst_195 {dimension_numbers = #tpu.dot_dimension_numbers<[1], [0], [0], [1], [0, 0, 1, 1], [], []>} : vector<24x64xbf16>, vector<64x128xbf16>, vector<24x128xf32> -> vector<24x128xf32>
    %243 = arith.addf %238, %242 : vector<24x128xf32>
    %c14_196 = arith.constant 14 : index
    %c0_197 = arith.constant 0 : index
    %244 = vector.load %arg16[%c14_196, %c0_197] : memref<38x64xbf16, #tpu.memory_space<vmem>>, vector<24x64xbf16>
    %c8_198 = arith.constant 8 : index
    %c0_199 = arith.constant 0 : index
    %c0_200 = arith.constant 0 : index
    %245 = vector.load %arg6[%c8_198, %c0_199, %c0_200] : memref<9x64x128xbf16, #tpu.memory_space<vmem>>, vector<1x64x128xbf16>
    %246 = vector.shape_cast %245 : vector<1x64x128xbf16> to vector<64x128xbf16>
    %cst_201 = arith.constant dense<0.000000e+00> : vector<24x128xf32>
    %247 = tpu.matmul %244, %246, %cst_201 {dimension_numbers = #tpu.dot_dimension_numbers<[1], [0], [0], [1], [0, 0, 1, 1], [], []>} : vector<24x64xbf16>, vector<64x128xbf16>, vector<24x128xf32> -> vector<24x128xf32>
    %248 = arith.addf %243, %247 : vector<24x128xf32>
    %c0_202 = arith.constant 0 : index
    %c0_203 = arith.constant 0 : index
    %249 = vector.load %arg7[%c0_202, %c0_203] : memref<3x128xf32, #tpu.memory_space<vmem>>, vector<3x128xf32>
    %250 = vector.extract_strided_slice %249 {offsets = [0, 0], sizes = [1, 128], strides = [1, 1]} : vector<3x128xf32> to vector<1x128xf32>
    %251 = vector.broadcast %250 : vector<1x128xf32> to vector<24x128xf32>
    %252 = arith.addf %248, %251 : vector<24x128xf32>
    %cst_204 = arith.constant 0.000000e+00 : f32
    %253 = vector.broadcast %cst_204 : f32 to vector<24x128xf32>
    %254 = arith.maximumf %252, %253 : vector<24x128xf32>
    %255 = vector.extract_strided_slice %249 {offsets = [1, 0], sizes = [1, 128], strides = [1, 1]} : vector<3x128xf32> to vector<1x128xf32>
    %256 = vector.broadcast %255 : vector<1x128xf32> to vector<24x128xf32>
    %257 = arith.mulf %254, %256 : vector<24x128xf32>
    %258 = vector.extract_strided_slice %249 {offsets = [2, 0], sizes = [1, 128], strides = [1, 1]} : vector<3x128xf32> to vector<1x128xf32>
    %259 = vector.broadcast %258 : vector<1x128xf32> to vector<24x128xf32>
    %260 = arith.addf %257, %259 : vector<24x128xf32>
    %261 = vector.extract_strided_slice %260 {offsets = [1, 0], sizes = [4, 128], strides = [1, 1]} : vector<24x128xf32> to vector<4x128xf32>
    %262 = vector.extract_strided_slice %260 {offsets = [7, 0], sizes = [4, 128], strides = [1, 1]} : vector<24x128xf32> to vector<4x128xf32>
    %263 = arith.maximumf %261, %262 : vector<4x128xf32>
    %c0_205 = arith.constant 0 : index
    %c0_206 = arith.constant 0 : index
    %264 = vector.load %arg20[%c0_205, %c0_206] : memref<8x128xf32, #tpu.memory_space<vmem>>, vector<4x128xf32>
    tpu.vector_store %arg20[%c0_205, %c0_206], %263 {strides = array<i32>} : memref<8x128xf32, #tpu.memory_space<vmem>>, vector<4x128xf32>,
    %265 = vector.extract_strided_slice %260 {offsets = [13, 0], sizes = [4, 128], strides = [1, 1]} : vector<24x128xf32> to vector<4x128xf32>
    %266 = vector.extract_strided_slice %260 {offsets = [19, 0], sizes = [4, 128], strides = [1, 1]} : vector<24x128xf32> to vector<4x128xf32>
    %267 = arith.maximumf %265, %266 : vector<4x128xf32>
    %c4_207 = arith.constant 4 : index
    %c0_208 = arith.constant 0 : index
    %268 = vector.load %arg20[%c4_207, %c0_208] : memref<8x128xf32, #tpu.memory_space<vmem>>, vector<4x128xf32>
    tpu.vector_store %arg20[%c4_207, %c0_208], %267 {strides = array<i32>} : memref<8x128xf32, #tpu.memory_space<vmem>>, vector<4x128xf32>,
    %c0_209 = arith.constant 0 : index
    %c0_210 = arith.constant 0 : index
    %269 = tpu.strided_load %arg20[%c0_209, %c0_210] {strides = array<i32: 2, 1>} : memref<8x128xf32, #tpu.memory_space<vmem>>, vector<4x128xf32>
    %c1_211 = arith.constant 1 : index
    %c0_212 = arith.constant 0 : index
    %270 = tpu.strided_load %arg20[%c1_211, %c0_212] {strides = array<i32: 2, 1>} : memref<8x128xf32, #tpu.memory_space<vmem>>, vector<4x128xf32>
    %271 = arith.maximumf %269, %270 : vector<4x128xf32>
    %cst_213 = arith.constant 0.000000e+00 : bf16
    %272 = vector.broadcast %cst_213 : bf16 to vector<18x128xbf16>
    %c0_214 = arith.constant 0 : index
    %c0_215 = arith.constant 0 : index
    %273 = vector.load %arg17[%c0_214, %c0_215] : memref<18x128xbf16, #tpu.memory_space<vmem>>, vector<18x128xbf16>
    tpu.vector_store %arg17[%c0_214, %c0_215], %272 {strides = array<i32>} : memref<18x128xbf16, #tpu.memory_space<vmem>>, vector<18x128xbf16>,
    %274 = arith.truncf %271 : vector<4x128xf32> to vector<4x128xbf16>
    %275 = vector.extract_strided_slice %274 {offsets = [0, 0], sizes = [2, 128], strides = [1, 1]} : vector<4x128xbf16> to vector<2x128xbf16>
    %c6_216 = arith.constant 6 : index
    %c0_217 = arith.constant 0 : index
    %276 = vector.load %arg17[%c6_216, %c0_217] : memref<18x128xbf16, #tpu.memory_space<vmem>>, vector<2x128xbf16>
    tpu.vector_store %arg17[%c6_216, %c0_217], %275 {strides = array<i32>} : memref<18x128xbf16, #tpu.memory_space<vmem>>, vector<2x128xbf16>,
    %277 = vector.extract_strided_slice %274 {offsets = [2, 0], sizes = [2, 128], strides = [1, 1]} : vector<4x128xbf16> to vector<2x128xbf16>
    %c10_218 = arith.constant 10 : index
    %c0_219 = arith.constant 0 : index
    %278 = vector.load %arg17[%c10_218, %c0_219] : memref<18x128xbf16, #tpu.memory_space<vmem>>, vector<2x128xbf16>
    tpu.vector_store %arg17[%c10_218, %c0_219], %277 {strides = array<i32>} : memref<18x128xbf16, #tpu.memory_space<vmem>>, vector<2x128xbf16>,
    %c0_220 = arith.constant 0 : index
    %c0_221 = arith.constant 0 : index
    %279 = vector.load %arg17[%c0_220, %c0_221] : memref<18x128xbf16, #tpu.memory_space<vmem>>, vector<8x128xbf16>
    %c0_222 = arith.constant 0 : index
    %c0_223 = arith.constant 0 : index
    %c0_224 = arith.constant 0 : index
    %280 = vector.load %arg8[%c0_222, %c0_223, %c0_224] : memref<9x128x128xbf16, #tpu.memory_space<vmem>>, vector<1x128x128xbf16>
    %281 = vector.shape_cast %280 : vector<1x128x128xbf16> to vector<128x128xbf16>
    %cst_225 = arith.constant dense<0.000000e+00> : vector<8x128xf32>
    %282 = tpu.matmul %279, %281, %cst_225 {dimension_numbers = #tpu.dot_dimension_numbers<[1], [0], [0], [1], [0, 0, 1, 1], [], []>} : vector<8x128xbf16>, vector<128x128xbf16>, vector<8x128xf32> -> vector<8x128xf32>
    %c1_226 = arith.constant 1 : index
    %c0_227 = arith.constant 0 : index
    %283 = vector.load %arg17[%c1_226, %c0_227] : memref<18x128xbf16, #tpu.memory_space<vmem>>, vector<8x128xbf16>
    %c1_228 = arith.constant 1 : index
    %c0_229 = arith.constant 0 : index
    %c0_230 = arith.constant 0 : index
    %284 = vector.load %arg8[%c1_228, %c0_229, %c0_230] : memref<9x128x128xbf16, #tpu.memory_space<vmem>>, vector<1x128x128xbf16>
    %285 = vector.shape_cast %284 : vector<1x128x128xbf16> to vector<128x128xbf16>
    %cst_231 = arith.constant dense<0.000000e+00> : vector<8x128xf32>
    %286 = tpu.matmul %283, %285, %cst_231 {dimension_numbers = #tpu.dot_dimension_numbers<[1], [0], [0], [1], [0, 0, 1, 1], [], []>} : vector<8x128xbf16>, vector<128x128xbf16>, vector<8x128xf32> -> vector<8x128xf32>
    %287 = arith.addf %282, %286 : vector<8x128xf32>
    %c2_232 = arith.constant 2 : index
    %c0_233 = arith.constant 0 : index
    %288 = vector.load %arg17[%c2_232, %c0_233] : memref<18x128xbf16, #tpu.memory_space<vmem>>, vector<8x128xbf16>
    %c2_234 = arith.constant 2 : index
    %c0_235 = arith.constant 0 : index
    %c0_236 = arith.constant 0 : index
    %289 = vector.load %arg8[%c2_234, %c0_235, %c0_236] : memref<9x128x128xbf16, #tpu.memory_space<vmem>>, vector<1x128x128xbf16>
    %290 = vector.shape_cast %289 : vector<1x128x128xbf16> to vector<128x128xbf16>
    %cst_237 = arith.constant dense<0.000000e+00> : vector<8x128xf32>
    %291 = tpu.matmul %288, %290, %cst_237 {dimension_numbers = #tpu.dot_dimension_numbers<[1], [0], [0], [1], [0, 0, 1, 1], [], []>} : vector<8x128xbf16>, vector<128x128xbf16>, vector<8x128xf32> -> vector<8x128xf32>
    %292 = arith.addf %287, %291 : vector<8x128xf32>
    %c4_238 = arith.constant 4 : index
    %c0_239 = arith.constant 0 : index
    %293 = vector.load %arg17[%c4_238, %c0_239] : memref<18x128xbf16, #tpu.memory_space<vmem>>, vector<8x128xbf16>
    %c3_240 = arith.constant 3 : index
    %c0_241 = arith.constant 0 : index
    %c0_242 = arith.constant 0 : index
    %294 = vector.load %arg8[%c3_240, %c0_241, %c0_242] : memref<9x128x128xbf16, #tpu.memory_space<vmem>>, vector<1x128x128xbf16>
    %295 = vector.shape_cast %294 : vector<1x128x128xbf16> to vector<128x128xbf16>
    %cst_243 = arith.constant dense<0.000000e+00> : vector<8x128xf32>
    %296 = tpu.matmul %293, %295, %cst_243 {dimension_numbers = #tpu.dot_dimension_numbers<[1], [0], [0], [1], [0, 0, 1, 1], [], []>} : vector<8x128xbf16>, vector<128x128xbf16>, vector<8x128xf32> -> vector<8x128xf32>
    %297 = arith.addf %292, %296 : vector<8x128xf32>
    %c5_244 = arith.constant 5 : index
    %c0_245 = arith.constant 0 : index
    %298 = vector.load %arg17[%c5_244, %c0_245] : memref<18x128xbf16, #tpu.memory_space<vmem>>, vector<8x128xbf16>
    %c4_246 = arith.constant 4 : index
    %c0_247 = arith.constant 0 : index
    %c0_248 = arith.constant 0 : index
    %299 = vector.load %arg8[%c4_246, %c0_247, %c0_248] : memref<9x128x128xbf16, #tpu.memory_space<vmem>>, vector<1x128x128xbf16>
    %300 = vector.shape_cast %299 : vector<1x128x128xbf16> to vector<128x128xbf16>
    %cst_249 = arith.constant dense<0.000000e+00> : vector<8x128xf32>
    %301 = tpu.matmul %298, %300, %cst_249 {dimension_numbers = #tpu.dot_dimension_numbers<[1], [0], [0], [1], [0, 0, 1, 1], [], []>} : vector<8x128xbf16>, vector<128x128xbf16>, vector<8x128xf32> -> vector<8x128xf32>
    %302 = arith.addf %297, %301 : vector<8x128xf32>
    %c6_250 = arith.constant 6 : index
    %c0_251 = arith.constant 0 : index
    %303 = vector.load %arg17[%c6_250, %c0_251] : memref<18x128xbf16, #tpu.memory_space<vmem>>, vector<8x128xbf16>
    %c5_252 = arith.constant 5 : index
    %c0_253 = arith.constant 0 : index
    %c0_254 = arith.constant 0 : index
    %304 = vector.load %arg8[%c5_252, %c0_253, %c0_254] : memref<9x128x128xbf16, #tpu.memory_space<vmem>>, vector<1x128x128xbf16>
    %305 = vector.shape_cast %304 : vector<1x128x128xbf16> to vector<128x128xbf16>
    %cst_255 = arith.constant dense<0.000000e+00> : vector<8x128xf32>
    %306 = tpu.matmul %303, %305, %cst_255 {dimension_numbers = #tpu.dot_dimension_numbers<[1], [0], [0], [1], [0, 0, 1, 1], [], []>} : vector<8x128xbf16>, vector<128x128xbf16>, vector<8x128xf32> -> vector<8x128xf32>
    %307 = arith.addf %302, %306 : vector<8x128xf32>
    %c8_256 = arith.constant 8 : index
    %c0_257 = arith.constant 0 : index
    %308 = vector.load %arg17[%c8_256, %c0_257] : memref<18x128xbf16, #tpu.memory_space<vmem>>, vector<8x128xbf16>
    %c6_258 = arith.constant 6 : index
    %c0_259 = arith.constant 0 : index
    %c0_260 = arith.constant 0 : index
    %309 = vector.load %arg8[%c6_258, %c0_259, %c0_260] : memref<9x128x128xbf16, #tpu.memory_space<vmem>>, vector<1x128x128xbf16>
    %310 = vector.shape_cast %309 : vector<1x128x128xbf16> to vector<128x128xbf16>
    %cst_261 = arith.constant dense<0.000000e+00> : vector<8x128xf32>
    %311 = tpu.matmul %308, %310, %cst_261 {dimension_numbers = #tpu.dot_dimension_numbers<[1], [0], [0], [1], [0, 0, 1, 1], [], []>} : vector<8x128xbf16>, vector<128x128xbf16>, vector<8x128xf32> -> vector<8x128xf32>
    %312 = arith.addf %307, %311 : vector<8x128xf32>
    %c9 = arith.constant 9 : index
    %c0_262 = arith.constant 0 : index
    %313 = vector.load %arg17[%c9, %c0_262] : memref<18x128xbf16, #tpu.memory_space<vmem>>, vector<8x128xbf16>
    %c7_263 = arith.constant 7 : index
    %c0_264 = arith.constant 0 : index
    %c0_265 = arith.constant 0 : index
    %314 = vector.load %arg8[%c7_263, %c0_264, %c0_265] : memref<9x128x128xbf16, #tpu.memory_space<vmem>>, vector<1x128x128xbf16>
    %315 = vector.shape_cast %314 : vector<1x128x128xbf16> to vector<128x128xbf16>
    %cst_266 = arith.constant dense<0.000000e+00> : vector<8x128xf32>
    %316 = tpu.matmul %313, %315, %cst_266 {dimension_numbers = #tpu.dot_dimension_numbers<[1], [0], [0], [1], [0, 0, 1, 1], [], []>} : vector<8x128xbf16>, vector<128x128xbf16>, vector<8x128xf32> -> vector<8x128xf32>
    %317 = arith.addf %312, %316 : vector<8x128xf32>
    %c10_267 = arith.constant 10 : index
    %c0_268 = arith.constant 0 : index
    %318 = vector.load %arg17[%c10_267, %c0_268] : memref<18x128xbf16, #tpu.memory_space<vmem>>, vector<8x128xbf16>
    %c8_269 = arith.constant 8 : index
    %c0_270 = arith.constant 0 : index
    %c0_271 = arith.constant 0 : index
    %319 = vector.load %arg8[%c8_269, %c0_270, %c0_271] : memref<9x128x128xbf16, #tpu.memory_space<vmem>>, vector<1x128x128xbf16>
    %320 = vector.shape_cast %319 : vector<1x128x128xbf16> to vector<128x128xbf16>
    %cst_272 = arith.constant dense<0.000000e+00> : vector<8x128xf32>
    %321 = tpu.matmul %318, %320, %cst_272 {dimension_numbers = #tpu.dot_dimension_numbers<[1], [0], [0], [1], [0, 0, 1, 1], [], []>} : vector<8x128xbf16>, vector<128x128xbf16>, vector<8x128xf32> -> vector<8x128xf32>
    %322 = arith.addf %317, %321 : vector<8x128xf32>
    %c0_273 = arith.constant 0 : index
    %c0_274 = arith.constant 0 : index
    %323 = vector.load %arg9[%c0_273, %c0_274] : memref<3x128xf32, #tpu.memory_space<vmem>>, vector<3x128xf32>
    %324 = vector.extract_strided_slice %323 {offsets = [0, 0], sizes = [1, 128], strides = [1, 1]} : vector<3x128xf32> to vector<1x128xf32>
    %325 = vector.broadcast %324 : vector<1x128xf32> to vector<8x128xf32>
    %326 = arith.addf %322, %325 : vector<8x128xf32>
    %cst_275 = arith.constant 0.000000e+00 : f32
    %327 = vector.broadcast %cst_275 : f32 to vector<8x128xf32>
    %328 = arith.maximumf %326, %327 : vector<8x128xf32>
    %329 = vector.extract_strided_slice %323 {offsets = [1, 0], sizes = [1, 128], strides = [1, 1]} : vector<3x128xf32> to vector<1x128xf32>
    %330 = vector.broadcast %329 : vector<1x128xf32> to vector<8x128xf32>
    %331 = arith.mulf %328, %330 : vector<8x128xf32>
    %332 = vector.extract_strided_slice %323 {offsets = [2, 0], sizes = [1, 128], strides = [1, 1]} : vector<3x128xf32> to vector<1x128xf32>
    %333 = vector.broadcast %332 : vector<1x128xf32> to vector<8x128xf32>
    %334 = arith.addf %331, %333 : vector<8x128xf32>
    %335 = vector.extract_strided_slice %334 {offsets = [1, 0], sizes = [2, 128], strides = [1, 1]} : vector<8x128xf32> to vector<2x128xf32>
    %336 = vector.extract_strided_slice %334 {offsets = [5, 0], sizes = [2, 128], strides = [1, 1]} : vector<8x128xf32> to vector<2x128xf32>
    %337 = arith.maximumf %335, %336 : vector<2x128xf32>
    %c0_276 = arith.constant 0 : index
    %c0_277 = arith.constant 0 : index
    %338 = vector.load %arg21[%c0_276, %c0_277] : memref<2x128xf32, #tpu.memory_space<vmem>>, vector<2x128xf32>
    tpu.vector_store %arg21[%c0_276, %c0_277], %337 {strides = array<i32>} : memref<2x128xf32, #tpu.memory_space<vmem>>, vector<2x128xf32>,
    %c0_278 = arith.constant 0 : index
    %c0_279 = arith.constant 0 : index
    %339 = tpu.strided_load %arg21[%c0_278, %c0_279] {strides = array<i32: 2, 1>} : memref<2x128xf32, #tpu.memory_space<vmem>>, vector<1x128xf32>
    %c1_280 = arith.constant 1 : index
    %c0_281 = arith.constant 0 : index
    %340 = tpu.strided_load %arg21[%c1_280, %c0_281] {strides = array<i32: 2, 1>} : memref<2x128xf32, #tpu.memory_space<vmem>>, vector<1x128xf32>
    %341 = arith.maximumf %339, %340 : vector<1x128xf32>
    %342 = arith.truncf %341 : vector<1x128xf32> to vector<1x128xbf16>
    %c0_282 = arith.constant 0 : index
    %c0_283 = arith.constant 0 : index
    %343 = vector.load %arg10[%c0_282, %c0_283] : memref<128x512xbf16, #tpu.memory_space<vmem>>, vector<128x512xbf16>
    %cst_284 = arith.constant dense<0.000000e+00> : vector<1x512xf32>
    %344 = tpu.matmul %342, %343, %cst_284 {dimension_numbers = #tpu.dot_dimension_numbers<[1], [0], [0], [1], [0, 0, 1, 1], [], []>} : vector<1x128xbf16>, vector<128x512xbf16>, vector<1x512xf32> -> vector<1x512xf32>
    %c0_285 = arith.constant 0 : index
    %c0_286 = arith.constant 0 : index
    %345 = vector.load %arg11[%c0_285, %c0_286] : memref<3x512xf32, #tpu.memory_space<vmem>>, vector<3x512xf32>
    %346 = vector.extract_strided_slice %345 {offsets = [0, 0], sizes = [1, 512], strides = [1, 1]} : vector<3x512xf32> to vector<1x512xf32>
    %347 = arith.addf %344, %346 : vector<1x512xf32>
    %cst_287 = arith.constant 0.000000e+00 : f32
    %348 = vector.broadcast %cst_287 : f32 to vector<1x512xf32>
    %349 = arith.maximumf %347, %348 : vector<1x512xf32>
    %350 = vector.extract_strided_slice %345 {offsets = [1, 0], sizes = [1, 512], strides = [1, 1]} : vector<3x512xf32> to vector<1x512xf32>
    %351 = arith.mulf %349, %350 : vector<1x512xf32>
    %352 = vector.extract_strided_slice %345 {offsets = [2, 0], sizes = [1, 512], strides = [1, 1]} : vector<3x512xf32> to vector<1x512xf32>
    %353 = arith.addf %351, %352 : vector<1x512xf32>
    %354 = arith.truncf %353 : vector<1x512xf32> to vector<1x512xbf16>
    %c0_288 = arith.constant 0 : index
    %c0_289 = arith.constant 0 : index
    %355 = vector.load %arg12[%c0_288, %c0_289] : memref<512x128xbf16, #tpu.memory_space<vmem>>, vector<512x128xbf16>
    %cst_290 = arith.constant dense<0.000000e+00> : vector<1x128xf32>
    %356 = tpu.matmul %354, %355, %cst_290 {dimension_numbers = #tpu.dot_dimension_numbers<[1], [0], [0], [1], [0, 0, 1, 1], [], []>} : vector<1x512xbf16>, vector<512x128xbf16>, vector<1x128xf32> -> vector<1x128xf32>
    %c0_291 = arith.constant 0 : index
    %c0_292 = arith.constant 0 : index
    %357 = vector.load %arg13[%c0_291, %c0_292] : memref<1x128xf32, #tpu.memory_space<vmem>>, vector<1x128xf32>
    %358 = arith.addf %356, %357 : vector<1x128xf32>
    %c0_293 = arith.constant 0 : index
    %c0_294 = arith.constant 0 : index
    %c0_295 = arith.constant 0 : index
    %359 = vector.load %arg14[%c0_293, %c0_294, %c0_295] : memref<1x1x128xf32, #tpu.memory_space<vmem>>, vector<1x1x128xf32>
    %360 = vector.shape_cast %359 : vector<1x1x128xf32> to vector<1x128xf32>
    %361 = vector.shape_cast %358 : vector<1x128xf32> to vector<1x1x128xf32>
    tpu.vector_store %arg14[%c0_293, %c0_294, %c0_295], %361 {strides = array<i32>} : memref<1x1x128xf32, #tpu.memory_space<vmem>>, vector<1x1x128xf32>,
    return
  }
  func.func @transform_0(%arg0: i32) -> (i32, i32, i32) {
    %c0_i32 = arith.constant 0 : i32
    %c0_i32_0 = arith.constant 0 : i32
    %c0_i32_1 = arith.constant 0 : i32
    return %arg0, %c0_i32, %c0_i32_0 : i32, i32, i32
  }
  func.func @transform_1(%arg0: i32) -> (i32, i32, i32) {
    %c0_i32 = arith.constant 0 : i32
    %c0_i32_0 = arith.constant 0 : i32
    %c0_i32_1 = arith.constant 0 : i32
    %c0_i32_2 = arith.constant 0 : i32
    return %c0_i32, %c0_i32_0, %c0_i32_1 : i32, i32, i32
  }
  func.func @transform_2(%arg0: i32) -> (i32, i32) {
    %c0_i32 = arith.constant 0 : i32
    %c0_i32_0 = arith.constant 0 : i32
    %c0_i32_1 = arith.constant 0 : i32
    return %c0_i32, %c0_i32_0 : i32, i32
  }
  func.func @transform_3(%arg0: i32) -> (i32, i32, i32) {
    %c0_i32 = arith.constant 0 : i32
    %c0_i32_0 = arith.constant 0 : i32
    %c0_i32_1 = arith.constant 0 : i32
    %c0_i32_2 = arith.constant 0 : i32
    return %c0_i32, %c0_i32_0, %c0_i32_1 : i32, i32, i32
  }
  func.func @transform_4(%arg0: i32) -> (i32, i32) {
    %c0_i32 = arith.constant 0 : i32
    %c0_i32_0 = arith.constant 0 : i32
    %c0_i32_1 = arith.constant 0 : i32
    return %c0_i32, %c0_i32_0 : i32, i32
  }
  func.func @transform_5(%arg0: i32) -> (i32, i32, i32) {
    %c0_i32 = arith.constant 0 : i32
    %c0_i32_0 = arith.constant 0 : i32
    %c0_i32_1 = arith.constant 0 : i32
    %c0_i32_2 = arith.constant 0 : i32
    return %c0_i32, %c0_i32_0, %c0_i32_1 : i32, i32, i32
  }
  func.func @transform_6(%arg0: i32) -> (i32, i32) {
    %c0_i32 = arith.constant 0 : i32
    %c0_i32_0 = arith.constant 0 : i32
    %c0_i32_1 = arith.constant 0 : i32
    return %c0_i32, %c0_i32_0 : i32, i32
  }
  func.func @transform_7(%arg0: i32) -> (i32, i32, i32) {
    %c0_i32 = arith.constant 0 : i32
    %c0_i32_0 = arith.constant 0 : i32
    %c0_i32_1 = arith.constant 0 : i32
    %c0_i32_2 = arith.constant 0 : i32
    return %c0_i32, %c0_i32_0, %c0_i32_1 : i32, i32, i32
  }
  func.func @transform_8(%arg0: i32) -> (i32, i32) {
    %c0_i32 = arith.constant 0 : i32
    %c0_i32_0 = arith.constant 0 : i32
    %c0_i32_1 = arith.constant 0 : i32
    return %c0_i32, %c0_i32_0 : i32, i32
  }
  func.func @transform_9(%arg0: i32) -> (i32, i32) {
    %c0_i32 = arith.constant 0 : i32
    %c0_i32_0 = arith.constant 0 : i32
    %c0_i32_1 = arith.constant 0 : i32
    return %c0_i32, %c0_i32_0 : i32, i32
  }
  func.func @transform_10(%arg0: i32) -> (i32, i32) {
    %c0_i32 = arith.constant 0 : i32
    %c0_i32_0 = arith.constant 0 : i32
    %c0_i32_1 = arith.constant 0 : i32
    return %c0_i32, %c0_i32_0 : i32, i32
  }
  func.func @transform_11(%arg0: i32) -> (i32, i32) {
    %c0_i32 = arith.constant 0 : i32
    %c0_i32_0 = arith.constant 0 : i32
    %c0_i32_1 = arith.constant 0 : i32
    return %c0_i32, %c0_i32_0 : i32, i32
  }
  func.func @transform_12(%arg0: i32) -> (i32, i32) {
    %c0_i32 = arith.constant 0 : i32
    %c0_i32_0 = arith.constant 0 : i32
    %c0_i32_1 = arith.constant 0 : i32
    return %c0_i32, %c0_i32_0 : i32, i32
  }
  func.func @transform_13(%arg0: i32) -> (i32, i32, i32) {
    %c0_i32 = arith.constant 0 : i32
    %c0_i32_0 = arith.constant 0 : i32
    %c0_i32_1 = arith.constant 0 : i32
    return %arg0, %c0_i32, %c0_i32_0 : i32, i32, i32
  }
}

</mosaic_0001>

<llo_original>
// kernel: custom_model_forward.1
$region0: #{custom_model_forward.1}
  #allocation0 [shape = 'u32[]', space=smem, size = 0x4, offset = 0x4, fixed_abs, tag = 'smem constant byte address 0x4 - core index']
  #allocation1 [shape = 'u32[72,128]{1,0:T(1,128)}', space=vmem, size = 0x9000, scoped, tag = 'internal scratch']
  #allocation2 [shape = 'bf16[102,32]{1,0:T(8,128)(2,1)}', space=vmem, size = 0x6800, scoped, tag = 'scratch operand']
  #allocation3 [shape = 'bf16[38,64]{1,0:T(8,128)(2,1)}', space=vmem, size = 0x2800, scoped, tag = 'scratch operand']
  #allocation4 [shape = 'bf16[18,128]{1,0:T(8,128)(2,1)}', space=vmem, size = 0x1800, scoped, tag = 'scratch operand']
  #allocation5 [shape = 'f32[128,32]{1,0:T(8,128)}', space=vmem, size = 0x10000, scoped, tag = 'scratch operand']
  #allocation6 [shape = 'f32[32,64]{1,0:T(8,128)}', space=vmem, size = 0x4000, scoped, tag = 'scratch operand']
  #allocation7 [shape = 'f32[8,128]{1,0:T(8,128)}', space=vmem, size = 0x1000, scoped, tag = 'scratch operand']
  #allocation8 [shape = 'f32[2,128]{1,0:T(2,128)}', space=vmem, size = 0x400, scoped, tag = 'scratch operand']
  %s0 = inlined_call_operand.vmem [shape: bf16[2,326,4], index: 0, kind: input, shape index: {}]
  %s1 = inlined_call_operand.vmem [shape: bf16[9,4,32], index: 1, kind: input, shape index: {}]
  %s2 = inlined_call_operand.vmem [shape: f32[3,32], index: 2, kind: input, shape index: {}]
  %s3 = inlined_call_operand.hbm [shape: bf16[9,32,64], index: 3, kind: input, shape index: {}]
  %s4 = inlined_call_operand.vmem [shape: f32[3,64], index: 4, kind: input, shape index: {}]
  %s5 = inlined_call_operand.vmem [shape: bf16[9,64,128], index: 5, kind: input, shape index: {}]
  %s6 = inlined_call_operand.vmem [shape: f32[3,128], index: 6, kind: input, shape index: {}]
  %s7 = inlined_call_operand.vmem [shape: bf16[9,128,128], index: 7, kind: input, shape index: {}]
  %s8 = inlined_call_operand.vmem [shape: f32[3,128], index: 8, kind: input, shape index: {}]
  %s9 = inlined_call_operand.vmem [shape: bf16[128,512], index: 9, kind: input, shape index: {}]
  %s10 = inlined_call_operand.vmem [shape: f32[3,512], index: 10, kind: input, shape index: {}]
  %s11 = inlined_call_operand.vmem [shape: bf16[512,128], index: 11, kind: input, shape index: {}]
  %s12 = inlined_call_operand.vmem [shape: f32[1,128], index: 12, kind: input, shape index: {}]
  %s13 = inlined_call_operand.hbm [shape: f32[2,1,128], index: 13, kind: output, shape index: {}]
  %s14 = sld [smem:[#allocation0]]
  $region89: #{custom_model_forward.1} parent=0
    _
  %s16 = ssub.s32 1, %s14
  %s17 = scalar_select 0, %s16, %s14
  $region1: #{custom_model_forward.1} parent=0
    #allocation9 [shape = 'u8[73728]{0}', space=vmem, size = 0x12000, scoped, tag = 'input window, operand 3, single buffered']
    #allocation10 [shape = 's32[2]{0}', space=sflag, size = 0x8, scoped, tag = 'scoped memory for custom_model_forward.1']
    #allocation11 [shape = 's32[2]{0}', space=sflag, size = 0x8, scoped, tag = 'scoped memory for custom_model_forward.1']
    #allocation12 [shape = 'u8[1024]{0}', space=vmem, size = 0x400, scoped, tag = 'output window, operand 0']
    %18 = vsyncpa [#allocation10], 0
    %19 = vsyncpa [#allocation11], 0
    %s20 = scalar_lea.sflag [#allocation11], 1
    %21 = vsyncpa %s20, 0
    loop: start=0, step=1, limit=4
    $region2: #{custom_model_forward.1} parent=1 // loop_pre_header
      _
    $region3: #{custom_model_forward.1} parent=1 // loop_header
      %s23 = sphi 0, %s27
      %p24 = scmp.ge.s32.totalorder %s23, 4
      %s33 = sphi 0, %s35
      %s36 = sphi 0, %s33
      %s37 = sphi 0, %s36
      %s53 = sphi 0, %s37
      %s57 = sphi 0, %s57
      %s59 = sphi 0, %s57
      %s60 = sphi 0, %s59
      %s74 = sphi 0, %s60
      %s78 = sphi 0, %s78
      %s80 = sphi 0, %s78
      %s81 = sphi 0, %s80
      %s95 = sphi 0, %s81
      %s99 = sphi 0, %s99
      %s101 = sphi 0, %s99
      %s102 = sphi 0, %s101
      %s116 = sphi 0, %s102
      %s120 = sphi 0, %s120
      %s122 = sphi 0, %s120
      %s123 = sphi 0, %s122
      %s137 = sphi 0, %s123
      %s141 = sphi 0, %s141
      %s143 = sphi 0, %s141
      %s144 = sphi 0, %s143
      %s158 = sphi 0, %s144
      %s162 = sphi 0, %s162
      %s164 = sphi 0, %s162
      %s165 = sphi 0, %s164
      %s179 = sphi 0, %s165
      %s183 = sphi 0, %s183
      %s185 = sphi 0, %s183
      %s186 = sphi 0, %s185
      %s200 = sphi 0, %s186
      %s204 = sphi 0, %s204
      %s206 = sphi 0, %s204
      %s207 = sphi 0, %s206
      %s221 = sphi 0, %s207
      %s225 = sphi 0, %s225
      %s227 = sphi 0, %s225
      %s228 = sphi 0, %s227
      %s242 = sphi 0, %s228
      %s246 = sphi 0, %s246
      %s248 = sphi 0, %s246
      %s249 = sphi 0, %s248
      %s263 = sphi 0, %s249
      %s267 = sphi 0, %s267
      %s269 = sphi 0, %s267
      %s270 = sphi 0, %s269
      %s284 = sphi 0, %s270
      %s288 = sphi 0, %s288
      %s290 = sphi 0, %s288
      %s291 = sphi 0, %s290
      %s305 = sphi 0, %s291
      %s311 = sphi 0, %s313
      %s314 = sphi 0, %s311
      %s315 = sphi 0, %s314
      %s331 = sphi 0, %s315
    $region4: #{custom_model_forward.1} parent=1 // loop_header_branch
      %26 = sbr.rel (%p24) target = $region8
    $region5: #{custom_model_forward.1} parent=1 // loop_body
      %s28 = ssub.s32 %s23, 1
      %s29 = ssub.s32 %s23, 2
      %s30 = sadd.s32 %s23, 1
      %s31 = ssub.s32 %s23, %s30
      %p32 = scmp.eq.s32.totalorder %s31, 0
      %s34 = sadd.s32 %s33, 1
      %s35 = scalar_select %p32, %s33, %s34
      %p38 = pneg %p32
      %p39 = scmp.eq.s32.totalorder %s23, 1
      %p40 = por %p38, %p39
      %p41 = scmp.ne.s32.totalorder %s33, %s36
      %p42 = scmp.eq.s32.totalorder %s23, 0
      %p43 = por %p41, %p42
      %p44 = scmp.ne.s32.totalorder %s33, %s36
      %p45 = scmp.eq.s32.totalorder %s28, 1
      %p46 = por %p44, %p45
      %p47 = scmp.ne.s32.totalorder %s36, %s37
      %p48 = scmp.eq.s32.totalorder %s28, 0
      %p49 = por %p47, %p48
      %p50 = scmp.ne.s32.totalorder %s36, %s37
      %p51 = scmp.eq.s32.totalorder %s29, 1
      %p52 = por %p50, %p51
      %p54 = scmp.ne.s32.totalorder %s37, %s53
      %p55 = scmp.eq.s32.totalorder %s29, 0
      %p56 = por %p54, %p55
      %s58 = sadd.s32 %s57, 1
      %p61 = scmp.eq.s32.totalorder %s23, 1
      %p62 = scmp.ne.s32.totalorder %s57, %s59
      %p63 = scmp.eq.s32.totalorder %s23, 0
      %p64 = por %p62, %p63
      %p65 = scmp.ne.s32.totalorder %s57, %s59
      %p66 = scmp.eq.s32.totalorder %s28, 1
      %p67 = por %p65, %p66
      %p68 = scmp.ne.s32.totalorder %s59, %s60
      %p69 = scmp.eq.s32.totalorder %s28, 0
      %p70 = por %p68, %p69
      %p71 = scmp.ne.s32.totalorder %s59, %s60
      %p72 = scmp.eq.s32.totalorder %s29, 1
      %p73 = por %p71, %p72
      %p75 = scmp.ne.s32.totalorder %s60, %s74
      %p76 = scmp.eq.s32.totalorder %s29, 0
      %p77 = por %p75, %p76
      %s79 = sadd.s32 %s78, 1
      %p82 = scmp.eq.s32.totalorder %s23, 1
      %p83 = scmp.ne.s32.totalorder %s78, %s80
      %p84 = scmp.eq.s32.totalorder %s23, 0
      %p85 = por %p83, %p84
      %p86 = scmp.ne.s32.totalorder %s78, %s80
      %p87 = scmp.eq.s32.totalorder %s28, 1
      %p88 = por %p86, %p87
      %p89 = scmp.ne.s32.totalorder %s80, %s81
      %p90 = scmp.eq.s32.totalorder %s28, 0
      %p91 = por %p89, %p90
      %p92 = scmp.ne.s32.totalorder %s80, %s81
      %p93 = scmp.eq.s32.totalorder %s29, 1
      %p94 = por %p92, %p93
      %p96 = scmp.ne.s32.totalorder %s81, %s95
      %p97 = scmp.eq.s32.totalorder %s29, 0
      %p98 = por %p96, %p97
      %s100 = sadd.s32 %s99, 1
      %p103 = scmp.eq.s32.totalorder %s23, 1
      %p104 = scmp.ne.s32.totalorder %s99, %s101
      %p105 = scmp.eq.s32.totalorder %s23, 0
      %p106 = por %p104, %p105
      %p107 = scmp.ne.s32.totalorder %s99, %s101
      %p108 = scmp.eq.s32.totalorder %s28, 1
      %p109 = por %p107, %p108
      %p110 = scmp.ne.s32.totalorder %s101, %s102
      %p111 = scmp.eq.s32.totalorder %s28, 0
      %p112 = por %p110, %p111
      %p113 = scmp.ne.s32.totalorder %s101, %s102
      %p114 = scmp.eq.s32.totalorder %s29, 1
      %p115 = por %p113, %p114
      %p117 = scmp.ne.s32.totalorder %s102, %s116
      %p118 = scmp.eq.s32.totalorder %s29, 0
      %p119 = por %p117, %p118
      %s121 = sadd.s32 %s120, 1
      %p124 = scmp.eq.s32.totalorder %s23, 1
      %p125 = scmp.ne.s32.totalorder %s120, %s122
      %p126 = scmp.eq.s32.totalorder %s23, 0
      %p127 = por %p125, %p126
      %p128 = scmp.ne.s32.totalorder %s120, %s122
      %p129 = scmp.eq.s32.totalorder %s28, 1
      %p130 = por %p128, %p129
      %p131 = scmp.ne.s32.totalorder %s122, %s123
      %p132 = scmp.eq.s32.totalorder %s28, 0
      %p133 = por %p131, %p132
      %p134 = scmp.ne.s32.totalorder %s122, %s123
      %p135 = scmp.eq.s32.totalorder %s29, 1
      %p136 = por %p134, %p135
      %p138 = scmp.ne.s32.totalorder %s123, %s137
      %p139 = scmp.eq.s32.totalorder %s29, 0
      %p140 = por %p138, %p139
      %s142 = sadd.s32 %s141, 1
      %p145 = scmp.eq.s32.totalorder %s23, 1
      %p146 = scmp.ne.s32.totalorder %s141, %s143
      %p147 = scmp.eq.s32.totalorder %s23, 0
      %p148 = por %p146, %p147
      %p149 = scmp.ne.s32.totalorder %s141, %s143
      %p150 = scmp.eq.s32.totalorder %s28, 1
      %p151 = por %p149, %p150
      %p152 = scmp.ne.s32.totalorder %s143, %s144
      %p153 = scmp.eq.s32.totalorder %s28, 0
      %p154 = por %p152, %p153
      %p155 = scmp.ne.s32.totalorder %s143, %s144
      %p156 = scmp.eq.s32.totalorder %s29, 1
      %p157 = por %p155, %p156
      %p159 = scmp.ne.s32.totalorder %s144, %s158
      %p160 = scmp.eq.s32.totalorder %s29, 0
      %p161 = por %p159, %p160
      %s163 = sadd.s32 %s162, 1
      %p166 = scmp.eq.s32.totalorder %s23, 1
      %p167 = scmp.ne.s32.totalorder %s162, %s164
      %p168 = scmp.eq.s32.totalorder %s23, 0
      %p169 = por %p167, %p168
      %p170 = scmp.ne.s32.totalorder %s162, %s164
      %p171 = scmp.eq.s32.totalorder %s28, 1
      %p172 = por %p170, %p171
      %p173 = scmp.ne.s32.totalorder %s164, %s165
      %p174 = scmp.eq.s32.totalorder %s28, 0
      %p175 = por %p173, %p174
      %p176 = scmp.ne.s32.totalorder %s164, %s165
      %p177 = scmp.eq.s32.totalorder %s29, 1
      %p178 = por %p176, %p177
      %p180 = scmp.ne.s32.totalorder %s165, %s179
      %p181 = scmp.eq.s32.totalorder %s29, 0
      %p182 = por %p180, %p181
      %s184 = sadd.s32 %s183, 1
      %p187 = scmp.eq.s32.totalorder %s23, 1
      %p188 = scmp.ne.s32.totalorder %s183, %s185
      %p189 = scmp.eq.s32.totalorder %s23, 0
      %p190 = por %p188, %p189
      %p191 = scmp.ne.s32.totalorder %s183, %s185
      %p192 = scmp.eq.s32.totalorder %s28, 1
      %p193 = por %p191, %p192
      %p194 = scmp.ne.s32.totalorder %s185, %s186
      %p195 = scmp.eq.s32.totalorder %s28, 0
      %p196 = por %p194, %p195
      %p197 = scmp.ne.s32.totalorder %s185, %s186
      %p198 = scmp.eq.s32.totalorder %s29, 1
      %p199 = por %p197, %p198
      %p201 = scmp.ne.s32.totalorder %s186, %s200
      %p202 = scmp.eq.s32.totalorder %s29, 0
      %p203 = por %p201, %p202
      %s205 = sadd.s32 %s204, 1
      %p208 = scmp.eq.s32.totalorder %s23, 1
      %p209 = scmp.ne.s32.totalorder %s204, %s206
      %p210 = scmp.eq.s32.totalorder %s23, 0
      %p211 = por %p209, %p210
      %p212 = scmp.ne.s32.totalorder %s204, %s206
      %p213 = scmp.eq.s32.totalorder %s28, 1
      %p214 = por %p212, %p213
      %p215 = scmp.ne.s32.totalorder %s206, %s207
      %p216 = scmp.eq.s32.totalorder %s28, 0
      %p217 = por %p215, %p216
      %p218 = scmp.ne.s32.totalorder %s206, %s207
      %p219 = scmp.eq.s32.totalorder %s29, 1
      %p220 = por %p218, %p219
      %p222 = scmp.ne.s32.totalorder %s207, %s221
      %p223 = scmp.eq.s32.totalorder %s29, 0
      %p224 = por %p222, %p223
      %s226 = sadd.s32 %s225, 1
      %p229 = scmp.eq.s32.totalorder %s23, 1
      %p230 = scmp.ne.s32.totalorder %s225, %s227
      %p231 = scmp.eq.s32.totalorder %s23, 0
      %p232 = por %p230, %p231
      %p233 = scmp.ne.s32.totalorder %s225, %s227
      %p234 = scmp.eq.s32.totalorder %s28, 1
      %p235 = por %p233, %p234
      %p236 = scmp.ne.s32.totalorder %s227, %s228
      %p237 = scmp.eq.s32.totalorder %s28, 0
      %p238 = por %p236, %p237
      %p239 = scmp.ne.s32.totalorder %s227, %s228
      %p240 = scmp.eq.s32.totalorder %s29, 1
      %p241 = por %p239, %p240
      %p243 = scmp.ne.s32.totalorder %s228, %s242
      %p244 = scmp.eq.s32.totalorder %s29, 0
      %p245 = por %p243, %p244
      %s247 = sadd.s32 %s246, 1
      %p250 = scmp.eq.s32.totalorder %s23, 1
      %p251 = scmp.ne.s32.totalorder %s246, %s248
      %p252 = scmp.eq.s32.totalorder %s23, 0
      %p253 = por %p251, %p252
      %p254 = scmp.ne.s32.totalorder %s246, %s248
      %p255 = scmp.eq.s32.totalorder %s28, 1
      %p256 = por %p254, %p255
      %p257 = scmp.ne.s32.totalorder %s248, %s249
      %p258 = scmp.eq.s32.totalorder %s28, 0
      %p259 = por %p257, %p258
      %p260 = scmp.ne.s32.totalorder %s248, %s249
      %p261 = scmp.eq.s32.totalorder %s29, 1
      %p262 = por %p260, %p261
      %p264 = scmp.ne.s32.totalorder %s249, %s263
      %p265 = scmp.eq.s32.totalorder %s29, 0
      %p266 = por %p264, %p265
      %s268 = sadd.s32 %s267, 1
      %p271 = scmp.eq.s32.totalorder %s23, 1
      %p272 = scmp.ne.s32.totalorder %s267, %s269
      %p273 = scmp.eq.s32.totalorder %s23, 0
      %p274 = por %p272, %p273
      %p275 = scmp.ne.s32.totalorder %s267, %s269
      %p276 = scmp.eq.s32.totalorder %s28, 1
      %p277 = por %p275, %p276
      %p278 = scmp.ne.s32.totalorder %s269, %s270
      %p279 = scmp.eq.s32.totalorder %s28, 0
      %p280 = por %p278, %p279
      %p281 = scmp.ne.s32.totalorder %s269, %s270
      %p282 = scmp.eq.s32.totalorder %s29, 1
      %p283 = por %p281, %p282
      %p285 = scmp.ne.s32.totalorder %s270, %s284
      %p286 = scmp.eq.s32.totalorder %s29, 0
      %p287 = por %p285, %p286
      %s289 = sadd.s32 %s288, 1
      %p292 = scmp.eq.s32.totalorder %s23, 1
      %p293 = scmp.ne.s32.totalorder %s288, %s290
      %p294 = scmp.eq.s32.totalorder %s23, 0
      %p295 = por %p293, %p294
      %p296 = scmp.ne.s32.totalorder %s288, %s290
      %p297 = scmp.eq.s32.totalorder %s28, 1
      %p298 = por %p296, %p297
      %p299 = scmp.ne.s32.totalorder %s290, %s291
      %p300 = scmp.eq.s32.totalorder %s28, 0
      %p301 = por %p299, %p300
      %p302 = scmp.ne.s32.totalorder %s290, %s291
      %p303 = scmp.eq.s32.totalorder %s29, 1
      %p304 = por %p302, %p303
      %p306 = scmp.ne.s32.totalorder %s291, %s305
      %p307 = scmp.eq.s32.totalorder %s29, 0
      %p308 = por %p306, %p307
      %s309 = ssub.s32 %s23, %s30
      %p310 = scmp.eq.s32.totalorder %s309, 0
      %s312 = sadd.s32 %s311, 1
      %s313 = scalar_select %p310, %s311, %s312
      %p316 = pneg %p310
      %p317 = scmp.eq.s32.totalorder %s23, 1
      %p318 = por %p316, %p317
      %p319 = scmp.ne.s32.totalorder %s311, %s314
      %p320 = scmp.eq.s32.totalorder %s23, 0
      %p321 = por %p319, %p320
      %p322 = scmp.ne.s32.totalorder %s311, %s314
      %p323 = scmp.eq.s32.totalorder %s28, 1
      %p324 = por %p322, %p323
      %p325 = scmp.ne.s32.totalorder %s314, %s315
      %p326 = scmp.eq.s32.totalorder %s28, 0
      %p327 = por %p325, %p326
      %p328 = scmp.ne.s32.totalorder %s314, %s315
      %p329 = scmp.eq.s32.totalorder %s29, 1
      %p330 = por %p328, %p329
      %p332 = scmp.ne.s32.totalorder %s315, %s331
      %p333 = scmp.eq.s32.totalorder %s29, 0
      %p334 = por %p332, %p333
      %p335 = scmp.le.s32.totalorder 1, %s23
      %p336 = scmp.lt.s32.totalorder %s23, 3
      %p337 = pnand %p335, %p336
      %p338 = pneg %p337
      // Predicated region
      $region9: #{custom_model_forward.1} parent=5 // pred_check
        _
      $region10: #{custom_model_forward.1} parent=5 // pred_check_branch
        %340 = sbr.rel (%p337) target = $region12
      $region11: #{custom_model_forward.1} parent=5 // pred_region
        %s341 = ssub.s32 %s23, 1
        // Predicated region
        $region13: #{custom_model_forward.1} parent=11 // pred_check
          %p342 = pneg %p70
        $region14: #{custom_model_forward.1} parent=11 // pred_check_branch
          %344 = sbr.rel (%p342) target = $region16
        $region15: #{custom_model_forward.1} parent=11 // pred_region
          _
        $region16: #{custom_model_forward.1} parent=11 // pred_fallthru
          _
        // Predicated region
        $region17: #{custom_model_forward.1} parent=11 // pred_check
          %p345 = pneg %p91
        $region18: #{custom_model_forward.1} parent=11 // pred_check_branch
          %347 = sbr.rel (%p345) target = $region20
        $region19: #{custom_model_forward.1} parent=11 // pred_region
          _
        $region20: #{custom_model_forward.1} parent=11 // pred_fallthru
          _
        // Predicated region
        $region21: #{custom_model_forward.1} parent=11 // pred_check
          %p348 = pneg %p112
        $region22: #{custom_model_forward.1} parent=11 // pred_check_branch
          %350 = sbr.rel (%p348) target = $region24
        $region23: #{custom_model_forward.1} parent=11 // pred_region
          %352 = vsyncadd [#allocation10], 0
          %s353 = sshll.u32 %s3, 4
          %s354 = int_to_ptr.hbm [resolvable:$true] %s353
          %s355 = sshll.u32 [#allocation9], 4
          %s356 = int_to_ptr.vmem [resolvable:$true] %s355
          %361 = dma.hbm_to_vmem [thread:$0]  %s354, 2304, %s356, [#allocation10], 64, 64, 4
        $region24: #{custom_model_forward.1} parent=11 // pred_fallthru
          _
        // Predicated region
        $region25: #{custom_model_forward.1} parent=11 // pred_check
          %p362 = pneg %p133
        $region26: #{custom_model_forward.1} parent=11 // pred_check_branch
          %364 = sbr.rel (%p362) target = $region28
        $region27: #{custom_model_forward.1} parent=11 // pred_region
          _
        $region28: #{custom_model_forward.1} parent=11 // pred_fallthru
          _
        // Predicated region
        $region29: #{custom_model_forward.1} parent=11 // pred_check
          %p365 = pneg %p154
        $region30: #{custom_model_forward.1} parent=11 // pred_check_branch
          %367 = sbr.rel (%p365) target = $region32
        $region31: #{custom_model_forward.1} parent=11 // pred_region
          _
        $region32: #{custom_model_forward.1} parent=11 // pred_fallthru
          _
        // Predicated region
        $region33: #{custom_model_forward.1} parent=11 // pred_check
          %p368 = pneg %p175
        $region34: #{custom_model_forward.1} parent=11 // pred_check_branch
          %370 = sbr.rel (%p368) target = $region36
        $region35: #{custom_model_forward.1} parent=11 // pred_region
          _
        $region36: #{custom_model_forward.1} parent=11 // pred_fallthru
          _
        // Predicated region
        $region37: #{custom_model_forward.1} parent=11 // pred_check
          %p371 = pneg %p196
        $region38: #{custom_model_forward.1} parent=11 // pred_check_branch
          %373 = sbr.rel (%p371) target = $region40
        $region39: #{custom_model_forward.1} parent=11 // pred_region
          _
        $region40: #{custom_model_forward.1} parent=11 // pred_fallthru
          _
        // Predicated region
        $region41: #{custom_model_forward.1} parent=11 // pred_check
          %p374 = pneg %p217
        $region42: #{custom_model_forward.1} parent=11 // pred_check_branch
          %376 = sbr.rel (%p374) target = $region44
        $region43: #{custom_model_forward.1} parent=11 // pred_region
          _
        $region44: #{custom_model_forward.1} parent=11 // pred_fallthru
          _
        // Predicated region
        $region45: #{custom_model_forward.1} parent=11 // pred_check
          %p377 = pneg %p238
        $region46: #{custom_model_forward.1} parent=11 // pred_check_branch
          %379 = sbr.rel (%p377) target = $region48
        $region47: #{custom_model_forward.1} parent=11 // pred_region
          _
        $region48: #{custom_model_forward.1} parent=11 // pred_fallthru
          _
        // Predicated region
        $region49: #{custom_model_forward.1} parent=11 // pred_check
          %p380 = pneg %p259
        $region50: #{custom_model_forward.1} parent=11 // pred_check_branch
          %382 = sbr.rel (%p380) target = $region52
        $region51: #{custom_model_forward.1} parent=11 // pred_region
          _
        $region52: #{custom_model_forward.1} parent=11 // pred_fallthru
          _
        // Predicated region
        $region53: #{custom_model_forward.1} parent=11 // pred_check
          %p383 = pneg %p280
        $region54: #{custom_model_forward.1} parent=11 // pred_check_branch
          %385 = sbr.rel (%p383) target = $region56
        $region55: #{custom_model_forward.1} parent=11 // pred_region
          _
        $region56: #{custom_model_forward.1} parent=11 // pred_fallthru
          _
        // Predicated region
        $region57: #{custom_model_forward.1} parent=11 // pred_check
          %p386 = pneg %p301
        $region58: #{custom_model_forward.1} parent=11 // pred_check_branch
          %388 = sbr.rel (%p386) target = $region60
        $region59: #{custom_model_forward.1} parent=11 // pred_region
          _
        $region60: #{custom_model_forward.1} parent=11 // pred_fallthru
          _
      $region12: #{custom_model_forward.1} parent=5 // pred_fallthru
        _
      %p389 = scmp.lt.s32.totalorder %s23, 2
      // Predicated region
      $region61: #{custom_model_forward.1} parent=5 // pred_check
        %p390 = pneg %p389
      $region62: #{custom_model_forward.1} parent=5 // pred_check_branch
        %392 = sbr.rel (%p390) target = $region64
      $region63: #{custom_model_forward.1} parent=5 // pred_region
        // Predicated region
        $region65: #{custom_model_forward.1} parent=63 // pred_check
          %p393 = pneg %p43
        $region66: #{custom_model_forward.1} parent=63 // pred_check_branch
          %395 = sbr.rel (%p393) target = $region68
        $region67: #{custom_model_forward.1} parent=63 // pred_region
          %p396 = scmp.lt.s32.totalorder %s23, 1
          %s397 = scalar_select %p396, %s23, 1
          %s398 = smul.addr %s397, 41
          %s399 = smul.addr %s398, 4
          %s400 = scalar_lea.vmem %s0, %s399
        $region68: #{custom_model_forward.1} parent=63 // pred_fallthru
          _
      $region64: #{custom_model_forward.1} parent=5 // pred_fallthru
        _
      %p401 = scmp.le.s32.totalorder 1, %s23
      %p402 = scmp.lt.s32.totalorder %s23, 3
      %p403 = pnand %p401, %p402
      %p404 = pneg %p403
      // Predicated region
      $region69: #{custom_model_forward.1} parent=5 // pred_check
        _
      $region70: #{custom_model_forward.1} parent=5 // pred_check_branch
        %406 = sbr.rel (%p403) target = $region72
      $region71: #{custom_model_forward.1} parent=5 // pred_region
        %s407 = ssub.s32 %s23, 1
        // Predicated region
        $region73: #{custom_model_forward.1} parent=71 // pred_check
          %p408 = pneg %p112
        $region74: #{custom_model_forward.1} parent=71 // pred_check_branch
          %410 = sbr.rel (%p408) target = $region76
        $region75: #{custom_model_forward.1} parent=71 // pred_region
          %412 = dma.done [#allocation10], 2304
        $region76: #{custom_model_forward.1} parent=71 // pred_fallthru
          _
        %p413 = scmp.lt.s32.totalorder %s28, 1
        %s414 = scalar_select %p413, %s28, 1
        %s415 = smul.addr %s414, 41
        %s416 = smul.addr %s415, 4
        %s417 = scalar_lea.vmem %s0, %s416
        %p418 = pneg %p49
        %p419 = pneg %p46
        %p420 = pneg %p70
        %p421 = pneg %p67
        %p422 = pneg %p91
        %p423 = pneg %p88
        %p424 = pneg %p112
        %p425 = pneg %p109
        %p426 = pneg %p133
        %p427 = pneg %p130
        %p428 = pneg %p154
        %p429 = pneg %p151
        %p430 = pneg %p175
        %p431 = pneg %p172
        %p432 = pneg %p196
        %p433 = pneg %p193
        %p434 = pneg %p217
        %p435 = pneg %p214
        %p436 = pneg %p238
        %p437 = pneg %p235
        %p438 = pneg %p259
        %p439 = pneg %p256
        %p440 = pneg %p280
        %p441 = pneg %p277
        %p442 = pneg %p301
        %p443 = pneg %p298
        %p444 = pneg %p327
        %p445 = pneg %p324
        %s446 = sand.u32 %s314, 1
        %s447 = scalar_lea.sflag [#allocation11], %s446
        %s448 = sand.u32 %s314, 1
        %s449 = scalar_lea.vmem [#allocation12], %s448
        %p450 = scmp.lt.s32.totalorder %s28, 1
        %s451 = scalar_select %p450, %s28, 1
        %s452 = smul.addr %s451, 41
        %s453 = smul.addr %s452, 4
        %s454 = scalar_lea.vmem %s0, %s453
        %v456 = vld [vmem:[%s454] sm:$0xf]
        %v457 = vld [vmem:[%s454 + $0x4] sm:$0xf]
        %v458 = vld [vmem:[%s454 + $0x8] sm:$0xf]
        %v459 = vld [vmem:[%s454 + $0xc] sm:$0xf]
        %v460 = vld [vmem:[%s454 + $0x10] sm:$0xf]
        %v461 = vld [vmem:[%s454 + $0x14] sm:$0xf]
        %v462 = vld [vmem:[%s454 + $0x18] sm:$0xf]
        %v463 = vld [vmem:[%s454 + $0x1c] sm:$0xf]
        %v464 = vld [vmem:[%s454 + $0x20] sm:$0xf]
        %v465 = vld [vmem:[%s454 + $0x24] sm:$0xf]
        %v466 = vld [vmem:[%s454 + $0x28] sm:$0xf]
        %v467 = vld [vmem:[%s454 + $0x2c] sm:$0xf]
        %v468 = vld [vmem:[%s454 + $0x30] sm:$0xf]
        %v469 = vld [vmem:[%s454 + $0x34] sm:$0xf]
        %v470 = vld [vmem:[%s454 + $0x38] sm:$0xf]
        %v471 = vld [vmem:[%s454 + $0x3c] sm:$0xf]
        %v472 = vld [vmem:[%s454 + $0x40] sm:$0xf]
        %v473 = vld [vmem:[%s454 + $0x44] sm:$0xf]
        %v474 = vld [vmem:[%s454 + $0x48] sm:$0xf]
        %v475 = vld [vmem:[%s454 + $0x4c] sm:$0xf]
        %v476 = vld [vmem:[%s454 + $0x50] sm:$0xf]
        %v477 = vld [vmem:[%s454 + $0x54] sm:$0xf]
        %v478 = vld [vmem:[%s454 + $0x58] sm:$0xf]
        %v479 = vld [vmem:[%s454 + $0x5c] sm:$0xf]
        %v480 = vld [vmem:[%s454 + $0x60] sm:$0xf]
        %v481 = vld [vmem:[%s454 + $0x64] sm:$0xf]
        %v482 = vld [vmem:[%s454 + $0x68] sm:$0xf]
        %v483 = vld [vmem:[%s454 + $0x6c] sm:$0xf]
        %v484 = vld [vmem:[%s454 + $0x70] sm:$0xf]
        %v485 = vld [vmem:[%s454 + $0x74] sm:$0xf]
        %v486 = vld [vmem:[%s454 + $0x78] sm:$0xf]
        %v487 = vld [vmem:[%s454 + $0x7c] sm:$0xf]
        %v488 = vld [vmem:[%s454 + $0x80] sm:$0xf]
        %v489 = vld [vmem:[%s454 + $0x84] sm:$0xf]
        %v490 = vld [vmem:[%s454 + $0x88] sm:$0xf]
        %v491 = vld [vmem:[%s454 + $0x8c] sm:$0xf]
        %v492 = vld [vmem:[%s1] sm:$0x3]
        %v493 = vld [vmem:[%s454 + $0x90] sm:$0x1]
        %s494 = scalar_lea.vmem %s1, 2
        %v495 = vld [vmem:[%s494] sm:$0x3]
        %v533 = vunpack.c.l.b16 %v456
        %v534 = vunpack.c.l.b16 %v457
        %v535 = vunpack.c.l.b16 %v458
        %v536 = vunpack.c.l.b16 %v459
        %v537 = vunpack.c.l.b16 %v460
        %v538 = vunpack.c.l.b16 %v461
        %v539 = vunpack.c.l.b16 %v462
        %v540 = vunpack.c.l.b16 %v463
        %v541 = vunpack.c.l.b16 %v464
        %v542 = vunpack.c.l.b16 %v465
        %v543 = vunpack.c.l.b16 %v466
        %v544 = vunpack.c.l.b16 %v467
        %v545 = vunpack.c.l.b16 %v468
        %v546 = vunpack.c.l.b16 %v469
        %v547 = vunpack.c.l.b16 %v470
        %v548 = vunpack.c.l.b16 %v471
        %v549 = vunpack.c.l.b16 %v472
        %v550 = vunpack.c.l.b16 %v473
        %v551 = vunpack.c.l.b16 %v474
        %v552 = vunpack.c.l.b16 %v475
        %v553 = vunpack.c.l.b16 %v476
        %v554 = vunpack.c.l.b16 %v477
        %v555 = vunpack.c.l.b16 %v478
        %v556 = vunpack.c.l.b16 %v479
        %v557 = vunpack.c.l.b16 %v480
        %v558 = vunpack.c.l.b16 %v481
        %v559 = vunpack.c.l.b16 %v482
        %v560 = vunpack.c.l.b16 %v483
        %v561 = vunpack.c.l.b16 %v484
        %v562 = vunpack.c.l.b16 %v485
        %v563 = vunpack.c.l.b16 %v486
        %v564 = vunpack.c.l.b16 %v487
        %v565 = vunpack.c.l.b16 %v488
        %v566 = vunpack.c.l.b16 %v489
        %v567 = vunpack.c.l.b16 %v490
        %v568 = vunpack.c.l.b16 %v491
        %v569 = vunpack.c.l.b16 %v493
        %v570 = vpack.c.b16 %v534, %v533
        %v571 = vpack.c.b16 %v536, %v535
        %v572 = vpack.c.b16 %v538, %v537
        %v573 = vpack.c.b16 %v540, %v539
        %v574 = vpack.c.b16 %v542, %v541
        %v575 = vpack.c.b16 %v544, %v543
        %v576 = vpack.c.b16 %v546, %v545
        %v577 = vpack.c.b16 %v548, %v547
        %v578 = vpack.c.b16 %v550, %v549
        %v579 = vpack.c.b16 %v552, %v551
        %v580 = vpack.c.b16 %v554, %v553
        %v581 = vpack.c.b16 %v556, %v555
        %v582 = vpack.c.b16 %v558, %v557
        %v583 = vpack.c.b16 %v560, %v559
        %v584 = vpack.c.b16 %v562, %v561
        %v585 = vpack.c.b16 %v564, %v563
        %v586 = vpack.c.b16 %v566, %v565
        %v587 = vpack.c.b16 %v568, %v567
        %v588 = vpack.c.b16 %v569, %v569
        %vm589 = vsmask.f32 7424
        %v591 = vshrl.u32 %v570, 16
        %v593 = vshll.u32 %v570, 16
        %v595 = vrot.slane %v593, 1
        %v596 = vor.u32 %v591, %v595
        %v598 = vshll.u32 %v571, 16
        %v600 = vrot.slane %v598, 1
        %v601 = vsel %vm589, %v596, %v600
        %v602 = vshrl.u32 %v571, 16
        %v604 = vor.u32 %v602, %v600
        %v606 = vshll.u32 %v572, 16
        %v608 = vrot.slane %v606, 1
        %v609 = vsel %vm589, %v604, %v608
        %v610 = vshrl.u32 %v572, 16
        %v612 = vor.u32 %v610, %v608
        %v614 = vshll.u32 %v573, 16
        %v616 = vrot.slane %v614, 1
        %v617 = vsel %vm589, %v612, %v616
        %v618 = vshrl.u32 %v573, 16
        %v620 = vor.u32 %v618, %v616
        %v622 = vshll.u32 %v574, 16
        %v624 = vrot.slane %v622, 1
        %v625 = vsel %vm589, %v620, %v624
        %v626 = vshrl.u32 %v574, 16
        %v628 = vor.u32 %v626, %v624
        %v630 = vshll.u32 %v575, 16
        %v632 = vrot.slane %v630, 1
        %v633 = vsel %vm589, %v628, %v632
        %v634 = vshrl.u32 %v575, 16
        %v636 = vor.u32 %v634, %v632
        %v638 = vshll.u32 %v576, 16
        %v640 = vrot.slane %v638, 1
        %v641 = vsel %vm589, %v636, %v640
        %v642 = vshrl.u32 %v576, 16
        %v644 = vor.u32 %v642, %v640
        %v646 = vshll.u32 %v577, 16
        %v648 = vrot.slane %v646, 1
        %v649 = vsel %vm589, %v644, %v648
        %v650 = vshrl.u32 %v577, 16
        %v652 = vor.u32 %v650, %v648
        %v654 = vshll.u32 %v578, 16
        %v656 = vrot.slane %v654, 1
        %v657 = vsel %vm589, %v652, %v656
        %v658 = vshrl.u32 %v578, 16
        %v660 = vor.u32 %v658, %v656
        %v662 = vshll.u32 %v579, 16
        %v664 = vrot.slane %v662, 1
        %v665 = vsel %vm589, %v660, %v664
        %v666 = vshrl.u32 %v579, 16
        %v668 = vor.u32 %v666, %v664
        %v670 = vshll.u32 %v580, 16
        %v672 = vrot.slane %v670, 1
        %v673 = vsel %vm589, %v668, %v672
        %v674 = vshrl.u32 %v580, 16
        %v676 = vor.u32 %v674, %v672
        %v678 = vshll.u32 %v581, 16
        %v680 = vrot.slane %v678, 1
        %v681 = vsel %vm589, %v676, %v680
        %v682 = vshrl.u32 %v581, 16
        %v684 = vor.u32 %v682, %v680
        %v686 = vshll.u32 %v582, 16
        %v688 = vrot.slane %v686, 1
        %v689 = vsel %vm589, %v684, %v688
        %v690 = vshrl.u32 %v582, 16
        %v692 = vor.u32 %v690, %v688
        %v694 = vshll.u32 %v583, 16
        %v696 = vrot.slane %v694, 1
        %v697 = vsel %vm589, %v692, %v696
        %v698 = vshrl.u32 %v583, 16
        %v700 = vor.u32 %v698, %v696
        %v702 = vshll.u32 %v584, 16
        %v704 = vrot.slane %v702, 1
        %v705 = vsel %vm589, %v700, %v704
        %v706 = vshrl.u32 %v584, 16
        %v708 = vor.u32 %v706, %v704
        %v710 = vshll.u32 %v585, 16
        %v712 = vrot.slane %v710, 1
        %v713 = vsel %vm589, %v708, %v712
        %v714 = vshrl.u32 %v585, 16
        %v716 = vor.u32 %v714, %v712
        %v718 = vshll.u32 %v586, 16
        %v720 = vrot.slane %v718, 1
        %v721 = vsel %vm589, %v716, %v720
        %v722 = vshrl.u32 %v586, 16
        %v724 = vor.u32 %v722, %v720
        %v726 = vshll.u32 %v587, 16
        %v728 = vrot.slane %v726, 1
        %v729 = vsel %vm589, %v724, %v728
        %v730 = vshrl.u32 %v587, 16
        %v732 = vor.u32 %v730, %v728
        %v734 = vshll.u32 %v588, 16
        %v736 = vrot.slane %v734, 1
        %v737 = vsel %vm589, %v732, %v736
        %vm738 = vcmask 31744
        %v740 = vsel %vm738, %v601, 0
        %v743 = vsel %vm738, %v609, 0
        %v746 = vsel %vm738, %v617, 0
        %v749 = vsel %vm738, %v625, 0
        %v752 = vsel %vm738, %v633, 0
        %v755 = vsel %vm738, %v641, 0
        %v758 = vsel %vm738, %v649, 0
        %v761 = vsel %vm738, %v657, 0
        %v764 = vsel %vm738, %v665, 0
        %v767 = vsel %vm738, %v673, 0
        %v770 = vsel %vm738, %v681, 0
        %v773 = vsel %vm738, %v689, 0
        %v776 = vsel %vm738, %v697, 0
        %v779 = vsel %vm738, %v705, 0
        %v782 = vsel %vm738, %v713, 0
        %v785 = vsel %vm738, %v721, 0
        %v788 = vsel %vm738, %v729, 0
        %v791 = vsel %vm738, %v737, 0
        %vm793 = vcmask 1041408
        %v795 = vsel %vm793, %v495, 0
        %797 = vmatpush.bf16.msra.mxu0 0
        %798 = vmatpush.bf16.msra.mxu0 0
        %799 = vmatpush.bf16.msra.mxu0 0
        %800 = vmatpush.bf16.msra.mxu0 0
        %801 = vmatpush.bf16.msra.mxu0 0
        %802 = vmatpush.bf16.msra.mxu0 0
        %803 = vmatpush.bf16.msra.mxu0 0
        %804 = vmatpush.bf16.msra.mxu0 %v795
        %805 = vmatmul.bf16.gmra.mxu0 %v740
        %v806 = vpop.f32.mrf.mxu0
        %v807 = vadd.f32 0.0, %v806
        %v808 = vpop.f32.mrf.mxu0
        %v809 = vadd.f32 0.0, %v808
        %810 = vmatmul.bf16.gmra.mxu0 %v743
        %v811 = vpop.f32.mrf.mxu0
        %v812 = vadd.f32 0.0, %v811
        %v813 = vpop.f32.mrf.mxu0
        %v814 = vadd.f32 0.0, %v813
        %815 = vmatmul.bf16.gmra.mxu0 %v746
        %v816 = vpop.f32.mrf.mxu0
        %v817 = vadd.f32 0.0, %v816
        %v818 = vpop.f32.mrf.mxu0
        %v819 = vadd.f32 0.0, %v818
        %820 = vmatmul.bf16.gmra.mxu0 %v749
        %v821 = vpop.f32.mrf.mxu0
        %v822 = vadd.f32 0.0, %v821
        %v823 = vpop.f32.mrf.mxu0
        %v824 = vadd.f32 0.0, %v823
        %825 = vmatmul.bf16.gmra.mxu0 %v752
        %v826 = vpop.f32.mrf.mxu0
        %v827 = vadd.f32 0.0, %v826
        %v828 = vpop.f32.mrf.mxu0
        %v829 = vadd.f32 0.0, %v828
        %830 = vmatmul.bf16.gmra.mxu0 %v755
        %v831 = vpop.f32.mrf.mxu0
        %v832 = vadd.f32 0.0, %v831
        %v833 = vpop.f32.mrf.mxu0
        %v834 = vadd.f32 0.0, %v833
        %835 = vmatmul.bf16.gmra.mxu0 %v758
        %v836 = vpop.f32.mrf.mxu0
        %v837 = vadd.f32 0.0, %v836
        %v838 = vpop.f32.mrf.mxu0
        %v839 = vadd.f32 0.0, %v838
        %840 = vmatmul.bf16.gmra.mxu0 %v761
        %v841 = vpop.f32.mrf.mxu0
        %v842 = vadd.f32 0.0, %v841
        %v843 = vpop.f32.mrf.mxu0
        %v844 = vadd.f32 0.0, %v843
        %845 = vmatmul.bf16.gmra.mxu0 %v764
        %v846 = vpop.f32.mrf.mxu0
        %v847 = vadd.f32 0.0, %v846
        %v848 = vpop.f32.mrf.mxu0
        %v849 = vadd.f32 0.0, %v848
        %850 = vmatmul.bf16.gmra.mxu0 %v767
        %v851 = vpop.f32.mrf.mxu0
        %v852 = vadd.f32 0.0, %v851
        %v853 = vpop.f32.mrf.mxu0
        %v854 = vadd.f32 0.0, %v853
        %855 = vmatmul.bf16.gmra.mxu0 %v770
        %v856 = vpop.f32.mrf.mxu0
        %v857 = vadd.f32 0.0, %v856
        %v858 = vpop.f32.mrf.mxu0
        %v859 = vadd.f32 0.0, %v858
        %860 = vmatmul.bf16.gmra.mxu0 %v773
        %v861 = vpop.f32.mrf.mxu0
        %v862 = vadd.f32 0.0, %v861
        %v863 = vpop.f32.mrf.mxu0
        %v864 = vadd.f32 0.0, %v863
        %865 = vmatmul.bf16.gmra.mxu0 %v776
        %v866 = vpop.f32.mrf.mxu0
        %v867 = vadd.f32 0.0, %v866
        %v868 = vpop.f32.mrf.mxu0
        %v869 = vadd.f32 0.0, %v868
        %870 = vmatmul.bf16.gmra.mxu0 %v779
        %v871 = vpop.f32.mrf.mxu0
        %v872 = vadd.f32 0.0, %v871
        %v873 = vpop.f32.mrf.mxu0
        %v874 = vadd.f32 0.0, %v873
        %875 = vmatmul.bf16.gmra.mxu0 %v782
        %v876 = vpop.f32.mrf.mxu0
        %v877 = vadd.f32 0.0, %v876
        %v878 = vpop.f32.mrf.mxu0
        %v879 = vadd.f32 0.0, %v878
        %880 = vmatmul.bf16.gmra.mxu0 %v785
        %v881 = vpop.f32.mrf.mxu0
        %v882 = vadd.f32 0.0, %v881
        %v883 = vpop.f32.mrf.mxu0
        %v884 = vadd.f32 0.0, %v883
        %885 = vmatmul.bf16.gmra.mxu0 %v788
        %v886 = vpop.f32.mrf.mxu0
        %v887 = vadd.f32 0.0, %v886
        %v888 = vpop.f32.mrf.mxu0
        %v889 = vadd.f32 0.0, %v888
        %890 = vmatmul.bf16.gmra.mxu0 %v791
        %v891 = vpop.f32.mrf.mxu0
        %v892 = vadd.f32 0.0, %v891
        %v893 = vpop.f32.mrf.mxu0
        %v894 = vadd.f32 0.0, %v893
        %895 = vdwg.mxu0
        %v896 = vsel %vm738, %v570, 0
        %v898 = vsel %vm738, %v571, 0
        %v900 = vsel %vm738, %v572, 0
        %v902 = vsel %vm738, %v573, 0
        %v904 = vsel %vm738, %v574, 0
        %v906 = vsel %vm738, %v575, 0
        %v908 = vsel %vm738, %v576, 0
        %v910 = vsel %vm738, %v577, 0
        %v912 = vsel %vm738, %v578, 0
        %v914 = vsel %vm738, %v579, 0
        %v916 = vsel %vm738, %v580, 0
        %v918 = vsel %vm738, %v581, 0
        %v920 = vsel %vm738, %v582, 0
        %v922 = vsel %vm738, %v583, 0
        %v924 = vsel %vm738, %v584, 0
        %v926 = vsel %vm738, %v585, 0
        %v928 = vsel %vm738, %v586, 0
        %v930 = vsel %vm738, %v587, 0
        %v933 = vsel %vm793, %v492, 0
        %935 = vmatpush.bf16.msra.mxu0 0
        %936 = vmatpush.bf16.msra.mxu0 0
        %937 = vmatpush.bf16.msra.mxu0 0
        %938 = vmatpush.bf16.msra.mxu0 0
        %939 = vmatpush.bf16.msra.mxu0 0
        %940 = vmatpush.bf16.msra.mxu0 0
        %941 = vmatpush.bf16.msra.mxu0 0
        %942 = vmatpush.bf16.msra.mxu0 %v933
        %943 = vmatmul.bf16.gmra.mxu0 %v896
        %v944 = vpop.f32.mrf.mxu0
        %v945 = vadd.f32 %v807, %v944
        %v946 = vpop.f32.mrf.mxu0
        %v947 = vadd.f32 %v809, %v946
        %948 = vmatmul.bf16.gmra.mxu0 %v898
        %v949 = vpop.f32.mrf.mxu0
        %v950 = vadd.f32 %v812, %v949
        %v951 = vpop.f32.mrf.mxu0
        %v952 = vadd.f32 %v814, %v951
        %953 = vmatmul.bf16.gmra.mxu0 %v900
        %v954 = vpop.f32.mrf.mxu0
        %v955 = vadd.f32 %v817, %v954
        %v956 = vpop.f32.mrf.mxu0
        %v957 = vadd.f32 %v819, %v956
        %958 = vmatmul.bf16.gmra.mxu0 %v902
        %v959 = vpop.f32.mrf.mxu0
        %v960 = vadd.f32 %v822, %v959
        %v961 = vpop.f32.mrf.mxu0
        %v962 = vadd.f32 %v824, %v961
        %963 = vmatmul.bf16.gmra.mxu0 %v904
        %v964 = vpop.f32.mrf.mxu0
        %v965 = vadd.f32 %v827, %v964
        %v966 = vpop.f32.mrf.mxu0
        %v967 = vadd.f32 %v829, %v966
        %968 = vmatmul.bf16.gmra.mxu0 %v906
        %v969 = vpop.f32.mrf.mxu0
        %v970 = vadd.f32 %v832, %v969
        %v971 = vpop.f32.mrf.mxu0
        %v972 = vadd.f32 %v834, %v971
        %973 = vmatmul.bf16.gmra.mxu0 %v908
        %v974 = vpop.f32.mrf.mxu0
        %v975 = vadd.f32 %v837, %v974
        %v976 = vpop.f32.mrf.mxu0
        %v977 = vadd.f32 %v839, %v976
        %978 = vmatmul.bf16.gmra.mxu0 %v910
        %v979 = vpop.f32.mrf.mxu0
        %v980 = vadd.f32 %v842, %v979
        %v981 = vpop.f32.mrf.mxu0
        %v982 = vadd.f32 %v844, %v981
        %983 = vmatmul.bf16.gmra.mxu0 %v912
        %v984 = vpop.f32.mrf.mxu0
        %v985 = vadd.f32 %v847, %v984
        %v986 = vpop.f32.mrf.mxu0
        %v987 = vadd.f32 %v849, %v986
        %988 = vmatmul.bf16.gmra.mxu0 %v914
        %v989 = vpop.f32.mrf.mxu0
        %v990 = vadd.f32 %v852, %v989
        %v991 = vpop.f32.mrf.mxu0
        %v992 = vadd.f32 %v854, %v991
        %993 = vmatmul.bf16.gmra.mxu0 %v916
        %v994 = vpop.f32.mrf.mxu0
        %v995 = vadd.f32 %v857, %v994
        %v996 = vpop.f32.mrf.mxu0
        %v997 = vadd.f32 %v859, %v996
        %998 = vmatmul.bf16.gmra.mxu0 %v918
        %v999 = vpop.f32.mrf.mxu0
        %v1000 = vadd.f32 %v862, %v999
        %v1001 = vpop.f32.mrf.mxu0
        %v1002 = vadd.f32 %v864, %v1001
        %1003 = vmatmul.bf16.gmra.mxu0 %v920
        %v1004 = vpop.f32.mrf.mxu0
        %v1005 = vadd.f32 %v867, %v1004
        %v1006 = vpop.f32.mrf.mxu0
        %v1007 = vadd.f32 %v869, %v1006
        %1008 = vmatmul.bf16.gmra.mxu0 %v922
        %v1009 = vpop.f32.mrf.mxu0
        %v1010 = vadd.f32 %v872, %v1009
        %v1011 = vpop.f32.mrf.mxu0
        %v1012 = vadd.f32 %v874, %v1011
        %1013 = vmatmul.bf16.gmra.mxu0 %v924
        %v1014 = vpop.f32.mrf.mxu0
        %v1015 = vadd.f32 %v877, %v1014
        %v1016 = vpop.f32.mrf.mxu0
        %v1017 = vadd.f32 %v879, %v1016
        %1018 = vmatmul.bf16.gmra.mxu0 %v926
        %v1019 = vpop.f32.mrf.mxu0
        %v1020 = vadd.f32 %v882, %v1019
        %v1021 = vpop.f32.mrf.mxu0
        %v1022 = vadd.f32 %v884, %v1021
        %1023 = vmatmul.bf16.gmra.mxu0 %v928
        %v1024 = vpop.f32.mrf.mxu0
        %v1025 = vadd.f32 %v887, %v1024
        %v1026 = vpop.f32.mrf.mxu0
        %v1027 = vadd.f32 %v889, %v1026
        %1028 = vmatmul.bf16.gmra.mxu0 %v930
        %v1029 = vpop.f32.mrf.mxu0
        %v1030 = vadd.f32 %v892, %v1029
        %v1031 = vpop.f32.mrf.mxu0
        %v1032 = vadd.f32 %v894, %v1031
        %1033 = vdwg.mxu0
        %v1034 = vld [vmem:[%s454] sm:$0xe]
        %s1035 = scalar_lea.vmem %s1, 4
        %v1036 = vld [vmem:[%s1035] sm:$0x3]
        %v1038 = vunpack.c.l.b16 %v1034
        %v1039 = vpack.c.b16 %v534, %v1038
        %vm1040 = vcmask 1046528
        %v1041 = vrot.slane %v1039, 1
        %v1042 = vrot.slane %v571, 1
        %v1043 = vsel %vm1040, %v1041, %v1042
        %v1044 = vrot.slane %v572, 1
        %v1045 = vsel %vm1040, %v1042, %v1044
        %v1046 = vrot.slane %v573, 1
        %v1047 = vsel %vm1040, %v1044, %v1046
        %v1048 = vrot.slane %v574, 1
        %v1049 = vsel %vm1040, %v1046, %v1048
        %v1050 = vrot.slane %v575, 1
        %v1051 = vsel %vm1040, %v1048, %v1050
        %v1052 = vrot.slane %v576, 1
        %v1053 = vsel %vm1040, %v1050, %v1052
        %v1054 = vrot.slane %v577, 1
        %v1055 = vsel %vm1040, %v1052, %v1054
        %v1056 = vrot.slane %v578, 1
        %v1057 = vsel %vm1040, %v1054, %v1056
        %v1058 = vrot.slane %v579, 1
        %v1059 = vsel %vm1040, %v1056, %v1058
        %v1060 = vrot.slane %v580, 1
        %v1061 = vsel %vm1040, %v1058, %v1060
        %v1062 = vrot.slane %v581, 1
        %v1063 = vsel %vm1040, %v1060, %v1062
        %v1064 = vrot.slane %v582, 1
        %v1065 = vsel %vm1040, %v1062, %v1064
        %v1066 = vrot.slane %v583, 1
        %v1067 = vsel %vm1040, %v1064, %v1066
        %v1068 = vrot.slane %v584, 1
        %v1069 = vsel %vm1040, %v1066, %v1068
        %v1070 = vrot.slane %v585, 1
        %v1071 = vsel %vm1040, %v1068, %v1070
        %v1072 = vrot.slane %v586, 1
        %v1073 = vsel %vm1040, %v1070, %v1072
        %v1074 = vrot.slane %v587, 1
        %v1075 = vsel %vm1040, %v1072, %v1074
        %v1076 = vrot.slane %v588, 1
        %v1077 = vsel %vm1040, %v1074, %v1076
        %v1079 = vsel %vm738, %v1043, 0
        %v1082 = vsel %vm738, %v1045, 0
        %v1085 = vsel %vm738, %v1047, 0
        %v1088 = vsel %vm738, %v1049, 0
        %v1091 = vsel %vm738, %v1051, 0
        %v1094 = vsel %vm738, %v1053, 0
        %v1097 = vsel %vm738, %v1055, 0
        %v1100 = vsel %vm738, %v1057, 0
        %v1103 = vsel %vm738, %v1059, 0
        %v1106 = vsel %vm738, %v1061, 0
        %v1109 = vsel %vm738, %v1063, 0
        %v1112 = vsel %vm738, %v1065, 0
        %v1115 = vsel %vm738, %v1067, 0
        %v1118 = vsel %vm738, %v1069, 0
        %v1121 = vsel %vm738, %v1071, 0
        %v1124 = vsel %vm738, %v1073, 0
        %v1127 = vsel %vm738, %v1075, 0
        %v1130 = vsel %vm738, %v1077, 0
        %v1133 = vsel %vm793, %v1036, 0
        %1135 = vmatpush.bf16.msra.mxu0 0
        %1136 = vmatpush.bf16.msra.mxu0 0
        %1137 = vmatpush.bf16.msra.mxu0 0
        %1138 = vmatpush.bf16.msra.mxu0 0
        %1139 = vmatpush.bf16.msra.mxu0 0
        %1140 = vmatpush.bf16.msra.mxu0 0
        %1141 = vmatpush.bf16.msra.mxu0 0
        %1142 = vmatpush.bf16.msra.mxu0 %v1133
        %1143 = vmatmul.bf16.gmra.mxu0 %v1079
        %v1144 = vpop.f32.mrf.mxu0
        %v1145 = vadd.f32 0.0, %v1144
        %v1146 = vpop.f32.mrf.mxu0
        %v1147 = vadd.f32 0.0, %v1146
        %1148 = vmatmul.bf16.gmra.mxu0 %v1082
        %v1149 = vpop.f32.mrf.mxu0
        %v1150 = vadd.f32 0.0, %v1149
        %v1151 = vpop.f32.mrf.mxu0
        %v1152 = vadd.f32 0.0, %v1151
        %1153 = vmatmul.bf16.gmra.mxu0 %v1085
        %v1154 = vpop.f32.mrf.mxu0
        %v1155 = vadd.f32 0.0, %v1154
        %v1156 = vpop.f32.mrf.mxu0
        %v1157 = vadd.f32 0.0, %v1156
        %1158 = vmatmul.bf16.gmra.mxu0 %v1088
        %v1159 = vpop.f32.mrf.mxu0
        %v1160 = vadd.f32 0.0, %v1159
        %v1161 = vpop.f32.mrf.mxu0
        %v1162 = vadd.f32 0.0, %v1161
        %1163 = vmatmul.bf16.gmra.mxu0 %v1091
        %v1164 = vpop.f32.mrf.mxu0
        %v1165 = vadd.f32 0.0, %v1164
        %v1166 = vpop.f32.mrf.mxu0
        %v1167 = vadd.f32 0.0, %v1166
        %1168 = vmatmul.bf16.gmra.mxu0 %v1094
        %v1169 = vpop.f32.mrf.mxu0
        %v1170 = vadd.f32 0.0, %v1169
        %v1171 = vpop.f32.mrf.mxu0
        %v1172 = vadd.f32 0.0, %v1171
        %1173 = vmatmul.bf16.gmra.mxu0 %v1097
        %v1174 = vpop.f32.mrf.mxu0
        %v1175 = vadd.f32 0.0, %v1174
        %v1176 = vpop.f32.mrf.mxu0
        %v1177 = vadd.f32 0.0, %v1176
        %1178 = vmatmul.bf16.gmra.mxu0 %v1100
        %v1179 = vpop.f32.mrf.mxu0
        %v1180 = vadd.f32 0.0, %v1179
        %v1181 = vpop.f32.mrf.mxu0
        %v1182 = vadd.f32 0.0, %v1181
        %1183 = vmatmul.bf16.gmra.mxu0 %v1103
        %v1184 = vpop.f32.mrf.mxu0
        %v1185 = vadd.f32 0.0, %v1184
        %v1186 = vpop.f32.mrf.mxu0
        %v1187 = vadd.f32 0.0, %v1186
        %1188 = vmatmul.bf16.gmra.mxu0 %v1106
        %v1189 = vpop.f32.mrf.mxu0
        %v1190 = vadd.f32 0.0, %v1189
        %v1191 = vpop.f32.mrf.mxu0
        %v1192 = vadd.f32 0.0, %v1191
        %1193 = vmatmul.bf16.gmra.mxu0 %v1109
        %v1194 = vpop.f32.mrf.mxu0
        %v1195 = vadd.f32 0.0, %v1194
        %v1196 = vpop.f32.mrf.mxu0
        %v1197 = vadd.f32 0.0, %v1196
        %1198 = vmatmul.bf16.gmra.mxu0 %v1112
        %v1199 = vpop.f32.mrf.mxu0
        %v1200 = vadd.f32 0.0, %v1199
        %v1201 = vpop.f32.mrf.mxu0
        %v1202 = vadd.f32 0.0, %v1201
        %1203 = vmatmul.bf16.gmra.mxu0 %v1115
        %v1204 = vpop.f32.mrf.mxu0
        %v1205 = vadd.f32 0.0, %v1204
        %v1206 = vpop.f32.mrf.mxu0
        %v1207 = vadd.f32 0.0, %v1206
        %1208 = vmatmul.bf16.gmra.mxu0 %v1118
        %v1209 = vpop.f32.mrf.mxu0
        %v1210 = vadd.f32 0.0, %v1209
        %v1211 = vpop.f32.mrf.mxu0
        %v1212 = vadd.f32 0.0, %v1211
        %1213 = vmatmul.bf16.gmra.mxu0 %v1121
        %v1214 = vpop.f32.mrf.mxu0
        %v1215 = vadd.f32 0.0, %v1214
        %v1216 = vpop.f32.mrf.mxu0
        %v1217 = vadd.f32 0.0, %v1216
        %1218 = vmatmul.bf16.gmra.mxu0 %v1124
        %v1219 = vpop.f32.mrf.mxu0
        %v1220 = vadd.f32 0.0, %v1219
        %v1221 = vpop.f32.mrf.mxu0
        %v1222 = vadd.f32 0.0, %v1221
        %1223 = vmatmul.bf16.gmra.mxu0 %v1127
        %v1224 = vpop.f32.mrf.mxu0
        %v1225 = vadd.f32 0.0, %v1224
        %v1226 = vpop.f32.mrf.mxu0
        %v1227 = vadd.f32 0.0, %v1226
        %1228 = vmatmul.bf16.gmra.mxu0 %v1130
        %v1229 = vpop.f32.mrf.mxu0
        %v1230 = vadd.f32 0.0, %v1229
        %v1231 = vpop.f32.mrf.mxu0
        %v1232 = vadd.f32 0.0, %v1231
        %1233 = vdwg.mxu0
        %v1234 = vadd.f32 %v945, %v1145
        %v1235 = vadd.f32 %v947, %v1147
        %v1236 = vadd.f32 %v950, %v1150
        %v1237 = vadd.f32 %v952, %v1152
        %v1238 = vadd.f32 %v955, %v1155
        %v1239 = vadd.f32 %v957, %v1157
        %v1240 = vadd.f32 %v960, %v1160
        %v1241 = vadd.f32 %v962, %v1162
        %v1242 = vadd.f32 %v965, %v1165
        %v1243 = vadd.f32 %v967, %v1167
        %v1244 = vadd.f32 %v970, %v1170
        %v1245 = vadd.f32 %v972, %v1172
        %v1246 = vadd.f32 %v975, %v1175
        %v1247 = vadd.f32 %v977, %v1177
        %v1248 = vadd.f32 %v980, %v1180
        %v1249 = vadd.f32 %v982, %v1182
        %v1250 = vadd.f32 %v985, %v1185
        %v1251 = vadd.f32 %v987, %v1187
        %v1252 = vadd.f32 %v990, %v1190
        %v1253 = vadd.f32 %v992, %v1192
        %v1254 = vadd.f32 %v995, %v1195
        %v1255 = vadd.f32 %v997, %v1197
        %v1256 = vadd.f32 %v1000, %v1200
        %v1257 = vadd.f32 %v1002, %v1202
        %v1258 = vadd.f32 %v1005, %v1205
        %v1259 = vadd.f32 %v1007, %v1207
        %v1260 = vadd.f32 %v1010, %v1210
        %v1261 = vadd.f32 %v1012, %v1212
        %v1262 = vadd.f32 %v1015, %v1215
        %v1263 = vadd.f32 %v1017, %v1217
        %v1264 = vadd.f32 %v1020, %v1220
        %v1265 = vadd.f32 %v1022, %v1222
        %v1266 = vadd.f32 %v1025, %v1225
        %v1267 = vadd.f32 %v1027, %v1227
        %v1268 = vadd.f32 %v1030, %v1230
        %v1269 = vadd.f32 %v1032, %v1232
        %v1270 = vld [vmem:[%s454 + $0x8] sm:$0xe]
        %v1271 = vld [vmem:[%s454 + $0xc] sm:$0xf]
        %v1272 = vld [vmem:[%s454 + $0x10] sm:$0xf]
        %v1273 = vld [vmem:[%s454 + $0x14] sm:$0xf]
        %v1274 = vld [vmem:[%s454 + $0x18] sm:$0xf]
        %v1275 = vld [vmem:[%s454 + $0x1c] sm:$0xf]
        %v1276 = vld [vmem:[%s454 + $0x20] sm:$0xf]
        %v1277 = vld [vmem:[%s454 + $0x24] sm:$0xf]
        %v1278 = vld [vmem:[%s454 + $0x28] sm:$0xf]
        %v1279 = vld [vmem:[%s454 + $0x2c] sm:$0xf]
        %v1280 = vld [vmem:[%s454 + $0x30] sm:$0xf]
        %v1281 = vld [vmem:[%s454 + $0x34] sm:$0xf]
        %v1282 = vld [vmem:[%s454 + $0x38] sm:$0xf]
        %v1283 = vld [vmem:[%s454 + $0x3c] sm:$0xf]
        %v1284 = vld [vmem:[%s454 + $0x40] sm:$0xf]
        %v1285 = vld [vmem:[%s454 + $0x44] sm:$0xf]
        %v1286 = vld [vmem:[%s454 + $0x48] sm:$0xf]
        %v1287 = vld [vmem:[%s454 + $0x4c] sm:$0xf]
        %v1288 = vld [vmem:[%s454 + $0x50] sm:$0xf]
        %v1289 = vld [vmem:[%s454 + $0x54] sm:$0xf]
        %v1290 = vld [vmem:[%s454 + $0x58] sm:$0xf]
        %v1291 = vld [vmem:[%s454 + $0x5c] sm:$0xf]
        %v1292 = vld [vmem:[%s454 + $0x60] sm:$0xf]
        %v1293 = vld [vmem:[%s454 + $0x64] sm:$0xf]
        %v1294 = vld [vmem:[%s454 + $0x68] sm:$0xf]
        %v1295 = vld [vmem:[%s454 + $0x6c] sm:$0xf]
        %v1296 = vld [vmem:[%s454 + $0x70] sm:$0xf]
        %v1297 = vld [vmem:[%s454 + $0x74] sm:$0xf]
        %v1298 = vld [vmem:[%s454 + $0x78] sm:$0xf]
        %v1299 = vld [vmem:[%s454 + $0x7c] sm:$0xf]
        %v1300 = vld [vmem:[%s454 + $0x80] sm:$0xf]
        %v1301 = vld [vmem:[%s454 + $0x84] sm:$0xf]
        %v1302 = vld [vmem:[%s454 + $0x88] sm:$0xf]
        %v1303 = vld [vmem:[%s454 + $0x8c] sm:$0xf]
        %v1304 = vld [vmem:[%s454 + $0x90] sm:$0xf]
        %v1305 = vld [vmem:[%s454 + $0x94] sm:$0xf]
        %v1306 = vld [vmem:[%s454 + $0x98] sm:$0x1]
        %s1307 = scalar_lea.vmem %s1, 6
        %v1308 = vld [vmem:[%s1307] sm:$0x3]
        %v1346 = vunpack.c.l.b16 %v1270
        %v1347 = vunpack.c.l.b16 %v1271
        %v1348 = vunpack.c.l.b16 %v1272
        %v1349 = vunpack.c.l.b16 %v1273
        %v1350 = vunpack.c.l.b16 %v1274
        %v1351 = vunpack.c.l.b16 %v1275
        %v1352 = vunpack.c.l.b16 %v1276
        %v1353 = vunpack.c.l.b16 %v1277
        %v1354 = vunpack.c.l.b16 %v1278
        %v1355 = vunpack.c.l.b16 %v1279
        %v1356 = vunpack.c.l.b16 %v1280
        %v1357 = vunpack.c.l.b16 %v1281
        %v1358 = vunpack.c.l.b16 %v1282
        %v1359 = vunpack.c.l.b16 %v1283
        %v1360 = vunpack.c.l.b16 %v1284
        %v1361 = vunpack.c.l.b16 %v1285
        %v1362 = vunpack.c.l.b16 %v1286
        %v1363 = vunpack.c.l.b16 %v1287
        %v1364 = vunpack.c.l.b16 %v1288
        %v1365 = vunpack.c.l.b16 %v1289
        %v1366 = vunpack.c.l.b16 %v1290
        %v1367 = vunpack.c.l.b16 %v1291
        %v1368 = vunpack.c.l.b16 %v1292
        %v1369 = vunpack.c.l.b16 %v1293
        %v1370 = vunpack.c.l.b16 %v1294
        %v1371 = vunpack.c.l.b16 %v1295
        %v1372 = vunpack.c.l.b16 %v1296
        %v1373 = vunpack.c.l.b16 %v1297
        %v1374 = vunpack.c.l.b16 %v1298
        %v1375 = vunpack.c.l.b16 %v1299
        %v1376 = vunpack.c.l.b16 %v1300
        %v1377 = vunpack.c.l.b16 %v1301
        %v1378 = vunpack.c.l.b16 %v1302
        %v1379 = vunpack.c.l.b16 %v1303
        %v1380 = vunpack.c.l.b16 %v1304
        %v1381 = vunpack.c.l.b16 %v1305
        %v1382 = vunpack.c.l.b16 %v1306
        %v1383 = vpack.c.b16 %v1347, %v1346
        %v1384 = vpack.c.b16 %v1349, %v1348
        %v1385 = vpack.c.b16 %v1351, %v1350
        %v1386 = vpack.c.b16 %v1353, %v1352
        %v1387 = vpack.c.b16 %v1355, %v1354
        %v1388 = vpack.c.b16 %v1357, %v1356
        %v1389 = vpack.c.b16 %v1359, %v1358
        %v1390 = vpack.c.b16 %v1361, %v1360
        %v1391 = vpack.c.b16 %v1363, %v1362
        %v1392 = vpack.c.b16 %v1365, %v1364
        %v1393 = vpack.c.b16 %v1367, %v1366
        %v1394 = vpack.c.b16 %v1369, %v1368
        %v1395 = vpack.c.b16 %v1371, %v1370
        %v1396 = vpack.c.b16 %v1373, %v1372
        %v1397 = vpack.c.b16 %v1375, %v1374
        %v1398 = vpack.c.b16 %v1377, %v1376
        %v1399 = vpack.c.b16 %v1379, %v1378
        %v1400 = vpack.c.b16 %v1381, %v1380
        %v1401 = vpack.c.b16 %v1382, %v1382
        %v1402 = vrot.slane %v1383, 1
        %v1403 = vrot.slane %v1384, 1
        %v1404 = vsel %vm1040, %v1402, %v1403
        %v1405 = vrot.slane %v1385, 1
        %v1406 = vsel %vm1040, %v1403, %v1405
        %v1407 = vrot.slane %v1386, 1
        %v1408 = vsel %vm1040, %v1405, %v1407
        %v1409 = vrot.slane %v1387, 1
        %v1410 = vsel %vm1040, %v1407, %v1409
        %v1411 = vrot.slane %v1388, 1
        %v1412 = vsel %vm1040, %v1409, %v1411
        %v1413 = vrot.slane %v1389, 1
        %v1414 = vsel %vm1040, %v1411, %v1413
        %v1415 = vrot.slane %v1390, 1
        %v1416 = vsel %vm1040, %v1413, %v1415
        %v1417 = vrot.slane %v1391, 1
        %v1418 = vsel %vm1040, %v1415, %v1417
        %v1419 = vrot.slane %v1392, 1
        %v1420 = vsel %vm1040, %v1417, %v1419
        %v1421 = vrot.slane %v1393, 1
        %v1422 = vsel %vm1040, %v1419, %v1421
        %v1423 = vrot.slane %v1394, 1
        %v1424 = vsel %vm1040, %v1421, %v1423
        %v1425 = vrot.slane %v1395, 1
        %v1426 = vsel %vm1040, %v1423, %v1425
        %v1427 = vrot.slane %v1396, 1
        %v1428 = vsel %vm1040, %v1425, %v1427
        %v1429 = vrot.slane %v1397, 1
        %v1430 = vsel %vm1040, %v1427, %v1429
        %v1431 = vrot.slane %v1398, 1
        %v1432 = vsel %vm1040, %v1429, %v1431
        %v1433 = vrot.slane %v1399, 1
        %v1434 = vsel %vm1040, %v1431, %v1433
        %v1435 = vrot.slane %v1400, 1
        %v1436 = vsel %vm1040, %v1433, %v1435
        %v1437 = vrot.slane %v1401, 1
        %v1438 = vsel %vm1040, %v1435, %v1437
        %v1440 = vsel %vm738, %v1404, 0
        %v1443 = vsel %vm738, %v1406, 0
        %v1446 = vsel %vm738, %v1408, 0
        %v1449 = vsel %vm738, %v1410, 0
        %v1452 = vsel %vm738, %v1412, 0
        %v1455 = vsel %vm738, %v1414, 0
        %v1458 = vsel %vm738, %v1416, 0
        %v1461 = vsel %vm738, %v1418, 0
        %v1464 = vsel %vm738, %v1420, 0
        %v1467 = vsel %vm738, %v1422, 0
        %v1470 = vsel %vm738, %v1424, 0
        %v1473 = vsel %vm738, %v1426, 0
        %v1476 = vsel %vm738, %v1428, 0
        %v1479 = vsel %vm738, %v1430, 0
        %v1482 = vsel %vm738, %v1432, 0
        %v1485 = vsel %vm738, %v1434, 0
        %v1488 = vsel %vm738, %v1436, 0
        %v1491 = vsel %vm738, %v1438, 0
        %v1494 = vsel %vm793, %v1308, 0
        %1496 = vmatpush.bf16.msra.mxu0 0
        %1497 = vmatpush.bf16.msra.mxu0 0
        %1498 = vmatpush.bf16.msra.mxu0 0
        %1499 = vmatpush.bf16.msra.mxu0 0
        %1500 = vmatpush.bf16.msra.mxu0 0
        %1501 = vmatpush.bf16.msra.mxu0 0
        %1502 = vmatpush.bf16.msra.mxu0 0
        %1503 = vmatpush.bf16.msra.mxu0 %v1494
        %1504 = vmatmul.bf16.gmra.mxu0 %v1440
        %v1505 = vpop.f32.mrf.mxu0
        %v1506 = vadd.f32 0.0, %v1505
        %v1507 = vpop.f32.mrf.mxu0
        %v1508 = vadd.f32 0.0, %v1507
        %1509 = vmatmul.bf16.gmra.mxu0 %v1443
        %v1510 = vpop.f32.mrf.mxu0
        %v1511 = vadd.f32 0.0, %v1510
        %v1512 = vpop.f32.mrf.mxu0
        %v1513 = vadd.f32 0.0, %v1512
        %1514 = vmatmul.bf16.gmra.mxu0 %v1446
        %v1515 = vpop.f32.mrf.mxu0
        %v1516 = vadd.f32 0.0, %v1515
        %v1517 = vpop.f32.mrf.mxu0
        %v1518 = vadd.f32 0.0, %v1517
        %1519 = vmatmul.bf16.gmra.mxu0 %v1449
        %v1520 = vpop.f32.mrf.mxu0
        %v1521 = vadd.f32 0.0, %v1520
        %v1522 = vpop.f32.mrf.mxu0
        %v1523 = vadd.f32 0.0, %v1522
        %1524 = vmatmul.bf16.gmra.mxu0 %v1452
        %v1525 = vpop.f32.mrf.mxu0
        %v1526 = vadd.f32 0.0, %v1525
        %v1527 = vpop.f32.mrf.mxu0
        %v1528 = vadd.f32 0.0, %v1527
        %1529 = vmatmul.bf16.gmra.mxu0 %v1455
        %v1530 = vpop.f32.mrf.mxu0
        %v1531 = vadd.f32 0.0, %v1530
        %v1532 = vpop.f32.mrf.mxu0
        %v1533 = vadd.f32 0.0, %v1532
        %1534 = vmatmul.bf16.gmra.mxu0 %v1458
        %v1535 = vpop.f32.mrf.mxu0
        %v1536 = vadd.f32 0.0, %v1535
        %v1537 = vpop.f32.mrf.mxu0
        %v1538 = vadd.f32 0.0, %v1537
        %1539 = vmatmul.bf16.gmra.mxu0 %v1461
        %v1540 = vpop.f32.mrf.mxu0
        %v1541 = vadd.f32 0.0, %v1540
        %v1542 = vpop.f32.mrf.mxu0
        %v1543 = vadd.f32 0.0, %v1542
        %1544 = vmatmul.bf16.gmra.mxu0 %v1464
        %v1545 = vpop.f32.mrf.mxu0
        %v1546 = vadd.f32 0.0, %v1545
        %v1547 = vpop.f32.mrf.mxu0
        %v1548 = vadd.f32 0.0, %v1547
        %1549 = vmatmul.bf16.gmra.mxu0 %v1467
        %v1550 = vpop.f32.mrf.mxu0
        %v1551 = vadd.f32 0.0, %v1550
        %v1552 = vpop.f32.mrf.mxu0
        %v1553 = vadd.f32 0.0, %v1552
        %1554 = vmatmul.bf16.gmra.mxu0 %v1470
        %v1555 = vpop.f32.mrf.mxu0
        %v1556 = vadd.f32 0.0, %v1555
        %v1557 = vpop.f32.mrf.mxu0
        %v1558 = vadd.f32 0.0, %v1557
        %1559 = vmatmul.bf16.gmra.mxu0 %v1473
        %v1560 = vpop.f32.mrf.mxu0
        %v1561 = vadd.f32 0.0, %v1560
        %v1562 = vpop.f32.mrf.mxu0
        %v1563 = vadd.f32 0.0, %v1562
        %1564 = vmatmul.bf16.gmra.mxu0 %v1476
        %v1565 = vpop.f32.mrf.mxu0
        %v1566 = vadd.f32 0.0, %v1565
        %v1567 = vpop.f32.mrf.mxu0
        %v1568 = vadd.f32 0.0, %v1567
        %1569 = vmatmul.bf16.gmra.mxu0 %v1479
        %v1570 = vpop.f32.mrf.mxu0
        %v1571 = vadd.f32 0.0, %v1570
        %v1572 = vpop.f32.mrf.mxu0
        %v1573 = vadd.f32 0.0, %v1572
        %1574 = vmatmul.bf16.gmra.mxu0 %v1482
        %v1575 = vpop.f32.mrf.mxu0
        %v1576 = vadd.f32 0.0, %v1575
        %v1577 = vpop.f32.mrf.mxu0
        %v1578 = vadd.f32 0.0, %v1577
        %1579 = vmatmul.bf16.gmra.mxu0 %v1485
        %v1580 = vpop.f32.mrf.mxu0
        %v1581 = vadd.f32 0.0, %v1580
        %v1582 = vpop.f32.mrf.mxu0
        %v1583 = vadd.f32 0.0, %v1582
        %1584 = vmatmul.bf16.gmra.mxu0 %v1488
        %v1585 = vpop.f32.mrf.mxu0
        %v1586 = vadd.f32 0.0, %v1585
        %v1587 = vpop.f32.mrf.mxu0
        %v1588 = vadd.f32 0.0, %v1587
        %1589 = vmatmul.bf16.gmra.mxu0 %v1491
        %v1590 = vpop.f32.mrf.mxu0
        %v1591 = vadd.f32 0.0, %v1590
        %v1592 = vpop.f32.mrf.mxu0
        %v1593 = vadd.f32 0.0, %v1592
        %1594 = vdwg.mxu0
        %v1595 = vadd.f32 %v1234, %v1506
        %v1596 = vadd.f32 %v1235, %v1508
        %v1597 = vadd.f32 %v1236, %v1511
        %v1598 = vadd.f32 %v1237, %v1513
        %v1599 = vadd.f32 %v1238, %v1516
        %v1600 = vadd.f32 %v1239, %v1518
        %v1601 = vadd.f32 %v1240, %v1521
        %v1602 = vadd.f32 %v1241, %v1523
        %v1603 = vadd.f32 %v1242, %v1526
        %v1604 = vadd.f32 %v1243, %v1528
        %v1605 = vadd.f32 %v1244, %v1531
        %v1606 = vadd.f32 %v1245, %v1533
        %v1607 = vadd.f32 %v1246, %v1536
        %v1608 = vadd.f32 %v1247, %v1538
        %v1609 = vadd.f32 %v1248, %v1541
        %v1610 = vadd.f32 %v1249, %v1543
        %v1611 = vadd.f32 %v1250, %v1546
        %v1612 = vadd.f32 %v1251, %v1548
        %v1613 = vadd.f32 %v1252, %v1551
        %v1614 = vadd.f32 %v1253, %v1553
        %v1615 = vadd.f32 %v1254, %v1556
        %v1616 = vadd.f32 %v1255, %v1558
        %v1617 = vadd.f32 %v1256, %v1561
        %v1618 = vadd.f32 %v1257, %v1563
        %v1619 = vadd.f32 %v1258, %v1566
        %v1620 = vadd.f32 %v1259, %v1568
        %v1621 = vadd.f32 %v1260, %v1571
        %v1622 = vadd.f32 %v1261, %v1573
        %v1623 = vadd.f32 %v1262, %v1576
        %v1624 = vadd.f32 %v1263, %v1578
        %v1625 = vadd.f32 %v1264, %v1581
        %v1626 = vadd.f32 %v1265, %v1583
        %v1627 = vadd.f32 %v1266, %v1586
        %v1628 = vadd.f32 %v1267, %v1588
        %v1629 = vadd.f32 %v1268, %v1591
        %v1630 = vadd.f32 %v1269, %v1593
        %v1631 = vld [vmem:[%s454 + $0x98] sm:$0x3]
        %s1632 = scalar_lea.vmem %s1, 8
        %v1633 = vld [vmem:[%s1632] sm:$0x3]
        %v1635 = vunpack.c.l.b16 %v1631
        %v1636 = vpack.c.b16 %v1635, %v1635
        %vm1637 = vsmask.f32 6400
        %v1639 = vshrl.u32 %v1383, 16
        %v1641 = vrot.slane %v1639, 1
        %v1642 = vshll.u32 %v1383, 16
        %v1644 = vrot.slane %v1642, 2
        %v1645 = vor.u32 %v1641, %v1644
        %v1647 = vshrl.u32 %v1384, 16
        %v1649 = vrot.slane %v1647, 1
        %v1650 = vshll.u32 %v1384, 16
        %v1652 = vrot.slane %v1650, 2
        %v1653 = vor.u32 %v1649, %v1652
        %v1654 = vsel %vm1637, %v1645, %v1653
        %v1656 = vshrl.u32 %v1385, 16
        %v1658 = vrot.slane %v1656, 1
        %v1659 = vshll.u32 %v1385, 16
        %v1661 = vrot.slane %v1659, 2
        %v1662 = vor.u32 %v1658, %v1661
        %v1663 = vsel %vm1637, %v1653, %v1662
        %v1665 = vshrl.u32 %v1386, 16
        %v1667 = vrot.slane %v1665, 1
        %v1668 = vshll.u32 %v1386, 16
        %v1670 = vrot.slane %v1668, 2
        %v1671 = vor.u32 %v1667, %v1670
        %v1672 = vsel %vm1637, %v1662, %v1671
        %v1674 = vshrl.u32 %v1387, 16
        %v1676 = vrot.slane %v1674, 1
        %v1677 = vshll.u32 %v1387, 16
        %v1679 = vrot.slane %v1677, 2
        %v1680 = vor.u32 %v1676, %v1679
        %v1681 = vsel %vm1637, %v1671, %v1680
        %v1683 = vshrl.u32 %v1388, 16
        %v1685 = vrot.slane %v1683, 1
        %v1686 = vshll.u32 %v1388, 16
        %v1688 = vrot.slane %v1686, 2
        %v1689 = vor.u32 %v1685, %v1688
        %v1690 = vsel %vm1637, %v1680, %v1689
        %v1692 = vshrl.u32 %v1389, 16
        %v1694 = vrot.slane %v1692, 1
        %v1695 = vshll.u32 %v1389, 16
        %v1697 = vrot.slane %v1695, 2
        %v1698 = vor.u32 %v1694, %v1697
        %v1699 = vsel %vm1637, %v1689, %v1698
        %v1701 = vshrl.u32 %v1390, 16
        %v1703 = vrot.slane %v1701, 1
        %v1704 = vshll.u32 %v1390, 16
        %v1706 = vrot.slane %v1704, 2
        %v1707 = vor.u32 %v1703, %v1706
        %v1708 = vsel %vm1637, %v1698, %v1707
        %v1710 = vshrl.u32 %v1391, 16
        %v1712 = vrot.slane %v1710, 1
        %v1713 = vshll.u32 %v1391, 16
        %v1715 = vrot.slane %v1713, 2
        %v1716 = vor.u32 %v1712, %v1715
        %v1717 = vsel %vm1637, %v1707, %v1716
        %v1719 = vshrl.u32 %v1392, 16
        %v1721 = vrot.slane %v1719, 1
        %v1722 = vshll.u32 %v1392, 16
        %v1724 = vrot.slane %v1722, 2
        %v1725 = vor.u32 %v1721, %v1724
        %v1726 = vsel %vm1637, %v1716, %v1725
        %v1728 = vshrl.u32 %v1393, 16
        %v1730 = vrot.slane %v1728, 1
        %v1731 = vshll.u32 %v1393, 16
        %v1733 = vrot.slane %v1731, 2
        %v1734 = vor.u32 %v1730, %v1733
        %v1735 = vsel %vm1637, %v1725, %v1734
        %v1737 = vshrl.u32 %v1394, 16
        %v1739 = vrot.slane %v1737, 1
        %v1740 = vshll.u32 %v1394, 16
        %v1742 = vrot.slane %v1740, 2
        %v1743 = vor.u32 %v1739, %v1742
        %v1744 = vsel %vm1637, %v1734, %v1743
        %v1746 = vshrl.u32 %v1395, 16
        %v1748 = vrot.slane %v1746, 1
        %v1749 = vshll.u32 %v1395, 16
        %v1751 = vrot.slane %v1749, 2
        %v1752 = vor.u32 %v1748, %v1751
        %v1753 = vsel %vm1637, %v1743, %v1752
        %v1755 = vshrl.u32 %v1396, 16
        %v1757 = vrot.slane %v1755, 1
        %v1758 = vshll.u32 %v1396, 16
        %v1760 = vrot.slane %v1758, 2
        %v1761 = vor.u32 %v1757, %v1760
        %v1762 = vsel %vm1637, %v1752, %v1761
        %v1764 = vshrl.u32 %v1397, 16
        %v1766 = vrot.slane %v1764, 1
        %v1767 = vshll.u32 %v1397, 16
        %v1769 = vrot.slane %v1767, 2
        %v1770 = vor.u32 %v1766, %v1769
        %v1771 = vsel %vm1637, %v1761, %v1770
        %v1773 = vshrl.u32 %v1398, 16
        %v1775 = vrot.slane %v1773, 1
        %v1776 = vshll.u32 %v1398, 16
        %v1778 = vrot.slane %v1776, 2
        %v1779 = vor.u32 %v1775, %v1778
        %v1780 = vsel %vm1637, %v1770, %v1779
        %v1782 = vshrl.u32 %v1399, 16
        %v1784 = vrot.slane %v1782, 1
        %v1785 = vshll.u32 %v1399, 16
        %v1787 = vrot.slane %v1785, 2
        %v1788 = vor.u32 %v1784, %v1787
        %v1789 = vsel %vm1637, %v1779, %v1788
        %v1791 = vshrl.u32 %v1400, 16
        %v1793 = vrot.slane %v1791, 1
        %v1794 = vshll.u32 %v1400, 16
        %v1796 = vrot.slane %v1794, 2
        %v1797 = vor.u32 %v1793, %v1796
        %v1798 = vsel %vm1637, %v1788, %v1797
        %v1800 = vshrl.u32 %v1636, 16
        %v1802 = vrot.slane %v1800, 1
        %v1803 = vshll.u32 %v1636, 16
        %v1805 = vrot.slane %v1803, 2
        %v1806 = vor.u32 %v1802, %v1805
        %v1807 = vsel %vm1637, %v1797, %v1806
        %v1809 = vsel %vm738, %v1654, 0
        %v1812 = vsel %vm738, %v1663, 0
        %v1815 = vsel %vm738, %v1672, 0
        %v1818 = vsel %vm738, %v1681, 0
        %v1821 = vsel %vm738, %v1690, 0
        %v1824 = vsel %vm738, %v1699, 0
        %v1827 = vsel %vm738, %v1708, 0
        %v1830 = vsel %vm738, %v1717, 0
        %v1833 = vsel %vm738, %v1726, 0
        %v1836 = vsel %vm738, %v1735, 0
        %v1839 = vsel %vm738, %v1744, 0
        %v1842 = vsel %vm738, %v1753, 0
        %v1845 = vsel %vm738, %v1762, 0
        %v1848 = vsel %vm738, %v1771, 0
        %v1851 = vsel %vm738, %v1780, 0
        %v1854 = vsel %vm738, %v1789, 0
        %v1857 = vsel %vm738, %v1798, 0
        %v1860 = vsel %vm738, %v1807, 0
        %v1863 = vsel %vm793, %v1633, 0
        %1865 = vmatpush.bf16.msra.mxu0 0
        %1866 = vmatpush.bf16.msra.mxu0 0
        %1867 = vmatpush.bf16.msra.mxu0 0
        %1868 = vmatpush.bf16.msra.mxu0 0
        %1869 = vmatpush.bf16.msra.mxu0 0
        %1870 = vmatpush.bf16.msra.mxu0 0
        %1871 = vmatpush.bf16.msra.mxu0 0
        %1872 = vmatpush.bf16.msra.mxu0 %v1863
        %1873 = vmatmul.bf16.gmra.mxu0 %v1809
        %v1874 = vpop.f32.mrf.mxu0
        %v1875 = vadd.f32 0.0, %v1874
        %v1876 = vpop.f32.mrf.mxu0
        %v1877 = vadd.f32 0.0, %v1876
        %1878 = vmatmul.bf16.gmra.mxu0 %v1812
        %v1879 = vpop.f32.mrf.mxu0
        %v1880 = vadd.f32 0.0, %v1879
        %v1881 = vpop.f32.mrf.mxu0
        %v1882 = vadd.f32 0.0, %v1881
        %1883 = vmatmul.bf16.gmra.mxu0 %v1815
        %v1884 = vpop.f32.mrf.mxu0
        %v1885 = vadd.f32 0.0, %v1884
        %v1886 = vpop.f32.mrf.mxu0
        %v1887 = vadd.f32 0.0, %v1886
        %1888 = vmatmul.bf16.gmra.mxu0 %v1818
        %v1889 = vpop.f32.mrf.mxu0
        %v1890 = vadd.f32 0.0, %v1889
        %v1891 = vpop.f32.mrf.mxu0
        %v1892 = vadd.f32 0.0, %v1891
        %1893 = vmatmul.bf16.gmra.mxu0 %v1821
        %v1894 = vpop.f32.mrf.mxu0
        %v1895 = vadd.f32 0.0, %v1894
        %v1896 = vpop.f32.mrf.mxu0
        %v1897 = vadd.f32 0.0, %v1896
        %1898 = vmatmul.bf16.gmra.mxu0 %v1824
        %v1899 = vpop.f32.mrf.mxu0
        %v1900 = vadd.f32 0.0, %v1899
        %v1901 = vpop.f32.mrf.mxu0
        %v1902 = vadd.f32 0.0, %v1901
        %1903 = vmatmul.bf16.gmra.mxu0 %v1827
        %v1904 = vpop.f32.mrf.mxu0
        %v1905 = vadd.f32 0.0, %v1904
        %v1906 = vpop.f32.mrf.mxu0
        %v1907 = vadd.f32 0.0, %v1906
        %1908 = vmatmul.bf16.gmra.mxu0 %v1830
        %v1909 = vpop.f32.mrf.mxu0
        %v1910 = vadd.f32 0.0, %v1909
        %v1911 = vpop.f32.mrf.mxu0
        %v1912 = vadd.f32 0.0, %v1911
        %1913 = vmatmul.bf16.gmra.mxu0 %v1833
        %v1914 = vpop.f32.mrf.mxu0
        %v1915 = vadd.f32 0.0, %v1914
        %v1916 = vpop.f32.mrf.mxu0
        %v1917 = vadd.f32 0.0, %v1916
        %1918 = vmatmul.bf16.gmra.mxu0 %v1836
        %v1919 = vpop.f32.mrf.mxu0
        %v1920 = vadd.f32 0.0, %v1919
        %v1921 = vpop.f32.mrf.mxu0
        %v1922 = vadd.f32 0.0, %v1921
        %1923 = vmatmul.bf16.gmra.mxu0 %v1839
        %v1924 = vpop.f32.mrf.mxu0
        %v1925 = vadd.f32 0.0, %v1924
        %v1926 = vpop.f32.mrf.mxu0
        %v1927 = vadd.f32 0.0, %v1926
        %1928 = vmatmul.bf16.gmra.mxu0 %v1842
        %v1929 = vpop.f32.mrf.mxu0
        %v1930 = vadd.f32 0.0, %v1929
        %v1931 = vpop.f32.mrf.mxu0
        %v1932 = vadd.f32 0.0, %v1931
        %1933 = vmatmul.bf16.gmra.mxu0 %v1845
        %v1934 = vpop.f32.mrf.mxu0
        %v1935 = vadd.f32 0.0, %v1934
        %v1936 = vpop.f32.mrf.mxu0
        %v1937 = vadd.f32 0.0, %v1936
        %1938 = vmatmul.bf16.gmra.mxu0 %v1848
        %v1939 = vpop.f32.mrf.mxu0
        %v1940 = vadd.f32 0.0, %v1939
        %v1941 = vpop.f32.mrf.mxu0
        %v1942 = vadd.f32 0.0, %v1941
        %1943 = vmatmul.bf16.gmra.mxu0 %v1851
        %v1944 = vpop.f32.mrf.mxu0
        %v1945 = vadd.f32 0.0, %v1944
        %v1946 = vpop.f32.mrf.mxu0
        %v1947 = vadd.f32 0.0, %v1946
        %1948 = vmatmul.bf16.gmra.mxu0 %v1854
        %v1949 = vpop.f32.mrf.mxu0
        %v1950 = vadd.f32 0.0, %v1949
        %v1951 = vpop.f32.mrf.mxu0
        %v1952 = vadd.f32 0.0, %v1951
        %1953 = vmatmul.bf16.gmra.mxu0 %v1857
        %v1954 = vpop.f32.mrf.mxu0
        %v1955 = vadd.f32 0.0, %v1954
        %v1956 = vpop.f32.mrf.mxu0
        %v1957 = vadd.f32 0.0, %v1956
        %1958 = vmatmul.bf16.gmra.mxu0 %v1860
        %v1959 = vpop.f32.mrf.mxu0
        %v1960 = vadd.f32 0.0, %v1959
        %v1961 = vpop.f32.mrf.mxu0
        %v1962 = vadd.f32 0.0, %v1961
        %1963 = vdwg.mxu0
        %v1964 = vadd.f32 %v1595, %v1875
        %v1965 = vadd.f32 %v1596, %v1877
        %v1966 = vadd.f32 %v1597, %v1880
        %v1967 = vadd.f32 %v1598, %v1882
        %v1968 = vadd.f32 %v1599, %v1885
        %v1969 = vadd.f32 %v1600, %v1887
        %v1970 = vadd.f32 %v1601, %v1890
        %v1971 = vadd.f32 %v1602, %v1892
        %v1972 = vadd.f32 %v1603, %v1895
        %v1973 = vadd.f32 %v1604, %v1897
        %v1974 = vadd.f32 %v1605, %v1900
        %v1975 = vadd.f32 %v1606, %v1902
        %v1976 = vadd.f32 %v1607, %v1905
        %v1977 = vadd.f32 %v1608, %v1907
        %v1978 = vadd.f32 %v1609, %v1910
        %v1979 = vadd.f32 %v1610, %v1912
        %v1980 = vadd.f32 %v1611, %v1915
        %v1981 = vadd.f32 %v1612, %v1917
        %v1982 = vadd.f32 %v1613, %v1920
        %v1983 = vadd.f32 %v1614, %v1922
        %v1984 = vadd.f32 %v1615, %v1925
        %v1985 = vadd.f32 %v1616, %v1927
        %v1986 = vadd.f32 %v1617, %v1930
        %v1987 = vadd.f32 %v1618, %v1932
        %v1988 = vadd.f32 %v1619, %v1935
        %v1989 = vadd.f32 %v1620, %v1937
        %v1990 = vadd.f32 %v1621, %v1940
        %v1991 = vadd.f32 %v1622, %v1942
        %v1992 = vadd.f32 %v1623, %v1945
        %v1993 = vadd.f32 %v1624, %v1947
        %v1994 = vadd.f32 %v1625, %v1950
        %v1995 = vadd.f32 %v1626, %v1952
        %v1996 = vadd.f32 %v1627, %v1955
        %v1997 = vadd.f32 %v1628, %v1957
        %v1998 = vadd.f32 %v1629, %v1960
        %v1999 = vadd.f32 %v1630, %v1962
        %v2000 = vld [vmem:[%s454 + $0x8] sm:$0xc]
        %s2001 = scalar_lea.vmem %s1, 10
        %v2002 = vld [vmem:[%s2001] sm:$0x3]
        %v2004 = vunpack.c.l.b16 %v2000
        %v2005 = vpack.c.b16 %v1347, %v2004
        %vm2006 = vcmask 1045504
        %v2007 = vrot.slane %v2005, 2
        %v2008 = vrot.slane %v1384, 2
        %v2009 = vsel %vm2006, %v2007, %v2008
        %v2010 = vrot.slane %v1385, 2
        %v2011 = vsel %vm2006, %v2008, %v2010
        %v2012 = vrot.slane %v1386, 2
        %v2013 = vsel %vm2006, %v2010, %v2012
        %v2014 = vrot.slane %v1387, 2
        %v2015 = vsel %vm2006, %v2012, %v2014
        %v2016 = vrot.slane %v1388, 2
        %v2017 = vsel %vm2006, %v2014, %v2016
        %v2018 = vrot.slane %v1389, 2
        %v2019 = vsel %vm2006, %v2016, %v2018
        %v2020 = vrot.slane %v1390, 2
        %v2021 = vsel %vm2006, %v2018, %v2020
        %v2022 = vrot.slane %v1391, 2
        %v2023 = vsel %vm2006, %v2020, %v2022
        %v2024 = vrot.slane %v1392, 2
        %v2025 = vsel %vm2006, %v2022, %v2024
        %v2026 = vrot.slane %v1393, 2
        %v2027 = vsel %vm2006, %v2024, %v2026
        %v2028 = vrot.slane %v1394, 2
        %v2029 = vsel %vm2006, %v2026, %v2028
        %v2030 = vrot.slane %v1395, 2
        %v2031 = vsel %vm2006, %v2028, %v2030
        %v2032 = vrot.slane %v1396, 2
        %v2033 = vsel %vm2006, %v2030, %v2032
        %v2034 = vrot.slane %v1397, 2
        %v2035 = vsel %vm2006, %v2032, %v2034
        %v2036 = vrot.slane %v1398, 2
        %v2037 = vsel %vm2006, %v2034, %v2036
        %v2038 = vrot.slane %v1399, 2
        %v2039 = vsel %vm2006, %v2036, %v2038
        %v2040 = vrot.slane %v1400, 2
        %v2041 = vsel %vm2006, %v2038, %v2040
        %v2042 = vrot.slane %v1636, 2
        %v2043 = vsel %vm2006, %v2040, %v2042
        %v2045 = vsel %vm738, %v2009, 0
        %v2048 = vsel %vm738, %v2011, 0
        %v2051 = vsel %vm738, %v2013, 0
        %v2054 = vsel %vm738, %v2015, 0
        %v2057 = vsel %vm738, %v2017, 0
        %v2060 = vsel %vm738, %v2019, 0
        %v2063 = vsel %vm738, %v2021, 0
        %v2066 = vsel %vm738, %v2023, 0
        %v2069 = vsel %vm738, %v2025, 0
        %v2072 = vsel %vm738, %v2027, 0
        %v2075 = vsel %vm738, %v2029, 0
        %v2078 = vsel %vm738, %v2031, 0
        %v2081 = vsel %vm738, %v2033, 0
        %v2084 = vsel %vm738, %v2035, 0
        %v2087 = vsel %vm738, %v2037, 0
        %v2090 = vsel %vm738, %v2039, 0
        %v2093 = vsel %vm738, %v2041, 0
        %v2096 = vsel %vm738, %v2043, 0
        %v2099 = vsel %vm793, %v2002, 0
        %2101 = vmatpush.bf16.msra.mxu0 0
        %2102 = vmatpush.bf16.msra.mxu0 0
        %2103 = vmatpush.bf16.msra.mxu0 0
        %2104 = vmatpush.bf16.msra.mxu0 0
        %2105 = vmatpush.bf16.msra.mxu0 0
        %2106 = vmatpush.bf16.msra.mxu0 0
        %2107 = vmatpush.bf16.msra.mxu0 0
        %2108 = vmatpush.bf16.msra.mxu0 %v2099
        %2109 = vmatmul.bf16.gmra.mxu0 %v2045
        %v2110 = vpop.f32.mrf.mxu0
        %v2111 = vadd.f32 0.0, %v2110
        %v2112 = vpop.f32.mrf.mxu0
        %v2113 = vadd.f32 0.0, %v2112
        %2114 = vmatmul.bf16.gmra.mxu0 %v2048
        %v2115 = vpop.f32.mrf.mxu0
        %v2116 = vadd.f32 0.0, %v2115
        %v2117 = vpop.f32.mrf.mxu0
        %v2118 = vadd.f32 0.0, %v2117
        %2119 = vmatmul.bf16.gmra.mxu0 %v2051
        %v2120 = vpop.f32.mrf.mxu0
        %v2121 = vadd.f32 0.0, %v2120
        %v2122 = vpop.f32.mrf.mxu0
        %v2123 = vadd.f32 0.0, %v2122
        %2124 = vmatmul.bf16.gmra.mxu0 %v2054
        %v2125 = vpop.f32.mrf.mxu0
        %v2126 = vadd.f32 0.0, %v2125
        %v2127 = vpop.f32.mrf.mxu0
        %v2128 = vadd.f32 0.0, %v2127
        %2129 = vmatmul.bf16.gmra.mxu0 %v2057
        %v2130 = vpop.f32.mrf.mxu0
        %v2131 = vadd.f32 0.0, %v2130
        %v2132 = vpop.f32.mrf.mxu0
        %v2133 = vadd.f32 0.0, %v2132
        %2134 = vmatmul.bf16.gmra.mxu0 %v2060
        %v2135 = vpop.f32.mrf.mxu0
        %v2136 = vadd.f32 0.0, %v2135
        %v2137 = vpop.f32.mrf.mxu0
        %v2138 = vadd.f32 0.0, %v2137
        %2139 = vmatmul.bf16.gmra.mxu0 %v2063
        %v2140 = vpop.f32.mrf.mxu0
        %v2141 = vadd.f32 0.0, %v2140
        %v2142 = vpop.f32.mrf.mxu0
        %v2143 = vadd.f32 0.0, %v2142
        %2144 = vmatmul.bf16.gmra.mxu0 %v2066
        %v2145 = vpop.f32.mrf.mxu0
        %v2146 = vadd.f32 0.0, %v2145
        %v2147 = vpop.f32.mrf.mxu0
        %v2148 = vadd.f32 0.0, %v2147
        %2149 = vmatmul.bf16.gmra.mxu0 %v2069
        %v2150 = vpop.f32.mrf.mxu0
        %v2151 = vadd.f32 0.0, %v2150
        %v2152 = vpop.f32.mrf.mxu0
        %v2153 = vadd.f32 0.0, %v2152
        %2154 = vmatmul.bf16.gmra.mxu0 %v2072
        %v2155 = vpop.f32.mrf.mxu0
        %v2156 = vadd.f32 0.0, %v2155
        %v2157 = vpop.f32.mrf.mxu0
        %v2158 = vadd.f32 0.0, %v2157
        %2159 = vmatmul.bf16.gmra.mxu0 %v2075
        %v2160 = vpop.f32.mrf.mxu0
        %v2161 = vadd.f32 0.0, %v2160
        %v2162 = vpop.f32.mrf.mxu0
        %v2163 = vadd.f32 0.0, %v2162
        %2164 = vmatmul.bf16.gmra.mxu0 %v2078
        %v2165 = vpop.f32.mrf.mxu0
        %v2166 = vadd.f32 0.0, %v2165
        %v2167 = vpop.f32.mrf.mxu0
        %v2168 = vadd.f32 0.0, %v2167
        %2169 = vmatmul.bf16.gmra.mxu0 %v2081
        %v2170 = vpop.f32.mrf.mxu0
        %v2171 = vadd.f32 0.0, %v2170
        %v2172 = vpop.f32.mrf.mxu0
        %v2173 = vadd.f32 0.0, %v2172
        %2174 = vmatmul.bf16.gmra.mxu0 %v2084
        %v2175 = vpop.f32.mrf.mxu0
        %v2176 = vadd.f32 0.0, %v2175
        %v2177 = vpop.f32.mrf.mxu0
        %v2178 = vadd.f32 0.0, %v2177
        %2179 = vmatmul.bf16.gmra.mxu0 %v2087
        %v2180 = vpop.f32.mrf.mxu0
        %v2181 = vadd.f32 0.0, %v2180
        %v2182 = vpop.f32.mrf.mxu0
        %v2183 = vadd.f32 0.0, %v2182
        %2184 = vmatmul.bf16.gmra.mxu0 %v2090
        %v2185 = vpop.f32.mrf.mxu0
        %v2186 = vadd.f32 0.0, %v2185
        %v2187 = vpop.f32.mrf.mxu0
        %v2188 = vadd.f32 0.0, %v2187
        %2189 = vmatmul.bf16.gmra.mxu0 %v2093
        %v2190 = vpop.f32.mrf.mxu0
        %v2191 = vadd.f32 0.0, %v2190
        %v2192 = vpop.f32.mrf.mxu0
        %v2193 = vadd.f32 0.0, %v2192
        %2194 = vmatmul.bf16.gmra.mxu0 %v2096
        %v2195 = vpop.f32.mrf.mxu0
        %v2196 = vadd.f32 0.0, %v2195
        %v2197 = vpop.f32.mrf.mxu0
        %v2198 = vadd.f32 0.0, %v2197
        %2199 = vdwg.mxu0
        %v2200 = vadd.f32 %v1964, %v2111
        %v2201 = vadd.f32 %v1965, %v2113
        %v2202 = vadd.f32 %v1966, %v2116
        %v2203 = vadd.f32 %v1967, %v2118
        %v2204 = vadd.f32 %v1968, %v2121
        %v2205 = vadd.f32 %v1969, %v2123
        %v2206 = vadd.f32 %v1970, %v2126
        %v2207 = vadd.f32 %v1971, %v2128
        %v2208 = vadd.f32 %v1972, %v2131
        %v2209 = vadd.f32 %v1973, %v2133
        %v2210 = vadd.f32 %v1974, %v2136
        %v2211 = vadd.f32 %v1975, %v2138
        %v2212 = vadd.f32 %v1976, %v2141
        %v2213 = vadd.f32 %v1977, %v2143
        %v2214 = vadd.f32 %v1978, %v2146
        %v2215 = vadd.f32 %v1979, %v2148
        %v2216 = vadd.f32 %v1980, %v2151
        %v2217 = vadd.f32 %v1981, %v2153
        %v2218 = vadd.f32 %v1982, %v2156
        %v2219 = vadd.f32 %v1983, %v2158
        %v2220 = vadd.f32 %v1984, %v2161
        %v2221 = vadd.f32 %v1985, %v2163
        %v2222 = vadd.f32 %v1986, %v2166
        %v2223 = vadd.f32 %v1987, %v2168
        %v2224 = vadd.f32 %v1988, %v2171
        %v2225 = vadd.f32 %v1989, %v2173
        %v2226 = vadd.f32 %v1990, %v2176
        %v2227 = vadd.f32 %v1991, %v2178
        %v2228 = vadd.f32 %v1992, %v2181
        %v2229 = vadd.f32 %v1993, %v2183
        %v2230 = vadd.f32 %v1994, %v2186
        %v2231 = vadd.f32 %v1995, %v2188
        %v2232 = vadd.f32 %v1996, %v2191
        %v2233 = vadd.f32 %v1997, %v2193
        %v2234 = vadd.f32 %v1998, %v2196
        %v2235 = vadd.f32 %v1999, %v2198
        %v2236 = vld [vmem:[%s454 + $0x10] sm:$0xc]
        %v2237 = vld [vmem:[%s454 + $0x14] sm:$0xf]
        %v2238 = vld [vmem:[%s454 + $0x18] sm:$0xf]
        %v2239 = vld [vmem:[%s454 + $0x1c] sm:$0xf]
        %v2240 = vld [vmem:[%s454 + $0x20] sm:$0xf]
        %v2241 = vld [vmem:[%s454 + $0x24] sm:$0xf]
        %v2242 = vld [vmem:[%s454 + $0x28] sm:$0xf]
        %v2243 = vld [vmem:[%s454 + $0x2c] sm:$0xf]
        %v2244 = vld [vmem:[%s454 + $0x30] sm:$0xf]
        %v2245 = vld [vmem:[%s454 + $0x34] sm:$0xf]
        %v2246 = vld [vmem:[%s454 + $0x38] sm:$0xf]
        %v2247 = vld [vmem:[%s454 + $0x3c] sm:$0xf]
        %v2248 = vld [vmem:[%s454 + $0x40] sm:$0xf]
        %v2249 = vld [vmem:[%s454 + $0x44] sm:$0xf]
        %v2250 = vld [vmem:[%s454 + $0x48] sm:$0xf]
        %v2251 = vld [vmem:[%s454 + $0x4c] sm:$0xf]
        %v2252 = vld [vmem:[%s454 + $0x50] sm:$0xf]
        %v2253 = vld [vmem:[%s454 + $0x54] sm:$0xf]
        %v2254 = vld [vmem:[%s454 + $0x58] sm:$0xf]
        %v2255 = vld [vmem:[%s454 + $0x5c] sm:$0xf]
        %v2256 = vld [vmem:[%s454 + $0x60] sm:$0xf]
        %v2257 = vld [vmem:[%s454 + $0x64] sm:$0xf]
        %v2258 = vld [vmem:[%s454 + $0x68] sm:$0xf]
        %v2259 = vld [vmem:[%s454 + $0x6c] sm:$0xf]
        %v2260 = vld [vmem:[%s454 + $0x70] sm:$0xf]
        %v2261 = vld [vmem:[%s454 + $0x74] sm:$0xf]
        %v2262 = vld [vmem:[%s454 + $0x78] sm:$0xf]
        %v2263 = vld [vmem:[%s454 + $0x7c] sm:$0xf]
        %v2264 = vld [vmem:[%s454 + $0x80] sm:$0xf]
        %v2265 = vld [vmem:[%s454 + $0x84] sm:$0xf]
        %v2266 = vld [vmem:[%s454 + $0x88] sm:$0xf]
        %v2267 = vld [vmem:[%s454 + $0x8c] sm:$0xf]
        %v2268 = vld [vmem:[%s454 + $0x90] sm:$0xf]
        %v2269 = vld [vmem:[%s454 + $0x94] sm:$0xf]
        %v2270 = vld [vmem:[%s454 + $0x98] sm:$0xf]
        %v2271 = vld [vmem:[%s454 + $0x9c] sm:$0xf]
        %v2272 = vld [vmem:[%s454 + $0xa0] sm:$0x3]
        %s2273 = scalar_lea.vmem %s1, 12
        %v2274 = vld [vmem:[%s2273] sm:$0x3]
        %v2312 = vunpack.c.l.b16 %v2236
        %v2313 = vunpack.c.l.b16 %v2237
        %v2314 = vunpack.c.l.b16 %v2238
        %v2315 = vunpack.c.l.b16 %v2239
        %v2316 = vunpack.c.l.b16 %v2240
        %v2317 = vunpack.c.l.b16 %v2241
        %v2318 = vunpack.c.l.b16 %v2242
        %v2319 = vunpack.c.l.b16 %v2243
        %v2320 = vunpack.c.l.b16 %v2244
        %v2321 = vunpack.c.l.b16 %v2245
        %v2322 = vunpack.c.l.b16 %v2246
        %v2323 = vunpack.c.l.b16 %v2247
        %v2324 = vunpack.c.l.b16 %v2248
        %v2325 = vunpack.c.l.b16 %v2249
        %v2326 = vunpack.c.l.b16 %v2250
        %v2327 = vunpack.c.l.b16 %v2251
        %v2328 = vunpack.c.l.b16 %v2252
        %v2329 = vunpack.c.l.b16 %v2253
        %v2330 = vunpack.c.l.b16 %v2254
        %v2331 = vunpack.c.l.b16 %v2255
        %v2332 = vunpack.c.l.b16 %v2256
        %v2333 = vunpack.c.l.b16 %v2257
        %v2334 = vunpack.c.l.b16 %v2258
        %v2335 = vunpack.c.l.b16 %v2259
        %v2336 = vunpack.c.l.b16 %v2260
        %v2337 = vunpack.c.l.b16 %v2261
        %v2338 = vunpack.c.l.b16 %v2262
        %v2339 = vunpack.c.l.b16 %v2263
        %v2340 = vunpack.c.l.b16 %v2264
        %v2341 = vunpack.c.l.b16 %v2265
        %v2342 = vunpack.c.l.b16 %v2266
        %v2343 = vunpack.c.l.b16 %v2267
        %v2344 = vunpack.c.l.b16 %v2268
        %v2345 = vunpack.c.l.b16 %v2269
        %v2346 = vunpack.c.l.b16 %v2270
        %v2347 = vunpack.c.l.b16 %v2271
        %v2348 = vunpack.c.l.b16 %v2272
        %v2349 = vpack.c.b16 %v2313, %v2312
        %v2350 = vpack.c.b16 %v2315, %v2314
        %v2351 = vpack.c.b16 %v2317, %v2316
        %v2352 = vpack.c.b16 %v2319, %v2318
        %v2353 = vpack.c.b16 %v2321, %v2320
        %v2354 = vpack.c.b16 %v2323, %v2322
        %v2355 = vpack.c.b16 %v2325, %v2324
        %v2356 = vpack.c.b16 %v2327, %v2326
        %v2357 = vpack.c.b16 %v2329, %v2328
        %v2358 = vpack.c.b16 %v2331, %v2330
        %v2359 = vpack.c.b16 %v2333, %v2332
        %v2360 = vpack.c.b16 %v2335, %v2334
        %v2361 = vpack.c.b16 %v2337, %v2336
        %v2362 = vpack.c.b16 %v2339, %v2338
        %v2363 = vpack.c.b16 %v2341, %v2340
        %v2364 = vpack.c.b16 %v2343, %v2342
        %v2365 = vpack.c.b16 %v2345, %v2344
        %v2366 = vpack.c.b16 %v2347, %v2346
        %v2367 = vpack.c.b16 %v2348, %v2348
        %v2368 = vrot.slane %v2349, 2
        %v2369 = vrot.slane %v2350, 2
        %v2370 = vsel %vm2006, %v2368, %v2369
        %v2371 = vrot.slane %v2351, 2
        %v2372 = vsel %vm2006, %v2369, %v2371
        %v2373 = vrot.slane %v2352, 2
        %v2374 = vsel %vm2006, %v2371, %v2373
        %v2375 = vrot.slane %v2353, 2
        %v2376 = vsel %vm2006, %v2373, %v2375
        %v2377 = vrot.slane %v2354, 2
        %v2378 = vsel %vm2006, %v2375, %v2377
        %v2379 = vrot.slane %v2355, 2
        %v2380 = vsel %vm2006, %v2377, %v2379
        %v2381 = vrot.slane %v2356, 2
        %v2382 = vsel %vm2006, %v2379, %v2381
        %v2383 = vrot.slane %v2357, 2
        %v2384 = vsel %vm2006, %v2381, %v2383
        %v2385 = vrot.slane %v2358, 2
        %v2386 = vsel %vm2006, %v2383, %v2385
        %v2387 = vrot.slane %v2359, 2
        %v2388 = vsel %vm2006, %v2385, %v2387
        %v2389 = vrot.slane %v2360, 2
        %v2390 = vsel %vm2006, %v2387, %v2389
        %v2391 = vrot.slane %v2361, 2
        %v2392 = vsel %vm2006, %v2389, %v2391
        %v2393 = vrot.slane %v2362, 2
        %v2394 = vsel %vm2006, %v2391, %v2393
        %v2395 = vrot.slane %v2363, 2
        %v2396 = vsel %vm2006, %v2393, %v2395
        %v2397 = vrot.slane %v2364, 2
        %v2398 = vsel %vm2006, %v2395, %v2397
        %v2399 = vrot.slane %v2365, 2
        %v2400 = vsel %vm2006, %v2397, %v2399
        %v2401 = vrot.slane %v2366, 2
        %v2402 = vsel %vm2006, %v2399, %v2401
        %v2403 = vrot.slane %v2367, 2
        %v2404 = vsel %vm2006, %v2401, %v2403
        %v2406 = vsel %vm738, %v2370, 0
        %v2409 = vsel %vm738, %v2372, 0
        %v2412 = vsel %vm738, %v2374, 0
        %v2415 = vsel %vm738, %v2376, 0
        %v2418 = vsel %vm738, %v2378, 0
        %v2421 = vsel %vm738, %v2380, 0
        %v2424 = vsel %vm738, %v2382, 0
        %v2427 = vsel %vm738, %v2384, 0
        %v2430 = vsel %vm738, %v2386, 0
        %v2433 = vsel %vm738, %v2388, 0
        %v2436 = vsel %vm738, %v2390, 0
        %v2439 = vsel %vm738, %v2392, 0
        %v2442 = vsel %vm738, %v2394, 0
        %v2445 = vsel %vm738, %v2396, 0
        %v2448 = vsel %vm738, %v2398, 0
        %v2451 = vsel %vm738, %v2400, 0
        %v2454 = vsel %vm738, %v2402, 0
        %v2457 = vsel %vm738, %v2404, 0
        %v2460 = vsel %vm793, %v2274, 0
        %2462 = vmatpush.bf16.msra.mxu0 0
        %2463 = vmatpush.bf16.msra.mxu0 0
        %2464 = vmatpush.bf16.msra.mxu0 0
        %2465 = vmatpush.bf16.msra.mxu0 0
        %2466 = vmatpush.bf16.msra.mxu0 0
        %2467 = vmatpush.bf16.msra.mxu0 0
        %2468 = vmatpush.bf16.msra.mxu0 0
        %2469 = vmatpush.bf16.msra.mxu0 %v2460
        %2470 = vmatmul.bf16.gmra.mxu0 %v2406
        %v2471 = vpop.f32.mrf.mxu0
        %v2472 = vadd.f32 0.0, %v2471
        %v2473 = vpop.f32.mrf.mxu0
        %v2474 = vadd.f32 0.0, %v2473
        %2475 = vmatmul.bf16.gmra.mxu0 %v2409
        %v2476 = vpop.f32.mrf.mxu0
        %v2477 = vadd.f32 0.0, %v2476
        %v2478 = vpop.f32.mrf.mxu0
        %v2479 = vadd.f32 0.0, %v2478
        %2480 = vmatmul.bf16.gmra.mxu0 %v2412
        %v2481 = vpop.f32.mrf.mxu0
        %v2482 = vadd.f32 0.0, %v2481
        %v2483 = vpop.f32.mrf.mxu0
        %v2484 = vadd.f32 0.0, %v2483
        %2485 = vmatmul.bf16.gmra.mxu0 %v2415
        %v2486 = vpop.f32.mrf.mxu0
        %v2487 = vadd.f32 0.0, %v2486
        %v2488 = vpop.f32.mrf.mxu0
        %v2489 = vadd.f32 0.0, %v2488
        %2490 = vmatmul.bf16.gmra.mxu0 %v2418
        %v2491 = vpop.f32.mrf.mxu0
        %v2492 = vadd.f32 0.0, %v2491
        %v2493 = vpop.f32.mrf.mxu0
        %v2494 = vadd.f32 0.0, %v2493
        %2495 = vmatmul.bf16.gmra.mxu0 %v2421
        %v2496 = vpop.f32.mrf.mxu0
        %v2497 = vadd.f32 0.0, %v2496
        %v2498 = vpop.f32.mrf.mxu0
        %v2499 = vadd.f32 0.0, %v2498
        %2500 = vmatmul.bf16.gmra.mxu0 %v2424
        %v2501 = vpop.f32.mrf.mxu0
        %v2502 = vadd.f32 0.0, %v2501
        %v2503 = vpop.f32.mrf.mxu0
        %v2504 = vadd.f32 0.0, %v2503
        %2505 = vmatmul.bf16.gmra.mxu0 %v2427
        %v2506 = vpop.f32.mrf.mxu0
        %v2507 = vadd.f32 0.0, %v2506
        %v2508 = vpop.f32.mrf.mxu0
        %v2509 = vadd.f32 0.0, %v2508
        %2510 = vmatmul.bf16.gmra.mxu0 %v2430
        %v2511 = vpop.f32.mrf.mxu0
        %v2512 = vadd.f32 0.0, %v2511
        %v2513 = vpop.f32.mrf.mxu0
        %v2514 = vadd.f32 0.0, %v2513
        %2515 = vmatmul.bf16.gmra.mxu0 %v2433
        %v2516 = vpop.f32.mrf.mxu0
        %v2517 = vadd.f32 0.0, %v2516
        %v2518 = vpop.f32.mrf.mxu0
        %v2519 = vadd.f32 0.0, %v2518
        %2520 = vmatmul.bf16.gmra.mxu0 %v2436
        %v2521 = vpop.f32.mrf.mxu0
        %v2522 = vadd.f32 0.0, %v2521
        %v2523 = vpop.f32.mrf.mxu0
        %v2524 = vadd.f32 0.0, %v2523
        %2525 = vmatmul.bf16.gmra.mxu0 %v2439
        %v2526 = vpop.f32.mrf.mxu0
        %v2527 = vadd.f32 0.0, %v2526
        %v2528 = vpop.f32.mrf.mxu0
        %v2529 = vadd.f32 0.0, %v2528
        %2530 = vmatmul.bf16.gmra.mxu0 %v2442
        %v2531 = vpop.f32.mrf.mxu0
        %v2532 = vadd.f32 0.0, %v2531
        %v2533 = vpop.f32.mrf.mxu0
        %v2534 = vadd.f32 0.0, %v2533
        %2535 = vmatmul.bf16.gmra.mxu0 %v2445
        %v2536 = vpop.f32.mrf.mxu0
        %v2537 = vadd.f32 0.0, %v2536
        %v2538 = vpop.f32.mrf.mxu0
        %v2539 = vadd.f32 0.0, %v2538
        %2540 = vmatmul.bf16.gmra.mxu0 %v2448
        %v2541 = vpop.f32.mrf.mxu0
        %v2542 = vadd.f32 0.0, %v2541
        %v2543 = vpop.f32.mrf.mxu0
        %v2544 = vadd.f32 0.0, %v2543
        %2545 = vmatmul.bf16.gmra.mxu0 %v2451
        %v2546 = vpop.f32.mrf.mxu0
        %v2547 = vadd.f32 0.0, %v2546
        %v2548 = vpop.f32.mrf.mxu0
        %v2549 = vadd.f32 0.0, %v2548
        %2550 = vmatmul.bf16.gmra.mxu0 %v2454
        %v2551 = vpop.f32.mrf.mxu0
        %v2552 = vadd.f32 0.0, %v2551
        %v2553 = vpop.f32.mrf.mxu0
        %v2554 = vadd.f32 0.0, %v2553
        %2555 = vmatmul.bf16.gmra.mxu0 %v2457
        %v2556 = vpop.f32.mrf.mxu0
        %v2557 = vadd.f32 0.0, %v2556
        %v2558 = vpop.f32.mrf.mxu0
        %v2559 = vadd.f32 0.0, %v2558
        %2560 = vdwg.mxu0
        %v2561 = vadd.f32 %v2200, %v2472
        %v2562 = vadd.f32 %v2201, %v2474
        %v2563 = vadd.f32 %v2202, %v2477
        %v2564 = vadd.f32 %v2203, %v2479
        %v2565 = vadd.f32 %v2204, %v2482
        %v2566 = vadd.f32 %v2205, %v2484
        %v2567 = vadd.f32 %v2206, %v2487
        %v2568 = vadd.f32 %v2207, %v2489
        %v2569 = vadd.f32 %v2208, %v2492
        %v2570 = vadd.f32 %v2209, %v2494
        %v2571 = vadd.f32 %v2210, %v2497
        %v2572 = vadd.f32 %v2211, %v2499
        %v2573 = vadd.f32 %v2212, %v2502
        %v2574 = vadd.f32 %v2213, %v2504
        %v2575 = vadd.f32 %v2214, %v2507
        %v2576 = vadd.f32 %v2215, %v2509
        %v2577 = vadd.f32 %v2216, %v2512
        %v2578 = vadd.f32 %v2217, %v2514
        %v2579 = vadd.f32 %v2218, %v2517
        %v2580 = vadd.f32 %v2219, %v2519
        %v2581 = vadd.f32 %v2220, %v2522
        %v2582 = vadd.f32 %v2221, %v2524
        %v2583 = vadd.f32 %v2222, %v2527
        %v2584 = vadd.f32 %v2223, %v2529
        %v2585 = vadd.f32 %v2224, %v2532
        %v2586 = vadd.f32 %v2225, %v2534
        %v2587 = vadd.f32 %v2226, %v2537
        %v2588 = vadd.f32 %v2227, %v2539
        %v2589 = vadd.f32 %v2228, %v2542
        %v2590 = vadd.f32 %v2229, %v2544
        %v2591 = vadd.f32 %v2230, %v2547
        %v2592 = vadd.f32 %v2231, %v2549
        %v2593 = vadd.f32 %v2232, %v2552
        %v2594 = vadd.f32 %v2233, %v2554
        %v2595 = vadd.f32 %v2234, %v2557
        %v2596 = vadd.f32 %v2235, %v2559
        %v2597 = vld [vmem:[%s454 + $0xa0] sm:$0x7]
        %s2598 = scalar_lea.vmem %s1, 14
        %v2599 = vld [vmem:[%s2598] sm:$0x3]
        %v2601 = vunpack.c.l.b16 %v2597
        %v2602 = vpack.c.b16 %v2601, %v2601
        %vm2603 = vsmask.f32 5376
        %v2605 = vshrl.u32 %v2349, 16
        %v2607 = vrot.slane %v2605, 2
        %v2608 = vshll.u32 %v2349, 16
        %v2610 = vrot.slane %v2608, 3
        %v2611 = vor.u32 %v2607, %v2610
        %v2613 = vshrl.u32 %v2350, 16
        %v2615 = vrot.slane %v2613, 2
        %v2616 = vshll.u32 %v2350, 16
        %v2618 = vrot.slane %v2616, 3
        %v2619 = vor.u32 %v2615, %v2618
        %v2620 = vsel %vm2603, %v2611, %v2619
        %v2622 = vshrl.u32 %v2351, 16
        %v2624 = vrot.slane %v2622, 2
        %v2625 = vshll.u32 %v2351, 16
        %v2627 = vrot.slane %v2625, 3
        %v2628 = vor.u32 %v2624, %v2627
        %v2629 = vsel %vm2603, %v2619, %v2628
        %v2631 = vshrl.u32 %v2352, 16
        %v2633 = vrot.slane %v2631, 2
        %v2634 = vshll.u32 %v2352, 16
        %v2636 = vrot.slane %v2634, 3
        %v2637 = vor.u32 %v2633, %v2636
        %v2638 = vsel %vm2603, %v2628, %v2637
        %v2640 = vshrl.u32 %v2353, 16
        %v2642 = vrot.slane %v2640, 2
        %v2643 = vshll.u32 %v2353, 16
        %v2645 = vrot.slane %v2643, 3
        %v2646 = vor.u32 %v2642, %v2645
        %v2647 = vsel %vm2603, %v2637, %v2646
        %v2649 = vshrl.u32 %v2354, 16
        %v2651 = vrot.slane %v2649, 2
        %v2652 = vshll.u32 %v2354, 16
        %v2654 = vrot.slane %v2652, 3
        %v2655 = vor.u32 %v2651, %v2654
        %v2656 = vsel %vm2603, %v2646, %v2655
        %v2658 = vshrl.u32 %v2355, 16
        %v2660 = vrot.slane %v2658, 2
        %v2661 = vshll.u32 %v2355, 16
        %v2663 = vrot.slane %v2661, 3
        %v2664 = vor.u32 %v2660, %v2663
        %v2665 = vsel %vm2603, %v2655, %v2664
        %v2667 = vshrl.u32 %v2356, 16
        %v2669 = vrot.slane %v2667, 2
        %v2670 = vshll.u32 %v2356, 16
        %v2672 = vrot.slane %v2670, 3
        %v2673 = vor.u32 %v2669, %v2672
        %v2674 = vsel %vm2603, %v2664, %v2673
        %v2676 = vshrl.u32 %v2357, 16
        %v2678 = vrot.slane %v2676, 2
        %v2679 = vshll.u32 %v2357, 16
        %v2681 = vrot.slane %v2679, 3
        %v2682 = vor.u32 %v2678, %v2681
        %v2683 = vsel %vm2603, %v2673, %v2682
        %v2685 = vshrl.u32 %v2358, 16
        %v2687 = vrot.slane %v2685, 2
        %v2688 = vshll.u32 %v2358, 16
        %v2690 = vrot.slane %v2688, 3
        %v2691 = vor.u32 %v2687, %v2690
        %v2692 = vsel %vm2603, %v2682, %v2691
        %v2694 = vshrl.u32 %v2359, 16
        %v2696 = vrot.slane %v2694, 2
        %v2697 = vshll.u32 %v2359, 16
        %v2699 = vrot.slane %v2697, 3
        %v2700 = vor.u32 %v2696, %v2699
        %v2701 = vsel %vm2603, %v2691, %v2700
        %v2703 = vshrl.u32 %v2360, 16
        %v2705 = vrot.slane %v2703, 2
        %v2706 = vshll.u32 %v2360, 16
        %v2708 = vrot.slane %v2706, 3
        %v2709 = vor.u32 %v2705, %v2708
        %v2710 = vsel %vm2603, %v2700, %v2709
        %v2712 = vshrl.u32 %v2361, 16
        %v2714 = vrot.slane %v2712, 2
        %v2715 = vshll.u32 %v2361, 16
        %v2717 = vrot.slane %v2715, 3
        %v2718 = vor.u32 %v2714, %v2717
        %v2719 = vsel %vm2603, %v2709, %v2718
        %v2721 = vshrl.u32 %v2362, 16
        %v2723 = vrot.slane %v2721, 2
        %v2724 = vshll.u32 %v2362, 16
        %v2726 = vrot.slane %v2724, 3
        %v2727 = vor.u32 %v2723, %v2726
        %v2728 = vsel %vm2603, %v2718, %v2727
        %v2730 = vshrl.u32 %v2363, 16
        %v2732 = vrot.slane %v2730, 2
        %v2733 = vshll.u32 %v2363, 16
        %v2735 = vrot.slane %v2733, 3
        %v2736 = vor.u32 %v2732, %v2735
        %v2737 = vsel %vm2603, %v2727, %v2736
        %v2739 = vshrl.u32 %v2364, 16
        %v2741 = vrot.slane %v2739, 2
        %v2742 = vshll.u32 %v2364, 16
        %v2744 = vrot.slane %v2742, 3
        %v2745 = vor.u32 %v2741, %v2744
        %v2746 = vsel %vm2603, %v2736, %v2745
        %v2748 = vshrl.u32 %v2365, 16
        %v2750 = vrot.slane %v2748, 2
        %v2751 = vshll.u32 %v2365, 16
        %v2753 = vrot.slane %v2751, 3
        %v2754 = vor.u32 %v2750, %v2753
        %v2755 = vsel %vm2603, %v2745, %v2754
        %v2757 = vshrl.u32 %v2366, 16
        %v2759 = vrot.slane %v2757, 2
        %v2760 = vshll.u32 %v2366, 16
        %v2762 = vrot.slane %v2760, 3
        %v2763 = vor.u32 %v2759, %v2762
        %v2764 = vsel %vm2603, %v2754, %v2763
        %v2766 = vshrl.u32 %v2602, 16
        %v2768 = vrot.slane %v2766, 2
        %v2769 = vshll.u32 %v2602, 16
        %v2771 = vrot.slane %v2769, 3
        %v2772 = vor.u32 %v2768, %v2771
        %v2773 = vsel %vm2603, %v2763, %v2772
        %v2775 = vsel %vm738, %v2620, 0
        %v2778 = vsel %vm738, %v2629, 0
        %v2781 = vsel %vm738, %v2638, 0
        %v2784 = vsel %vm738, %v2647, 0
        %v2787 = vsel %vm738, %v2656, 0
        %v2790 = vsel %vm738, %v2665, 0
        %v2793 = vsel %vm738, %v2674, 0
        %v2796 = vsel %vm738, %v2683, 0
        %v2799 = vsel %vm738, %v2692, 0
        %v2802 = vsel %vm738, %v2701, 0
        %v2805 = vsel %vm738, %v2710, 0
        %v2808 = vsel %vm738, %v2719, 0
        %v2811 = vsel %vm738, %v2728, 0
        %v2814 = vsel %vm738, %v2737, 0
        %v2817 = vsel %vm738, %v2746, 0
        %v2820 = vsel %vm738, %v2755, 0
        %v2823 = vsel %vm738, %v2764, 0
        %v2826 = vsel %vm738, %v2773, 0
        %v2829 = vsel %vm793, %v2599, 0
        %2831 = vmatpush.bf16.msra.mxu0 0
        %2832 = vmatpush.bf16.msra.mxu0 0
        %2833 = vmatpush.bf16.msra.mxu0 0
        %2834 = vmatpush.bf16.msra.mxu0 0
        %2835 = vmatpush.bf16.msra.mxu0 0
        %2836 = vmatpush.bf16.msra.mxu0 0
        %2837 = vmatpush.bf16.msra.mxu0 0
        %2838 = vmatpush.bf16.msra.mxu0 %v2829
        %2839 = vmatmul.bf16.gmra.mxu0 %v2775
        %v2840 = vpop.f32.mrf.mxu0
        %v2841 = vadd.f32 0.0, %v2840
        %v2842 = vpop.f32.mrf.mxu0
        %v2843 = vadd.f32 0.0, %v2842
        %2844 = vmatmul.bf16.gmra.mxu0 %v2778
        %v2845 = vpop.f32.mrf.mxu0
        %v2846 = vadd.f32 0.0, %v2845
        %v2847 = vpop.f32.mrf.mxu0
        %v2848 = vadd.f32 0.0, %v2847
        %2849 = vmatmul.bf16.gmra.mxu0 %v2781
        %v2850 = vpop.f32.mrf.mxu0
        %v2851 = vadd.f32 0.0, %v2850
        %v2852 = vpop.f32.mrf.mxu0
        %v2853 = vadd.f32 0.0, %v2852
        %2854 = vmatmul.bf16.gmra.mxu0 %v2784
        %v2855 = vpop.f32.mrf.mxu0
        %v2856 = vadd.f32 0.0, %v2855
        %v2857 = vpop.f32.mrf.mxu0
        %v2858 = vadd.f32 0.0, %v2857
        %2859 = vmatmul.bf16.gmra.mxu0 %v2787
        %v2860 = vpop.f32.mrf.mxu0
        %v2861 = vadd.f32 0.0, %v2860
        %v2862 = vpop.f32.mrf.mxu0
        %v2863 = vadd.f32 0.0, %v2862
        %2864 = vmatmul.bf16.gmra.mxu0 %v2790
        %v2865 = vpop.f32.mrf.mxu0
        %v2866 = vadd.f32 0.0, %v2865
        %v2867 = vpop.f32.mrf.mxu0
        %v2868 = vadd.f32 0.0, %v2867
        %2869 = vmatmul.bf16.gmra.mxu0 %v2793
        %v2870 = vpop.f32.mrf.mxu0
        %v2871 = vadd.f32 0.0, %v2870
        %v2872 = vpop.f32.mrf.mxu0
        %v2873 = vadd.f32 0.0, %v2872
        %2874 = vmatmul.bf16.gmra.mxu0 %v2796
        %v2875 = vpop.f32.mrf.mxu0
        %v2876 = vadd.f32 0.0, %v2875
        %v2877 = vpop.f32.mrf.mxu0
        %v2878 = vadd.f32 0.0, %v2877
        %2879 = vmatmul.bf16.gmra.mxu0 %v2799
        %v2880 = vpop.f32.mrf.mxu0
        %v2881 = vadd.f32 0.0, %v2880
        %v2882 = vpop.f32.mrf.mxu0
        %v2883 = vadd.f32 0.0, %v2882
        %2884 = vmatmul.bf16.gmra.mxu0 %v2802
        %v2885 = vpop.f32.mrf.mxu0
        %v2886 = vadd.f32 0.0, %v2885
        %v2887 = vpop.f32.mrf.mxu0
        %v2888 = vadd.f32 0.0, %v2887
        %2889 = vmatmul.bf16.gmra.mxu0 %v2805
        %v2890 = vpop.f32.mrf.mxu0
        %v2891 = vadd.f32 0.0, %v2890
        %v2892 = vpop.f32.mrf.mxu0
        %v2893 = vadd.f32 0.0, %v2892
        %2894 = vmatmul.bf16.gmra.mxu0 %v2808
        %v2895 = vpop.f32.mrf.mxu0
        %v2896 = vadd.f32 0.0, %v2895
        %v2897 = vpop.f32.mrf.mxu0
        %v2898 = vadd.f32 0.0, %v2897
        %2899 = vmatmul.bf16.gmra.mxu0 %v2811
        %v2900 = vpop.f32.mrf.mxu0
        %v2901 = vadd.f32 0.0, %v2900
        %v2902 = vpop.f32.mrf.mxu0
        %v2903 = vadd.f32 0.0, %v2902
        %2904 = vmatmul.bf16.gmra.mxu0 %v2814
        %v2905 = vpop.f32.mrf.mxu0
        %v2906 = vadd.f32 0.0, %v2905
        %v2907 = vpop.f32.mrf.mxu0
        %v2908 = vadd.f32 0.0, %v2907
        %2909 = vmatmul.bf16.gmra.mxu0 %v2817
        %v2910 = vpop.f32.mrf.mxu0
        %v2911 = vadd.f32 0.0, %v2910
        %v2912 = vpop.f32.mrf.mxu0
        %v2913 = vadd.f32 0.0, %v2912
        %2914 = vmatmul.bf16.gmra.mxu0 %v2820
        %v2915 = vpop.f32.mrf.mxu0
        %v2916 = vadd.f32 0.0, %v2915
        %v2917 = vpop.f32.mrf.mxu0
        %v2918 = vadd.f32 0.0, %v2917
        %2919 = vmatmul.bf16.gmra.mxu0 %v2823
        %v2920 = vpop.f32.mrf.mxu0
        %v2921 = vadd.f32 0.0, %v2920
        %v2922 = vpop.f32.mrf.mxu0
        %v2923 = vadd.f32 0.0, %v2922
        %2924 = vmatmul.bf16.gmra.mxu0 %v2826
        %v2925 = vpop.f32.mrf.mxu0
        %v2926 = vadd.f32 0.0, %v2925
        %v2927 = vpop.f32.mrf.mxu0
        %v2928 = vadd.f32 0.0, %v2927
        %2929 = vdwg.mxu0
        %v2930 = vadd.f32 %v2561, %v2841
        %v2931 = vadd.f32 %v2562, %v2843
        %v2932 = vadd.f32 %v2563, %v2846
        %v2933 = vadd.f32 %v2564, %v2848
        %v2934 = vadd.f32 %v2565, %v2851
        %v2935 = vadd.f32 %v2566, %v2853
        %v2936 = vadd.f32 %v2567, %v2856
        %v2937 = vadd.f32 %v2568, %v2858
        %v2938 = vadd.f32 %v2569, %v2861
        %v2939 = vadd.f32 %v2570, %v2863
        %v2940 = vadd.f32 %v2571, %v2866
        %v2941 = vadd.f32 %v2572, %v2868
        %v2942 = vadd.f32 %v2573, %v2871
        %v2943 = vadd.f32 %v2574, %v2873
        %v2944 = vadd.f32 %v2575, %v2876
        %v2945 = vadd.f32 %v2576, %v2878
        %v2946 = vadd.f32 %v2577, %v2881
        %v2947 = vadd.f32 %v2578, %v2883
        %v2948 = vadd.f32 %v2579, %v2886
        %v2949 = vadd.f32 %v2580, %v2888
        %v2950 = vadd.f32 %v2581, %v2891
        %v2951 = vadd.f32 %v2582, %v2893
        %v2952 = vadd.f32 %v2583, %v2896
        %v2953 = vadd.f32 %v2584, %v2898
        %v2954 = vadd.f32 %v2585, %v2901
        %v2955 = vadd.f32 %v2586, %v2903
        %v2956 = vadd.f32 %v2587, %v2906
        %v2957 = vadd.f32 %v2588, %v2908
        %v2958 = vadd.f32 %v2589, %v2911
        %v2959 = vadd.f32 %v2590, %v2913
        %v2960 = vadd.f32 %v2591, %v2916
        %v2961 = vadd.f32 %v2592, %v2918
        %v2962 = vadd.f32 %v2593, %v2921
        %v2963 = vadd.f32 %v2594, %v2923
        %v2964 = vadd.f32 %v2595, %v2926
        %v2965 = vadd.f32 %v2596, %v2928
        %v2966 = vld [vmem:[%s454 + $0x10] sm:$0x8]
        %s2967 = scalar_lea.vmem %s1, 16
        %v2968 = vld [vmem:[%s2967] sm:$0x3]
        %v2970 = vunpack.c.l.b16 %v2966
        %v2971 = vpack.c.b16 %v2313, %v2970
        %vm2972 = vcmask 1044480
        %v2973 = vrot.slane %v2971, 3
        %v2974 = vrot.slane %v2350, 3
        %v2975 = vsel %vm2972, %v2973, %v2974
        %v2976 = vrot.slane %v2351, 3
        %v2977 = vsel %vm2972, %v2974, %v2976
        %v2978 = vrot.slane %v2352, 3
        %v2979 = vsel %vm2972, %v2976, %v2978
        %v2980 = vrot.slane %v2353, 3
        %v2981 = vsel %vm2972, %v2978, %v2980
        %v2982 = vrot.slane %v2354, 3
        %v2983 = vsel %vm2972, %v2980, %v2982
        %v2984 = vrot.slane %v2355, 3
        %v2985 = vsel %vm2972, %v2982, %v2984
        %v2986 = vrot.slane %v2356, 3
        %v2987 = vsel %vm2972, %v2984, %v2986
        %v2988 = vrot.slane %v2357, 3
        %v2989 = vsel %vm2972, %v2986, %v2988
        %v2990 = vrot.slane %v2358, 3
        %v2991 = vsel %vm2972, %v2988, %v2990
        %v2992 = vrot.slane %v2359, 3
        %v2993 = vsel %vm2972, %v2990, %v2992
        %v2994 = vrot.slane %v2360, 3
        %v2995 = vsel %vm2972, %v2992, %v2994
        %v2996 = vrot.slane %v2361, 3
        %v2997 = vsel %vm2972, %v2994, %v2996
        %v2998 = vrot.slane %v2362, 3
        %v2999 = vsel %vm2972, %v2996, %v2998
        %v3000 = vrot.slane %v2363, 3
        %v3001 = vsel %vm2972, %v2998, %v3000
        %v3002 = vrot.slane %v2364, 3
        %v3003 = vsel %vm2972, %v3000, %v3002
        %v3004 = vrot.slane %v2365, 3
        %v3005 = vsel %vm2972, %v3002, %v3004
        %v3006 = vrot.slane %v2366, 3
        %v3007 = vsel %vm2972, %v3004, %v3006
        %v3008 = vrot.slane %v2602, 3
        %v3009 = vsel %vm2972, %v3006, %v3008
        %v3011 = vsel %vm738, %v2975, 0
        %v3014 = vsel %vm738, %v2977, 0
        %v3017 = vsel %vm738, %v2979, 0
        %v3020 = vsel %vm738, %v2981, 0
        %v3023 = vsel %vm738, %v2983, 0
        %v3026 = vsel %vm738, %v2985, 0
        %v3029 = vsel %vm738, %v2987, 0
        %v3032 = vsel %vm738, %v2989, 0
        %v3035 = vsel %vm738, %v2991, 0
        %v3038 = vsel %vm738, %v2993, 0
        %v3041 = vsel %vm738, %v2995, 0
        %v3044 = vsel %vm738, %v2997, 0
        %v3047 = vsel %vm738, %v2999, 0
        %v3050 = vsel %vm738, %v3001, 0
        %v3053 = vsel %vm738, %v3003, 0
        %v3056 = vsel %vm738, %v3005, 0
        %v3059 = vsel %vm738, %v3007, 0
        %v3062 = vsel %vm738, %v3009, 0
        %v3065 = vsel %vm793, %v2968, 0
        %3067 = vmatpush.bf16.msra.mxu0 0
        %3068 = vmatpush.bf16.msra.mxu0 0
        %3069 = vmatpush.bf16.msra.mxu0 0
        %3070 = vmatpush.bf16.msra.mxu0 0
        %3071 = vmatpush.bf16.msra.mxu0 0
        %3072 = vmatpush.bf16.msra.mxu0 0
        %3073 = vmatpush.bf16.msra.mxu0 0
        %3074 = vmatpush.bf16.msra.mxu0 %v3065
        %3075 = vmatmul.bf16.gmra.mxu0 %v3011
        %v3076 = vpop.f32.mrf.mxu0
        %v3077 = vadd.f32 0.0, %v3076
        %v3078 = vpop.f32.mrf.mxu0
        %v3079 = vadd.f32 0.0, %v3078
        %3080 = vmatmul.bf16.gmra.mxu0 %v3014
        %v3081 = vpop.f32.mrf.mxu0
        %v3082 = vadd.f32 0.0, %v3081
        %v3083 = vpop.f32.mrf.mxu0
        %v3084 = vadd.f32 0.0, %v3083
        %3085 = vmatmul.bf16.gmra.mxu0 %v3017
        %v3086 = vpop.f32.mrf.mxu0
        %v3087 = vadd.f32 0.0, %v3086
        %v3088 = vpop.f32.mrf.mxu0
        %v3089 = vadd.f32 0.0, %v3088
        %3090 = vmatmul.bf16.gmra.mxu0 %v3020
        %v3091 = vpop.f32.mrf.mxu0
        %v3092 = vadd.f32 0.0, %v3091
        %v3093 = vpop.f32.mrf.mxu0
        %v3094 = vadd.f32 0.0, %v3093
        %3095 = vmatmul.bf16.gmra.mxu0 %v3023
        %v3096 = vpop.f32.mrf.mxu0
        %v3097 = vadd.f32 0.0, %v3096
        %v3098 = vpop.f32.mrf.mxu0
        %v3099 = vadd.f32 0.0, %v3098
        %3100 = vmatmul.bf16.gmra.mxu0 %v3026
        %v3101 = vpop.f32.mrf.mxu0
        %v3102 = vadd.f32 0.0, %v3101
        %v3103 = vpop.f32.mrf.mxu0
        %v3104 = vadd.f32 0.0, %v3103
        %3105 = vmatmul.bf16.gmra.mxu0 %v3029
        %v3106 = vpop.f32.mrf.mxu0
        %v3107 = vadd.f32 0.0, %v3106
        %v3108 = vpop.f32.mrf.mxu0
        %v3109 = vadd.f32 0.0, %v3108
        %3110 = vmatmul.bf16.gmra.mxu0 %v3032
        %v3111 = vpop.f32.mrf.mxu0
        %v3112 = vadd.f32 0.0, %v3111
        %v3113 = vpop.f32.mrf.mxu0
        %v3114 = vadd.f32 0.0, %v3113
        %3115 = vmatmul.bf16.gmra.mxu0 %v3035
        %v3116 = vpop.f32.mrf.mxu0
        %v3117 = vadd.f32 0.0, %v3116
        %v3118 = vpop.f32.mrf.mxu0
        %v3119 = vadd.f32 0.0, %v3118
        %3120 = vmatmul.bf16.gmra.mxu0 %v3038
        %v3121 = vpop.f32.mrf.mxu0
        %v3122 = vadd.f32 0.0, %v3121
        %v3123 = vpop.f32.mrf.mxu0
        %v3124 = vadd.f32 0.0, %v3123
        %3125 = vmatmul.bf16.gmra.mxu0 %v3041
        %v3126 = vpop.f32.mrf.mxu0
        %v3127 = vadd.f32 0.0, %v3126
        %v3128 = vpop.f32.mrf.mxu0
        %v3129 = vadd.f32 0.0, %v3128
        %3130 = vmatmul.bf16.gmra.mxu0 %v3044
        %v3131 = vpop.f32.mrf.mxu0
        %v3132 = vadd.f32 0.0, %v3131
        %v3133 = vpop.f32.mrf.mxu0
        %v3134 = vadd.f32 0.0, %v3133
        %3135 = vmatmul.bf16.gmra.mxu0 %v3047
        %v3136 = vpop.f32.mrf.mxu0
        %v3137 = vadd.f32 0.0, %v3136
        %v3138 = vpop.f32.mrf.mxu0
        %v3139 = vadd.f32 0.0, %v3138
        %3140 = vmatmul.bf16.gmra.mxu0 %v3050
        %v3141 = vpop.f32.mrf.mxu0
        %v3142 = vadd.f32 0.0, %v3141
        %v3143 = vpop.f32.mrf.mxu0
        %v3144 = vadd.f32 0.0, %v3143
        %3145 = vmatmul.bf16.gmra.mxu0 %v3053
        %v3146 = vpop.f32.mrf.mxu0
        %v3147 = vadd.f32 0.0, %v3146
        %v3148 = vpop.f32.mrf.mxu0
        %v3149 = vadd.f32 0.0, %v3148
        %3150 = vmatmul.bf16.gmra.mxu0 %v3056
        %v3151 = vpop.f32.mrf.mxu0
        %v3152 = vadd.f32 0.0, %v3151
        %v3153 = vpop.f32.mrf.mxu0
        %v3154 = vadd.f32 0.0, %v3153
        %3155 = vmatmul.bf16.gmra.mxu0 %v3059
        %v3156 = vpop.f32.mrf.mxu0
        %v3157 = vadd.f32 0.0, %v3156
        %v3158 = vpop.f32.mrf.mxu0
        %v3159 = vadd.f32 0.0, %v3158
        %3160 = vmatmul.bf16.gmra.mxu0 %v3062
        %v3161 = vpop.f32.mrf.mxu0
        %v3162 = vadd.f32 0.0, %v3161
        %v3163 = vpop.f32.mrf.mxu0
        %v3164 = vadd.f32 0.0, %v3163
        %3165 = vdwg.mxu0
        %v3166 = vadd.f32 %v2930, %v3077
        %v3167 = vadd.f32 %v2931, %v3079
        %v3168 = vadd.f32 %v2932, %v3082
        %v3169 = vadd.f32 %v2933, %v3084
        %v3170 = vadd.f32 %v2934, %v3087
        %v3171 = vadd.f32 %v2935, %v3089
        %v3172 = vadd.f32 %v2936, %v3092
        %v3173 = vadd.f32 %v2937, %v3094
        %v3174 = vadd.f32 %v2938, %v3097
        %v3175 = vadd.f32 %v2939, %v3099
        %v3176 = vadd.f32 %v2940, %v3102
        %v3177 = vadd.f32 %v2941, %v3104
        %v3178 = vadd.f32 %v2942, %v3107
        %v3179 = vadd.f32 %v2943, %v3109
        %v3180 = vadd.f32 %v2944, %v3112
        %v3181 = vadd.f32 %v2945, %v3114
        %v3182 = vadd.f32 %v2946, %v3117
        %v3183 = vadd.f32 %v2947, %v3119
        %v3184 = vadd.f32 %v2948, %v3122
        %v3185 = vadd.f32 %v2949, %v3124
        %v3186 = vadd.f32 %v2950, %v3127
        %v3187 = vadd.f32 %v2951, %v3129
        %v3188 = vadd.f32 %v2952, %v3132
        %v3189 = vadd.f32 %v2953, %v3134
        %v3190 = vadd.f32 %v2954, %v3137
        %v3191 = vadd.f32 %v2955, %v3139
        %v3192 = vadd.f32 %v2956, %v3142
        %v3193 = vadd.f32 %v2957, %v3144
        %v3194 = vadd.f32 %v2958, %v3147
        %v3195 = vadd.f32 %v2959, %v3149
        %v3196 = vadd.f32 %v2960, %v3152
        %v3197 = vadd.f32 %v2961, %v3154
        %v3198 = vadd.f32 %v2962, %v3157
        %v3199 = vadd.f32 %v2963, %v3159
        %v3200 = vadd.f32 %v2964, %v3162
        %v3201 = vadd.f32 %v2965, %v3164
        %v3202 = vld [vmem:[%s2] sm:$0x7]
        %v3203 = vperm.slane %v3202, 0
        %v3204 = vadd.f32 %v3166, %v3203
        %v3205 = vadd.f32 %v3167, %v3203
        %v3206 = vadd.f32 %v3168, %v3203
        %v3207 = vadd.f32 %v3169, %v3203
        %v3208 = vadd.f32 %v3170, %v3203
        %v3209 = vadd.f32 %v3171, %v3203
        %v3210 = vadd.f32 %v3172, %v3203
        %v3211 = vadd.f32 %v3173, %v3203
        %v3212 = vadd.f32 %v3174, %v3203
        %v3213 = vadd.f32 %v3175, %v3203
        %v3214 = vadd.f32 %v3176, %v3203
        %v3215 = vadd.f32 %v3177, %v3203
        %v3216 = vadd.f32 %v3178, %v3203
        %v3217 = vadd.f32 %v3179, %v3203
        %v3218 = vadd.f32 %v3180, %v3203
        %v3219 = vadd.f32 %v3181, %v3203
        %v3220 = vadd.f32 %v3182, %v3203
        %v3221 = vadd.f32 %v3183, %v3203
        %v3222 = vadd.f32 %v3184, %v3203
        %v3223 = vadd.f32 %v3185, %v3203
        %v3224 = vadd.f32 %v3186, %v3203
        %v3225 = vadd.f32 %v3187, %v3203
        %v3226 = vadd.f32 %v3188, %v3203
        %v3227 = vadd.f32 %v3189, %v3203
        %v3228 = vadd.f32 %v3190, %v3203
        %v3229 = vadd.f32 %v3191, %v3203
        %v3230 = vadd.f32 %v3192, %v3203
        %v3231 = vadd.f32 %v3193, %v3203
        %v3232 = vadd.f32 %v3194, %v3203
        %v3233 = vadd.f32 %v3195, %v3203
        %v3234 = vadd.f32 %v3196, %v3203
        %v3235 = vadd.f32 %v3197, %v3203
        %v3236 = vadd.f32 %v3198, %v3203
        %v3237 = vadd.f32 %v3199, %v3203
        %v3238 = vadd.f32 %v3200, %v3203
        %v3239 = vadd.f32 %v3201, %v3203
        %v3240 = vmax.f32 %v3204, 0.0
        %v3241 = vmax.f32 %v3205, 0.0
        %v3242 = vmax.f32 %v3206, 0.0
        %v3243 = vmax.f32 %v3207, 0.0
        %v3244 = vmax.f32 %v3208, 0.0
        %v3245 = vmax.f32 %v3209, 0.0
        %v3246 = vmax.f32 %v3210, 0.0
        %v3247 = vmax.f32 %v3211, 0.0
        %v3248 = vmax.f32 %v3212, 0.0
        %v3249 = vmax.f32 %v3213, 0.0
        %v3250 = vmax.f32 %v3214, 0.0
        %v3251 = vmax.f32 %v3215, 0.0
        %v3252 = vmax.f32 %v3216, 0.0
        %v3253 = vmax.f32 %v3217, 0.0
        %v3254 = vmax.f32 %v3218, 0.0
        %v3255 = vmax.f32 %v3219, 0.0
        %v3256 = vmax.f32 %v3220, 0.0
        %v3257 = vmax.f32 %v3221, 0.0
        %v3258 = vmax.f32 %v3222, 0.0
        %v3259 = vmax.f32 %v3223, 0.0
        %v3260 = vmax.f32 %v3224, 0.0
        %v3261 = vmax.f32 %v3225, 0.0
        %v3262 = vmax.f32 %v3226, 0.0
        %v3263 = vmax.f32 %v3227, 0.0
        %v3264 = vmax.f32 %v3228, 0.0
        %v3265 = vmax.f32 %v3229, 0.0
        %v3266 = vmax.f32 %v3230, 0.0
        %v3267 = vmax.f32 %v3231, 0.0
        %v3268 = vmax.f32 %v3232, 0.0
        %v3269 = vmax.f32 %v3233, 0.0
        %v3270 = vmax.f32 %v3234, 0.0
        %v3271 = vmax.f32 %v3235, 0.0
        %v3272 = vmax.f32 %v3236, 0.0
        %v3273 = vmax.f32 %v3237, 0.0
        %v3274 = vmax.f32 %v3238, 0.0
        %v3275 = vmax.f32 %v3239, 0.0
        %v3276 = vperm.slane %v3202, 1
        %v3277 = vmul.f32 %v3240, %v3276
        %v3278 = vmul.f32 %v3241, %v3276
        %v3279 = vmul.f32 %v3242, %v3276
        %v3280 = vmul.f32 %v3243, %v3276
        %v3281 = vmul.f32 %v3244, %v3276
        %v3282 = vmul.f32 %v3245, %v3276
        %v3283 = vmul.f32 %v3246, %v3276
        %v3284 = vmul.f32 %v3247, %v3276
        %v3285 = vmul.f32 %v3248, %v3276
        %v3286 = vmul.f32 %v3249, %v3276
        %v3287 = vmul.f32 %v3250, %v3276
        %v3288 = vmul.f32 %v3251, %v3276
        %v3289 = vmul.f32 %v3252, %v3276
        %v3290 = vmul.f32 %v3253, %v3276
        %v3291 = vmul.f32 %v3254, %v3276
        %v3292 = vmul.f32 %v3255, %v3276
        %v3293 = vmul.f32 %v3256, %v3276
        %v3294 = vmul.f32 %v3257, %v3276
        %v3295 = vmul.f32 %v3258, %v3276
        %v3296 = vmul.f32 %v3259, %v3276
        %v3297 = vmul.f32 %v3260, %v3276
        %v3298 = vmul.f32 %v3261, %v3276
        %v3299 = vmul.f32 %v3262, %v3276
        %v3300 = vmul.f32 %v3263, %v3276
        %v3301 = vmul.f32 %v3264, %v3276
        %v3302 = vmul.f32 %v3265, %v3276
        %v3303 = vmul.f32 %v3266, %v3276
        %v3304 = vmul.f32 %v3267, %v3276
        %v3305 = vmul.f32 %v3268, %v3276
        %v3306 = vmul.f32 %v3269, %v3276
        %v3307 = vmul.f32 %v3270, %v3276
        %v3308 = vmul.f32 %v3271, %v3276
        %v3309 = vmul.f32 %v3272, %v3276
        %v3310 = vmul.f32 %v3273, %v3276
        %v3311 = vmul.f32 %v3274, %v3276
        %v3312 = vmul.f32 %v3275, %v3276
        %v3313 = vperm.slane %v3202, 2
        %v3314 = vadd.f32 %v3277, %v3313
        %v3315 = vadd.f32 %v3278, %v3313
        %v3316 = vadd.f32 %v3279, %v3313
        %v3317 = vadd.f32 %v3280, %v3313
        %v3318 = vadd.f32 %v3281, %v3313
        %v3319 = vadd.f32 %v3282, %v3313
        %v3320 = vadd.f32 %v3283, %v3313
        %v3321 = vadd.f32 %v3284, %v3313
        %v3322 = vadd.f32 %v3285, %v3313
        %v3323 = vadd.f32 %v3286, %v3313
        %v3324 = vadd.f32 %v3287, %v3313
        %v3325 = vadd.f32 %v3288, %v3313
        %v3326 = vadd.f32 %v3289, %v3313
        %v3327 = vadd.f32 %v3290, %v3313
        %v3328 = vadd.f32 %v3291, %v3313
        %v3329 = vadd.f32 %v3292, %v3313
        %v3330 = vadd.f32 %v3293, %v3313
        %v3331 = vadd.f32 %v3294, %v3313
        %v3332 = vadd.f32 %v3295, %v3313
        %v3333 = vadd.f32 %v3296, %v3313
        %v3334 = vadd.f32 %v3297, %v3313
        %v3335 = vadd.f32 %v3298, %v3313
        %v3336 = vadd.f32 %v3299, %v3313
        %v3337 = vadd.f32 %v3300, %v3313
        %v3338 = vadd.f32 %v3301, %v3313
        %v3339 = vadd.f32 %v3302, %v3313
        %v3340 = vadd.f32 %v3303, %v3313
        %v3341 = vadd.f32 %v3304, %v3313
        %v3342 = vadd.f32 %v3305, %v3313
        %v3343 = vadd.f32 %v3306, %v3313
        %v3344 = vadd.f32 %v3307, %v3313
        %v3345 = vadd.f32 %v3308, %v3313
        %v3346 = vadd.f32 %v3309, %v3313
        %v3347 = vadd.f32 %v3310, %v3313
        %v3348 = vadd.f32 %v3311, %v3313
        %v3349 = vadd.f32 %v3312, %v3313
        %vm3353 = vcmask 1045504
        %v3354 = vrot.slane %v3316, 2
        %v3355 = vrot.slane %v3317, 2
        %v3356 = vsel %vm3353, %v3354, %v3355
        %v3357 = vrot.slane %v3318, 2
        %v3358 = vsel %vm3353, %v3355, %v3357
        %v3362 = vmax.f32 %v3314, %v3356
        %v3363 = vmax.f32 %v3315, %v3358
        %v3364 = vmax.f32 %v3316, %v3357
        %vm3365 = vcmask 261121
        %3366 = vst.msk [vmem:[#allocation5 - $0x1] sm:$0xfe] %vm3365, %v3362
        %vm3367 = vcmask 261120
        %3368 = vst.msk [vmem:[#allocation5 + $0x7] sm:$0xff] %vm3367, %v3363
        %vm3369 = vcmask 253952
        %3370 = vst.msk [vmem:[#allocation5 + $0xf] sm:$0x1] %vm3369, %v3364
        %v3374 = vrot.slane %v3320, 2
        %v3375 = vrot.slane %v3321, 2
        %v3376 = vsel %vm3353, %v3374, %v3375
        %v3377 = vrot.slane %v3322, 2
        %v3378 = vsel %vm3353, %v3375, %v3377
        %v3382 = vmax.f32 %v3318, %v3376
        %v3383 = vmax.f32 %v3319, %v3378
        %v3384 = vmax.f32 %v3320, %v3377
        %vm3385 = vcmask 261125
        %3386 = vst.msk [vmem:[#allocation5 + $0xb] sm:$0xe0] %vm3385, %v3382
        %3387 = vst.msk [vmem:[#allocation5 + $0x13] sm:$0xff] %vm3367, %v3383
        %vm3388 = vcmask 258048
        %3389 = vst.msk [vmem:[#allocation5 + $0x1b] sm:$0x1f] %vm3388, %v3384
        %v3393 = vrot.slane %v3325, 2
        %v3394 = vrot.slane %v3326, 2
        %v3395 = vsel %vm3353, %v3393, %v3394
        %v3396 = vrot.slane %v3327, 2
        %v3397 = vsel %vm3353, %v3394, %v3396
        %v3401 = vmax.f32 %v3323, %v3395
        %v3402 = vmax.f32 %v3324, %v3397
        %v3403 = vmax.f32 %v3325, %v3396
        %3404 = vst.msk [vmem:[#allocation5 + $0x1f] sm:$0xfe] %vm3365, %v3401
        %3405 = vst.msk [vmem:[#allocation5 + $0x27] sm:$0xff] %vm3367, %v3402
        %3406 = vst.msk [vmem:[#allocation5 + $0x2f] sm:$0x1] %vm3369, %v3403
        %v3410 = vrot.slane %v3329, 2
        %v3411 = vrot.slane %v3330, 2
        %v3412 = vsel %vm3353, %v3410, %v3411
        %v3413 = vrot.slane %v3331, 2
        %v3414 = vsel %vm3353, %v3411, %v3413
        %v3418 = vmax.f32 %v3327, %v3412
        %v3419 = vmax.f32 %v3328, %v3414
        %v3420 = vmax.f32 %v3329, %v3413
        %3421 = vst.msk [vmem:[#allocation5 + $0x2b] sm:$0xe0] %vm3385, %v3418
        %3422 = vst.msk [vmem:[#allocation5 + $0x33] sm:$0xff] %vm3367, %v3419
        %3423 = vst.msk [vmem:[#allocation5 + $0x3b] sm:$0x1f] %vm3388, %v3420
        %v3427 = vrot.slane %v3334, 2
        %v3428 = vrot.slane %v3335, 2
        %v3429 = vsel %vm3353, %v3427, %v3428
        %v3430 = vrot.slane %v3336, 2
        %v3431 = vsel %vm3353, %v3428, %v3430
        %v3435 = vmax.f32 %v3332, %v3429
        %v3436 = vmax.f32 %v3333, %v3431
        %v3437 = vmax.f32 %v3334, %v3430
        %3438 = vst.msk [vmem:[#allocation5 + $0x3f] sm:$0xfe] %vm3365, %v3435
        %3439 = vst.msk [vmem:[#allocation5 + $0x47] sm:$0xff] %vm3367, %v3436
        %3440 = vst.msk [vmem:[#allocation5 + $0x4f] sm:$0x1] %vm3369, %v3437
        %v3444 = vrot.slane %v3338, 2
        %v3445 = vrot.slane %v3339, 2
        %v3446 = vsel %vm3353, %v3444, %v3445
        %v3447 = vrot.slane %v3340, 2
        %v3448 = vsel %vm3353, %v3445, %v3447
        %v3452 = vmax.f32 %v3336, %v3446
        %v3453 = vmax.f32 %v3337, %v3448
        %v3454 = vmax.f32 %v3338, %v3447
        %3455 = vst.msk [vmem:[#allocation5 + $0x4b] sm:$0xe0] %vm3385, %v3452
        %3456 = vst.msk [vmem:[#allocation5 + $0x53] sm:$0xff] %vm3367, %v3453
        %3457 = vst.msk [vmem:[#allocation5 + $0x5b] sm:$0x1f] %vm3388, %v3454
        %v3461 = vrot.slane %v3343, 2
        %v3462 = vrot.slane %v3344, 2
        %v3463 = vsel %vm3353, %v3461, %v3462
        %v3464 = vrot.slane %v3345, 2
        %v3465 = vsel %vm3353, %v3462, %v3464
        %v3469 = vmax.f32 %v3341, %v3463
        %v3470 = vmax.f32 %v3342, %v3465
        %v3471 = vmax.f32 %v3343, %v3464
        %3472 = vst.msk [vmem:[#allocation5 + $0x5f] sm:$0xfe] %vm3365, %v3469
        %3473 = vst.msk [vmem:[#allocation5 + $0x67] sm:$0xff] %vm3367, %v3470
        %3474 = vst.msk [vmem:[#allocation5 + $0x6f] sm:$0x1] %vm3369, %v3471
        %v3478 = vrot.slane %v3347, 2
        %v3479 = vrot.slane %v3348, 2
        %v3480 = vsel %vm3353, %v3478, %v3479
        %v3481 = vrot.slane %v3349, 2
        %v3482 = vsel %vm3353, %v3479, %v3481
        %v3486 = vmax.f32 %v3345, %v3480
        %v3487 = vmax.f32 %v3346, %v3482
        %v3488 = vmax.f32 %v3347, %v3481
        %3489 = vst.msk [vmem:[#allocation5 + $0x6b] sm:$0xe0] %vm3385, %v3486
        %3490 = vst.msk [vmem:[#allocation5 + $0x73] sm:$0xff] %vm3367, %v3487
        %3491 = vst.msk [vmem:[#allocation5 + $0x7b] sm:$0x1f] %vm3388, %v3488
        %v3492 = vld [vmem:[#allocation5] ss:$2 sm:$0xff]
        %s3493 = scalar_lea.vmem [#allocation5], 16
        %v3494 = vld [vmem:[%s3493] ss:$2 sm:$0xff]
        %s3495 = scalar_lea.vmem [#allocation5], 32
        %v3496 = vld [vmem:[%s3495] ss:$2 sm:$0xff]
        %s3497 = scalar_lea.vmem [#allocation5], 48
        %v3498 = vld [vmem:[%s3497] ss:$2 sm:$0xff]
        %s3499 = scalar_lea.vmem [#allocation5], 64
        %v3500 = vld [vmem:[%s3499] ss:$2 sm:$0xff]
        %s3501 = scalar_lea.vmem [#allocation5], 80
        %v3502 = vld [vmem:[%s3501] ss:$2 sm:$0xff]
        %s3503 = scalar_lea.vmem [#allocation5], 96
        %v3504 = vld [vmem:[%s3503] ss:$2 sm:$0xff]
        %s3505 = scalar_lea.vmem [#allocation5], 112
        %v3506 = vld [vmem:[%s3505] ss:$2 sm:$0xff]
        %s3507 = scalar_lea.vmem [#allocation5], 1
        %v3508 = vld [vmem:[%s3507] ss:$2 sm:$0xff]
        %s3509 = scalar_lea.vmem [#allocation5], 17
        %v3510 = vld [vmem:[%s3509] ss:$2 sm:$0xff]
        %s3511 = scalar_lea.vmem [#allocation5], 33
        %v3512 = vld [vmem:[%s3511] ss:$2 sm:$0xff]
        %s3513 = scalar_lea.vmem [#allocation5], 49
        %v3514 = vld [vmem:[%s3513] ss:$2 sm:$0xff]
        %s3515 = scalar_lea.vmem [#allocation5], 65
        %v3516 = vld [vmem:[%s3515] ss:$2 sm:$0xff]
        %s3517 = scalar_lea.vmem [#allocation5], 81
        %v3518 = vld [vmem:[%s3517] ss:$2 sm:$0xff]
        %s3519 = scalar_lea.vmem [#allocation5], 97
        %v3520 = vld [vmem:[%s3519] ss:$2 sm:$0xff]
        %s3521 = scalar_lea.vmem [#allocation5], 113
        %v3522 = vld [vmem:[%s3521] ss:$2 sm:$0xff]
        %v3523 = vmax.f32 %v3492, %v3508
        %v3524 = vmax.f32 %v3494, %v3510
        %v3525 = vmax.f32 %v3496, %v3512
        %v3526 = vmax.f32 %v3498, %v3514
        %v3527 = vmax.f32 %v3500, %v3516
        %v3528 = vmax.f32 %v3502, %v3518
        %v3529 = vmax.f32 %v3504, %v3520
        %v3530 = vmax.f32 %v3506, %v3522
        %vm3531 = vcmask 257024
        %3532 = vst.msk [vmem:[#allocation2] sm:$0xf] %vm3531, 0
        %3533 = vst.msk [vmem:[#allocation2 + $0x4] sm:$0xf] %vm3531, 0
        %3534 = vst.msk [vmem:[#allocation2 + $0x8] sm:$0xf] %vm3531, 0
        %3535 = vst.msk [vmem:[#allocation2 + $0xc] sm:$0xf] %vm3531, 0
        %3536 = vst.msk [vmem:[#allocation2 + $0x10] sm:$0xf] %vm3531, 0
        %3537 = vst.msk [vmem:[#allocation2 + $0x14] sm:$0xf] %vm3531, 0
        %3538 = vst.msk [vmem:[#allocation2 + $0x18] sm:$0xf] %vm3531, 0
        %3539 = vst.msk [vmem:[#allocation2 + $0x1c] sm:$0xf] %vm3531, 0
        %3540 = vst.msk [vmem:[#allocation2 + $0x20] sm:$0xf] %vm3531, 0
        %3541 = vst.msk [vmem:[#allocation2 + $0x24] sm:$0xf] %vm3531, 0
        %3542 = vst.msk [vmem:[#allocation2 + $0x28] sm:$0xf] %vm3531, 0
        %3543 = vst.msk [vmem:[#allocation2 + $0x2c] sm:$0xf] %vm3531, 0
        %vm3544 = vcmask 256000
        %3545 = vst.msk [vmem:[#allocation2 + $0x30] sm:$0x7] %vm3544, 0
        %v3546 = vpack.c.bf16 %v3523, %v3523
        %v3547 = vpack.c.bf16 %v3524, %v3524
        %v3548 = vpack.c.bf16 %v3525, %v3525
        %v3549 = vpack.c.bf16 %v3526, %v3526
        %v3550 = vpack.c.bf16 %v3527, %v3527
        %v3551 = vpack.c.bf16 %v3528, %v3528
        %v3552 = vpack.c.bf16 %v3529, %v3529
        %v3553 = vpack.c.bf16 %v3530, %v3530
        %v3555 = vrot.slane %v3546, 6
        %v3556 = vrot.slane %v3555, 4
        %vm3559 = vcmask 257026
        %3560 = vst.msk [vmem:[#allocation2 + $0x4] sm:$0xc] %vm3559, %v3555
        %vm3561 = vcmask 254976
        %3562 = vst.msk [vmem:[#allocation2 + $0x8] sm:$0x3] %vm3561, %v3556
        %v3564 = vrot.slane %v3547, 5
        %v3565 = vrot.slane %v3564, 4
        %vm3568 = vcmask 257027
        %3569 = vst.msk [vmem:[#allocation2 + $0x8] sm:$0x8] %vm3568, %v3564
        %3570 = vst.msk [vmem:[#allocation2 + $0xc] sm:$0x7] %vm3544, %v3565
        %3571 = vst.msk [vmem:[#allocation2 + $0x10] sm:$0xf] %vm3531, %v3548
        %v3573 = vrot.slane %v3549, 7
        %v3574 = vrot.slane %v3573, 4
        %vm3577 = vcmask 257025
        %3578 = vst.msk [vmem:[#allocation2 + $0x14] sm:$0xe] %vm3577, %v3573
        %3579 = vst.msk [vmem:[#allocation2 + $0x18] sm:$0x1] %vm3369, %v3574
        %v3581 = vrot.slane %v3550, 6
        %v3582 = vrot.slane %v3581, 4
        %3585 = vst.msk [vmem:[#allocation2 + $0x18] sm:$0xc] %vm3559, %v3581
        %3586 = vst.msk [vmem:[#allocation2 + $0x1c] sm:$0x3] %vm3561, %v3582
        %v3588 = vrot.slane %v3551, 5
        %v3589 = vrot.slane %v3588, 4
        %3592 = vst.msk [vmem:[#allocation2 + $0x1c] sm:$0x8] %vm3568, %v3588
        %3593 = vst.msk [vmem:[#allocation2 + $0x20] sm:$0x7] %vm3544, %v3589
        %3594 = vst.msk [vmem:[#allocation2 + $0x24] sm:$0xf] %vm3531, %v3552
        %v3596 = vrot.slane %v3553, 7
        %v3597 = vrot.slane %v3596, 4
        %3600 = vst.msk [vmem:[#allocation2 + $0x28] sm:$0xe] %vm3577, %v3596
        %3601 = vst.msk [vmem:[#allocation2 + $0x2c] sm:$0x1] %vm3369, %v3597
        %v3602 = vld [vmem:[#allocation2] sm:$0xf]
        %v3603 = vld [vmem:[#allocation2 + $0x4] sm:$0xf]
        %v3604 = vld [vmem:[#allocation2 + $0x8] sm:$0xf]
        %v3605 = vld [vmem:[#allocation2 + $0xc] sm:$0xf]
        %v3606 = vld [vmem:[#allocation2 + $0x10] sm:$0xf]
        %v3607 = vld [vmem:[#allocation2 + $0x14] sm:$0xf]
        %v3608 = vld [vmem:[#allocation2 + $0x18] sm:$0xf]
        %v3609 = vld [vmem:[#allocation2 + $0x1c] sm:$0xf]
        %v3610 = vld [vmem:[#allocation2 + $0x20] sm:$0xf]
        %v3611 = vld [vmem:[#allocation2 + $0x24] sm:$0xf]
        %v3612 = vld [vmem:[#allocation9] sm:$0xf]
        %v3613 = vld [vmem:[#allocation9 + $0x4] sm:$0xf]
        %v3614 = vld [vmem:[#allocation9 + $0x8] sm:$0xf]
        %v3615 = vld [vmem:[#allocation9 + $0xc] sm:$0xf]
        %v3616 = vld [vmem:[#allocation2 + $0x28] sm:$0x1]
        %s3617 = scalar_lea.vmem [#allocation9], 16
        %v3618 = vld [vmem:[%s3617] sm:$0xf]
        %v3619 = vld [vmem:[%s3617 + $0x4] sm:$0xf]
        %v3620 = vld [vmem:[%s3617 + $0x8] sm:$0xf]
        %v3621 = vld [vmem:[%s3617 + $0xc] sm:$0xf]
        %v3633 = vunpack.c.l.b16 %v3602
        %v3634 = vunpack.c.l.b16 %v3603
        %v3635 = vunpack.c.l.b16 %v3604
        %v3636 = vunpack.c.l.b16 %v3605
        %v3637 = vunpack.c.l.b16 %v3606
        %v3638 = vunpack.c.l.b16 %v3607
        %v3639 = vunpack.c.l.b16 %v3608
        %v3640 = vunpack.c.l.b16 %v3609
        %v3641 = vunpack.c.l.b16 %v3610
        %v3642 = vunpack.c.l.b16 %v3611
        %v3643 = vunpack.c.l.b16 %v3616
        %v3644 = vpack.c.b16 %v3634, %v3633
        %v3645 = vpack.c.b16 %v3636, %v3635
        %v3646 = vpack.c.b16 %v3638, %v3637
        %v3647 = vpack.c.b16 %v3640, %v3639
        %v3648 = vpack.c.b16 %v3642, %v3641
        %v3649 = vpack.c.b16 %v3643, %v3643
        %v3651 = vshrl.u32 %v3644, 16
        %v3653 = vshll.u32 %v3644, 16
        %v3655 = vrot.slane %v3653, 1
        %v3656 = vor.u32 %v3651, %v3655
        %v3658 = vshll.u32 %v3645, 16
        %v3660 = vrot.slane %v3658, 1
        %v3661 = vsel %vm589, %v3656, %v3660
        %v3662 = vshrl.u32 %v3645, 16
        %v3664 = vor.u32 %v3662, %v3660
        %v3666 = vshll.u32 %v3646, 16
        %v3668 = vrot.slane %v3666, 1
        %v3669 = vsel %vm589, %v3664, %v3668
        %v3670 = vshrl.u32 %v3646, 16
        %v3672 = vor.u32 %v3670, %v3668
        %v3674 = vshll.u32 %v3647, 16
        %v3676 = vrot.slane %v3674, 1
        %v3677 = vsel %vm589, %v3672, %v3676
        %v3678 = vshrl.u32 %v3647, 16
        %v3680 = vor.u32 %v3678, %v3676
        %v3682 = vshll.u32 %v3648, 16
        %v3684 = vrot.slane %v3682, 1
        %v3685 = vsel %vm589, %v3680, %v3684
        %v3686 = vshrl.u32 %v3648, 16
        %v3688 = vor.u32 %v3686, %v3684
        %v3690 = vshll.u32 %v3649, 16
        %v3692 = vrot.slane %v3690, 1
        %v3693 = vsel %vm589, %v3688, %v3692
        %v3698 = vunpack.c.l.b16 %v3618
        %v3699 = vunpack.c.l.b16 %v3619
        %v3700 = vunpack.c.l.b16 %v3620
        %v3701 = vunpack.c.l.b16 %v3621
        %v3702 = vpack.c.b16 %v3699, %v3698
        %v3703 = vpack.c.b16 %v3701, %v3700
        %v3707 = vsel %vm3367, %v3661, 0
        %v3710 = vsel %vm3367, %v3669, 0
        %v3713 = vsel %vm3367, %v3677, 0
        %v3716 = vsel %vm3367, %v3685, 0
        %v3719 = vsel %vm3367, %v3693, 0
        %3721 = vmatpush.bf16.msra.mxu0 0
        %3722 = vmatpush.bf16.msra.mxu0 0
        %3723 = vmatpush.bf16.msra.mxu0 0
        %3724 = vmatpush.bf16.msra.mxu0 0
        %3725 = vmatpush.bf16.msra.mxu0 0
        %3726 = vmatpush.bf16.msra.mxu0 0
        %3727 = vmatpush.bf16.msra.mxu0 %v3703
        %3728 = vmatpush.bf16.msra.mxu0 %v3702
        %3729 = vmatmul.bf16.gmra.mxu0 %v3707
        %v3730 = vpop.f32.mrf.mxu0
        %v3731 = vadd.f32 0.0, %v3730
        %v3732 = vpop.f32.mrf.mxu0
        %v3733 = vadd.f32 0.0, %v3732
        %3734 = vmatmul.bf16.gmra.mxu0 %v3710
        %v3735 = vpop.f32.mrf.mxu0
        %v3736 = vadd.f32 0.0, %v3735
        %v3737 = vpop.f32.mrf.mxu0
        %v3738 = vadd.f32 0.0, %v3737
        %3739 = vmatmul.bf16.gmra.mxu0 %v3713
        %v3740 = vpop.f32.mrf.mxu0
        %v3741 = vadd.f32 0.0, %v3740
        %v3742 = vpop.f32.mrf.mxu0
        %v3743 = vadd.f32 0.0, %v3742
        %3744 = vmatmul.bf16.gmra.mxu0 %v3716
        %v3745 = vpop.f32.mrf.mxu0
        %v3746 = vadd.f32 0.0, %v3745
        %v3747 = vpop.f32.mrf.mxu0
        %v3748 = vadd.f32 0.0, %v3747
        %3749 = vmatmul.bf16.gmra.mxu0 %v3719
        %v3750 = vpop.f32.mrf.mxu0
        %v3751 = vadd.f32 0.0, %v3750
        %v3752 = vpop.f32.mrf.mxu0
        %v3753 = vadd.f32 0.0, %v3752
        %3754 = vdwg.mxu0
        %v3759 = vunpack.c.l.b16 %v3612
        %v3760 = vunpack.c.l.b16 %v3613
        %v3761 = vunpack.c.l.b16 %v3614
        %v3762 = vunpack.c.l.b16 %v3615
        %v3763 = vpack.c.b16 %v3760, %v3759
        %v3764 = vpack.c.b16 %v3762, %v3761
        %v3767 = vsel %vm3367, %v3644, 0
        %v3769 = vsel %vm3367, %v3645, 0
        %v3771 = vsel %vm3367, %v3646, 0
        %v3773 = vsel %vm3367, %v3647, 0
        %v3775 = vsel %vm3367, %v3648, 0
        %3777 = vmatpush.bf16.msra.mxu0 0
        %3778 = vmatpush.bf16.msra.mxu0 0
        %3779 = vmatpush.bf16.msra.mxu0 0
        %3780 = vmatpush.bf16.msra.mxu0 0
        %3781 = vmatpush.bf16.msra.mxu0 0
        %3782 = vmatpush.bf16.msra.mxu0 0
        %3783 = vmatpush.bf16.msra.mxu0 %v3764
        %3784 = vmatpush.bf16.msra.mxu0 %v3763
        %3785 = vmatmul.bf16.gmra.mxu0 %v3767
        %v3786 = vpop.f32.mrf.mxu0
        %v3787 = vadd.f32 %v3731, %v3786
        %v3788 = vpop.f32.mrf.mxu0
        %v3789 = vadd.f32 %v3733, %v3788
        %3790 = vmatmul.bf16.gmra.mxu0 %v3769
        %v3791 = vpop.f32.mrf.mxu0
        %v3792 = vadd.f32 %v3736, %v3791
        %v3793 = vpop.f32.mrf.mxu0
        %v3794 = vadd.f32 %v3738, %v3793
        %3795 = vmatmul.bf16.gmra.mxu0 %v3771
        %v3796 = vpop.f32.mrf.mxu0
        %v3797 = vadd.f32 %v3741, %v3796
        %v3798 = vpop.f32.mrf.mxu0
        %v3799 = vadd.f32 %v3743, %v3798
        %3800 = vmatmul.bf16.gmra.mxu0 %v3773
        %v3801 = vpop.f32.mrf.mxu0
        %v3802 = vadd.f32 %v3746, %v3801
        %v3803 = vpop.f32.mrf.mxu0
        %v3804 = vadd.f32 %v3748, %v3803
        %3805 = vmatmul.bf16.gmra.mxu0 %v3775
        %v3806 = vpop.f32.mrf.mxu0
        %v3807 = vadd.f32 %v3751, %v3806
        %v3808 = vpop.f32.mrf.mxu0
        %v3809 = vadd.f32 %v3753, %v3808
        %3810 = vdwg.mxu0
        %v3811 = vld [vmem:[#allocation2] sm:$0xe]
        %s3812 = scalar_lea.vmem [#allocation9], 32
        %v3813 = vld [vmem:[%s3812] sm:$0xf]
        %v3814 = vld [vmem:[%s3812 + $0x4] sm:$0xf]
        %v3815 = vld [vmem:[%s3812 + $0x8] sm:$0xf]
        %v3816 = vld [vmem:[%s3812 + $0xc] sm:$0xf]
        %v3818 = vunpack.c.l.b16 %v3811
        %v3819 = vpack.c.b16 %v3634, %v3818
        %v3820 = vrot.slane %v3819, 1
        %v3821 = vrot.slane %v3645, 1
        %v3822 = vsel %vm1040, %v3820, %v3821
        %v3823 = vrot.slane %v3646, 1
        %v3824 = vsel %vm1040, %v3821, %v3823
        %v3825 = vrot.slane %v3647, 1
        %v3826 = vsel %vm1040, %v3823, %v3825
        %v3827 = vrot.slane %v3648, 1
        %v3828 = vsel %vm1040, %v3825, %v3827
        %v3829 = vrot.slane %v3649, 1
        %v3830 = vsel %vm1040, %v3827, %v3829
        %v3835 = vunpack.c.l.b16 %v3813
        %v3836 = vunpack.c.l.b16 %v3814
        %v3837 = vunpack.c.l.b16 %v3815
        %v3838 = vunpack.c.l.b16 %v3816
        %v3839 = vpack.c.b16 %v3836, %v3835
        %v3840 = vpack.c.b16 %v3838, %v3837
        %v3844 = vsel %vm3367, %v3822, 0
        %v3847 = vsel %vm3367, %v3824, 0
        %v3850 = vsel %vm3367, %v3826, 0
        %v3853 = vsel %vm3367, %v3828, 0
        %v3856 = vsel %vm3367, %v3830, 0
        %3858 = vmatpush.bf16.msra.mxu0 0
        %3859 = vmatpush.bf16.msra.mxu0 0
        %3860 = vmatpush.bf16.msra.mxu0 0
        %3861 = vmatpush.bf16.msra.mxu0 0
        %3862 = vmatpush.bf16.msra.mxu0 0
        %3863 = vmatpush.bf16.msra.mxu0 0
        %3864 = vmatpush.bf16.msra.mxu0 %v3840
        %3865 = vmatpush.bf16.msra.mxu0 %v3839
        %3866 = vmatmul.bf16.gmra.mxu0 %v3844
        %v3867 = vpop.f32.mrf.mxu0
        %v3868 = vadd.f32 0.0, %v3867
        %v3869 = vpop.f32.mrf.mxu0
        %v3870 = vadd.f32 0.0, %v3869
        %3871 = vmatmul.bf16.gmra.mxu0 %v3847
        %v3872 = vpop.f32.mrf.mxu0
        %v3873 = vadd.f32 0.0, %v3872
        %v3874 = vpop.f32.mrf.mxu0
        %v3875 = vadd.f32 0.0, %v3874
        %3876 = vmatmul.bf16.gmra.mxu0 %v3850
        %v3877 = vpop.f32.mrf.mxu0
        %v3878 = vadd.f32 0.0, %v3877
        %v3879 = vpop.f32.mrf.mxu0
        %v3880 = vadd.f32 0.0, %v3879
        %3881 = vmatmul.bf16.gmra.mxu0 %v3853
        %v3882 = vpop.f32.mrf.mxu0
        %v3883 = vadd.f32 0.0, %v3882
        %v3884 = vpop.f32.mrf.mxu0
        %v3885 = vadd.f32 0.0, %v3884
        %3886 = vmatmul.bf16.gmra.mxu0 %v3856
        %v3887 = vpop.f32.mrf.mxu0
        %v3888 = vadd.f32 0.0, %v3887
        %v3889 = vpop.f32.mrf.mxu0
        %v3890 = vadd.f32 0.0, %v3889
        %3891 = vdwg.mxu0
        %v3892 = vadd.f32 %v3787, %v3868
        %v3893 = vadd.f32 %v3789, %v3870
        %v3894 = vadd.f32 %v3792, %v3873
        %v3895 = vadd.f32 %v3794, %v3875
        %v3896 = vadd.f32 %v3797, %v3878
        %v3897 = vadd.f32 %v3799, %v3880
        %v3898 = vadd.f32 %v3802, %v3883
        %v3899 = vadd.f32 %v3804, %v3885
        %v3900 = vadd.f32 %v3807, %v3888
        %v3901 = vadd.f32 %v3809, %v3890
        %v3902 = vld [vmem:[#allocation2 + $0x4] sm:$0xe]
        %v3903 = vld [vmem:[#allocation2 + $0x8] sm:$0xf]
        %v3904 = vld [vmem:[#allocation2 + $0xc] sm:$0xf]
        %v3905 = vld [vmem:[#allocation2 + $0x10] sm:$0xf]
        %v3906 = vld [vmem:[#allocation2 + $0x14] sm:$0xf]
        %v3907 = vld [vmem:[#allocation2 + $0x18] sm:$0xf]
        %v3908 = vld [vmem:[#allocation2 + $0x1c] sm:$0xf]
        %v3909 = vld [vmem:[#allocation2 + $0x20] sm:$0xf]
        %v3910 = vld [vmem:[#allocation2 + $0x24] sm:$0xf]
        %v3911 = vld [vmem:[#allocation2 + $0x28] sm:$0xf]
        %v3912 = vld [vmem:[#allocation2 + $0x2c] sm:$0x1]
        %s3913 = scalar_lea.vmem [#allocation9], 48
        %v3914 = vld [vmem:[%s3913] sm:$0xf]
        %v3915 = vld [vmem:[%s3913 + $0x4] sm:$0xf]
        %v3916 = vld [vmem:[%s3913 + $0x8] sm:$0xf]
        %v3917 = vld [vmem:[%s3913 + $0xc] sm:$0xf]
        %v3929 = vunpack.c.l.b16 %v3902
        %v3930 = vunpack.c.l.b16 %v3903
        %v3931 = vunpack.c.l.b16 %v3904
        %v3932 = vunpack.c.l.b16 %v3905
        %v3933 = vunpack.c.l.b16 %v3906
        %v3934 = vunpack.c.l.b16 %v3907
        %v3935 = vunpack.c.l.b16 %v3908
        %v3936 = vunpack.c.l.b16 %v3909
        %v3937 = vunpack.c.l.b16 %v3910
        %v3938 = vunpack.c.l.b16 %v3911
        %v3939 = vunpack.c.l.b16 %v3912
        %v3940 = vpack.c.b16 %v3930, %v3929
        %v3941 = vpack.c.b16 %v3932, %v3931
        %v3942 = vpack.c.b16 %v3934, %v3933
        %v3943 = vpack.c.b16 %v3936, %v3935
        %v3944 = vpack.c.b16 %v3938, %v3937
        %v3945 = vpack.c.b16 %v3939, %v3939
        %v3946 = vrot.slane %v3940, 1
        %v3947 = vrot.slane %v3941, 1
        %v3948 = vsel %vm1040, %v3946, %v3947
        %v3949 = vrot.slane %v3942, 1
        %v3950 = vsel %vm1040, %v3947, %v3949
        %v3951 = vrot.slane %v3943, 1
        %v3952 = vsel %vm1040, %v3949, %v3951
        %v3953 = vrot.slane %v3944, 1
        %v3954 = vsel %vm1040, %v3951, %v3953
        %v3955 = vrot.slane %v3945, 1
        %v3956 = vsel %vm1040, %v3953, %v3955
        %v3961 = vunpack.c.l.b16 %v3914
        %v3962 = vunpack.c.l.b16 %v3915
        %v3963 = vunpack.c.l.b16 %v3916
        %v3964 = vunpack.c.l.b16 %v3917
        %v3965 = vpack.c.b16 %v3962, %v3961
        %v3966 = vpack.c.b16 %v3964, %v3963
        %v3970 = vsel %vm3367, %v3948, 0
        %v3973 = vsel %vm3367, %v3950, 0
        %v3976 = vsel %vm3367, %v3952, 0
        %v3979 = vsel %vm3367, %v3954, 0
        %v3982 = vsel %vm3367, %v3956, 0
        %3984 = vmatpush.bf16.msra.mxu0 0
        %3985 = vmatpush.bf16.msra.mxu0 0
        %3986 = vmatpush.bf16.msra.mxu0 0
        %3987 = vmatpush.bf16.msra.mxu0 0
        %3988 = vmatpush.bf16.msra.mxu0 0
        %3989 = vmatpush.bf16.msra.mxu0 0
        %3990 = vmatpush.bf16.msra.mxu0 %v3966
        %3991 = vmatpush.bf16.msra.mxu0 %v3965
        %3992 = vmatmul.bf16.gmra.mxu0 %v3970
        %v3993 = vpop.f32.mrf.mxu0
        %v3994 = vadd.f32 0.0, %v3993
        %v3995 = vpop.f32.mrf.mxu0
        %v3996 = vadd.f32 0.0, %v3995
        %3997 = vmatmul.bf16.gmra.mxu0 %v3973
        %v3998 = vpop.f32.mrf.mxu0
        %v3999 = vadd.f32 0.0, %v3998
        %v4000 = vpop.f32.mrf.mxu0
        %v4001 = vadd.f32 0.0, %v4000
        %4002 = vmatmul.bf16.gmra.mxu0 %v3976
        %v4003 = vpop.f32.mrf.mxu0
        %v4004 = vadd.f32 0.0, %v4003
        %v4005 = vpop.f32.mrf.mxu0
        %v4006 = vadd.f32 0.0, %v4005
        %4007 = vmatmul.bf16.gmra.mxu0 %v3979
        %v4008 = vpop.f32.mrf.mxu0
        %v4009 = vadd.f32 0.0, %v4008
        %v4010 = vpop.f32.mrf.mxu0
        %v4011 = vadd.f32 0.0, %v4010
        %4012 = vmatmul.bf16.gmra.mxu0 %v3982
        %v4013 = vpop.f32.mrf.mxu0
        %v4014 = vadd.f32 0.0, %v4013
        %v4015 = vpop.f32.mrf.mxu0
        %v4016 = vadd.f32 0.0, %v4015
        %4017 = vdwg.mxu0
        %v4018 = vadd.f32 %v3892, %v3994
        %v4019 = vadd.f32 %v3893, %v3996
        %v4020 = vadd.f32 %v3894, %v3999
        %v4021 = vadd.f32 %v3895, %v4001
        %v4022 = vadd.f32 %v3896, %v4004
        %v4023 = vadd.f32 %v3897, %v4006
        %v4024 = vadd.f32 %v3898, %v4009
        %v4025 = vadd.f32 %v3899, %v4011
        %v4026 = vadd.f32 %v3900, %v4014
        %v4027 = vadd.f32 %v3901, %v4016
        %v4028 = vld [vmem:[#allocation2 + $0x2c] sm:$0x3]
        %s4029 = scalar_lea.vmem [#allocation9], 64
        %v4030 = vld [vmem:[%s4029] sm:$0xf]
        %v4031 = vld [vmem:[%s4029 + $0x4] sm:$0xf]
        %v4032 = vld [vmem:[%s4029 + $0x8] sm:$0xf]
        %v4033 = vld [vmem:[%s4029 + $0xc] sm:$0xf]
        %v4035 = vunpack.c.l.b16 %v4028
        %v4036 = vpack.c.b16 %v4035, %v4035
        %v4038 = vshrl.u32 %v3940, 16
        %v4040 = vrot.slane %v4038, 1
        %v4041 = vshll.u32 %v3940, 16
        %v4043 = vrot.slane %v4041, 2
        %v4044 = vor.u32 %v4040, %v4043
        %v4046 = vshrl.u32 %v3941, 16
        %v4048 = vrot.slane %v4046, 1
        %v4049 = vshll.u32 %v3941, 16
        %v4051 = vrot.slane %v4049, 2
        %v4052 = vor.u32 %v4048, %v4051
        %v4053 = vsel %vm1637, %v4044, %v4052
        %v4055 = vshrl.u32 %v3942, 16
        %v4057 = vrot.slane %v4055, 1
        %v4058 = vshll.u32 %v3942, 16
        %v4060 = vrot.slane %v4058, 2
        %v4061 = vor.u32 %v4057, %v4060
        %v4062 = vsel %vm1637, %v4052, %v4061
        %v4064 = vshrl.u32 %v3943, 16
        %v4066 = vrot.slane %v4064, 1
        %v4067 = vshll.u32 %v3943, 16
        %v4069 = vrot.slane %v4067, 2
        %v4070 = vor.u32 %v4066, %v4069
        %v4071 = vsel %vm1637, %v4061, %v4070
        %v4073 = vshrl.u32 %v3944, 16
        %v4075 = vrot.slane %v4073, 1
        %v4076 = vshll.u32 %v3944, 16
        %v4078 = vrot.slane %v4076, 2
        %v4079 = vor.u32 %v4075, %v4078
        %v4080 = vsel %vm1637, %v4070, %v4079
        %v4082 = vshrl.u32 %v4036, 16
        %v4084 = vrot.slane %v4082, 1
        %v4085 = vshll.u32 %v4036, 16
        %v4087 = vrot.slane %v4085, 2
        %v4088 = vor.u32 %v4084, %v4087
        %v4089 = vsel %vm1637, %v4079, %v4088
        %v4094 = vunpack.c.l.b16 %v4030
        %v4095 = vunpack.c.l.b16 %v4031
        %v4096 = vunpack.c.l.b16 %v4032
        %v4097 = vunpack.c.l.b16 %v4033
        %v4098 = vpack.c.b16 %v4095, %v4094
        %v4099 = vpack.c.b16 %v4097, %v4096
        %v4103 = vsel %vm3367, %v4053, 0
        %v4106 = vsel %vm3367, %v4062, 0
        %v4109 = vsel %vm3367, %v4071, 0
        %v4112 = vsel %vm3367, %v4080, 0
        %v4115 = vsel %vm3367, %v4089, 0
        %4117 = vmatpush.bf16.msra.mxu0 0
        %4118 = vmatpush.bf16.msra.mxu0 0
        %4119 = vmatpush.bf16.msra.mxu0 0
        %4120 = vmatpush.bf16.msra.mxu0 0
        %4121 = vmatpush.bf16.msra.mxu0 0
        %4122 = vmatpush.bf16.msra.mxu0 0
        %4123 = vmatpush.bf16.msra.mxu0 %v4099
        %4124 = vmatpush.bf16.msra.mxu0 %v4098
        %4125 = vmatmul.bf16.gmra.mxu0 %v4103
        %v4126 = vpop.f32.mrf.mxu0
        %v4127 = vadd.f32 0.0, %v4126
        %v4128 = vpop.f32.mrf.mxu0
        %v4129 = vadd.f32 0.0, %v4128
        %4130 = vmatmul.bf16.gmra.mxu0 %v4106
        %v4131 = vpop.f32.mrf.mxu0
        %v4132 = vadd.f32 0.0, %v4131
        %v4133 = vpop.f32.mrf.mxu0
        %v4134 = vadd.f32 0.0, %v4133
        %4135 = vmatmul.bf16.gmra.mxu0 %v4109
        %v4136 = vpop.f32.mrf.mxu0
        %v4137 = vadd.f32 0.0, %v4136
        %v4138 = vpop.f32.mrf.mxu0
        %v4139 = vadd.f32 0.0, %v4138
        %4140 = vmatmul.bf16.gmra.mxu0 %v4112
        %v4141 = vpop.f32.mrf.mxu0
        %v4142 = vadd.f32 0.0, %v4141
        %v4143 = vpop.f32.mrf.mxu0
        %v4144 = vadd.f32 0.0, %v4143
        %4145 = vmatmul.bf16.gmra.mxu0 %v4115
        %v4146 = vpop.f32.mrf.mxu0
        %v4147 = vadd.f32 0.0, %v4146
        %v4148 = vpop.f32.mrf.mxu0
        %v4149 = vadd.f32 0.0, %v4148
        %4150 = vdwg.mxu0
        %v4151 = vadd.f32 %v4018, %v4127
        %v4152 = vadd.f32 %v4019, %v4129
        %v4153 = vadd.f32 %v4020, %v4132
        %v4154 = vadd.f32 %v4021, %v4134
        %v4155 = vadd.f32 %v4022, %v4137
        %v4156 = vadd.f32 %v4023, %v4139
        %v4157 = vadd.f32 %v4024, %v4142
        %v4158 = vadd.f32 %v4025, %v4144
        %v4159 = vadd.f32 %v4026, %v4147
        %v4160 = vadd.f32 %v4027, %v4149
        %v4161 = vld [vmem:[#allocation2 + $0x4] sm:$0xc]
        %s4162 = scalar_lea.vmem [#allocation9], 80
        %v4163 = vld [vmem:[%s4162] sm:$0xf]
        %v4164 = vld [vmem:[%s4162 + $0x4] sm:$0xf]
        %v4165 = vld [vmem:[%s4162 + $0x8] sm:$0xf]
        %v4166 = vld [vmem:[%s4162 + $0xc] sm:$0xf]
        %v4168 = vunpack.c.l.b16 %v4161
        %v4169 = vpack.c.b16 %v3930, %v4168
        %v4170 = vrot.slane %v4169, 2
        %v4171 = vrot.slane %v3941, 2
        %v4172 = vsel %vm2006, %v4170, %v4171
        %v4173 = vrot.slane %v3942, 2
        %v4174 = vsel %vm2006, %v4171, %v4173
        %v4175 = vrot.slane %v3943, 2
        %v4176 = vsel %vm2006, %v4173, %v4175
        %v4177 = vrot.slane %v3944, 2
        %v4178 = vsel %vm2006, %v4175, %v4177
        %v4179 = vrot.slane %v4036, 2
        %v4180 = vsel %vm2006, %v4177, %v4179
        %v4185 = vunpack.c.l.b16 %v4163
        %v4186 = vunpack.c.l.b16 %v4164
        %v4187 = vunpack.c.l.b16 %v4165
        %v4188 = vunpack.c.l.b16 %v4166
        %v4189 = vpack.c.b16 %v4186, %v4185
        %v4190 = vpack.c.b16 %v4188, %v4187
        %v4194 = vsel %vm3367, %v4172, 0
        %v4197 = vsel %vm3367, %v4174, 0
        %v4200 = vsel %vm3367, %v4176, 0
        %v4203 = vsel %vm3367, %v4178, 0
        %v4206 = vsel %vm3367, %v4180, 0
        %4208 = vmatpush.bf16.msra.mxu0 0
        %4209 = vmatpush.bf16.msra.mxu0 0
        %4210 = vmatpush.bf16.msra.mxu0 0
        %4211 = vmatpush.bf16.msra.mxu0 0
        %4212 = vmatpush.bf16.msra.mxu0 0
        %4213 = vmatpush.bf16.msra.mxu0 0
        %4214 = vmatpush.bf16.msra.mxu0 %v4190
        %4215 = vmatpush.bf16.msra.mxu0 %v4189
        %4216 = vmatmul.bf16.gmra.mxu0 %v4194
        %v4217 = vpop.f32.mrf.mxu0
        %v4218 = vadd.f32 0.0, %v4217
        %v4219 = vpop.f32.mrf.mxu0
        %v4220 = vadd.f32 0.0, %v4219
        %4221 = vmatmul.bf16.gmra.mxu0 %v4197
        %v4222 = vpop.f32.mrf.mxu0
        %v4223 = vadd.f32 0.0, %v4222
        %v4224 = vpop.f32.mrf.mxu0
        %v4225 = vadd.f32 0.0, %v4224
        %4226 = vmatmul.bf16.gmra.mxu0 %v4200
        %v4227 = vpop.f32.mrf.mxu0
        %v4228 = vadd.f32 0.0, %v4227
        %v4229 = vpop.f32.mrf.mxu0
        %v4230 = vadd.f32 0.0, %v4229
        %4231 = vmatmul.bf16.gmra.mxu0 %v4203
        %v4232 = vpop.f32.mrf.mxu0
        %v4233 = vadd.f32 0.0, %v4232
        %v4234 = vpop.f32.mrf.mxu0
        %v4235 = vadd.f32 0.0, %v4234
        %4236 = vmatmul.bf16.gmra.mxu0 %v4206
        %v4237 = vpop.f32.mrf.mxu0
        %v4238 = vadd.f32 0.0, %v4237
        %v4239 = vpop.f32.mrf.mxu0
        %v4240 = vadd.f32 0.0, %v4239
        %4241 = vdwg.mxu0
        %v4242 = vadd.f32 %v4151, %v4218
        %v4243 = vadd.f32 %v4152, %v4220
        %v4244 = vadd.f32 %v4153, %v4223
        %v4245 = vadd.f32 %v4154, %v4225
        %v4246 = vadd.f32 %v4155, %v4228
        %v4247 = vadd.f32 %v4156, %v4230
        %v4248 = vadd.f32 %v4157, %v4233
        %v4249 = vadd.f32 %v4158, %v4235
        %v4250 = vadd.f32 %v4159, %v4238
        %v4251 = vadd.f32 %v4160, %v4240
        %v4252 = vld [vmem:[#allocation2 + $0x8] sm:$0xc]
        %v4253 = vld [vmem:[#allocation2 + $0xc] sm:$0xf]
        %v4254 = vld [vmem:[#allocation2 + $0x10] sm:$0xf]
        %v4255 = vld [vmem:[#allocation2 + $0x14] sm:$0xf]
        %v4256 = vld [vmem:[#allocation2 + $0x18] sm:$0xf]
        %v4257 = vld [vmem:[#allocation2 + $0x1c] sm:$0xf]
        %v4258 = vld [vmem:[#allocation2 + $0x20] sm:$0xf]
        %v4259 = vld [vmem:[#allocation2 + $0x24] sm:$0xf]
        %v4260 = vld [vmem:[#allocation2 + $0x28] sm:$0xf]
        %v4261 = vld [vmem:[#allocation2 + $0x2c] sm:$0xf]
        %v4262 = vld [vmem:[#allocation2 + $0x30] sm:$0x3]
        %s4263 = scalar_lea.vmem [#allocation9], 96
        %v4264 = vld [vmem:[%s4263] sm:$0xf]
        %v4265 = vld [vmem:[%s4263 + $0x4] sm:$0xf]
        %v4266 = vld [vmem:[%s4263 + $0x8] sm:$0xf]
        %v4267 = vld [vmem:[%s4263 + $0xc] sm:$0xf]
        %v4279 = vunpack.c.l.b16 %v4252
        %v4280 = vunpack.c.l.b16 %v4253
        %v4281 = vunpack.c.l.b16 %v4254
        %v4282 = vunpack.c.l.b16 %v4255
        %v4283 = vunpack.c.l.b16 %v4256
        %v4284 = vunpack.c.l.b16 %v4257
        %v4285 = vunpack.c.l.b16 %v4258
        %v4286 = vunpack.c.l.b16 %v4259
        %v4287 = vunpack.c.l.b16 %v4260
        %v4288 = vunpack.c.l.b16 %v4261
        %v4289 = vunpack.c.l.b16 %v4262
        %v4290 = vpack.c.b16 %v4280, %v4279
        %v4291 = vpack.c.b16 %v4282, %v4281
        %v4292 = vpack.c.b16 %v4284, %v4283
        %v4293 = vpack.c.b16 %v4286, %v4285
        %v4294 = vpack.c.b16 %v4288, %v4287
        %v4295 = vpack.c.b16 %v4289, %v4289
        %v4296 = vrot.slane %v4290, 2
        %v4297 = vrot.slane %v4291, 2
        %v4298 = vsel %vm2006, %v4296, %v4297
        %v4299 = vrot.slane %v4292, 2
        %v4300 = vsel %vm2006, %v4297, %v4299
        %v4301 = vrot.slane %v4293, 2
        %v4302 = vsel %vm2006, %v4299, %v4301
        %v4303 = vrot.slane %v4294, 2
        %v4304 = vsel %vm2006, %v4301, %v4303
        %v4305 = vrot.slane %v4295, 2
        %v4306 = vsel %vm2006, %v4303, %v4305
        %v4311 = vunpack.c.l.b16 %v4264
        %v4312 = vunpack.c.l.b16 %v4265
        %v4313 = vunpack.c.l.b16 %v4266
        %v4314 = vunpack.c.l.b16 %v4267
        %v4315 = vpack.c.b16 %v4312, %v4311
        %v4316 = vpack.c.b16 %v4314, %v4313
        %v4320 = vsel %vm3367, %v4298, 0
        %v4323 = vsel %vm3367, %v4300, 0
        %v4326 = vsel %vm3367, %v4302, 0
        %v4329 = vsel %vm3367, %v4304, 0
        %v4332 = vsel %vm3367, %v4306, 0
        %4334 = vmatpush.bf16.msra.mxu0 0
        %4335 = vmatpush.bf16.msra.mxu0 0
        %4336 = vmatpush.bf16.msra.mxu0 0
        %4337 = vmatpush.bf16.msra.mxu0 0
        %4338 = vmatpush.bf16.msra.mxu0 0
        %4339 = vmatpush.bf16.msra.mxu0 0
        %4340 = vmatpush.bf16.msra.mxu0 %v4316
        %4341 = vmatpush.bf16.msra.mxu0 %v4315
        %4342 = vmatmul.bf16.gmra.mxu0 %v4320
        %v4343 = vpop.f32.mrf.mxu0
        %v4344 = vadd.f32 0.0, %v4343
        %v4345 = vpop.f32.mrf.mxu0
        %v4346 = vadd.f32 0.0, %v4345
        %4347 = vmatmul.bf16.gmra.mxu0 %v4323
        %v4348 = vpop.f32.mrf.mxu0
        %v4349 = vadd.f32 0.0, %v4348
        %v4350 = vpop.f32.mrf.mxu0
        %v4351 = vadd.f32 0.0, %v4350
        %4352 = vmatmul.bf16.gmra.mxu0 %v4326
        %v4353 = vpop.f32.mrf.mxu0
        %v4354 = vadd.f32 0.0, %v4353
        %v4355 = vpop.f32.mrf.mxu0
        %v4356 = vadd.f32 0.0, %v4355
        %4357 = vmatmul.bf16.gmra.mxu0 %v4329
        %v4358 = vpop.f32.mrf.mxu0
        %v4359 = vadd.f32 0.0, %v4358
        %v4360 = vpop.f32.mrf.mxu0
        %v4361 = vadd.f32 0.0, %v4360
        %4362 = vmatmul.bf16.gmra.mxu0 %v4332
        %v4363 = vpop.f32.mrf.mxu0
        %v4364 = vadd.f32 0.0, %v4363
        %v4365 = vpop.f32.mrf.mxu0
        %v4366 = vadd.f32 0.0, %v4365
        %4367 = vdwg.mxu0
        %v4368 = vadd.f32 %v4242, %v4344
        %v4369 = vadd.f32 %v4243, %v4346
        %v4370 = vadd.f32 %v4244, %v4349
        %v4371 = vadd.f32 %v4245, %v4351
        %v4372 = vadd.f32 %v4246, %v4354
        %v4373 = vadd.f32 %v4247, %v4356
        %v4374 = vadd.f32 %v4248, %v4359
        %v4375 = vadd.f32 %v4249, %v4361
        %v4376 = vadd.f32 %v4250, %v4364
        %v4377 = vadd.f32 %v4251, %v4366
        %v4378 = vld [vmem:[#allocation2 + $0x30] sm:$0x7]
        %s4379 = scalar_lea.vmem [#allocation9], 112
        %v4380 = vld [vmem:[%s4379] sm:$0xf]
        %v4381 = vld [vmem:[%s4379 + $0x4] sm:$0xf]
        %v4382 = vld [vmem:[%s4379 + $0x8] sm:$0xf]
        %v4383 = vld [vmem:[%s4379 + $0xc] sm:$0xf]
        %v4385 = vunpack.c.l.b16 %v4378
        %v4386 = vpack.c.b16 %v4385, %v4385
        %v4388 = vshrl.u32 %v4290, 16
        %v4390 = vrot.slane %v4388, 2
        %v4391 = vshll.u32 %v4290, 16
        %v4393 = vrot.slane %v4391, 3
        %v4394 = vor.u32 %v4390, %v4393
        %v4396 = vshrl.u32 %v4291, 16
        %v4398 = vrot.slane %v4396, 2
        %v4399 = vshll.u32 %v4291, 16
        %v4401 = vrot.slane %v4399, 3
        %v4402 = vor.u32 %v4398, %v4401
        %v4403 = vsel %vm2603, %v4394, %v4402
        %v4405 = vshrl.u32 %v4292, 16
        %v4407 = vrot.slane %v4405, 2
        %v4408 = vshll.u32 %v4292, 16
        %v4410 = vrot.slane %v4408, 3
        %v4411 = vor.u32 %v4407, %v4410
        %v4412 = vsel %vm2603, %v4402, %v4411
        %v4414 = vshrl.u32 %v4293, 16
        %v4416 = vrot.slane %v4414, 2
        %v4417 = vshll.u32 %v4293, 16
        %v4419 = vrot.slane %v4417, 3
        %v4420 = vor.u32 %v4416, %v4419
        %v4421 = vsel %vm2603, %v4411, %v4420
        %v4423 = vshrl.u32 %v4294, 16
        %v4425 = vrot.slane %v4423, 2
        %v4426 = vshll.u32 %v4294, 16
        %v4428 = vrot.slane %v4426, 3
        %v4429 = vor.u32 %v4425, %v4428
        %v4430 = vsel %vm2603, %v4420, %v4429
        %v4432 = vshrl.u32 %v4386, 16
        %v4434 = vrot.slane %v4432, 2
        %v4435 = vshll.u32 %v4386, 16
        %v4437 = vrot.slane %v4435, 3
        %v4438 = vor.u32 %v4434, %v4437
        %v4439 = vsel %vm2603, %v4429, %v4438
        %v4444 = vunpack.c.l.b16 %v4380
        %v4445 = vunpack.c.l.b16 %v4381
        %v4446 = vunpack.c.l.b16 %v4382
        %v4447 = vunpack.c.l.b16 %v4383
        %v4448 = vpack.c.b16 %v4445, %v4444
        %v4449 = vpack.c.b16 %v4447, %v4446
        %v4453 = vsel %vm3367, %v4403, 0
        %v4456 = vsel %vm3367, %v4412, 0
        %v4459 = vsel %vm3367, %v4421, 0
        %v4462 = vsel %vm3367, %v4430, 0
        %v4465 = vsel %vm3367, %v4439, 0
        %4467 = vmatpush.bf16.msra.mxu0 0
        %4468 = vmatpush.bf16.msra.mxu0 0
        %4469 = vmatpush.bf16.msra.mxu0 0
        %4470 = vmatpush.bf16.msra.mxu0 0
        %4471 = vmatpush.bf16.msra.mxu0 0
        %4472 = vmatpush.bf16.msra.mxu0 0
        %4473 = vmatpush.bf16.msra.mxu0 %v4449
        %4474 = vmatpush.bf16.msra.mxu0 %v4448
        %4475 = vmatmul.bf16.gmra.mxu0 %v4453
        %v4476 = vpop.f32.mrf.mxu0
        %v4477 = vadd.f32 0.0, %v4476
        %v4478 = vpop.f32.mrf.mxu0
        %v4479 = vadd.f32 0.0, %v4478
        %4480 = vmatmul.bf16.gmra.mxu0 %v4456
        %v4481 = vpop.f32.mrf.mxu0
        %v4482 = vadd.f32 0.0, %v4481
        %v4483 = vpop.f32.mrf.mxu0
        %v4484 = vadd.f32 0.0, %v4483
        %4485 = vmatmul.bf16.gmra.mxu0 %v4459
        %v4486 = vpop.f32.mrf.mxu0
        %v4487 = vadd.f32 0.0, %v4486
        %v4488 = vpop.f32.mrf.mxu0
        %v4489 = vadd.f32 0.0, %v4488
        %4490 = vmatmul.bf16.gmra.mxu0 %v4462
        %v4491 = vpop.f32.mrf.mxu0
        %v4492 = vadd.f32 0.0, %v4491
        %v4493 = vpop.f32.mrf.mxu0
        %v4494 = vadd.f32 0.0, %v4493
        %4495 = vmatmul.bf16.gmra.mxu0 %v4465
        %v4496 = vpop.f32.mrf.mxu0
        %v4497 = vadd.f32 0.0, %v4496
        %v4498 = vpop.f32.mrf.mxu0
        %v4499 = vadd.f32 0.0, %v4498
        %4500 = vdwg.mxu0
        %v4501 = vadd.f32 %v4368, %v4477
        %v4502 = vadd.f32 %v4369, %v4479
        %v4503 = vadd.f32 %v4370, %v4482
        %v4504 = vadd.f32 %v4371, %v4484
        %v4505 = vadd.f32 %v4372, %v4487
        %v4506 = vadd.f32 %v4373, %v4489
        %v4507 = vadd.f32 %v4374, %v4492
        %v4508 = vadd.f32 %v4375, %v4494
        %v4509 = vadd.f32 %v4376, %v4497
        %v4510 = vadd.f32 %v4377, %v4499
        %v4511 = vld [vmem:[#allocation2 + $0x8] sm:$0x8]
        %s4512 = scalar_lea.vmem [#allocation9], 128
        %v4513 = vld [vmem:[%s4512] sm:$0xf]
        %v4514 = vld [vmem:[%s4512 + $0x4] sm:$0xf]
        %v4515 = vld [vmem:[%s4512 + $0x8] sm:$0xf]
        %v4516 = vld [vmem:[%s4512 + $0xc] sm:$0xf]
        %v4518 = vunpack.c.l.b16 %v4511
        %v4519 = vpack.c.b16 %v4280, %v4518
        %v4520 = vrot.slane %v4519, 3
        %v4521 = vrot.slane %v4291, 3
        %v4522 = vsel %vm2972, %v4520, %v4521
        %v4523 = vrot.slane %v4292, 3
        %v4524 = vsel %vm2972, %v4521, %v4523
        %v4525 = vrot.slane %v4293, 3
        %v4526 = vsel %vm2972, %v4523, %v4525
        %v4527 = vrot.slane %v4294, 3
        %v4528 = vsel %vm2972, %v4525, %v4527
        %v4529 = vrot.slane %v4386, 3
        %v4530 = vsel %vm2972, %v4527, %v4529
        %v4535 = vunpack.c.l.b16 %v4513
        %v4536 = vunpack.c.l.b16 %v4514
        %v4537 = vunpack.c.l.b16 %v4515
        %v4538 = vunpack.c.l.b16 %v4516
        %v4539 = vpack.c.b16 %v4536, %v4535
        %v4540 = vpack.c.b16 %v4538, %v4537
        %v4544 = vsel %vm3367, %v4522, 0
        %v4547 = vsel %vm3367, %v4524, 0
        %v4550 = vsel %vm3367, %v4526, 0
        %v4553 = vsel %vm3367, %v4528, 0
        %v4556 = vsel %vm3367, %v4530, 0
        %4558 = vmatpush.bf16.msra.mxu0 0
        %4559 = vmatpush.bf16.msra.mxu0 0
        %4560 = vmatpush.bf16.msra.mxu0 0
        %4561 = vmatpush.bf16.msra.mxu0 0
        %4562 = vmatpush.bf16.msra.mxu0 0
        %4563 = vmatpush.bf16.msra.mxu0 0
        %4564 = vmatpush.bf16.msra.mxu0 %v4540
        %4565 = vmatpush.bf16.msra.mxu0 %v4539
        %4566 = vmatmul.bf16.gmra.mxu0 %v4544
        %v4567 = vpop.f32.mrf.mxu0
        %v4568 = vadd.f32 0.0, %v4567
        %v4569 = vpop.f32.mrf.mxu0
        %v4570 = vadd.f32 0.0, %v4569
        %4571 = vmatmul.bf16.gmra.mxu0 %v4547
        %v4572 = vpop.f32.mrf.mxu0
        %v4573 = vadd.f32 0.0, %v4572
        %v4574 = vpop.f32.mrf.mxu0
        %v4575 = vadd.f32 0.0, %v4574
        %4576 = vmatmul.bf16.gmra.mxu0 %v4550
        %v4577 = vpop.f32.mrf.mxu0
        %v4578 = vadd.f32 0.0, %v4577
        %v4579 = vpop.f32.mrf.mxu0
        %v4580 = vadd.f32 0.0, %v4579
        %4581 = vmatmul.bf16.gmra.mxu0 %v4553
        %v4582 = vpop.f32.mrf.mxu0
        %v4583 = vadd.f32 0.0, %v4582
        %v4584 = vpop.f32.mrf.mxu0
        %v4585 = vadd.f32 0.0, %v4584
        %4586 = vmatmul.bf16.gmra.mxu0 %v4556
        %v4587 = vpop.f32.mrf.mxu0
        %v4588 = vadd.f32 0.0, %v4587
        %v4589 = vpop.f32.mrf.mxu0
        %v4590 = vadd.f32 0.0, %v4589
        %4591 = vdwg.mxu0
        %v4592 = vadd.f32 %v4501, %v4568
        %v4593 = vadd.f32 %v4502, %v4570
        %v4594 = vadd.f32 %v4503, %v4573
        %v4595 = vadd.f32 %v4504, %v4575
        %v4596 = vadd.f32 %v4505, %v4578
        %v4597 = vadd.f32 %v4506, %v4580
        %v4598 = vadd.f32 %v4507, %v4583
        %v4599 = vadd.f32 %v4508, %v4585
        %v4600 = vadd.f32 %v4509, %v4588
        %v4601 = vadd.f32 %v4510, %v4590
        %v4602 = vld [vmem:[%s4] sm:$0x7]
        %v4603 = vperm.slane %v4602, 0
        %v4604 = vadd.f32 %v4592, %v4603
        %v4605 = vadd.f32 %v4593, %v4603
        %v4606 = vadd.f32 %v4594, %v4603
        %v4607 = vadd.f32 %v4595, %v4603
        %v4608 = vadd.f32 %v4596, %v4603
        %v4609 = vadd.f32 %v4597, %v4603
        %v4610 = vadd.f32 %v4598, %v4603
        %v4611 = vadd.f32 %v4599, %v4603
        %v4612 = vadd.f32 %v4600, %v4603
        %v4613 = vadd.f32 %v4601, %v4603
        %v4614 = vmax.f32 %v4604, 0.0
        %v4615 = vmax.f32 %v4605, 0.0
        %v4616 = vmax.f32 %v4606, 0.0
        %v4617 = vmax.f32 %v4607, 0.0
        %v4618 = vmax.f32 %v4608, 0.0
        %v4619 = vmax.f32 %v4609, 0.0
        %v4620 = vmax.f32 %v4610, 0.0
        %v4621 = vmax.f32 %v4611, 0.0
        %v4622 = vmax.f32 %v4612, 0.0
        %v4623 = vmax.f32 %v4613, 0.0
        %v4624 = vperm.slane %v4602, 1
        %v4625 = vmul.f32 %v4614, %v4624
        %v4626 = vmul.f32 %v4615, %v4624
        %v4627 = vmul.f32 %v4616, %v4624
        %v4628 = vmul.f32 %v4617, %v4624
        %v4629 = vmul.f32 %v4618, %v4624
        %v4630 = vmul.f32 %v4619, %v4624
        %v4631 = vmul.f32 %v4620, %v4624
        %v4632 = vmul.f32 %v4621, %v4624
        %v4633 = vmul.f32 %v4622, %v4624
        %v4634 = vmul.f32 %v4623, %v4624
        %v4635 = vperm.slane %v4602, 2
        %v4636 = vadd.f32 %v4625, %v4635
        %v4637 = vadd.f32 %v4626, %v4635
        %v4638 = vadd.f32 %v4627, %v4635
        %v4639 = vadd.f32 %v4628, %v4635
        %v4640 = vadd.f32 %v4629, %v4635
        %v4641 = vadd.f32 %v4630, %v4635
        %v4642 = vadd.f32 %v4631, %v4635
        %v4643 = vadd.f32 %v4632, %v4635
        %v4644 = vadd.f32 %v4633, %v4635
        %v4645 = vadd.f32 %v4634, %v4635
        %v4648 = vrot.slane %v4637, 2
        %v4649 = vrot.slane %v4638, 2
        %v4650 = vsel %vm3353, %v4648, %v4649
        %v4653 = vmax.f32 %v4636, %v4650
        %v4654 = vmax.f32 %v4637, %v4649
        %vm4655 = vcmask 523265
        %4656 = vst.msk [vmem:[#allocation6 - $0x1] sm:$0xfe] %vm4655, %v4653
        %vm4657 = vcmask 516096
        %4658 = vst.msk [vmem:[#allocation6 + $0x7] sm:$0x1] %vm4657, %v4654
        %v4661 = vrot.slane %v4639, 2
        %v4662 = vrot.slane %v4640, 2
        %v4663 = vsel %vm3353, %v4661, %v4662
        %v4666 = vmax.f32 %v4638, %v4663
        %v4667 = vmax.f32 %v4639, %v4662
        %vm4668 = vcmask 523269
        %4669 = vst.msk [vmem:[#allocation6 + $0x3] sm:$0xe0] %vm4668, %v4666
        %vm4670 = vcmask 520192
        %4671 = vst.msk [vmem:[#allocation6 + $0xb] sm:$0x1f] %vm4670, %v4667
        %v4674 = vrot.slane %v4642, 2
        %v4675 = vrot.slane %v4643, 2
        %v4676 = vsel %vm3353, %v4674, %v4675
        %v4679 = vmax.f32 %v4641, %v4676
        %v4680 = vmax.f32 %v4642, %v4675
        %4681 = vst.msk [vmem:[#allocation6 + $0xf] sm:$0xfe] %vm4655, %v4679
        %4682 = vst.msk [vmem:[#allocation6 + $0x17] sm:$0x1] %vm4657, %v4680
        %v4685 = vrot.slane %v4644, 2
        %v4686 = vrot.slane %v4645, 2
        %v4687 = vsel %vm3353, %v4685, %v4686
        %v4690 = vmax.f32 %v4643, %v4687
        %v4691 = vmax.f32 %v4644, %v4686
        %4692 = vst.msk [vmem:[#allocation6 + $0x13] sm:$0xe0] %vm4668, %v4690
        %4693 = vst.msk [vmem:[#allocation6 + $0x1b] sm:$0x1f] %vm4670, %v4691
        %v4694 = vld [vmem:[#allocation6] ss:$2 sm:$0xff]
        %s4695 = scalar_lea.vmem [#allocation6], 16
        %v4696 = vld [vmem:[%s4695] ss:$2 sm:$0xff]
        %s4697 = scalar_lea.vmem [#allocation6], 1
        %v4698 = vld [vmem:[%s4697] ss:$2 sm:$0xff]
        %s4699 = scalar_lea.vmem [#allocation6], 17
        %v4700 = vld [vmem:[%s4699] ss:$2 sm:$0xff]
        %v4701 = vmax.f32 %v4694, %v4698
        %v4702 = vmax.f32 %v4696, %v4700
        %vm4703 = vcmask 519168
        %4704 = vst.msk [vmem:[#allocation3] sm:$0xf] %vm4703, 0
        %4705 = vst.msk [vmem:[#allocation3 + $0x4] sm:$0xf] %vm4703, 0
        %4706 = vst.msk [vmem:[#allocation3 + $0x8] sm:$0xf] %vm4703, 0
        %4707 = vst.msk [vmem:[#allocation3 + $0xc] sm:$0xf] %vm4703, 0
        %vm4708 = vcmask 518144
        %4709 = vst.msk [vmem:[#allocation3 + $0x10] sm:$0x7] %vm4708, 0
        %v4710 = vpack.c.bf16 %v4701, %v4701
        %v4711 = vpack.c.bf16 %v4702, %v4702
        %vm4712 = vcmask 517120
        %4713 = vst.msk [vmem:[#allocation3 + $0x4] sm:$0x3] %vm4712, %v4710
        %v4715 = vrot.slane %v4710, 7
        %v4716 = vrot.slane %v4715, 4
        %vm4719 = vcmask 519171
        %4720 = vst.msk [vmem:[#allocation3 + $0x4] sm:$0x8] %vm4719, %v4715
        %4721 = vst.msk [vmem:[#allocation3 + $0x8] sm:$0x1] %vm4657, %v4716
        %v4723 = vrot.slane %v4711, 6
        %vm4725 = vcmask 519170
        %4726 = vst.msk [vmem:[#allocation3 + $0x8] sm:$0xc] %vm4725, %v4723
        %v4727 = vrot.slane %v4711, 5
        %v4728 = vrot.slane %v4727, 4
        %vm4730 = vcmask 518145
        %4731 = vst.msk [vmem:[#allocation3 + $0xc] sm:$0x6] %vm4730, %v4728
        %v4732 = vld [vmem:[#allocation3] sm:$0xf]
        %v4733 = vld [vmem:[#allocation3 + $0x4] sm:$0xf]
        %v4734 = vld [vmem:[#allocation3 + $0x8] sm:$0xf]
        %v4735 = vld [vmem:[%s5] sm:$0xf]
        %v4736 = vld [vmem:[%s5 + $0x4] sm:$0xf]
        %v4737 = vld [vmem:[%s5 + $0x8] sm:$0xf]
        %v4738 = vld [vmem:[%s5 + $0xc] sm:$0xf]
        %v4739 = vld [vmem:[%s5 + $0x10] sm:$0xf]
        %v4740 = vld [vmem:[%s5 + $0x14] sm:$0xf]
        %v4741 = vld [vmem:[%s5 + $0x18] sm:$0xf]
        %v4742 = vld [vmem:[%s5 + $0x1c] sm:$0xf]
        %v4743 = vld [vmem:[#allocation3 + $0xc] sm:$0x1]
        %s4744 = scalar_lea.vmem %s5, 32
        %v4745 = vld [vmem:[%s4744] sm:$0xf]
        %v4746 = vld [vmem:[%s4744 + $0x4] sm:$0xf]
        %v4747 = vld [vmem:[%s4744 + $0x8] sm:$0xf]
        %v4748 = vld [vmem:[%s4744 + $0xc] sm:$0xf]
        %v4749 = vld [vmem:[%s4744 + $0x10] sm:$0xf]
        %v4750 = vld [vmem:[%s4744 + $0x14] sm:$0xf]
        %v4751 = vld [vmem:[%s4744 + $0x18] sm:$0xf]
        %v4752 = vld [vmem:[%s4744 + $0x1c] sm:$0xf]
        %v4757 = vunpack.c.l.b16 %v4732
        %v4758 = vunpack.c.l.b16 %v4733
        %v4759 = vunpack.c.l.b16 %v4734
        %v4760 = vunpack.c.l.b16 %v4743
        %v4761 = vpack.c.b16 %v4758, %v4757
        %v4762 = vpack.c.b16 %v4760, %v4759
        %v4764 = vshrl.u32 %v4761, 16
        %v4766 = vshll.u32 %v4761, 16
        %v4768 = vrot.slane %v4766, 1
        %v4769 = vor.u32 %v4764, %v4768
        %v4771 = vshll.u32 %v4762, 16
        %v4773 = vrot.slane %v4771, 1
        %v4774 = vsel %vm589, %v4769, %v4773
        %v4775 = vshrl.u32 %v4762, 16
        %v4777 = vor.u32 %v4775, %v4773
        %v4786 = vunpack.c.l.b16 %v4745
        %v4787 = vunpack.c.l.b16 %v4746
        %v4788 = vunpack.c.l.b16 %v4747
        %v4789 = vunpack.c.l.b16 %v4748
        %v4790 = vunpack.c.l.b16 %v4749
        %v4791 = vunpack.c.l.b16 %v4750
        %v4792 = vunpack.c.l.b16 %v4751
        %v4793 = vunpack.c.l.b16 %v4752
        %v4794 = vpack.c.b16 %v4787, %v4786
        %v4795 = vpack.c.b16 %v4789, %v4788
        %v4796 = vpack.c.b16 %v4791, %v4790
        %v4797 = vpack.c.b16 %v4793, %v4792
        %vm4802 = vcmask 523264
        %v4804 = vsel %vm4802, %v4774, 0
        %v4807 = vsel %vm4802, %v4777, 0
        %4809 = vmatpush.bf16.msra.mxu0 0
        %4810 = vmatpush.bf16.msra.mxu0 0
        %4811 = vmatpush.bf16.msra.mxu0 0
        %4812 = vmatpush.bf16.msra.mxu0 0
        %4813 = vmatpush.bf16.msra.mxu0 %v4797
        %4814 = vmatpush.bf16.msra.mxu0 %v4796
        %4815 = vmatpush.bf16.msra.mxu0 %v4795
        %4816 = vmatpush.bf16.msra.mxu0 %v4794
        %4817 = vmatmul.bf16.gmra.mxu0 %v4804
        %v4818 = vpop.f32.mrf.mxu0
        %v4819 = vadd.f32 0.0, %v4818
        %v4820 = vpop.f32.mrf.mxu0
        %v4821 = vadd.f32 0.0, %v4820
        %4822 = vmatmul.bf16.gmra.mxu0 %v4807
        %v4823 = vpop.f32.mrf.mxu0
        %v4824 = vadd.f32 0.0, %v4823
        %v4825 = vpop.f32.mrf.mxu0
        %4826 = vdwg.mxu0
        %v4827 = vpack.c.b16 %v4759, %v4759
        %v4836 = vunpack.c.l.b16 %v4735
        %v4837 = vunpack.c.l.b16 %v4736
        %v4838 = vunpack.c.l.b16 %v4737
        %v4839 = vunpack.c.l.b16 %v4738
        %v4840 = vunpack.c.l.b16 %v4739
        %v4841 = vunpack.c.l.b16 %v4740
        %v4842 = vunpack.c.l.b16 %v4741
        %v4843 = vunpack.c.l.b16 %v4742
        %v4844 = vpack.c.b16 %v4837, %v4836
        %v4845 = vpack.c.b16 %v4839, %v4838
        %v4846 = vpack.c.b16 %v4841, %v4840
        %v4847 = vpack.c.b16 %v4843, %v4842
        %v4852 = vsel %vm4802, %v4761, 0
        %v4855 = vsel %vm4802, %v4827, 0
        %4857 = vmatpush.bf16.msra.mxu0 0
        %4858 = vmatpush.bf16.msra.mxu0 0
        %4859 = vmatpush.bf16.msra.mxu0 0
        %4860 = vmatpush.bf16.msra.mxu0 0
        %4861 = vmatpush.bf16.msra.mxu0 %v4847
        %4862 = vmatpush.bf16.msra.mxu0 %v4846
        %4863 = vmatpush.bf16.msra.mxu0 %v4845
        %4864 = vmatpush.bf16.msra.mxu0 %v4844
        %4865 = vmatmul.bf16.gmra.mxu0 %v4852
        %v4866 = vpop.f32.mrf.mxu0
        %v4867 = vadd.f32 %v4819, %v4866
        %v4868 = vpop.f32.mrf.mxu0
        %v4869 = vadd.f32 %v4821, %v4868
        %4870 = vmatmul.bf16.gmra.mxu0 %v4855
        %v4871 = vpop.f32.mrf.mxu0
        %v4872 = vadd.f32 %v4824, %v4871
        %v4873 = vpop.f32.mrf.mxu0
        %4874 = vdwg.mxu0
        %v4875 = vld [vmem:[#allocation3] sm:$0xe]
        %s4876 = scalar_lea.vmem %s5, 64
        %v4877 = vld [vmem:[%s4876] sm:$0xf]
        %v4878 = vld [vmem:[%s4876 + $0x4] sm:$0xf]
        %v4879 = vld [vmem:[%s4876 + $0x8] sm:$0xf]
        %v4880 = vld [vmem:[%s4876 + $0xc] sm:$0xf]
        %v4881 = vld [vmem:[%s4876 + $0x10] sm:$0xf]
        %v4882 = vld [vmem:[%s4876 + $0x14] sm:$0xf]
        %v4883 = vld [vmem:[%s4876 + $0x18] sm:$0xf]
        %v4884 = vld [vmem:[%s4876 + $0x1c] sm:$0xf]
        %v4886 = vunpack.c.l.b16 %v4875
        %v4887 = vpack.c.b16 %v4758, %v4886
        %v4888 = vrot.slane %v4887, 1
        %v4889 = vrot.slane %v4762, 1
        %v4890 = vsel %vm1040, %v4888, %v4889
        %v4899 = vunpack.c.l.b16 %v4877
        %v4900 = vunpack.c.l.b16 %v4878
        %v4901 = vunpack.c.l.b16 %v4879
        %v4902 = vunpack.c.l.b16 %v4880
        %v4903 = vunpack.c.l.b16 %v4881
        %v4904 = vunpack.c.l.b16 %v4882
        %v4905 = vunpack.c.l.b16 %v4883
        %v4906 = vunpack.c.l.b16 %v4884
        %v4907 = vpack.c.b16 %v4900, %v4899
        %v4908 = vpack.c.b16 %v4902, %v4901
        %v4909 = vpack.c.b16 %v4904, %v4903
        %v4910 = vpack.c.b16 %v4906, %v4905
        %v4916 = vsel %vm4802, %v4890, 0
        %v4919 = vsel %vm4802, %v4889, 0
        %4921 = vmatpush.bf16.msra.mxu0 0
        %4922 = vmatpush.bf16.msra.mxu0 0
        %4923 = vmatpush.bf16.msra.mxu0 0
        %4924 = vmatpush.bf16.msra.mxu0 0
        %4925 = vmatpush.bf16.msra.mxu0 %v4910
        %4926 = vmatpush.bf16.msra.mxu0 %v4909
        %4927 = vmatpush.bf16.msra.mxu0 %v4908
        %4928 = vmatpush.bf16.msra.mxu0 %v4907
        %4929 = vmatmul.bf16.gmra.mxu0 %v4916
        %v4930 = vpop.f32.mrf.mxu0
        %v4931 = vadd.f32 0.0, %v4930
        %v4932 = vpop.f32.mrf.mxu0
        %v4933 = vadd.f32 0.0, %v4932
        %4934 = vmatmul.bf16.gmra.mxu0 %v4919
        %v4935 = vpop.f32.mrf.mxu0
        %v4936 = vadd.f32 0.0, %v4935
        %v4937 = vpop.f32.mrf.mxu0
        %4938 = vdwg.mxu0
        %v4939 = vadd.f32 %v4867, %v4931
        %v4940 = vadd.f32 %v4869, %v4933
        %v4941 = vadd.f32 %v4872, %v4936
        %v4942 = vld [vmem:[#allocation3] sm:$0x8]
        %v4943 = vld [vmem:[#allocation3 + $0xc] sm:$0x7]
        %s4944 = scalar_lea.vmem %s5, 96
        %v4945 = vld [vmem:[%s4944] sm:$0xf]
        %v4946 = vld [vmem:[%s4944 + $0x4] sm:$0xf]
        %v4947 = vld [vmem:[%s4944 + $0x8] sm:$0xf]
        %v4948 = vld [vmem:[%s4944 + $0xc] sm:$0xf]
        %v4949 = vld [vmem:[%s4944 + $0x10] sm:$0xf]
        %v4950 = vld [vmem:[%s4944 + $0x14] sm:$0xf]
        %v4951 = vld [vmem:[%s4944 + $0x18] sm:$0xf]
        %v4952 = vld [vmem:[%s4944 + $0x1c] sm:$0xf]
        %v4955 = vunpack.c.l.b16 %v4942
        %v4956 = vunpack.c.l.b16 %v4943
        %v4957 = vpack.c.b16 %v4758, %v4955
        %v4958 = vpack.c.b16 %v4956, %v4759
        %v4959 = vrot.slane %v4957, 3
        %v4960 = vrot.slane %v4958, 3
        %v4961 = vsel %vm2972, %v4959, %v4960
        %v4970 = vunpack.c.l.b16 %v4945
        %v4971 = vunpack.c.l.b16 %v4946
        %v4972 = vunpack.c.l.b16 %v4947
        %v4973 = vunpack.c.l.b16 %v4948
        %v4974 = vunpack.c.l.b16 %v4949
        %v4975 = vunpack.c.l.b16 %v4950
        %v4976 = vunpack.c.l.b16 %v4951
        %v4977 = vunpack.c.l.b16 %v4952
        %v4978 = vpack.c.b16 %v4971, %v4970
        %v4979 = vpack.c.b16 %v4973, %v4972
        %v4980 = vpack.c.b16 %v4975, %v4974
        %v4981 = vpack.c.b16 %v4977, %v4976
        %v4987 = vsel %vm4802, %v4961, 0
        %v4990 = vsel %vm4802, %v4960, 0
        %4992 = vmatpush.bf16.msra.mxu0 0
        %4993 = vmatpush.bf16.msra.mxu0 0
        %4994 = vmatpush.bf16.msra.mxu0 0
        %4995 = vmatpush.bf16.msra.mxu0 0
        %4996 = vmatpush.bf16.msra.mxu0 %v4981
        %4997 = vmatpush.bf16.msra.mxu0 %v4980
        %4998 = vmatpush.bf16.msra.mxu0 %v4979
        %4999 = vmatpush.bf16.msra.mxu0 %v4978
        %5000 = vmatmul.bf16.gmra.mxu0 %v4987
        %v5001 = vpop.f32.mrf.mxu0
        %v5002 = vadd.f32 0.0, %v5001
        %v5003 = vpop.f32.mrf.mxu0
        %v5004 = vadd.f32 0.0, %v5003
        %5005 = vmatmul.bf16.gmra.mxu0 %v4990
        %v5006 = vpop.f32.mrf.mxu0
        %v5007 = vadd.f32 0.0, %v5006
        %v5008 = vpop.f32.mrf.mxu0
        %5009 = vdwg.mxu0
        %v5010 = vadd.f32 %v4939, %v5002
        %v5011 = vadd.f32 %v4940, %v5004
        %v5012 = vadd.f32 %v4941, %v5007
        %v5013 = vld [vmem:[#allocation3 + $0xc] sm:$0xf]
        %s5014 = scalar_lea.vmem %s5, 128
        %v5015 = vld [vmem:[%s5014] sm:$0xf]
        %v5016 = vld [vmem:[%s5014 + $0x4] sm:$0xf]
        %v5017 = vld [vmem:[%s5014 + $0x8] sm:$0xf]
        %v5018 = vld [vmem:[%s5014 + $0xc] sm:$0xf]
        %v5019 = vld [vmem:[%s5014 + $0x10] sm:$0xf]
        %v5020 = vld [vmem:[%s5014 + $0x14] sm:$0xf]
        %v5021 = vld [vmem:[%s5014 + $0x18] sm:$0xf]
        %v5022 = vld [vmem:[%s5014 + $0x1c] sm:$0xf]
        %v5024 = vunpack.c.l.b16 %v5013
        %v5025 = vpack.c.b16 %v5024, %v4759
        %vm5026 = vsmask.f32 4352
        %v5028 = vshrl.u32 %v4957, 16
        %v5030 = vrot.slane %v5028, 3
        %v5031 = vshll.u32 %v4957, 16
        %v5033 = vrot.slane %v5031, 4
        %v5034 = vor.u32 %v5030, %v5033
        %v5036 = vshrl.u32 %v5025, 16
        %v5038 = vrot.slane %v5036, 3
        %v5039 = vshll.u32 %v5025, 16
        %v5041 = vrot.slane %v5039, 4
        %v5042 = vor.u32 %v5038, %v5041
        %v5043 = vsel %vm5026, %v5034, %v5042
        %v5052 = vunpack.c.l.b16 %v5015
        %v5053 = vunpack.c.l.b16 %v5016
        %v5054 = vunpack.c.l.b16 %v5017
        %v5055 = vunpack.c.l.b16 %v5018
        %v5056 = vunpack.c.l.b16 %v5019
        %v5057 = vunpack.c.l.b16 %v5020
        %v5058 = vunpack.c.l.b16 %v5021
        %v5059 = vunpack.c.l.b16 %v5022
        %v5060 = vpack.c.b16 %v5053, %v5052
        %v5061 = vpack.c.b16 %v5055, %v5054
        %v5062 = vpack.c.b16 %v5057, %v5056
        %v5063 = vpack.c.b16 %v5059, %v5058
        %v5069 = vsel %vm4802, %v5043, 0
        %v5072 = vsel %vm4802, %v5042, 0
        %5074 = vmatpush.bf16.msra.mxu0 0
        %5075 = vmatpush.bf16.msra.mxu0 0
        %5076 = vmatpush.bf16.msra.mxu0 0
        %5077 = vmatpush.bf16.msra.mxu0 0
        %5078 = vmatpush.bf16.msra.mxu0 %v5063
        %5079 = vmatpush.bf16.msra.mxu0 %v5062
        %5080 = vmatpush.bf16.msra.mxu0 %v5061
        %5081 = vmatpush.bf16.msra.mxu0 %v5060
        %5082 = vmatmul.bf16.gmra.mxu0 %v5069
        %v5083 = vpop.f32.mrf.mxu0
        %v5084 = vadd.f32 0.0, %v5083
        %v5085 = vpop.f32.mrf.mxu0
        %v5086 = vadd.f32 0.0, %v5085
        %5087 = vmatmul.bf16.gmra.mxu0 %v5072
        %v5088 = vpop.f32.mrf.mxu0
        %v5089 = vadd.f32 0.0, %v5088
        %v5090 = vpop.f32.mrf.mxu0
        %5091 = vdwg.mxu0
        %v5092 = vadd.f32 %v5010, %v5084
        %v5093 = vadd.f32 %v5011, %v5086
        %v5094 = vadd.f32 %v5012, %v5089
        %s5095 = scalar_lea.vmem %s5, 160
        %v5096 = vld [vmem:[%s5095] sm:$0xf]
        %v5097 = vld [vmem:[%s5095 + $0x4] sm:$0xf]
        %v5098 = vld [vmem:[%s5095 + $0x8] sm:$0xf]
        %v5099 = vld [vmem:[%s5095 + $0xc] sm:$0xf]
        %v5100 = vld [vmem:[%s5095 + $0x10] sm:$0xf]
        %v5101 = vld [vmem:[%s5095 + $0x14] sm:$0xf]
        %v5102 = vld [vmem:[%s5095 + $0x18] sm:$0xf]
        %v5103 = vld [vmem:[%s5095 + $0x1c] sm:$0xf]
        %v5104 = vpack.c.b16 %v4759, %v4758
        %v5105 = vpack.c.b16 %v5024, %v5024
        %v5114 = vunpack.c.l.b16 %v5096
        %v5115 = vunpack.c.l.b16 %v5097
        %v5116 = vunpack.c.l.b16 %v5098
        %v5117 = vunpack.c.l.b16 %v5099
        %v5118 = vunpack.c.l.b16 %v5100
        %v5119 = vunpack.c.l.b16 %v5101
        %v5120 = vunpack.c.l.b16 %v5102
        %v5121 = vunpack.c.l.b16 %v5103
        %v5122 = vpack.c.b16 %v5115, %v5114
        %v5123 = vpack.c.b16 %v5117, %v5116
        %v5124 = vpack.c.b16 %v5119, %v5118
        %v5125 = vpack.c.b16 %v5121, %v5120
        %v5131 = vsel %vm4802, %v5104, 0
        %v5134 = vsel %vm4802, %v5105, 0
        %5136 = vmatpush.bf16.msra.mxu0 0
        %5137 = vmatpush.bf16.msra.mxu0 0
        %5138 = vmatpush.bf16.msra.mxu0 0
        %5139 = vmatpush.bf16.msra.mxu0 0
        %5140 = vmatpush.bf16.msra.mxu0 %v5125
        %5141 = vmatpush.bf16.msra.mxu0 %v5124
        %5142 = vmatpush.bf16.msra.mxu0 %v5123
        %5143 = vmatpush.bf16.msra.mxu0 %v5122
        %5144 = vmatmul.bf16.gmra.mxu0 %v5131
        %v5145 = vpop.f32.mrf.mxu0
        %v5146 = vadd.f32 0.0, %v5145
        %v5147 = vpop.f32.mrf.mxu0
        %v5148 = vadd.f32 0.0, %v5147
        %5149 = vmatmul.bf16.gmra.mxu0 %v5134
        %v5150 = vpop.f32.mrf.mxu0
        %v5151 = vadd.f32 0.0, %v5150
        %v5152 = vpop.f32.mrf.mxu0
        %5153 = vdwg.mxu0
        %v5154 = vadd.f32 %v5092, %v5146
        %v5155 = vadd.f32 %v5093, %v5148
        %v5156 = vadd.f32 %v5094, %v5151
        %v5157 = vld [vmem:[#allocation3 + $0x4] sm:$0xc]
        %v5158 = vld [vmem:[#allocation3 + $0x8] sm:$0xf]
        %v5159 = vld [vmem:[#allocation3 + $0xc] sm:$0xf]
        %v5160 = vld [vmem:[#allocation3 + $0x10] sm:$0x3]
        %s5161 = scalar_lea.vmem %s5, 192
        %v5162 = vld [vmem:[%s5161] sm:$0xf]
        %v5163 = vld [vmem:[%s5161 + $0x4] sm:$0xf]
        %v5164 = vld [vmem:[%s5161 + $0x8] sm:$0xf]
        %v5165 = vld [vmem:[%s5161 + $0xc] sm:$0xf]
        %v5166 = vld [vmem:[%s5161 + $0x10] sm:$0xf]
        %v5167 = vld [vmem:[%s5161 + $0x14] sm:$0xf]
        %v5168 = vld [vmem:[%s5161 + $0x18] sm:$0xf]
        %v5169 = vld [vmem:[%s5161 + $0x1c] sm:$0xf]
        %v5174 = vunpack.c.l.b16 %v5157
        %v5175 = vunpack.c.l.b16 %v5158
        %v5176 = vunpack.c.l.b16 %v5159
        %v5177 = vunpack.c.l.b16 %v5160
        %v5178 = vpack.c.b16 %v5175, %v5174
        %v5179 = vpack.c.b16 %v5177, %v5176
        %v5180 = vrot.slane %v5178, 2
        %v5181 = vrot.slane %v5179, 2
        %v5182 = vsel %vm2006, %v5180, %v5181
        %v5191 = vunpack.c.l.b16 %v5162
        %v5192 = vunpack.c.l.b16 %v5163
        %v5193 = vunpack.c.l.b16 %v5164
        %v5194 = vunpack.c.l.b16 %v5165
        %v5195 = vunpack.c.l.b16 %v5166
        %v5196 = vunpack.c.l.b16 %v5167
        %v5197 = vunpack.c.l.b16 %v5168
        %v5198 = vunpack.c.l.b16 %v5169
        %v5199 = vpack.c.b16 %v5192, %v5191
        %v5200 = vpack.c.b16 %v5194, %v5193
        %v5201 = vpack.c.b16 %v5196, %v5195
        %v5202 = vpack.c.b16 %v5198, %v5197
        %v5208 = vsel %vm4802, %v5182, 0
        %v5211 = vsel %vm4802, %v5181, 0
        %5213 = vmatpush.bf16.msra.mxu0 0
        %5214 = vmatpush.bf16.msra.mxu0 0
        %5215 = vmatpush.bf16.msra.mxu0 0
        %5216 = vmatpush.bf16.msra.mxu0 0
        %5217 = vmatpush.bf16.msra.mxu0 %v5202
        %5218 = vmatpush.bf16.msra.mxu0 %v5201
        %5219 = vmatpush.bf16.msra.mxu0 %v5200
        %5220 = vmatpush.bf16.msra.mxu0 %v5199
        %5221 = vmatmul.bf16.gmra.mxu0 %v5208
        %v5222 = vpop.f32.mrf.mxu0
        %v5223 = vadd.f32 0.0, %v5222
        %v5224 = vpop.f32.mrf.mxu0
        %v5225 = vadd.f32 0.0, %v5224
        %5226 = vmatmul.bf16.gmra.mxu0 %v5211
        %v5227 = vpop.f32.mrf.mxu0
        %v5228 = vadd.f32 0.0, %v5227
        %v5229 = vpop.f32.mrf.mxu0
        %5230 = vdwg.mxu0
        %v5231 = vadd.f32 %v5154, %v5223
        %v5232 = vadd.f32 %v5155, %v5225
        %v5233 = vadd.f32 %v5156, %v5228
        %v5234 = vld [vmem:[#allocation3 + $0x10] sm:$0x7]
        %s5235 = scalar_lea.vmem %s5, 224
        %v5236 = vld [vmem:[%s5235] sm:$0xf]
        %v5237 = vld [vmem:[%s5235 + $0x4] sm:$0xf]
        %v5238 = vld [vmem:[%s5235 + $0x8] sm:$0xf]
        %v5239 = vld [vmem:[%s5235 + $0xc] sm:$0xf]
        %v5240 = vld [vmem:[%s5235 + $0x10] sm:$0xf]
        %v5241 = vld [vmem:[%s5235 + $0x14] sm:$0xf]
        %v5242 = vld [vmem:[%s5235 + $0x18] sm:$0xf]
        %v5243 = vld [vmem:[%s5235 + $0x1c] sm:$0xf]
        %v5245 = vunpack.c.l.b16 %v5234
        %v5246 = vpack.c.b16 %v5245, %v5176
        %v5248 = vshrl.u32 %v5178, 16
        %v5250 = vrot.slane %v5248, 2
        %v5251 = vshll.u32 %v5178, 16
        %v5253 = vrot.slane %v5251, 3
        %v5254 = vor.u32 %v5250, %v5253
        %v5256 = vshrl.u32 %v5246, 16
        %v5258 = vrot.slane %v5256, 2
        %v5259 = vshll.u32 %v5246, 16
        %v5261 = vrot.slane %v5259, 3
        %v5262 = vor.u32 %v5258, %v5261
        %v5263 = vsel %vm2603, %v5254, %v5262
        %v5272 = vunpack.c.l.b16 %v5236
        %v5273 = vunpack.c.l.b16 %v5237
        %v5274 = vunpack.c.l.b16 %v5238
        %v5275 = vunpack.c.l.b16 %v5239
        %v5276 = vunpack.c.l.b16 %v5240
        %v5277 = vunpack.c.l.b16 %v5241
        %v5278 = vunpack.c.l.b16 %v5242
        %v5279 = vunpack.c.l.b16 %v5243
        %v5280 = vpack.c.b16 %v5273, %v5272
        %v5281 = vpack.c.b16 %v5275, %v5274
        %v5282 = vpack.c.b16 %v5277, %v5276
        %v5283 = vpack.c.b16 %v5279, %v5278
        %v5289 = vsel %vm4802, %v5263, 0
        %v5292 = vsel %vm4802, %v5262, 0
        %5294 = vmatpush.bf16.msra.mxu0 0
        %5295 = vmatpush.bf16.msra.mxu0 0
        %5296 = vmatpush.bf16.msra.mxu0 0
        %5297 = vmatpush.bf16.msra.mxu0 0
        %5298 = vmatpush.bf16.msra.mxu0 %v5283
        %5299 = vmatpush.bf16.msra.mxu0 %v5282
        %5300 = vmatpush.bf16.msra.mxu0 %v5281
        %5301 = vmatpush.bf16.msra.mxu0 %v5280
        %5302 = vmatmul.bf16.gmra.mxu0 %v5289
        %v5303 = vpop.f32.mrf.mxu0
        %v5304 = vadd.f32 0.0, %v5303
        %v5305 = vpop.f32.mrf.mxu0
        %v5306 = vadd.f32 0.0, %v5305
        %5307 = vmatmul.bf16.gmra.mxu0 %v5292
        %v5308 = vpop.f32.mrf.mxu0
        %v5309 = vadd.f32 0.0, %v5308
        %v5310 = vpop.f32.mrf.mxu0
        %5311 = vdwg.mxu0
        %v5312 = vadd.f32 %v5231, %v5304
        %v5313 = vadd.f32 %v5232, %v5306
        %v5314 = vadd.f32 %v5233, %v5309
        %v5315 = vld [vmem:[#allocation3 + $0x4] sm:$0x8]
        %s5316 = scalar_lea.vmem %s5, 256
        %v5317 = vld [vmem:[%s5316] sm:$0xf]
        %v5318 = vld [vmem:[%s5316 + $0x4] sm:$0xf]
        %v5319 = vld [vmem:[%s5316 + $0x8] sm:$0xf]
        %v5320 = vld [vmem:[%s5316 + $0xc] sm:$0xf]
        %v5321 = vld [vmem:[%s5316 + $0x10] sm:$0xf]
        %v5322 = vld [vmem:[%s5316 + $0x14] sm:$0xf]
        %v5323 = vld [vmem:[%s5316 + $0x18] sm:$0xf]
        %v5324 = vld [vmem:[%s5316 + $0x1c] sm:$0xf]
        %v5326 = vunpack.c.l.b16 %v5315
        %v5327 = vpack.c.b16 %v5175, %v5326
        %v5328 = vrot.slane %v5327, 3
        %v5329 = vrot.slane %v5246, 3
        %v5330 = vsel %vm2972, %v5328, %v5329
        %v5339 = vunpack.c.l.b16 %v5317
        %v5340 = vunpack.c.l.b16 %v5318
        %v5341 = vunpack.c.l.b16 %v5319
        %v5342 = vunpack.c.l.b16 %v5320
        %v5343 = vunpack.c.l.b16 %v5321
        %v5344 = vunpack.c.l.b16 %v5322
        %v5345 = vunpack.c.l.b16 %v5323
        %v5346 = vunpack.c.l.b16 %v5324
        %v5347 = vpack.c.b16 %v5340, %v5339
        %v5348 = vpack.c.b16 %v5342, %v5341
        %v5349 = vpack.c.b16 %v5344, %v5343
        %v5350 = vpack.c.b16 %v5346, %v5345
        %v5356 = vsel %vm4802, %v5330, 0
        %v5359 = vsel %vm4802, %v5329, 0
        %5361 = vmatpush.bf16.msra.mxu0 0
        %5362 = vmatpush.bf16.msra.mxu0 0
        %5363 = vmatpush.bf16.msra.mxu0 0
        %5364 = vmatpush.bf16.msra.mxu0 0
        %5365 = vmatpush.bf16.msra.mxu0 %v5350
        %5366 = vmatpush.bf16.msra.mxu0 %v5349
        %5367 = vmatpush.bf16.msra.mxu0 %v5348
        %5368 = vmatpush.bf16.msra.mxu0 %v5347
        %5369 = vmatmul.bf16.gmra.mxu0 %v5356
        %v5370 = vpop.f32.mrf.mxu0
        %v5371 = vadd.f32 0.0, %v5370
        %v5372 = vpop.f32.mrf.mxu0
        %v5373 = vadd.f32 0.0, %v5372
        %5374 = vmatmul.bf16.gmra.mxu0 %v5359
        %v5375 = vpop.f32.mrf.mxu0
        %v5376 = vadd.f32 0.0, %v5375
        %v5377 = vpop.f32.mrf.mxu0
        %5378 = vdwg.mxu0
        %v5379 = vadd.f32 %v5312, %v5371
        %v5380 = vadd.f32 %v5313, %v5373
        %v5381 = vadd.f32 %v5314, %v5376
        %v5382 = vld [vmem:[%s6] sm:$0x7]
        %v5383 = vperm.slane %v5382, 0
        %v5384 = vadd.f32 %v5379, %v5383
        %v5385 = vadd.f32 %v5380, %v5383
        %v5386 = vadd.f32 %v5381, %v5383
        %v5387 = vmax.f32 %v5384, 0.0
        %v5388 = vmax.f32 %v5385, 0.0
        %v5389 = vmax.f32 %v5386, 0.0
        %v5390 = vperm.slane %v5382, 1
        %v5391 = vmul.f32 %v5387, %v5390
        %v5392 = vmul.f32 %v5388, %v5390
        %v5393 = vmul.f32 %v5389, %v5390
        %v5394 = vperm.slane %v5382, 2
        %v5395 = vadd.f32 %v5391, %v5394
        %v5396 = vadd.f32 %v5392, %v5394
        %v5397 = vadd.f32 %v5393, %v5394
        %v5400 = vrot.slane %v5395, 6
        %v5401 = vrot.slane %v5396, 6
        %v5402 = vsel %vm793, %v5400, %v5401
        %v5404 = vmax.f32 %v5395, %v5402
        %5405 = vst [vmem:[#allocation7 - $0x1] sm:$0x1e] %v5404
        %v5407 = vrot.slane %v5397, 6
        %v5409 = vmax.f32 %v5396, %v5407
        %v5410 = vmax.f32 %v5397, %v5407
        %5411 = vst [vmem:[#allocation7 - $0x1] sm:$0xe0] %v5409
        %5412 = vst [vmem:[#allocation7 + $0x7] sm:$0x1] %v5410
        %v5413 = vld [vmem:[#allocation7] ss:$2 sm:$0xf]
        %s5414 = scalar_lea.vmem [#allocation7], 1
        %v5415 = vld [vmem:[%s5414] ss:$2 sm:$0xf]
        %v5416 = vmax.f32 %v5413, %v5415
        %5417 = vst [vmem:[#allocation4] sm:$0xf] 0
        %5418 = vst [vmem:[#allocation4 + $0x4] sm:$0xf] 0
        %5419 = vst [vmem:[#allocation4 + $0x8] sm:$0x1] 0
        %v5420 = vpack.c.bf16 %v5416, %v5416
        %v5422 = vrot.slane %v5420, 5
        %5424 = vst [vmem:[#allocation4] sm:$0x8] %v5422
        %5425 = vst [vmem:[#allocation4 + $0x4] sm:$0x2] %v5420
        %v5426 = vld [vmem:[#allocation4] sm:$0xf]
        %v5427 = vld [vmem:[%s7] sm:$0xf]
        %v5428 = vld [vmem:[%s7 + $0x4] sm:$0xf]
        %v5429 = vld [vmem:[%s7 + $0x8] sm:$0xf]
        %v5430 = vld [vmem:[%s7 + $0xc] sm:$0xf]
        %v5431 = vld [vmem:[%s7 + $0x10] sm:$0xf]
        %v5432 = vld [vmem:[%s7 + $0x14] sm:$0xf]
        %v5433 = vld [vmem:[%s7 + $0x18] sm:$0xf]
        %v5434 = vld [vmem:[%s7 + $0x1c] sm:$0xf]
        %v5435 = vld [vmem:[%s7 + $0x20] sm:$0xf]
        %v5436 = vld [vmem:[%s7 + $0x24] sm:$0xf]
        %v5437 = vld [vmem:[%s7 + $0x28] sm:$0xf]
        %v5438 = vld [vmem:[%s7 + $0x2c] sm:$0xf]
        %v5439 = vld [vmem:[%s7 + $0x30] sm:$0xf]
        %v5440 = vld [vmem:[%s7 + $0x34] sm:$0xf]
        %v5441 = vld [vmem:[%s7 + $0x38] sm:$0xf]
        %v5442 = vld [vmem:[%s7 + $0x3c] sm:$0xf]
        %v5443 = vld [vmem:[#allocation4 + $0x4] sm:$0x1]
        %s5444 = scalar_lea.vmem %s7, 64
        %v5445 = vld [vmem:[%s5444] sm:$0xf]
        %v5446 = vld [vmem:[%s5444 + $0x4] sm:$0xf]
        %v5447 = vld [vmem:[%s5444 + $0x8] sm:$0xf]
        %v5448 = vld [vmem:[%s5444 + $0xc] sm:$0xf]
        %v5449 = vld [vmem:[%s5444 + $0x10] sm:$0xf]
        %v5450 = vld [vmem:[%s5444 + $0x14] sm:$0xf]
        %v5451 = vld [vmem:[%s5444 + $0x18] sm:$0xf]
        %v5452 = vld [vmem:[%s5444 + $0x1c] sm:$0xf]
        %v5453 = vld [vmem:[%s5444 + $0x20] sm:$0xf]
        %v5454 = vld [vmem:[%s5444 + $0x24] sm:$0xf]
        %v5455 = vld [vmem:[%s5444 + $0x28] sm:$0xf]
        %v5456 = vld [vmem:[%s5444 + $0x2c] sm:$0xf]
        %v5457 = vld [vmem:[%s5444 + $0x30] sm:$0xf]
        %v5458 = vld [vmem:[%s5444 + $0x34] sm:$0xf]
        %v5459 = vld [vmem:[%s5444 + $0x38] sm:$0xf]
        %v5460 = vld [vmem:[%s5444 + $0x3c] sm:$0xf]
        %v5463 = vunpack.c.l.b16 %v5426
        %v5464 = vunpack.c.l.b16 %v5443
        %v5465 = vpack.c.b16 %v5464, %v5463
        %v5467 = vshrl.u32 %v5465, 16
        %v5469 = vshll.u32 %v5465, 16
        %v5471 = vrot.slane %v5469, 1
        %v5472 = vor.u32 %v5467, %v5471
        %v5490 = vunpack.c.l.b16 %v5445
        %v5491 = vunpack.c.l.b16 %v5446
        %v5492 = vunpack.c.l.b16 %v5447
        %v5493 = vunpack.c.l.b16 %v5448
        %v5494 = vunpack.c.l.b16 %v5449
        %v5495 = vunpack.c.l.b16 %v5450
        %v5496 = vunpack.c.l.b16 %v5451
        %v5497 = vunpack.c.l.b16 %v5452
        %v5498 = vunpack.c.l.b16 %v5453
        %v5499 = vunpack.c.l.b16 %v5454
        %v5500 = vunpack.c.l.b16 %v5455
        %v5501 = vunpack.c.l.b16 %v5456
        %v5502 = vunpack.c.l.b16 %v5457
        %v5503 = vunpack.c.l.b16 %v5458
        %v5504 = vunpack.c.l.b16 %v5459
        %v5505 = vunpack.c.l.b16 %v5460
        %v5506 = vpack.c.b16 %v5491, %v5490
        %v5507 = vpack.c.b16 %v5493, %v5492
        %v5508 = vpack.c.b16 %v5495, %v5494
        %v5509 = vpack.c.b16 %v5497, %v5496
        %v5510 = vpack.c.b16 %v5499, %v5498
        %v5511 = vpack.c.b16 %v5501, %v5500
        %v5512 = vpack.c.b16 %v5503, %v5502
        %v5513 = vpack.c.b16 %v5505, %v5504
        %5522 = vmatpush.bf16.msra.mxu0 %v5513
        %5523 = vmatpush.bf16.msra.mxu0 %v5512
        %5524 = vmatpush.bf16.msra.mxu0 %v5511
        %5525 = vmatpush.bf16.msra.mxu0 %v5510
        %5526 = vmatpush.bf16.msra.mxu0 %v5509
        %5527 = vmatpush.bf16.msra.mxu0 %v5508
        %5528 = vmatpush.bf16.msra.mxu0 %v5507
        %5529 = vmatpush.bf16.msra.mxu0 %v5506
        %5530 = vmatmul.bf16.gmra.mxu0 %v5472
        %v5531 = vpop.f32.mrf.mxu0
        %v5532 = vadd.f32 0.0, %v5531
        %v5533 = vpop.f32.mrf.mxu0
        %5534 = vdwg.mxu0
        %v5551 = vunpack.c.l.b16 %v5427
        %v5552 = vunpack.c.l.b16 %v5428
        %v5553 = vunpack.c.l.b16 %v5429
        %v5554 = vunpack.c.l.b16 %v5430
        %v5555 = vunpack.c.l.b16 %v5431
        %v5556 = vunpack.c.l.b16 %v5432
        %v5557 = vunpack.c.l.b16 %v5433
        %v5558 = vunpack.c.l.b16 %v5434
        %v5559 = vunpack.c.l.b16 %v5435
        %v5560 = vunpack.c.l.b16 %v5436
        %v5561 = vunpack.c.l.b16 %v5437
        %v5562 = vunpack.c.l.b16 %v5438
        %v5563 = vunpack.c.l.b16 %v5439
        %v5564 = vunpack.c.l.b16 %v5440
        %v5565 = vunpack.c.l.b16 %v5441
        %v5566 = vunpack.c.l.b16 %v5442
        %v5567 = vpack.c.b16 %v5552, %v5551
        %v5568 = vpack.c.b16 %v5554, %v5553
        %v5569 = vpack.c.b16 %v5556, %v5555
        %v5570 = vpack.c.b16 %v5558, %v5557
        %v5571 = vpack.c.b16 %v5560, %v5559
        %v5572 = vpack.c.b16 %v5562, %v5561
        %v5573 = vpack.c.b16 %v5564, %v5563
        %v5574 = vpack.c.b16 %v5566, %v5565
        %5583 = vmatpush.bf16.msra.mxu0 %v5574
        %5584 = vmatpush.bf16.msra.mxu0 %v5573
        %5585 = vmatpush.bf16.msra.mxu0 %v5572
        %5586 = vmatpush.bf16.msra.mxu0 %v5571
        %5587 = vmatpush.bf16.msra.mxu0 %v5570
        %5588 = vmatpush.bf16.msra.mxu0 %v5569
        %5589 = vmatpush.bf16.msra.mxu0 %v5568
        %5590 = vmatpush.bf16.msra.mxu0 %v5567
        %5591 = vmatmul.bf16.gmra.mxu0 %v5426
        %v5592 = vpop.f32.mrf.mxu0
        %v5593 = vadd.f32 %v5532, %v5592
        %v5594 = vpop.f32.mrf.mxu0
        %5595 = vdwg.mxu0
        %v5596 = vld [vmem:[#allocation4] sm:$0xe]
        %s5597 = scalar_lea.vmem %s7, 128
        %v5598 = vld [vmem:[%s5597] sm:$0xf]
        %v5599 = vld [vmem:[%s5597 + $0x4] sm:$0xf]
        %v5600 = vld [vmem:[%s5597 + $0x8] sm:$0xf]
        %v5601 = vld [vmem:[%s5597 + $0xc] sm:$0xf]
        %v5602 = vld [vmem:[%s5597 + $0x10] sm:$0xf]
        %v5603 = vld [vmem:[%s5597 + $0x14] sm:$0xf]
        %v5604 = vld [vmem:[%s5597 + $0x18] sm:$0xf]
        %v5605 = vld [vmem:[%s5597 + $0x1c] sm:$0xf]
        %v5606 = vld [vmem:[%s5597 + $0x20] sm:$0xf]
        %v5607 = vld [vmem:[%s5597 + $0x24] sm:$0xf]
        %v5608 = vld [vmem:[%s5597 + $0x28] sm:$0xf]
        %v5609 = vld [vmem:[%s5597 + $0x2c] sm:$0xf]
        %v5610 = vld [vmem:[%s5597 + $0x30] sm:$0xf]
        %v5611 = vld [vmem:[%s5597 + $0x34] sm:$0xf]
        %v5612 = vld [vmem:[%s5597 + $0x38] sm:$0xf]
        %v5613 = vld [vmem:[%s5597 + $0x3c] sm:$0xf]
        %v5615 = vunpack.c.l.b16 %v5596
        %v5616 = vpack.c.b16 %v5464, %v5615
        %v5617 = vrot.slane %v5616, 1
        %v5635 = vunpack.c.l.b16 %v5598
        %v5636 = vunpack.c.l.b16 %v5599
        %v5637 = vunpack.c.l.b16 %v5600
        %v5638 = vunpack.c.l.b16 %v5601
        %v5639 = vunpack.c.l.b16 %v5602
        %v5640 = vunpack.c.l.b16 %v5603
        %v5641 = vunpack.c.l.b16 %v5604
        %v5642 = vunpack.c.l.b16 %v5605
        %v5643 = vunpack.c.l.b16 %v5606
        %v5644 = vunpack.c.l.b16 %v5607
        %v5645 = vunpack.c.l.b16 %v5608
        %v5646 = vunpack.c.l.b16 %v5609
        %v5647 = vunpack.c.l.b16 %v5610
        %v5648 = vunpack.c.l.b16 %v5611
        %v5649 = vunpack.c.l.b16 %v5612
        %v5650 = vunpack.c.l.b16 %v5613
        %v5651 = vpack.c.b16 %v5636, %v5635
        %v5652 = vpack.c.b16 %v5638, %v5637
        %v5653 = vpack.c.b16 %v5640, %v5639
        %v5654 = vpack.c.b16 %v5642, %v5641
        %v5655 = vpack.c.b16 %v5644, %v5643
        %v5656 = vpack.c.b16 %v5646, %v5645
        %v5657 = vpack.c.b16 %v5648, %v5647
        %v5658 = vpack.c.b16 %v5650, %v5649
        %5667 = vmatpush.bf16.msra.mxu0 %v5658
        %5668 = vmatpush.bf16.msra.mxu0 %v5657
        %5669 = vmatpush.bf16.msra.mxu0 %v5656
        %5670 = vmatpush.bf16.msra.mxu0 %v5655
        %5671 = vmatpush.bf16.msra.mxu0 %v5654
        %5672 = vmatpush.bf16.msra.mxu0 %v5653
        %5673 = vmatpush.bf16.msra.mxu0 %v5652
        %5674 = vmatpush.bf16.msra.mxu0 %v5651
        %5675 = vmatmul.bf16.gmra.mxu0 %v5617
        %v5676 = vpop.f32.mrf.mxu0
        %v5677 = vadd.f32 0.0, %v5676
        %v5678 = vpop.f32.mrf.mxu0
        %5679 = vdwg.mxu0
        %v5680 = vadd.f32 %v5593, %v5677
        %v5681 = vld [vmem:[#allocation4] sm:$0xc]
        %v5682 = vld [vmem:[#allocation4 + $0x4] sm:$0x3]
        %s5683 = scalar_lea.vmem %s7, 192
        %v5684 = vld [vmem:[%s5683] sm:$0xf]
        %v5685 = vld [vmem:[%s5683 + $0x4] sm:$0xf]
        %v5686 = vld [vmem:[%s5683 + $0x8] sm:$0xf]
        %v5687 = vld [vmem:[%s5683 + $0xc] sm:$0xf]
        %v5688 = vld [vmem:[%s5683 + $0x10] sm:$0xf]
        %v5689 = vld [vmem:[%s5683 + $0x14] sm:$0xf]
        %v5690 = vld [vmem:[%s5683 + $0x18] sm:$0xf]
        %v5691 = vld [vmem:[%s5683 + $0x1c] sm:$0xf]
        %v5692 = vld [vmem:[%s5683 + $0x20] sm:$0xf]
        %v5693 = vld [vmem:[%s5683 + $0x24] sm:$0xf]
        %v5694 = vld [vmem:[%s5683 + $0x28] sm:$0xf]
        %v5695 = vld [vmem:[%s5683 + $0x2c] sm:$0xf]
        %v5696 = vld [vmem:[%s5683 + $0x30] sm:$0xf]
        %v5697 = vld [vmem:[%s5683 + $0x34] sm:$0xf]
        %v5698 = vld [vmem:[%s5683 + $0x38] sm:$0xf]
        %v5699 = vld [vmem:[%s5683 + $0x3c] sm:$0xf]
        %v5702 = vunpack.c.l.b16 %v5681
        %v5703 = vunpack.c.l.b16 %v5682
        %v5704 = vpack.c.b16 %v5703, %v5702
        %v5705 = vrot.slane %v5704, 2
        %v5723 = vunpack.c.l.b16 %v5684
        %v5724 = vunpack.c.l.b16 %v5685
        %v5725 = vunpack.c.l.b16 %v5686
        %v5726 = vunpack.c.l.b16 %v5687
        %v5727 = vunpack.c.l.b16 %v5688
        %v5728 = vunpack.c.l.b16 %v5689
        %v5729 = vunpack.c.l.b16 %v5690
        %v5730 = vunpack.c.l.b16 %v5691
        %v5731 = vunpack.c.l.b16 %v5692
        %v5732 = vunpack.c.l.b16 %v5693
        %v5733 = vunpack.c.l.b16 %v5694
        %v5734 = vunpack.c.l.b16 %v5695
        %v5735 = vunpack.c.l.b16 %v5696
        %v5736 = vunpack.c.l.b16 %v5697
        %v5737 = vunpack.c.l.b16 %v5698
        %v5738 = vunpack.c.l.b16 %v5699
        %v5739 = vpack.c.b16 %v5724, %v5723
        %v5740 = vpack.c.b16 %v5726, %v5725
        %v5741 = vpack.c.b16 %v5728, %v5727
        %v5742 = vpack.c.b16 %v5730, %v5729
        %v5743 = vpack.c.b16 %v5732, %v5731
        %v5744 = vpack.c.b16 %v5734, %v5733
        %v5745 = vpack.c.b16 %v5736, %v5735
        %v5746 = vpack.c.b16 %v5738, %v5737
        %5755 = vmatpush.bf16.msra.mxu0 %v5746
        %5756 = vmatpush.bf16.msra.mxu0 %v5745
        %5757 = vmatpush.bf16.msra.mxu0 %v5744
        %5758 = vmatpush.bf16.msra.mxu0 %v5743
        %5759 = vmatpush.bf16.msra.mxu0 %v5742
        %5760 = vmatpush.bf16.msra.mxu0 %v5741
        %5761 = vmatpush.bf16.msra.mxu0 %v5740
        %5762 = vmatpush.bf16.msra.mxu0 %v5739
        %5763 = vmatmul.bf16.gmra.mxu0 %v5705
        %v5764 = vpop.f32.mrf.mxu0
        %v5765 = vadd.f32 0.0, %v5764
        %v5766 = vpop.f32.mrf.mxu0
        %5767 = vdwg.mxu0
        %v5768 = vadd.f32 %v5680, %v5765
        %v5769 = vld [vmem:[#allocation4 + $0x4] sm:$0x7]
        %s5770 = scalar_lea.vmem %s7, 256
        %v5771 = vld [vmem:[%s5770] sm:$0xf]
        %v5772 = vld [vmem:[%s5770 + $0x4] sm:$0xf]
        %v5773 = vld [vmem:[%s5770 + $0x8] sm:$0xf]
        %v5774 = vld [vmem:[%s5770 + $0xc] sm:$0xf]
        %v5775 = vld [vmem:[%s5770 + $0x10] sm:$0xf]
        %v5776 = vld [vmem:[%s5770 + $0x14] sm:$0xf]
        %v5777 = vld [vmem:[%s5770 + $0x18] sm:$0xf]
        %v5778 = vld [vmem:[%s5770 + $0x1c] sm:$0xf]
        %v5779 = vld [vmem:[%s5770 + $0x20] sm:$0xf]
        %v5780 = vld [vmem:[%s5770 + $0x24] sm:$0xf]
        %v5781 = vld [vmem:[%s5770 + $0x28] sm:$0xf]
        %v5782 = vld [vmem:[%s5770 + $0x2c] sm:$0xf]
        %v5783 = vld [vmem:[%s5770 + $0x30] sm:$0xf]
        %v5784 = vld [vmem:[%s5770 + $0x34] sm:$0xf]
        %v5785 = vld [vmem:[%s5770 + $0x38] sm:$0xf]
        %v5786 = vld [vmem:[%s5770 + $0x3c] sm:$0xf]
        %v5788 = vunpack.c.l.b16 %v5769
        %v5789 = vpack.c.b16 %v5788, %v5702
        %v5791 = vshrl.u32 %v5789, 16
        %v5793 = vrot.slane %v5791, 2
        %v5794 = vshll.u32 %v5789, 16
        %v5796 = vrot.slane %v5794, 3
        %v5797 = vor.u32 %v5793, %v5796
        %v5815 = vunpack.c.l.b16 %v5771
        %v5816 = vunpack.c.l.b16 %v5772
        %v5817 = vunpack.c.l.b16 %v5773
        %v5818 = vunpack.c.l.b16 %v5774
        %v5819 = vunpack.c.l.b16 %v5775
        %v5820 = vunpack.c.l.b16 %v5776
        %v5821 = vunpack.c.l.b16 %v5777
        %v5822 = vunpack.c.l.b16 %v5778
        %v5823 = vunpack.c.l.b16 %v5779
        %v5824 = vunpack.c.l.b16 %v5780
        %v5825 = vunpack.c.l.b16 %v5781
        %v5826 = vunpack.c.l.b16 %v5782
        %v5827 = vunpack.c.l.b16 %v5783
        %v5828 = vunpack.c.l.b16 %v5784
        %v5829 = vunpack.c.l.b16 %v5785
        %v5830 = vunpack.c.l.b16 %v5786
        %v5831 = vpack.c.b16 %v5816, %v5815
        %v5832 = vpack.c.b16 %v5818, %v5817
        %v5833 = vpack.c.b16 %v5820, %v5819
        %v5834 = vpack.c.b16 %v5822, %v5821
        %v5835 = vpack.c.b16 %v5824, %v5823
        %v5836 = vpack.c.b16 %v5826, %v5825
        %v5837 = vpack.c.b16 %v5828, %v5827
        %v5838 = vpack.c.b16 %v5830, %v5829
        %5847 = vmatpush.bf16.msra.mxu0 %v5838
        %5848 = vmatpush.bf16.msra.mxu0 %v5837
        %5849 = vmatpush.bf16.msra.mxu0 %v5836
        %5850 = vmatpush.bf16.msra.mxu0 %v5835
        %5851 = vmatpush.bf16.msra.mxu0 %v5834
        %5852 = vmatpush.bf16.msra.mxu0 %v5833
        %5853 = vmatpush.bf16.msra.mxu0 %v5832
        %5854 = vmatpush.bf16.msra.mxu0 %v5831
        %5855 = vmatmul.bf16.gmra.mxu0 %v5797
        %v5856 = vpop.f32.mrf.mxu0
        %v5857 = vadd.f32 0.0, %v5856
        %v5858 = vpop.f32.mrf.mxu0
        %5859 = vdwg.mxu0
        %v5860 = vadd.f32 %v5768, %v5857
        %v5861 = vld [vmem:[#allocation4] sm:$0x8]
        %s5862 = scalar_lea.vmem %s7, 320
        %v5863 = vld [vmem:[%s5862] sm:$0xf]
        %v5864 = vld [vmem:[%s5862 + $0x4] sm:$0xf]
        %v5865 = vld [vmem:[%s5862 + $0x8] sm:$0xf]
        %v5866 = vld [vmem:[%s5862 + $0xc] sm:$0xf]
        %v5867 = vld [vmem:[%s5862 + $0x10] sm:$0xf]
        %v5868 = vld [vmem:[%s5862 + $0x14] sm:$0xf]
        %v5869 = vld [vmem:[%s5862 + $0x18] sm:$0xf]
        %v5870 = vld [vmem:[%s5862 + $0x1c] sm:$0xf]
        %v5871 = vld [vmem:[%s5862 + $0x20] sm:$0xf]
        %v5872 = vld [vmem:[%s5862 + $0x24] sm:$0xf]
        %v5873 = vld [vmem:[%s5862 + $0x28] sm:$0xf]
        %v5874 = vld [vmem:[%s5862 + $0x2c] sm:$0xf]
        %v5875 = vld [vmem:[%s5862 + $0x30] sm:$0xf]
        %v5876 = vld [vmem:[%s5862 + $0x34] sm:$0xf]
        %v5877 = vld [vmem:[%s5862 + $0x38] sm:$0xf]
        %v5878 = vld [vmem:[%s5862 + $0x3c] sm:$0xf]
        %v5880 = vunpack.c.l.b16 %v5861
        %v5881 = vpack.c.b16 %v5788, %v5880
        %v5882 = vrot.slane %v5881, 3
        %v5900 = vunpack.c.l.b16 %v5863
        %v5901 = vunpack.c.l.b16 %v5864
        %v5902 = vunpack.c.l.b16 %v5865
        %v5903 = vunpack.c.l.b16 %v5866
        %v5904 = vunpack.c.l.b16 %v5867
        %v5905 = vunpack.c.l.b16 %v5868
        %v5906 = vunpack.c.l.b16 %v5869
        %v5907 = vunpack.c.l.b16 %v5870
        %v5908 = vunpack.c.l.b16 %v5871
        %v5909 = vunpack.c.l.b16 %v5872
        %v5910 = vunpack.c.l.b16 %v5873
        %v5911 = vunpack.c.l.b16 %v5874
        %v5912 = vunpack.c.l.b16 %v5875
        %v5913 = vunpack.c.l.b16 %v5876
        %v5914 = vunpack.c.l.b16 %v5877
        %v5915 = vunpack.c.l.b16 %v5878
        %v5916 = vpack.c.b16 %v5901, %v5900
        %v5917 = vpack.c.b16 %v5903, %v5902
        %v5918 = vpack.c.b16 %v5905, %v5904
        %v5919 = vpack.c.b16 %v5907, %v5906
        %v5920 = vpack.c.b16 %v5909, %v5908
        %v5921 = vpack.c.b16 %v5911, %v5910
        %v5922 = vpack.c.b16 %v5913, %v5912
        %v5923 = vpack.c.b16 %v5915, %v5914
        %5932 = vmatpush.bf16.msra.mxu0 %v5923
        %5933 = vmatpush.bf16.msra.mxu0 %v5922
        %5934 = vmatpush.bf16.msra.mxu0 %v5921
        %5935 = vmatpush.bf16.msra.mxu0 %v5920
        %5936 = vmatpush.bf16.msra.mxu0 %v5919
        %5937 = vmatpush.bf16.msra.mxu0 %v5918
        %5938 = vmatpush.bf16.msra.mxu0 %v5917
        %5939 = vmatpush.bf16.msra.mxu0 %v5916
        %5940 = vmatmul.bf16.gmra.mxu0 %v5882
        %v5941 = vpop.f32.mrf.mxu0
        %v5942 = vadd.f32 0.0, %v5941
        %v5943 = vpop.f32.mrf.mxu0
        %5944 = vdwg.mxu0
        %v5945 = vadd.f32 %v5860, %v5942
        %v5946 = vld [vmem:[#allocation4 + $0x4] sm:$0xf]
        %s5947 = scalar_lea.vmem %s7, 384
        %v5948 = vld [vmem:[%s5947] sm:$0xf]
        %v5949 = vld [vmem:[%s5947 + $0x4] sm:$0xf]
        %v5950 = vld [vmem:[%s5947 + $0x8] sm:$0xf]
        %v5951 = vld [vmem:[%s5947 + $0xc] sm:$0xf]
        %v5952 = vld [vmem:[%s5947 + $0x10] sm:$0xf]
        %v5953 = vld [vmem:[%s5947 + $0x14] sm:$0xf]
        %v5954 = vld [vmem:[%s5947 + $0x18] sm:$0xf]
        %v5955 = vld [vmem:[%s5947 + $0x1c] sm:$0xf]
        %v5956 = vld [vmem:[%s5947 + $0x20] sm:$0xf]
        %v5957 = vld [vmem:[%s5947 + $0x24] sm:$0xf]
        %v5958 = vld [vmem:[%s5947 + $0x28] sm:$0xf]
        %v5959 = vld [vmem:[%s5947 + $0x2c] sm:$0xf]
        %v5960 = vld [vmem:[%s5947 + $0x30] sm:$0xf]
        %v5961 = vld [vmem:[%s5947 + $0x34] sm:$0xf]
        %v5962 = vld [vmem:[%s5947 + $0x38] sm:$0xf]
        %v5963 = vld [vmem:[%s5947 + $0x3c] sm:$0xf]
        %v5980 = vunpack.c.l.b16 %v5948
        %v5981 = vunpack.c.l.b16 %v5949
        %v5982 = vunpack.c.l.b16 %v5950
        %v5983 = vunpack.c.l.b16 %v5951
        %v5984 = vunpack.c.l.b16 %v5952
        %v5985 = vunpack.c.l.b16 %v5953
        %v5986 = vunpack.c.l.b16 %v5954
        %v5987 = vunpack.c.l.b16 %v5955
        %v5988 = vunpack.c.l.b16 %v5956
        %v5989 = vunpack.c.l.b16 %v5957
        %v5990 = vunpack.c.l.b16 %v5958
        %v5991 = vunpack.c.l.b16 %v5959
        %v5992 = vunpack.c.l.b16 %v5960
        %v5993 = vunpack.c.l.b16 %v5961
        %v5994 = vunpack.c.l.b16 %v5962
        %v5995 = vunpack.c.l.b16 %v5963
        %v5996 = vpack.c.b16 %v5981, %v5980
        %v5997 = vpack.c.b16 %v5983, %v5982
        %v5998 = vpack.c.b16 %v5985, %v5984
        %v5999 = vpack.c.b16 %v5987, %v5986
        %v6000 = vpack.c.b16 %v5989, %v5988
        %v6001 = vpack.c.b16 %v5991, %v5990
        %v6002 = vpack.c.b16 %v5993, %v5992
        %v6003 = vpack.c.b16 %v5995, %v5994
        %6012 = vmatpush.bf16.msra.mxu0 %v6003
        %6013 = vmatpush.bf16.msra.mxu0 %v6002
        %6014 = vmatpush.bf16.msra.mxu0 %v6001
        %6015 = vmatpush.bf16.msra.mxu0 %v6000
        %6016 = vmatpush.bf16.msra.mxu0 %v5999
        %6017 = vmatpush.bf16.msra.mxu0 %v5998
        %6018 = vmatpush.bf16.msra.mxu0 %v5997
        %6019 = vmatpush.bf16.msra.mxu0 %v5996
        %6020 = vmatmul.bf16.gmra.mxu0 %v5946
        %v6021 = vpop.f32.mrf.mxu0
        %v6022 = vadd.f32 0.0, %v6021
        %v6023 = vpop.f32.mrf.mxu0
        %6024 = vdwg.mxu0
        %v6025 = vadd.f32 %v5945, %v6022
        %v6026 = vld [vmem:[#allocation4 + $0x4] sm:$0xf]
        %v6027 = vld [vmem:[#allocation4 + $0x8] sm:$0x1]
        %s6028 = scalar_lea.vmem %s7, 448
        %v6029 = vld [vmem:[%s6028] sm:$0xf]
        %v6030 = vld [vmem:[%s6028 + $0x4] sm:$0xf]
        %v6031 = vld [vmem:[%s6028 + $0x8] sm:$0xf]
        %v6032 = vld [vmem:[%s6028 + $0xc] sm:$0xf]
        %v6033 = vld [vmem:[%s6028 + $0x10] sm:$0xf]
        %v6034 = vld [vmem:[%s6028 + $0x14] sm:$0xf]
        %v6035 = vld [vmem:[%s6028 + $0x18] sm:$0xf]
        %v6036 = vld [vmem:[%s6028 + $0x1c] sm:$0xf]
        %v6037 = vld [vmem:[%s6028 + $0x20] sm:$0xf]
        %v6038 = vld [vmem:[%s6028 + $0x24] sm:$0xf]
        %v6039 = vld [vmem:[%s6028 + $0x28] sm:$0xf]
        %v6040 = vld [vmem:[%s6028 + $0x2c] sm:$0xf]
        %v6041 = vld [vmem:[%s6028 + $0x30] sm:$0xf]
        %v6042 = vld [vmem:[%s6028 + $0x34] sm:$0xf]
        %v6043 = vld [vmem:[%s6028 + $0x38] sm:$0xf]
        %v6044 = vld [vmem:[%s6028 + $0x3c] sm:$0xf]
        %v6047 = vunpack.c.l.b16 %v6026
        %v6048 = vunpack.c.l.b16 %v6027
        %v6049 = vpack.c.b16 %v6048, %v6047
        %v6051 = vshrl.u32 %v6049, 16
        %v6053 = vshll.u32 %v6049, 16
        %v6055 = vrot.slane %v6053, 1
        %v6056 = vor.u32 %v6051, %v6055
        %v6074 = vunpack.c.l.b16 %v6029
        %v6075 = vunpack.c.l.b16 %v6030
        %v6076 = vunpack.c.l.b16 %v6031
        %v6077 = vunpack.c.l.b16 %v6032
        %v6078 = vunpack.c.l.b16 %v6033
        %v6079 = vunpack.c.l.b16 %v6034
        %v6080 = vunpack.c.l.b16 %v6035
        %v6081 = vunpack.c.l.b16 %v6036
        %v6082 = vunpack.c.l.b16 %v6037
        %v6083 = vunpack.c.l.b16 %v6038
        %v6084 = vunpack.c.l.b16 %v6039
        %v6085 = vunpack.c.l.b16 %v6040
        %v6086 = vunpack.c.l.b16 %v6041
        %v6087 = vunpack.c.l.b16 %v6042
        %v6088 = vunpack.c.l.b16 %v6043
        %v6089 = vunpack.c.l.b16 %v6044
        %v6090 = vpack.c.b16 %v6075, %v6074
        %v6091 = vpack.c.b16 %v6077, %v6076
        %v6092 = vpack.c.b16 %v6079, %v6078
        %v6093 = vpack.c.b16 %v6081, %v6080
        %v6094 = vpack.c.b16 %v6083, %v6082
        %v6095 = vpack.c.b16 %v6085, %v6084
        %v6096 = vpack.c.b16 %v6087, %v6086
        %v6097 = vpack.c.b16 %v6089, %v6088
        %6106 = vmatpush.bf16.msra.mxu0 %v6097
        %6107 = vmatpush.bf16.msra.mxu0 %v6096
        %6108 = vmatpush.bf16.msra.mxu0 %v6095
        %6109 = vmatpush.bf16.msra.mxu0 %v6094
        %6110 = vmatpush.bf16.msra.mxu0 %v6093
        %6111 = vmatpush.bf16.msra.mxu0 %v6092
        %6112 = vmatpush.bf16.msra.mxu0 %v6091
        %6113 = vmatpush.bf16.msra.mxu0 %v6090
        %6114 = vmatmul.bf16.gmra.mxu0 %v6056
        %v6115 = vpop.f32.mrf.mxu0
        %v6116 = vadd.f32 0.0, %v6115
        %v6117 = vpop.f32.mrf.mxu0
        %6118 = vdwg.mxu0
        %v6119 = vadd.f32 %v6025, %v6116
        %v6120 = vld [vmem:[#allocation4 + $0x4] sm:$0xe]
        %s6121 = scalar_lea.vmem %s7, 512
        %v6122 = vld [vmem:[%s6121] sm:$0xf]
        %v6123 = vld [vmem:[%s6121 + $0x4] sm:$0xf]
        %v6124 = vld [vmem:[%s6121 + $0x8] sm:$0xf]
        %v6125 = vld [vmem:[%s6121 + $0xc] sm:$0xf]
        %v6126 = vld [vmem:[%s6121 + $0x10] sm:$0xf]
        %v6127 = vld [vmem:[%s6121 + $0x14] sm:$0xf]
        %v6128 = vld [vmem:[%s6121 + $0x18] sm:$0xf]
        %v6129 = vld [vmem:[%s6121 + $0x1c] sm:$0xf]
        %v6130 = vld [vmem:[%s6121 + $0x20] sm:$0xf]
        %v6131 = vld [vmem:[%s6121 + $0x24] sm:$0xf]
        %v6132 = vld [vmem:[%s6121 + $0x28] sm:$0xf]
        %v6133 = vld [vmem:[%s6121 + $0x2c] sm:$0xf]
        %v6134 = vld [vmem:[%s6121 + $0x30] sm:$0xf]
        %v6135 = vld [vmem:[%s6121 + $0x34] sm:$0xf]
        %v6136 = vld [vmem:[%s6121 + $0x38] sm:$0xf]
        %v6137 = vld [vmem:[%s6121 + $0x3c] sm:$0xf]
        %v6139 = vunpack.c.l.b16 %v6120
        %v6140 = vpack.c.b16 %v6048, %v6139
        %v6141 = vrot.slane %v6140, 1
        %v6159 = vunpack.c.l.b16 %v6122
        %v6160 = vunpack.c.l.b16 %v6123
        %v6161 = vunpack.c.l.b16 %v6124
        %v6162 = vunpack.c.l.b16 %v6125
        %v6163 = vunpack.c.l.b16 %v6126
        %v6164 = vunpack.c.l.b16 %v6127
        %v6165 = vunpack.c.l.b16 %v6128
        %v6166 = vunpack.c.l.b16 %v6129
        %v6167 = vunpack.c.l.b16 %v6130
        %v6168 = vunpack.c.l.b16 %v6131
        %v6169 = vunpack.c.l.b16 %v6132
        %v6170 = vunpack.c.l.b16 %v6133
        %v6171 = vunpack.c.l.b16 %v6134
        %v6172 = vunpack.c.l.b16 %v6135
        %v6173 = vunpack.c.l.b16 %v6136
        %v6174 = vunpack.c.l.b16 %v6137
        %v6175 = vpack.c.b16 %v6160, %v6159
        %v6176 = vpack.c.b16 %v6162, %v6161
        %v6177 = vpack.c.b16 %v6164, %v6163
        %v6178 = vpack.c.b16 %v6166, %v6165
        %v6179 = vpack.c.b16 %v6168, %v6167
        %v6180 = vpack.c.b16 %v6170, %v6169
        %v6181 = vpack.c.b16 %v6172, %v6171
        %v6182 = vpack.c.b16 %v6174, %v6173
        %6191 = vmatpush.bf16.msra.mxu0 %v6182
        %6192 = vmatpush.bf16.msra.mxu0 %v6181
        %6193 = vmatpush.bf16.msra.mxu0 %v6180
        %6194 = vmatpush.bf16.msra.mxu0 %v6179
        %6195 = vmatpush.bf16.msra.mxu0 %v6178
        %6196 = vmatpush.bf16.msra.mxu0 %v6177
        %6197 = vmatpush.bf16.msra.mxu0 %v6176
        %6198 = vmatpush.bf16.msra.mxu0 %v6175
        %6199 = vmatmul.bf16.gmra.mxu0 %v6141
        %v6200 = vpop.f32.mrf.mxu0
        %v6201 = vadd.f32 0.0, %v6200
        %v6202 = vpop.f32.mrf.mxu0
        %6203 = vdwg.mxu0
        %v6204 = vadd.f32 %v6119, %v6201
        %v6205 = vld [vmem:[%s8] sm:$0x7]
        %v6206 = vperm.slane %v6205, 0
        %v6207 = vadd.f32 %v6204, %v6206
        %v6208 = vmax.f32 %v6207, 0.0
        %v6209 = vperm.slane %v6205, 1
        %v6210 = vmul.f32 %v6208, %v6209
        %v6211 = vperm.slane %v6205, 2
        %v6212 = vadd.f32 %v6210, %v6211
        %v6214 = vrot.slane %v6212, 4
        %v6216 = vmax.f32 %v6212, %v6214
        %6217 = vst [vmem:[#allocation8 - $0x1] sm:$0x6] %v6216
        %v6218 = vld [vmem:[#allocation8] ss:$2 sm:$0x1]
        %s6219 = scalar_lea.vmem [#allocation8], 1
        %v6220 = vld [vmem:[%s6219] ss:$2 sm:$0x1]
        %v6221 = vmax.f32 %v6218, %v6220
        %v6222 = vpack.c.bf16 %v6221, %v6221
        %v6223 = vld [vmem:[%s9] sm:$0xff]
        %v6224 = vld [vmem:[%s9 + $0x8] sm:$0xff]
        %v6225 = vld [vmem:[%s9 + $0x10] sm:$0xff]
        %v6226 = vld [vmem:[%s9 + $0x18] sm:$0xff]
        %v6227 = vld [vmem:[%s9 + $0x20] sm:$0xff]
        %v6228 = vld [vmem:[%s9 + $0x28] sm:$0xff]
        %v6229 = vld [vmem:[%s9 + $0x30] sm:$0xff]
        %v6230 = vld [vmem:[%s9 + $0x38] sm:$0xff]
        %v6231 = vld [vmem:[%s9 + $0x40] sm:$0xff]
        %v6232 = vld [vmem:[%s9 + $0x48] sm:$0xff]
        %v6233 = vld [vmem:[%s9 + $0x50] sm:$0xff]
        %v6234 = vld [vmem:[%s9 + $0x58] sm:$0xff]
        %v6235 = vld [vmem:[%s9 + $0x60] sm:$0xff]
        %v6236 = vld [vmem:[%s9 + $0x68] sm:$0xff]
        %v6237 = vld [vmem:[%s9 + $0x70] sm:$0xff]
        %v6238 = vld [vmem:[%s9 + $0x78] sm:$0xff]
        %v6239 = vld [vmem:[%s9 + $0x80] sm:$0xff]
        %v6240 = vld [vmem:[%s9 + $0x88] sm:$0xff]
        %v6241 = vld [vmem:[%s9 + $0x90] sm:$0xff]
        %v6242 = vld [vmem:[%s9 + $0x98] sm:$0xff]
        %v6243 = vld [vmem:[%s9 + $0xa0] sm:$0xff]
        %v6244 = vld [vmem:[%s9 + $0xa8] sm:$0xff]
        %v6245 = vld [vmem:[%s9 + $0xb0] sm:$0xff]
        %v6246 = vld [vmem:[%s9 + $0xb8] sm:$0xff]
        %v6247 = vld [vmem:[%s9 + $0xc0] sm:$0xff]
        %v6248 = vld [vmem:[%s9 + $0xc8] sm:$0xff]
        %v6249 = vld [vmem:[%s9 + $0xd0] sm:$0xff]
        %v6250 = vld [vmem:[%s9 + $0xd8] sm:$0xff]
        %v6251 = vld [vmem:[%s9 + $0xe0] sm:$0xff]
        %v6252 = vld [vmem:[%s9 + $0xe8] sm:$0xff]
        %v6253 = vld [vmem:[%s9 + $0xf0] sm:$0xff]
        %v6254 = vld [vmem:[%s9 + $0xf8] sm:$0xff]
        %v6255 = vld [vmem:[%s10] sm:$0x77]
        %v6256 = vld [vmem:[%s10 + $0x8] sm:$0x77]
        %v6289 = vunpack.c.l.b16 %v6223
        %v6290 = vunpack.c.h.b16 %v6223
        %v6291 = vunpack.c.l.b16 %v6224
        %v6292 = vunpack.c.h.b16 %v6224
        %v6293 = vunpack.c.l.b16 %v6225
        %v6294 = vunpack.c.h.b16 %v6225
        %v6295 = vunpack.c.l.b16 %v6226
        %v6296 = vunpack.c.h.b16 %v6226
        %v6297 = vunpack.c.l.b16 %v6227
        %v6298 = vunpack.c.h.b16 %v6227
        %v6299 = vunpack.c.l.b16 %v6228
        %v6300 = vunpack.c.h.b16 %v6228
        %v6301 = vunpack.c.l.b16 %v6229
        %v6302 = vunpack.c.h.b16 %v6229
        %v6303 = vunpack.c.l.b16 %v6230
        %v6304 = vunpack.c.h.b16 %v6230
        %v6305 = vunpack.c.l.b16 %v6231
        %v6306 = vunpack.c.h.b16 %v6231
        %v6307 = vunpack.c.l.b16 %v6232
        %v6308 = vunpack.c.h.b16 %v6232
        %v6309 = vunpack.c.l.b16 %v6233
        %v6310 = vunpack.c.h.b16 %v6233
        %v6311 = vunpack.c.l.b16 %v6234
        %v6312 = vunpack.c.h.b16 %v6234
        %v6313 = vunpack.c.l.b16 %v6235
        %v6314 = vunpack.c.h.b16 %v6235
        %v6315 = vunpack.c.l.b16 %v6236
        %v6316 = vunpack.c.h.b16 %v6236
        %v6317 = vunpack.c.l.b16 %v6237
        %v6318 = vunpack.c.h.b16 %v6237
        %v6319 = vunpack.c.l.b16 %v6238
        %v6320 = vunpack.c.h.b16 %v6238
        %v6321 = vunpack.c.l.b16 %v6239
        %v6322 = vunpack.c.h.b16 %v6239
        %v6323 = vunpack.c.l.b16 %v6240
        %v6324 = vunpack.c.h.b16 %v6240
        %v6325 = vunpack.c.l.b16 %v6241
        %v6326 = vunpack.c.h.b16 %v6241
        %v6327 = vunpack.c.l.b16 %v6242
        %v6328 = vunpack.c.h.b16 %v6242
        %v6329 = vunpack.c.l.b16 %v6243
        %v6330 = vunpack.c.h.b16 %v6243
        %v6331 = vunpack.c.l.b16 %v6244
        %v6332 = vunpack.c.h.b16 %v6244
        %v6333 = vunpack.c.l.b16 %v6245
        %v6334 = vunpack.c.h.b16 %v6245
        %v6335 = vunpack.c.l.b16 %v6246
        %v6336 = vunpack.c.h.b16 %v6246
        %v6337 = vunpack.c.l.b16 %v6247
        %v6338 = vunpack.c.h.b16 %v6247
        %v6339 = vunpack.c.l.b16 %v6248
        %v6340 = vunpack.c.h.b16 %v6248
        %v6341 = vunpack.c.l.b16 %v6249
        %v6342 = vunpack.c.h.b16 %v6249
        %v6343 = vunpack.c.l.b16 %v6250
        %v6344 = vunpack.c.h.b16 %v6250
        %v6345 = vunpack.c.l.b16 %v6251
        %v6346 = vunpack.c.h.b16 %v6251
        %v6347 = vunpack.c.l.b16 %v6252
        %v6348 = vunpack.c.h.b16 %v6252
        %v6349 = vunpack.c.l.b16 %v6253
        %v6350 = vunpack.c.h.b16 %v6253
        %v6351 = vunpack.c.l.b16 %v6254
        %v6352 = vunpack.c.h.b16 %v6254
        %v6353 = vpack.c.b16 %v6293, %v6289
        %v6354 = vpack.c.b16 %v6294, %v6290
        %v6355 = vpack.c.b16 %v6295, %v6291
        %v6356 = vpack.c.b16 %v6296, %v6292
        %v6357 = vpack.c.b16 %v6301, %v6297
        %v6358 = vpack.c.b16 %v6302, %v6298
        %v6359 = vpack.c.b16 %v6303, %v6299
        %v6360 = vpack.c.b16 %v6304, %v6300
        %v6361 = vpack.c.b16 %v6309, %v6305
        %v6362 = vpack.c.b16 %v6310, %v6306
        %v6363 = vpack.c.b16 %v6311, %v6307
        %v6364 = vpack.c.b16 %v6312, %v6308
        %v6365 = vpack.c.b16 %v6317, %v6313
        %v6366 = vpack.c.b16 %v6318, %v6314
        %v6367 = vpack.c.b16 %v6319, %v6315
        %v6368 = vpack.c.b16 %v6320, %v6316
        %v6369 = vpack.c.b16 %v6325, %v6321
        %v6370 = vpack.c.b16 %v6326, %v6322
        %v6371 = vpack.c.b16 %v6327, %v6323
        %v6372 = vpack.c.b16 %v6328, %v6324
        %v6373 = vpack.c.b16 %v6333, %v6329
        %v6374 = vpack.c.b16 %v6334, %v6330
        %v6375 = vpack.c.b16 %v6335, %v6331
        %v6376 = vpack.c.b16 %v6336, %v6332
        %v6377 = vpack.c.b16 %v6341, %v6337
        %v6378 = vpack.c.b16 %v6342, %v6338
        %v6379 = vpack.c.b16 %v6343, %v6339
        %v6380 = vpack.c.b16 %v6344, %v6340
        %v6381 = vpack.c.b16 %v6349, %v6345
        %v6382 = vpack.c.b16 %v6350, %v6346
        %v6383 = vpack.c.b16 %v6351, %v6347
        %v6384 = vpack.c.b16 %v6352, %v6348
        %v6419 = vperm.slane %v6255, 0
        %v6420 = vperm.slane %v6255, 4
        %v6421 = vperm.slane %v6256, 0
        %v6422 = vperm.slane %v6256, 4
        %6427 = vmatpush.bf16.msra.mxu0 %v6381
        %6428 = vmatpush.bf16.msra.mxu0 %v6377
        %6429 = vmatpush.bf16.msra.mxu0 %v6373
        %6430 = vmatpush.bf16.msra.mxu0 %v6369
        %6431 = vmatpush.bf16.msra.mxu0 %v6365
        %6432 = vmatpush.bf16.msra.mxu0 %v6361
        %6433 = vmatpush.bf16.msra.mxu0 %v6357
        %6434 = vmatpush.bf16.msra.mxu0 %v6353
        %6435 = vmatmul.bf16.gmra.mxu0 %v6222
        %v6436 = vpop.f32.mrf.mxu0
        %v6437 = vadd.f32 %v6419, %v6436
        %v6438 = vpop.f32.mrf.mxu0
        %6439 = vdwg.mxu0
        %6440 = vmatpush.bf16.msra.mxu0 %v6382
        %6441 = vmatpush.bf16.msra.mxu0 %v6378
        %6442 = vmatpush.bf16.msra.mxu0 %v6374
        %6443 = vmatpush.bf16.msra.mxu0 %v6370
        %6444 = vmatpush.bf16.msra.mxu0 %v6366
        %6445 = vmatpush.bf16.msra.mxu0 %v6362
        %6446 = vmatpush.bf16.msra.mxu0 %v6358
        %6447 = vmatpush.bf16.msra.mxu0 %v6354
        %6448 = vmatmul.bf16.gmra.mxu0 %v6222
        %v6449 = vpop.f32.mrf.mxu0
        %v6450 = vadd.f32 %v6420, %v6449
        %v6451 = vpop.f32.mrf.mxu0
        %6452 = vdwg.mxu0
        %6453 = vmatpush.bf16.msra.mxu0 %v6383
        %6454 = vmatpush.bf16.msra.mxu0 %v6379
        %6455 = vmatpush.bf16.msra.mxu0 %v6375
        %6456 = vmatpush.bf16.msra.mxu0 %v6371
        %6457 = vmatpush.bf16.msra.mxu0 %v6367
        %6458 = vmatpush.bf16.msra.mxu0 %v6363
        %6459 = vmatpush.bf16.msra.mxu0 %v6359
        %6460 = vmatpush.bf16.msra.mxu0 %v6355
        %6461 = vmatmul.bf16.gmra.mxu0 %v6222
        %v6462 = vpop.f32.mrf.mxu0
        %v6463 = vadd.f32 %v6421, %v6462
        %v6464 = vpop.f32.mrf.mxu0
        %6465 = vdwg.mxu0
        %6466 = vmatpush.bf16.msra.mxu0 %v6384
        %6467 = vmatpush.bf16.msra.mxu0 %v6380
        %6468 = vmatpush.bf16.msra.mxu0 %v6376
        %6469 = vmatpush.bf16.msra.mxu0 %v6372
        %6470 = vmatpush.bf16.msra.mxu0 %v6368
        %6471 = vmatpush.bf16.msra.mxu0 %v6364
        %6472 = vmatpush.bf16.msra.mxu0 %v6360
        %6473 = vmatpush.bf16.msra.mxu0 %v6356
        %6474 = vmatmul.bf16.gmra.mxu0 %v6222
        %v6475 = vpop.f32.mrf.mxu0
        %v6476 = vadd.f32 %v6422, %v6475
        %v6477 = vpop.f32.mrf.mxu0
        %6478 = vdwg.mxu0
        %v6479 = vmax.f32 %v6437, 0.0
        %v6480 = vmax.f32 %v6450, 0.0
        %v6481 = vmax.f32 %v6463, 0.0
        %v6482 = vmax.f32 %v6476, 0.0
        %v6483 = vperm.slane %v6255, 1
        %v6484 = vperm.slane %v6255, 5
        %v6485 = vperm.slane %v6256, 1
        %v6486 = vperm.slane %v6256, 5
        %v6491 = vmul.f32 %v6479, %v6483
        %v6492 = vmul.f32 %v6480, %v6484
        %v6493 = vmul.f32 %v6481, %v6485
        %v6494 = vmul.f32 %v6482, %v6486
        %v6495 = vperm.slane %v6255, 2
        %v6496 = vperm.slane %v6255, 6
        %v6497 = vperm.slane %v6256, 2
        %v6498 = vperm.slane %v6256, 6
        %v6503 = vadd.f32 %v6491, %v6495
        %v6504 = vadd.f32 %v6492, %v6496
        %v6505 = vadd.f32 %v6493, %v6497
        %v6506 = vadd.f32 %v6494, %v6498
        %v6507 = vpack.c.bf16 %v6503, %v6503
        %v6508 = vpack.c.bf16 %v6504, %v6504
        %v6509 = vpack.c.bf16 %v6505, %v6505
        %v6510 = vpack.c.bf16 %v6506, %v6506
        %v6511 = vld [vmem:[%s11] sm:$0xf]
        %v6512 = vld [vmem:[%s11 + $0x4] sm:$0xf]
        %v6513 = vld [vmem:[%s11 + $0x8] sm:$0xf]
        %v6514 = vld [vmem:[%s11 + $0xc] sm:$0xf]
        %v6515 = vld [vmem:[%s11 + $0x10] sm:$0xf]
        %v6516 = vld [vmem:[%s11 + $0x14] sm:$0xf]
        %v6517 = vld [vmem:[%s11 + $0x18] sm:$0xf]
        %v6518 = vld [vmem:[%s11 + $0x1c] sm:$0xf]
        %v6519 = vld [vmem:[%s11 + $0x20] sm:$0xf]
        %v6520 = vld [vmem:[%s11 + $0x24] sm:$0xf]
        %v6521 = vld [vmem:[%s11 + $0x28] sm:$0xf]
        %v6522 = vld [vmem:[%s11 + $0x2c] sm:$0xf]
        %v6523 = vld [vmem:[%s11 + $0x30] sm:$0xf]
        %v6524 = vld [vmem:[%s11 + $0x34] sm:$0xf]
        %v6525 = vld [vmem:[%s11 + $0x38] sm:$0xf]
        %v6526 = vld [vmem:[%s11 + $0x3c] sm:$0xf]
        %v6527 = vld [vmem:[%s11 + $0x40] sm:$0xf]
        %v6528 = vld [vmem:[%s11 + $0x44] sm:$0xf]
        %v6529 = vld [vmem:[%s11 + $0x48] sm:$0xf]
        %v6530 = vld [vmem:[%s11 + $0x4c] sm:$0xf]
        %v6531 = vld [vmem:[%s11 + $0x50] sm:$0xf]
        %v6532 = vld [vmem:[%s11 + $0x54] sm:$0xf]
        %v6533 = vld [vmem:[%s11 + $0x58] sm:$0xf]
        %v6534 = vld [vmem:[%s11 + $0x5c] sm:$0xf]
        %v6535 = vld [vmem:[%s11 + $0x60] sm:$0xf]
        %v6536 = vld [vmem:[%s11 + $0x64] sm:$0xf]
        %v6537 = vld [vmem:[%s11 + $0x68] sm:$0xf]
        %v6538 = vld [vmem:[%s11 + $0x6c] sm:$0xf]
        %v6539 = vld [vmem:[%s11 + $0x70] sm:$0xf]
        %v6540 = vld [vmem:[%s11 + $0x74] sm:$0xf]
        %v6541 = vld [vmem:[%s11 + $0x78] sm:$0xf]
        %v6542 = vld [vmem:[%s11 + $0x7c] sm:$0xf]
        %v6543 = vld [vmem:[%s11 + $0x80] sm:$0xf]
        %v6544 = vld [vmem:[%s11 + $0x84] sm:$0xf]
        %v6545 = vld [vmem:[%s11 + $0x88] sm:$0xf]
        %v6546 = vld [vmem:[%s11 + $0x8c] sm:$0xf]
        %v6547 = vld [vmem:[%s11 + $0x90] sm:$0xf]
        %v6548 = vld [vmem:[%s11 + $0x94] sm:$0xf]
        %v6549 = vld [vmem:[%s11 + $0x98] sm:$0xf]
        %v6550 = vld [vmem:[%s11 + $0x9c] sm:$0xf]
        %v6551 = vld [vmem:[%s11 + $0xa0] sm:$0xf]
        %v6552 = vld [vmem:[%s11 + $0xa4] sm:$0xf]
        %v6553 = vld [vmem:[%s11 + $0xa8] sm:$0xf]
        %v6554 = vld [vmem:[%s11 + $0xac] sm:$0xf]
        %v6555 = vld [vmem:[%s11 + $0xb0] sm:$0xf]
        %v6556 = vld [vmem:[%s11 + $0xb4] sm:$0xf]
        %v6557 = vld [vmem:[%s11 + $0xb8] sm:$0xf]
        %v6558 = vld [vmem:[%s11 + $0xbc] sm:$0xf]
        %v6559 = vld [vmem:[%s11 + $0xc0] sm:$0xf]
        %v6560 = vld [vmem:[%s11 + $0xc4] sm:$0xf]
        %v6561 = vld [vmem:[%s11 + $0xc8] sm:$0xf]
        %v6562 = vld [vmem:[%s11 + $0xcc] sm:$0xf]
        %v6563 = vld [vmem:[%s11 + $0xd0] sm:$0xf]
        %v6564 = vld [vmem:[%s11 + $0xd4] sm:$0xf]
        %v6565 = vld [vmem:[%s11 + $0xd8] sm:$0xf]
        %v6566 = vld [vmem:[%s11 + $0xdc] sm:$0xf]
        %v6567 = vld [vmem:[%s11 + $0xe0] sm:$0xf]
        %v6568 = vld [vmem:[%s11 + $0xe4] sm:$0xf]
        %v6569 = vld [vmem:[%s11 + $0xe8] sm:$0xf]
        %v6570 = vld [vmem:[%s11 + $0xec] sm:$0xf]
        %v6571 = vld [vmem:[%s11 + $0xf0] sm:$0xf]
        %v6572 = vld [vmem:[%s11 + $0xf4] sm:$0xf]
        %v6573 = vld [vmem:[%s11 + $0xf8] sm:$0xf]
        %v6574 = vld [vmem:[%s11 + $0xfc] sm:$0xf]
        %v6575 = vld [vmem:[%s12] sm:$0x1]
        %v6640 = vunpack.c.l.b16 %v6511
        %v6641 = vunpack.c.l.b16 %v6512
        %v6642 = vunpack.c.l.b16 %v6513
        %v6643 = vunpack.c.l.b16 %v6514
        %v6644 = vunpack.c.l.b16 %v6515
        %v6645 = vunpack.c.l.b16 %v6516
        %v6646 = vunpack.c.l.b16 %v6517
        %v6647 = vunpack.c.l.b16 %v6518
        %v6648 = vunpack.c.l.b16 %v6519
        %v6649 = vunpack.c.l.b16 %v6520
        %v6650 = vunpack.c.l.b16 %v6521
        %v6651 = vunpack.c.l.b16 %v6522
        %v6652 = vunpack.c.l.b16 %v6523
        %v6653 = vunpack.c.l.b16 %v6524
        %v6654 = vunpack.c.l.b16 %v6525
        %v6655 = vunpack.c.l.b16 %v6526
        %v6656 = vunpack.c.l.b16 %v6527
        %v6657 = vunpack.c.l.b16 %v6528
        %v6658 = vunpack.c.l.b16 %v6529
        %v6659 = vunpack.c.l.b16 %v6530
        %v6660 = vunpack.c.l.b16 %v6531
        %v6661 = vunpack.c.l.b16 %v6532
        %v6662 = vunpack.c.l.b16 %v6533
        %v6663 = vunpack.c.l.b16 %v6534
        %v6664 = vunpack.c.l.b16 %v6535
        %v6665 = vunpack.c.l.b16 %v6536
        %v6666 = vunpack.c.l.b16 %v6537
        %v6667 = vunpack.c.l.b16 %v6538
        %v6668 = vunpack.c.l.b16 %v6539
        %v6669 = vunpack.c.l.b16 %v6540
        %v6670 = vunpack.c.l.b16 %v6541
        %v6671 = vunpack.c.l.b16 %v6542
        %v6672 = vunpack.c.l.b16 %v6543
        %v6673 = vunpack.c.l.b16 %v6544
        %v6674 = vunpack.c.l.b16 %v6545
        %v6675 = vunpack.c.l.b16 %v6546
        %v6676 = vunpack.c.l.b16 %v6547
        %v6677 = vunpack.c.l.b16 %v6548
        %v6678 = vunpack.c.l.b16 %v6549
        %v6679 = vunpack.c.l.b16 %v6550
        %v6680 = vunpack.c.l.b16 %v6551
        %v6681 = vunpack.c.l.b16 %v6552
        %v6682 = vunpack.c.l.b16 %v6553
        %v6683 = vunpack.c.l.b16 %v6554
        %v6684 = vunpack.c.l.b16 %v6555
        %v6685 = vunpack.c.l.b16 %v6556
        %v6686 = vunpack.c.l.b16 %v6557
        %v6687 = vunpack.c.l.b16 %v6558
        %v6688 = vunpack.c.l.b16 %v6559
        %v6689 = vunpack.c.l.b16 %v6560
        %v6690 = vunpack.c.l.b16 %v6561
        %v6691 = vunpack.c.l.b16 %v6562
        %v6692 = vunpack.c.l.b16 %v6563
        %v6693 = vunpack.c.l.b16 %v6564
        %v6694 = vunpack.c.l.b16 %v6565
        %v6695 = vunpack.c.l.b16 %v6566
        %v6696 = vunpack.c.l.b16 %v6567
        %v6697 = vunpack.c.l.b16 %v6568
        %v6698 = vunpack.c.l.b16 %v6569
        %v6699 = vunpack.c.l.b16 %v6570
        %v6700 = vunpack.c.l.b16 %v6571
        %v6701 = vunpack.c.l.b16 %v6572
        %v6702 = vunpack.c.l.b16 %v6573
        %v6703 = vunpack.c.l.b16 %v6574
        %v6704 = vpack.c.b16 %v6641, %v6640
        %v6705 = vpack.c.b16 %v6643, %v6642
        %v6706 = vpack.c.b16 %v6645, %v6644
        %v6707 = vpack.c.b16 %v6647, %v6646
        %v6708 = vpack.c.b16 %v6649, %v6648
        %v6709 = vpack.c.b16 %v6651, %v6650
        %v6710 = vpack.c.b16 %v6653, %v6652
        %v6711 = vpack.c.b16 %v6655, %v6654
        %v6712 = vpack.c.b16 %v6657, %v6656
        %v6713 = vpack.c.b16 %v6659, %v6658
        %v6714 = vpack.c.b16 %v6661, %v6660
        %v6715 = vpack.c.b16 %v6663, %v6662
        %v6716 = vpack.c.b16 %v6665, %v6664
        %v6717 = vpack.c.b16 %v6667, %v6666
        %v6718 = vpack.c.b16 %v6669, %v6668
        %v6719 = vpack.c.b16 %v6671, %v6670
        %v6720 = vpack.c.b16 %v6673, %v6672
        %v6721 = vpack.c.b16 %v6675, %v6674
        %v6722 = vpack.c.b16 %v6677, %v6676
        %v6723 = vpack.c.b16 %v6679, %v6678
        %v6724 = vpack.c.b16 %v6681, %v6680
        %v6725 = vpack.c.b16 %v6683, %v6682
        %v6726 = vpack.c.b16 %v6685, %v6684
        %v6727 = vpack.c.b16 %v6687, %v6686
        %v6728 = vpack.c.b16 %v6689, %v6688
        %v6729 = vpack.c.b16 %v6691, %v6690
        %v6730 = vpack.c.b16 %v6693, %v6692
        %v6731 = vpack.c.b16 %v6695, %v6694
        %v6732 = vpack.c.b16 %v6697, %v6696
        %v6733 = vpack.c.b16 %v6699, %v6698
        %v6734 = vpack.c.b16 %v6701, %v6700
        %v6735 = vpack.c.b16 %v6703, %v6702
        %6768 = vmatpush.bf16.msra.mxu0 %v6711
        %6769 = vmatpush.bf16.msra.mxu0 %v6710
        %6770 = vmatpush.bf16.msra.mxu0 %v6709
        %6771 = vmatpush.bf16.msra.mxu0 %v6708
        %6772 = vmatpush.bf16.msra.mxu0 %v6707
        %6773 = vmatpush.bf16.msra.mxu0 %v6706
        %6774 = vmatpush.bf16.msra.mxu0 %v6705
        %6775 = vmatpush.bf16.msra.mxu0 %v6704
        %6776 = vmatmul.bf16.gmra.mxu0 %v6507
        %v6777 = vpop.f32.mrf.mxu0
        %v6778 = vadd.f32 %v6575, %v6777
        %v6779 = vpop.f32.mrf.mxu0
        %6780 = vdwg.mxu0
        %6781 = vmatpush.bf16.msra.mxu0 %v6719
        %6782 = vmatpush.bf16.msra.mxu0 %v6718
        %6783 = vmatpush.bf16.msra.mxu0 %v6717
        %6784 = vmatpush.bf16.msra.mxu0 %v6716
        %6785 = vmatpush.bf16.msra.mxu0 %v6715
        %6786 = vmatpush.bf16.msra.mxu0 %v6714
        %6787 = vmatpush.bf16.msra.mxu0 %v6713
        %6788 = vmatpush.bf16.msra.mxu0 %v6712
        %6789 = vmatmul.bf16.gmra.mxu0 %v6508
        %v6790 = vpop.f32.mrf.mxu0
        %v6791 = vadd.f32 %v6778, %v6790
        %v6792 = vpop.f32.mrf.mxu0
        %6793 = vdwg.mxu0
        %6794 = vmatpush.bf16.msra.mxu0 %v6727
        %6795 = vmatpush.bf16.msra.mxu0 %v6726
        %6796 = vmatpush.bf16.msra.mxu0 %v6725
        %6797 = vmatpush.bf16.msra.mxu0 %v6724
        %6798 = vmatpush.bf16.msra.mxu0 %v6723
        %6799 = vmatpush.bf16.msra.mxu0 %v6722
        %6800 = vmatpush.bf16.msra.mxu0 %v6721
        %6801 = vmatpush.bf16.msra.mxu0 %v6720
        %6802 = vmatmul.bf16.gmra.mxu0 %v6509
        %v6803 = vpop.f32.mrf.mxu0
        %v6804 = vadd.f32 %v6791, %v6803
        %v6805 = vpop.f32.mrf.mxu0
        %6806 = vdwg.mxu0
        %6807 = vmatpush.bf16.msra.mxu0 %v6735
        %6808 = vmatpush.bf16.msra.mxu0 %v6734
        %6809 = vmatpush.bf16.msra.mxu0 %v6733
        %6810 = vmatpush.bf16.msra.mxu0 %v6732
        %6811 = vmatpush.bf16.msra.mxu0 %v6731
        %6812 = vmatpush.bf16.msra.mxu0 %v6730
        %6813 = vmatpush.bf16.msra.mxu0 %v6729
        %6814 = vmatpush.bf16.msra.mxu0 %v6728
        %6815 = vmatmul.bf16.gmra.mxu0 %v6510
        %v6816 = vpop.f32.mrf.mxu0
        %v6817 = vadd.f32 %v6804, %v6816
        %v6818 = vpop.f32.mrf.mxu0
        %6819 = vdwg.mxu0
        %6820 = vst [vmem:[%s449] sm:$0x1] %v6817
        %s6821 = sand.u32 %s314, 1
        %s6822 = scalar_lea.sflag [#allocation11], %s6821
        %s6823 = sand.u32 %s314, 1
        %s6824 = scalar_lea.vmem [#allocation12], %s6823
        // Predicated region
        $region77: #{custom_model_forward.1} parent=71 // pred_check
          %p6825 = pneg %p324
        $region78: #{custom_model_forward.1} parent=71 // pred_check_branch
          %6827 = sbr.rel (%p6825) target = $region80
        $region79: #{custom_model_forward.1} parent=71 // pred_region
          %6829 = vsyncadd %s6822, 0
          %s6830 = scalar_lea.hbm %s13, %s28
          %s6832 = sshll.u32 %s6824, 4
          %s6833 = int_to_ptr.vmem [resolvable:$true] %s6832
          %s6834 = sshll.u32 %s6830, 4
          %s6835 = int_to_ptr.hbm [resolvable:$true] %s6834
          %6837 = dma.vmem_to_hbm [thread:$0]  %s6833, 16, %s6835, %s6822
        $region80: #{custom_model_forward.1} parent=71 // pred_fallthru
          _
      $region72: #{custom_model_forward.1} parent=5 // pred_fallthru
        _
      %p6838 = scmp.le.s32.totalorder 2, %s23
      // Predicated region
      $region81: #{custom_model_forward.1} parent=5 // pred_check
        %p6839 = pneg %p6838
      $region82: #{custom_model_forward.1} parent=5 // pred_check_branch
        %6841 = sbr.rel (%p6839) target = $region84
      $region83: #{custom_model_forward.1} parent=5 // pred_region
        %s6842 = ssub.s32 %s23, 2
        // Predicated region
        $region85: #{custom_model_forward.1} parent=83 // pred_check
          %p6843 = pneg %p330
        $region86: #{custom_model_forward.1} parent=83 // pred_check_branch
          %6845 = sbr.rel (%p6843) target = $region88
        $region87: #{custom_model_forward.1} parent=83 // pred_region
          %s6846 = sand.u32 %s315, 1
          %s6847 = scalar_lea.sflag [#allocation11], %s6846
          %s6848 = sand.u32 %s315, 1
          %s6849 = scalar_lea.vmem [#allocation12], %s6848
          %6851 = dma.done %s6847, 16
        $region88: #{custom_model_forward.1} parent=83 // pred_fallthru
          _
      $region84: #{custom_model_forward.1} parent=5 // pred_fallthru
        _
    $region6: #{custom_model_forward.1} parent=1 // loop_footer
      %s27 = sadd.s32 1, %s23
    $region7: #{custom_model_forward.1} parent=1 // loop_footer_branch
      %22 = sbr.rel target = $region3
    $region8: #{custom_model_forward.1} parent=1 // loop_exit
      _
    %6852 = vsyncpa [#allocation10], 1
    %s6853 = scalar_lea.sflag [#allocation10], 1
    %6854 = vsyncpa %s6853, 1
    %6855 = vsyncpa [#allocation11], 1
    %s6856 = scalar_lea.sflag [#allocation11], 1
    %6857 = vsyncpa %s6856, 1

</llo_original>
